<compile_context>
chip_gen: v5e
topology: v5e:2x2
jax: 0.10.0
libtpu: 0.0.40
codegen_flags: <defaults>
</compile_context>

<pallas_src>
import math

import jax
import jax.numpy as jnp
from jax import lax
from jax.experimental import pallas as pl
from jax.experimental.pallas import tpu as pltpu


def _round_up(x, m):
    return ((x + m - 1) // m) * m


BATCH_TILE = 16  # full bf16 sublane tile -> unmasked packing on the serial path


# ----------------------------------------------------------------------------
# Fused Pallas kernel: wavefronted GRU layers + final FC, grid over batch tiles
# ----------------------------------------------------------------------------
def make_gru_wavefront_kernel(num_layers, seq, tile, hidden):
    """Ref layout (in order):
      inputs : x2d (seq*tile, in_dim) bf16 block (per batch tile),
               per layer l: w_ih_t (in_l, 3H) bf16, w_hh_t (H, 3H) bf16,
                            b_gi (1, 3H) f32,      b_hn (1, H) f32,
               w_fc_t (H, out_pad) bf16, b_fc (1, out_pad) f32
      outputs: out (tile, out_pad) f32
      scratch: gi0_buf (seq*tile, 3H) f32   hoisted layer-0 gate activations
    """
    H = hidden
    L = num_layers

    def kernel(*refs):
        x_ref = refs[0]
        layer_refs = [refs[1 + 4 * l: 1 + 4 * (l + 1)] for l in range(L)]
        w_fc_ref = refs[1 + 4 * L]
        b_fc_ref = refs[2 + 4 * L]
        out_ref = refs[3 + 4 * L]
        gi0_buf = refs[4 + 4 * L]

        # ---- hoisted layer-0 input projection: ALL timesteps, one MXU call --
        w_ih0_ref, _, b_gi0_ref, _ = layer_refs[0]
        gi0_buf[...] = (
            jnp.dot(x_ref[...], w_ih0_ref[...],
                    preferred_element_type=jnp.float32) + b_gi0_ref[...])

        def gru_cell(l, gi, h_l):
            _, w_hh_ref, _, b_hn_ref = layer_refs[l]
            # W_hh read from the ref per step (vld overlaps MXU); not pinned
            # in vregs across the whole unrolled loop.
            gh = jnp.dot(h_l.astype(jnp.bfloat16), w_hh_ref[...],
                         preferred_element_type=jnp.float32)
            r = jax.nn.sigmoid(gi[:, 0:H] + gh[:, 0:H])
            z = jax.nn.sigmoid(gi[:, H:2 * H] + gh[:, H:2 * H])
            n = jnp.tanh(gi[:, 2 * H:] + r * (gh[:, 2 * H:] + b_hn_ref[...]))
            return (1.0 - z) * n + z * h_l

        def wave_step(s, h, prev, active):
            """Combined wavefront step: layer l handles time t = s - l.

            Every active cell depends only on `prev` (outputs from combined
            step s-1) and its own h[l], so the L matmuls of one combined step
            are independent and pipeline through the MXU.
            """
            h = list(h)
            cur = list(prev)
            for l in active:
                w_ih_ref, _, b_gi_ref, _ = layer_refs[l]
                if l == 0:
                    row = s * tile                      # t = s for layer 0
                    if not isinstance(row, int):
                        row = pl.multiple_of(row, tile)
                    gi = gi0_buf[pl.ds(row, tile), :]
                else:
                    gi = (jnp.dot(prev[l - 1], w_ih_ref[...],
                                  preferred_element_type=jnp.float32)
                          + b_gi_ref[...])
                h_new = gru_cell(l, gi, h[l])
                h[l] = h_new
                if l < L - 1:       # feed next layer (bf16: matmul input only)
                    cur[l] = h_new.astype(jnp.bfloat16)
            return h, cur

        # Recurrent state in vregs (loop carry); h0 = zeros (matches torch).
        h = [jnp.zeros((tile, H), jnp.float32) for _ in range(L)]
        prev = [jnp.zeros((tile, H), jnp.bfloat16) for _ in range(L - 1)]

        total = seq + L - 1
        if seq >= L:
            # ramp-up: layers 0..s active
            for s in range(L - 1):
                h, prev = wave_step(s, h, prev, active=range(s + 1))

            # interior: all L layers active; fori_loop bounds live ranges.
            def body(s, carry):
                h_c, prev_c = carry
                h_n, prev_n = wave_step(s, list(h_c), list(prev_c),
                                        active=range(L))
                return (tuple(h_n), tuple(prev_n))

            n_inner = seq - (L - 1)
            h_t, prev_t = lax.fori_loop(
                L - 1, seq, body, (tuple(h), tuple(prev)),
                unroll=True if n_inner <= 16 else 8)
            h, prev = list(h_t), list(prev_t)

            # ramp-down: layers s-seq+1 .. L-1 active
            for s in range(seq, total):
                h, prev = wave_step(s, h, prev, active=range(s - seq + 1, L))
        else:
            for s in range(total):
                act = [l for l in range(L) if 0 <= s - l < seq]
                h, prev = wave_step(s, h, prev, active=act)

        # ---- fused FC on the last layer's final hidden state ----------------
        # nn.Dropout(0.2) is identity at inference time.
        out_ref[...] = (
            jnp.dot(h[L - 1].astype(jnp.bfloat16), w_fc_ref[...],
                    preferred_element_type=jnp.float32) + b_fc_ref[...])

    return kernel


# ----------------------------------------------------------------------------
# Wrapper
# ----------------------------------------------------------------------------
def gru_model_forward(x, params, hidden_size, num_layers, output_size):
    """x: (batch, seq, input_size) f32  ->  (batch, output_size) f32."""
    batch, seq, in_dim = x.shape
    H = hidden_size
    tile = BATCH_TILE
    batch_p = _round_up(batch, tile)
    num_tiles = batch_p // tile
    out_pad = params["fc"]["w_t"].shape[1]          # lane-padded FC output

    # Host-side: pad batch to a full bf16 sublane tile, cast to bf16 once,
    # regroup as [tile b][time t][row i] so every per-step slice in the kernel
    # is a contiguous, tile-aligned row block.
    xp = jnp.pad(x, ((0, batch_p - batch), (0, 0), (0, 0))).astype(jnp.bfloat16)
    x2d = (xp.reshape(num_tiles, tile, seq, in_dim)
             .transpose(0, 2, 1, 3)
             .reshape(num_tiles * seq * tile, in_dim))

    inputs = [x2d]
    in_specs = [pl.BlockSpec((seq * tile, in_dim), lambda b: (b, 0))]
    for l in range(num_layers):
        p = params["gru"][l]
        d = in_dim if l == 0 else H
        inputs += [p["w_ih_t"], p["w_hh_t"], p["b_gi"], p["b_hn"]]
        in_specs += [
            pl.BlockSpec((d, 3 * H), lambda b: (0, 0)),
            pl.BlockSpec((H, 3 * H), lambda b: (0, 0)),
            pl.BlockSpec((1, 3 * H), lambda b: (0, 0)),
            pl.BlockSpec((1, H), lambda b: (0, 0)),
        ]
    inputs += [params["fc"]["w_t"], params["fc"]["b"]]
    in_specs += [
        pl.BlockSpec((H, out_pad), lambda b: (0, 0)),
        pl.BlockSpec((1, out_pad), lambda b: (0, 0)),
    ]

    # TODO(synk): for long sequences, chunk the hoisted layer-0 gi scratch over
    # time windows (double-buffered) so it stays within v5e/v7x VMEM limits.
    out_p = pl.pallas_call(
        make_gru_wavefront_kernel(num_layers, seq, tile, H),
        out_shape=jax.ShapeDtypeStruct((batch_p, out_pad), jnp.float32),
        grid=(num_tiles,),
        in_specs=in_specs,
        out_specs=pl.BlockSpec((tile, out_pad), lambda b: (b, 0)),
        scratch_shapes=[
            pltpu.VMEM((seq * tile, 3 * H), jnp.float32),   # hoisted gi (layer 0)
        ],
        compiler_params=pltpu.CompilerParams(
            dimension_semantics=("parallel",)),  # batch tiles -> both TCs on v7x
    )(*inputs)

    return out_p[:batch, :output_size]


# ----------------------------------------------------------------------------
# Deterministic parameter init (PyTorch nn.GRU / nn.Linear shapes, then
# transformed for the kernel: transposed, bf16 weights, folded biases).
# ----------------------------------------------------------------------------
def init_params(key, input_size, hidden_size, num_layers, output_size):
    H = hidden_size
    k = 1.0 / math.sqrt(H)
    out_pad = _round_up(max(output_size, 1), 128)

    params = {"gru": []}
    for l in range(num_layers):
        in_dim = input_size if l == 0 else H
        key, k1, k2, k3, k4 = jax.random.split(key, 5)
        w_ih = jax.random.uniform(k1, (3 * H, in_dim), jnp.float32, -k, k)
        w_hh = jax.random.uniform(k2, (3 * H, H), jnp.float32, -k, k)
        b_ih = jax.random.uniform(k3, (3 * H,), jnp.float32, -k, k)
        b_hh = jax.random.uniform(k4, (3 * H,), jnp.float32, -k, k)
        # Fold b_hh of the r,z gates into the input-side bias; keep b_hh_n
        # separate because n = tanh(gi_n + r * (h@W_hn + b_hn)).
        b_gi = jnp.concatenate([b_ih[:2 * H] + b_hh[:2 * H], b_ih[2 * H:]])
        params["gru"].append({
            "w_ih_t": w_ih.T.astype(jnp.bfloat16),      # (in_dim, 3H)
            "w_hh_t": w_hh.T.astype(jnp.bfloat16),      # (H, 3H)
            "b_gi": b_gi.reshape(1, 3 * H),             # f32
            "b_hn": b_hh[2 * H:].reshape(1, H),         # f32
        })

    key, k5, k6 = jax.random.split(key, 3)
    w_fc = jax.random.uniform(k5, (output_size, H), jnp.float32, -k, k)
    b_fc = jax.random.uniform(k6, (output_size,), jnp.float32, -k, k)
    # Pad the FC output to a full lane (128) so the final store is unmasked.
    w_fc_t = jnp.zeros((H, out_pad), jnp.float32).at[:, :output_size].set(w_fc.T)
    b_fc_p = jnp.zeros((1, out_pad), jnp.float32).at[0, :output_size].set(b_fc)
    params["fc"] = {"w_t": w_fc_t.astype(jnp.bfloat16), "b": b_fc_p}
    return params


# ----------------------------------------------------------------------------
# Pure-JAX reference with the same (bf16-matmul, f32-accumulate) numerics
# ----------------------------------------------------------------------------
def gru_model_reference(x, params, hidden_size, num_layers, output_size):
    H = hidden_size
    batch = x.shape[0]
    layer_in = jnp.transpose(x, (1, 0, 2))  # (seq, batch, in)
    h_last = None
    for l in range(num_layers):
        p = params["gru"][l]
        h0 = jnp.zeros((batch, H), jnp.float32)

        def step(h_prev, x_t, p=p):
            gi = jnp.dot(x_t.astype(jnp.bfloat16), p["w_ih_t"],
                         preferred_element_type=jnp.float32) + p["b_gi"]
            gh = jnp.dot(h_prev.astype(jnp.bfloat16), p["w_hh_t"],
                         preferred_element_type=jnp.float32)
            r = jax.nn.sigmoid(gi[:, :H] + gh[:, :H])
            z = jax.nn.sigmoid(gi[:, H:2 * H] + gh[:, H:2 * H])
            n = jnp.tanh(gi[:, 2 * H:] + r * (gh[:, 2 * H:] + p["b_hn"]))
            h = (1.0 - z) * n + z * h_prev
            return h, h

        h_last, outs = lax.scan(step, h0, layer_in)
        layer_in = outs
    out = jnp.dot(h_last.astype(jnp.bfloat16), params["fc"]["w_t"],
                  preferred_element_type=jnp.float32) + params["fc"]["b"]
    return out[:, :output_size]


# ----------------------------------------------------------------------------
if __name__ == "__main__":
    INPUT_SIZE = 5
    HIDDEN_SIZE = 128
    NUM_LAYERS = 4
    OUTPUT_SIZE = 1
    BATCH = 4
    SEQ = 8

    key = jax.random.PRNGKey(0)
    key, xk = jax.random.split(key)
    x = jax.random.normal(xk, (BATCH, SEQ, INPUT_SIZE), jnp.float32)
    params = init_params(key, INPUT_SIZE, HIDDEN_SIZE, NUM_LAYERS, OUTPUT_SIZE)

    out = jax.block_until_ready(
        gru_model_forward(x, params, HIDDEN_SIZE, NUM_LAYERS, OUTPUT_SIZE))
    ref = jax.block_until_ready(
        gru_model_reference(x, params, HIDDEN_SIZE, NUM_LAYERS, OUTPUT_SIZE))

    assert out.shape == (BATCH, OUTPUT_SIZE), out.shape
    assert jnp.allclose(out, ref, atol=1e-2, rtol=1e-2), (out, ref)

    print("KERNEL_OK")
</pallas_src>

<mosaic_0001>
module attributes {stable_mosaic.version = 11 : i64} {
  func.func @kernel(%arg0: i32, %arg1: memref<128x5xbf16, #tpu.memory_space<vmem>>, %arg2: memref<5x384xbf16, #tpu.memory_space<vmem>>, %arg3: memref<128x384xbf16, #tpu.memory_space<vmem>>, %arg4: memref<1x384xf32, #tpu.memory_space<vmem>>, %arg5: memref<1x128xf32, #tpu.memory_space<vmem>>, %arg6: memref<128x384xbf16, #tpu.memory_space<vmem>>, %arg7: memref<128x384xbf16, #tpu.memory_space<vmem>>, %arg8: memref<1x384xf32, #tpu.memory_space<vmem>>, %arg9: memref<1x128xf32, #tpu.memory_space<vmem>>, %arg10: memref<128x384xbf16, #tpu.memory_space<vmem>>, %arg11: memref<128x384xbf16, #tpu.memory_space<vmem>>, %arg12: memref<1x384xf32, #tpu.memory_space<vmem>>, %arg13: memref<1x128xf32, #tpu.memory_space<vmem>>, %arg14: memref<128x384xbf16, #tpu.memory_space<vmem>>, %arg15: memref<128x384xbf16, #tpu.memory_space<vmem>>, %arg16: memref<1x384xf32, #tpu.memory_space<vmem>>, %arg17: memref<1x128xf32, #tpu.memory_space<vmem>>, %arg18: memref<128x128xbf16, #tpu.memory_space<vmem>>, %arg19: memref<1x128xf32, #tpu.memory_space<vmem>>, %arg20: memref<16x128xf32, #tpu.memory_space<vmem>>, %arg21: memref<128x384xf32, #tpu.memory_space<vmem>>) attributes {dimension_semantics = [#tpu.dimension_semantics<parallel>], iteration_bounds = array<i64: 1>, scalar_prefetch = 0 : i64, scratch_operands = 1 : i64, tpu.core_type = #tpu.core_type<tc>, window_params = [{transform_indices = @transform_0, window_bounds = array<i64: 128, 5>}, {pipeline_mode = #tpu.pipeline_mode<synchronous>, transform_indices = @transform_1, window_bounds = array<i64: 5, 384>}, {pipeline_mode = #tpu.pipeline_mode<synchronous>, transform_indices = @transform_2, window_bounds = array<i64: 128, 384>}, {pipeline_mode = #tpu.pipeline_mode<synchronous>, transform_indices = @transform_3, window_bounds = array<i64: 1, 384>}, {pipeline_mode = #tpu.pipeline_mode<synchronous>, transform_indices = @transform_4, window_bounds = array<i64: 1, 128>}, {pipeline_mode = #tpu.pipeline_mode<synchronous>, transform_indices = @transform_5, window_bounds = array<i64: 128, 384>}, {pipeline_mode = #tpu.pipeline_mode<synchronous>, transform_indices = @transform_6, window_bounds = array<i64: 128, 384>}, {pipeline_mode = #tpu.pipeline_mode<synchronous>, transform_indices = @transform_7, window_bounds = array<i64: 1, 384>}, {pipeline_mode = #tpu.pipeline_mode<synchronous>, transform_indices = @transform_8, window_bounds = array<i64: 1, 128>}, {pipeline_mode = #tpu.pipeline_mode<synchronous>, transform_indices = @transform_9, window_bounds = array<i64: 128, 384>}, {pipeline_mode = #tpu.pipeline_mode<synchronous>, transform_indices = @transform_10, window_bounds = array<i64: 128, 384>}, {pipeline_mode = #tpu.pipeline_mode<synchronous>, transform_indices = @transform_11, window_bounds = array<i64: 1, 384>}, {pipeline_mode = #tpu.pipeline_mode<synchronous>, transform_indices = @transform_12, window_bounds = array<i64: 1, 128>}, {pipeline_mode = #tpu.pipeline_mode<synchronous>, transform_indices = @transform_13, window_bounds = array<i64: 128, 384>}, {pipeline_mode = #tpu.pipeline_mode<synchronous>, transform_indices = @transform_14, window_bounds = array<i64: 128, 384>}, {pipeline_mode = #tpu.pipeline_mode<synchronous>, transform_indices = @transform_15, window_bounds = array<i64: 1, 384>}, {pipeline_mode = #tpu.pipeline_mode<synchronous>, transform_indices = @transform_16, window_bounds = array<i64: 1, 128>}, {pipeline_mode = #tpu.pipeline_mode<synchronous>, transform_indices = @transform_17, window_bounds = array<i64: 128, 128>}, {pipeline_mode = #tpu.pipeline_mode<synchronous>, transform_indices = @transform_18, window_bounds = array<i64: 1, 128>}, {transform_indices = @transform_19, window_bounds = array<i64: 16, 128>}]} {
    %c0 = arith.constant 0 : index
    %c0_0 = arith.constant 0 : index
    %0 = vector.load %arg1[%c0, %c0_0] : memref<128x5xbf16, #tpu.memory_space<vmem>>, vector<128x5xbf16>
    %c0_1 = arith.constant 0 : index
    %c0_2 = arith.constant 0 : index
    %1 = vector.load %arg2[%c0_1, %c0_2] : memref<5x384xbf16, #tpu.memory_space<vmem>>, vector<5x384xbf16>
    %cst = arith.constant dense<0.000000e+00> : vector<128x384xf32>
    %2 = tpu.matmul %0, %1, %cst {dimension_numbers = #tpu.dot_dimension_numbers<[1], [0], [0], [1], [0, 0, 1, 1], [], []>} : vector<128x5xbf16>, vector<5x384xbf16>, vector<128x384xf32> -> vector<128x384xf32>
    %c0_3 = arith.constant 0 : index
    %c0_4 = arith.constant 0 : index
    %3 = vector.load %arg4[%c0_3, %c0_4] : memref<1x384xf32, #tpu.memory_space<vmem>>, vector<1x384xf32>
    %4 = vector.broadcast %3 : vector<1x384xf32> to vector<128x384xf32>
    %5 = arith.addf %2, %4 : vector<128x384xf32>
    %c0_5 = arith.constant 0 : index
    %c0_6 = arith.constant 0 : index
    %6 = vector.load %arg21[%c0_5, %c0_6] : memref<128x384xf32, #tpu.memory_space<vmem>>, vector<128x384xf32>
    tpu.vector_store %arg21[%c0_5, %c0_6], %5 {strides = array<i32>} : memref<128x384xf32, #tpu.memory_space<vmem>>, vector<128x384xf32>,
    %cst_7 = arith.constant 0.000000e+00 : f32
    %7 = vector.broadcast %cst_7 : f32 to vector<16x128xf32>
    %cst_8 = arith.constant 0.000000e+00 : f32
    %8 = vector.broadcast %cst_8 : f32 to vector<16x128xf32>
    %cst_9 = arith.constant 0.000000e+00 : f32
    %9 = vector.broadcast %cst_9 : f32 to vector<16x128xf32>
    %cst_10 = arith.constant 0.000000e+00 : f32
    %10 = vector.broadcast %cst_10 : f32 to vector<16x128xf32>
    %c0_11 = arith.constant 0 : index
    %c0_12 = arith.constant 0 : index
    %11 = vector.load %arg21[%c0_11, %c0_12] : memref<128x384xf32, #tpu.memory_space<vmem>>, vector<16x384xf32>
    %12 = arith.truncf %7 : vector<16x128xf32> to vector<16x128xbf16>
    %c0_13 = arith.constant 0 : index
    %c0_14 = arith.constant 0 : index
    %13 = vector.load %arg3[%c0_13, %c0_14] : memref<128x384xbf16, #tpu.memory_space<vmem>>, vector<128x384xbf16>
    %cst_15 = arith.constant dense<0.000000e+00> : vector<16x384xf32>
    %14 = tpu.matmul %12, %13, %cst_15 {dimension_numbers = #tpu.dot_dimension_numbers<[1], [0], [0], [1], [0, 0, 1, 1], [], []>} : vector<16x128xbf16>, vector<128x384xbf16>, vector<16x384xf32> -> vector<16x384xf32>
    %15 = vector.extract_strided_slice %11 {offsets = [0, 0], sizes = [16, 128], strides = [1, 1]} : vector<16x384xf32> to vector<16x128xf32>
    %16 = vector.extract_strided_slice %14 {offsets = [0, 0], sizes = [16, 128], strides = [1, 1]} : vector<16x384xf32> to vector<16x128xf32>
    %17 = arith.addf %15, %16 : vector<16x128xf32>
    %18 = arith.negf %17 : vector<16x128xf32>
    %19 = math.exp %18 : vector<16x128xf32>
    %cst_16 = arith.constant 1.000000e+00 : f32
    %20 = vector.broadcast %cst_16 : f32 to vector<16x128xf32>
    %21 = arith.addf %20, %19 : vector<16x128xf32>
    %22 = arith.divf %20, %21 : vector<16x128xf32>
    %23 = vector.extract_strided_slice %11 {offsets = [0, 128], sizes = [16, 128], strides = [1, 1]} : vector<16x384xf32> to vector<16x128xf32>
    %24 = vector.extract_strided_slice %14 {offsets = [0, 128], sizes = [16, 128], strides = [1, 1]} : vector<16x384xf32> to vector<16x128xf32>
    %25 = arith.addf %23, %24 : vector<16x128xf32>
    %26 = arith.negf %25 : vector<16x128xf32>
    %27 = math.exp %26 : vector<16x128xf32>
    %cst_17 = arith.constant 1.000000e+00 : f32
    %28 = vector.broadcast %cst_17 : f32 to vector<16x128xf32>
    %29 = arith.addf %28, %27 : vector<16x128xf32>
    %30 = arith.divf %28, %29 : vector<16x128xf32>
    %31 = vector.extract_strided_slice %11 {offsets = [0, 256], sizes = [16, 128], strides = [1, 1]} : vector<16x384xf32> to vector<16x128xf32>
    %32 = vector.extract_strided_slice %14 {offsets = [0, 256], sizes = [16, 128], strides = [1, 1]} : vector<16x384xf32> to vector<16x128xf32>
    %c0_18 = arith.constant 0 : index
    %c0_19 = arith.constant 0 : index
    %33 = vector.load %arg5[%c0_18, %c0_19] : memref<1x128xf32, #tpu.memory_space<vmem>>, vector<1x128xf32>
    %34 = vector.broadcast %33 : vector<1x128xf32> to vector<16x128xf32>
    %35 = arith.addf %32, %34 : vector<16x128xf32>
    %36 = arith.mulf %22, %35 : vector<16x128xf32>
    %37 = arith.addf %31, %36 : vector<16x128xf32>
    %38 = math.tanh %37 : vector<16x128xf32>
    %cst_20 = arith.constant 1.000000e+00 : f32
    %39 = vector.broadcast %cst_20 : f32 to vector<16x128xf32>
    %40 = arith.subf %39, %30 : vector<16x128xf32>
    %41 = arith.mulf %40, %38 : vector<16x128xf32>
    %42 = arith.mulf %30, %7 : vector<16x128xf32>
    %43 = arith.addf %41, %42 : vector<16x128xf32>
    %44 = arith.truncf %43 : vector<16x128xf32> to vector<16x128xbf16>
    %c16 = arith.constant 16 : index
    %c0_21 = arith.constant 0 : index
    %45 = vector.load %arg21[%c16, %c0_21] : memref<128x384xf32, #tpu.memory_space<vmem>>, vector<16x384xf32>
    %46 = arith.truncf %43 : vector<16x128xf32> to vector<16x128xbf16>
    %c0_22 = arith.constant 0 : index
    %c0_23 = arith.constant 0 : index
    %47 = vector.load %arg3[%c0_22, %c0_23] : memref<128x384xbf16, #tpu.memory_space<vmem>>, vector<128x384xbf16>
    %cst_24 = arith.constant dense<0.000000e+00> : vector<16x384xf32>
    %48 = tpu.matmul %46, %47, %cst_24 {dimension_numbers = #tpu.dot_dimension_numbers<[1], [0], [0], [1], [0, 0, 1, 1], [], []>} : vector<16x128xbf16>, vector<128x384xbf16>, vector<16x384xf32> -> vector<16x384xf32>
    %49 = vector.extract_strided_slice %45 {offsets = [0, 0], sizes = [16, 128], strides = [1, 1]} : vector<16x384xf32> to vector<16x128xf32>
    %50 = vector.extract_strided_slice %48 {offsets = [0, 0], sizes = [16, 128], strides = [1, 1]} : vector<16x384xf32> to vector<16x128xf32>
    %51 = arith.addf %49, %50 : vector<16x128xf32>
    %52 = arith.negf %51 : vector<16x128xf32>
    %53 = math.exp %52 : vector<16x128xf32>
    %cst_25 = arith.constant 1.000000e+00 : f32
    %54 = vector.broadcast %cst_25 : f32 to vector<16x128xf32>
    %55 = arith.addf %54, %53 : vector<16x128xf32>
    %56 = arith.divf %54, %55 : vector<16x128xf32>
    %57 = vector.extract_strided_slice %45 {offsets = [0, 128], sizes = [16, 128], strides = [1, 1]} : vector<16x384xf32> to vector<16x128xf32>
    %58 = vector.extract_strided_slice %48 {offsets = [0, 128], sizes = [16, 128], strides = [1, 1]} : vector<16x384xf32> to vector<16x128xf32>
    %59 = arith.addf %57, %58 : vector<16x128xf32>
    %60 = arith.negf %59 : vector<16x128xf32>
    %61 = math.exp %60 : vector<16x128xf32>
    %cst_26 = arith.constant 1.000000e+00 : f32
    %62 = vector.broadcast %cst_26 : f32 to vector<16x128xf32>
    %63 = arith.addf %62, %61 : vector<16x128xf32>
    %64 = arith.divf %62, %63 : vector<16x128xf32>
    %65 = vector.extract_strided_slice %45 {offsets = [0, 256], sizes = [16, 128], strides = [1, 1]} : vector<16x384xf32> to vector<16x128xf32>
    %66 = vector.extract_strided_slice %48 {offsets = [0, 256], sizes = [16, 128], strides = [1, 1]} : vector<16x384xf32> to vector<16x128xf32>
    %c0_27 = arith.constant 0 : index
    %c0_28 = arith.constant 0 : index
    %67 = vector.load %arg5[%c0_27, %c0_28] : memref<1x128xf32, #tpu.memory_space<vmem>>, vector<1x128xf32>
    %68 = vector.broadcast %67 : vector<1x128xf32> to vector<16x128xf32>
    %69 = arith.addf %66, %68 : vector<16x128xf32>
    %70 = arith.mulf %56, %69 : vector<16x128xf32>
    %71 = arith.addf %65, %70 : vector<16x128xf32>
    %72 = math.tanh %71 : vector<16x128xf32>
    %cst_29 = arith.constant 1.000000e+00 : f32
    %73 = vector.broadcast %cst_29 : f32 to vector<16x128xf32>
    %74 = arith.subf %73, %64 : vector<16x128xf32>
    %75 = arith.mulf %74, %72 : vector<16x128xf32>
    %76 = arith.mulf %64, %43 : vector<16x128xf32>
    %77 = arith.addf %75, %76 : vector<16x128xf32>
    %78 = arith.truncf %77 : vector<16x128xf32> to vector<16x128xbf16>
    %c0_30 = arith.constant 0 : index
    %c0_31 = arith.constant 0 : index
    %79 = vector.load %arg6[%c0_30, %c0_31] : memref<128x384xbf16, #tpu.memory_space<vmem>>, vector<128x384xbf16>
    %cst_32 = arith.constant dense<0.000000e+00> : vector<16x384xf32>
    %80 = tpu.matmul %44, %79, %cst_32 {dimension_numbers = #tpu.dot_dimension_numbers<[1], [0], [0], [1], [0, 0, 1, 1], [], []>} : vector<16x128xbf16>, vector<128x384xbf16>, vector<16x384xf32> -> vector<16x384xf32>
    %c0_33 = arith.constant 0 : index
    %c0_34 = arith.constant 0 : index
    %81 = vector.load %arg8[%c0_33, %c0_34] : memref<1x384xf32, #tpu.memory_space<vmem>>, vector<1x384xf32>
    %82 = vector.broadcast %81 : vector<1x384xf32> to vector<16x384xf32>
    %83 = arith.addf %80, %82 : vector<16x384xf32>
    %84 = arith.truncf %8 : vector<16x128xf32> to vector<16x128xbf16>
    %c0_35 = arith.constant 0 : index
    %c0_36 = arith.constant 0 : index
    %85 = vector.load %arg7[%c0_35, %c0_36] : memref<128x384xbf16, #tpu.memory_space<vmem>>, vector<128x384xbf16>
    %cst_37 = arith.constant dense<0.000000e+00> : vector<16x384xf32>
    %86 = tpu.matmul %84, %85, %cst_37 {dimension_numbers = #tpu.dot_dimension_numbers<[1], [0], [0], [1], [0, 0, 1, 1], [], []>} : vector<16x128xbf16>, vector<128x384xbf16>, vector<16x384xf32> -> vector<16x384xf32>
    %87 = vector.extract_strided_slice %83 {offsets = [0, 0], sizes = [16, 128], strides = [1, 1]} : vector<16x384xf32> to vector<16x128xf32>
    %88 = vector.extract_strided_slice %86 {offsets = [0, 0], sizes = [16, 128], strides = [1, 1]} : vector<16x384xf32> to vector<16x128xf32>
    %89 = arith.addf %87, %88 : vector<16x128xf32>
    %90 = arith.negf %89 : vector<16x128xf32>
    %91 = math.exp %90 : vector<16x128xf32>
    %cst_38 = arith.constant 1.000000e+00 : f32
    %92 = vector.broadcast %cst_38 : f32 to vector<16x128xf32>
    %93 = arith.addf %92, %91 : vector<16x128xf32>
    %94 = arith.divf %92, %93 : vector<16x128xf32>
    %95 = vector.extract_strided_slice %83 {offsets = [0, 128], sizes = [16, 128], strides = [1, 1]} : vector<16x384xf32> to vector<16x128xf32>
    %96 = vector.extract_strided_slice %86 {offsets = [0, 128], sizes = [16, 128], strides = [1, 1]} : vector<16x384xf32> to vector<16x128xf32>
    %97 = arith.addf %95, %96 : vector<16x128xf32>
    %98 = arith.negf %97 : vector<16x128xf32>
    %99 = math.exp %98 : vector<16x128xf32>
    %cst_39 = arith.constant 1.000000e+00 : f32
    %100 = vector.broadcast %cst_39 : f32 to vector<16x128xf32>
    %101 = arith.addf %100, %99 : vector<16x128xf32>
    %102 = arith.divf %100, %101 : vector<16x128xf32>
    %103 = vector.extract_strided_slice %83 {offsets = [0, 256], sizes = [16, 128], strides = [1, 1]} : vector<16x384xf32> to vector<16x128xf32>
    %104 = vector.extract_strided_slice %86 {offsets = [0, 256], sizes = [16, 128], strides = [1, 1]} : vector<16x384xf32> to vector<16x128xf32>
    %c0_40 = arith.constant 0 : index
    %c0_41 = arith.constant 0 : index
    %105 = vector.load %arg9[%c0_40, %c0_41] : memref<1x128xf32, #tpu.memory_space<vmem>>, vector<1x128xf32>
    %106 = vector.broadcast %105 : vector<1x128xf32> to vector<16x128xf32>
    %107 = arith.addf %104, %106 : vector<16x128xf32>
    %108 = arith.mulf %94, %107 : vector<16x128xf32>
    %109 = arith.addf %103, %108 : vector<16x128xf32>
    %110 = math.tanh %109 : vector<16x128xf32>
    %cst_42 = arith.constant 1.000000e+00 : f32
    %111 = vector.broadcast %cst_42 : f32 to vector<16x128xf32>
    %112 = arith.subf %111, %102 : vector<16x128xf32>
    %113 = arith.mulf %112, %110 : vector<16x128xf32>
    %114 = arith.mulf %102, %8 : vector<16x128xf32>
    %115 = arith.addf %113, %114 : vector<16x128xf32>
    %116 = arith.truncf %115 : vector<16x128xf32> to vector<16x128xbf16>
    %c32 = arith.constant 32 : index
    %c0_43 = arith.constant 0 : index
    %117 = vector.load %arg21[%c32, %c0_43] : memref<128x384xf32, #tpu.memory_space<vmem>>, vector<16x384xf32>
    %118 = arith.truncf %77 : vector<16x128xf32> to vector<16x128xbf16>
    %c0_44 = arith.constant 0 : index
    %c0_45 = arith.constant 0 : index
    %119 = vector.load %arg3[%c0_44, %c0_45] : memref<128x384xbf16, #tpu.memory_space<vmem>>, vector<128x384xbf16>
    %cst_46 = arith.constant dense<0.000000e+00> : vector<16x384xf32>
    %120 = tpu.matmul %118, %119, %cst_46 {dimension_numbers = #tpu.dot_dimension_numbers<[1], [0], [0], [1], [0, 0, 1, 1], [], []>} : vector<16x128xbf16>, vector<128x384xbf16>, vector<16x384xf32> -> vector<16x384xf32>
    %121 = vector.extract_strided_slice %117 {offsets = [0, 0], sizes = [16, 128], strides = [1, 1]} : vector<16x384xf32> to vector<16x128xf32>
    %122 = vector.extract_strided_slice %120 {offsets = [0, 0], sizes = [16, 128], strides = [1, 1]} : vector<16x384xf32> to vector<16x128xf32>
    %123 = arith.addf %121, %122 : vector<16x128xf32>
    %124 = arith.negf %123 : vector<16x128xf32>
    %125 = math.exp %124 : vector<16x128xf32>
    %cst_47 = arith.constant 1.000000e+00 : f32
    %126 = vector.broadcast %cst_47 : f32 to vector<16x128xf32>
    %127 = arith.addf %126, %125 : vector<16x128xf32>
    %128 = arith.divf %126, %127 : vector<16x128xf32>
    %129 = vector.extract_strided_slice %117 {offsets = [0, 128], sizes = [16, 128], strides = [1, 1]} : vector<16x384xf32> to vector<16x128xf32>
    %130 = vector.extract_strided_slice %120 {offsets = [0, 128], sizes = [16, 128], strides = [1, 1]} : vector<16x384xf32> to vector<16x128xf32>
    %131 = arith.addf %129, %130 : vector<16x128xf32>
    %132 = arith.negf %131 : vector<16x128xf32>
    %133 = math.exp %132 : vector<16x128xf32>
    %cst_48 = arith.constant 1.000000e+00 : f32
    %134 = vector.broadcast %cst_48 : f32 to vector<16x128xf32>
    %135 = arith.addf %134, %133 : vector<16x128xf32>
    %136 = arith.divf %134, %135 : vector<16x128xf32>
    %137 = vector.extract_strided_slice %117 {offsets = [0, 256], sizes = [16, 128], strides = [1, 1]} : vector<16x384xf32> to vector<16x128xf32>
    %138 = vector.extract_strided_slice %120 {offsets = [0, 256], sizes = [16, 128], strides = [1, 1]} : vector<16x384xf32> to vector<16x128xf32>
    %c0_49 = arith.constant 0 : index
    %c0_50 = arith.constant 0 : index
    %139 = vector.load %arg5[%c0_49, %c0_50] : memref<1x128xf32, #tpu.memory_space<vmem>>, vector<1x128xf32>
    %140 = vector.broadcast %139 : vector<1x128xf32> to vector<16x128xf32>
    %141 = arith.addf %138, %140 : vector<16x128xf32>
    %142 = arith.mulf %128, %141 : vector<16x128xf32>
    %143 = arith.addf %137, %142 : vector<16x128xf32>
    %144 = math.tanh %143 : vector<16x128xf32>
    %cst_51 = arith.constant 1.000000e+00 : f32
    %145 = vector.broadcast %cst_51 : f32 to vector<16x128xf32>
    %146 = arith.subf %145, %136 : vector<16x128xf32>
    %147 = arith.mulf %146, %144 : vector<16x128xf32>
    %148 = arith.mulf %136, %77 : vector<16x128xf32>
    %149 = arith.addf %147, %148 : vector<16x128xf32>
    %150 = arith.truncf %149 : vector<16x128xf32> to vector<16x128xbf16>
    %c0_52 = arith.constant 0 : index
    %c0_53 = arith.constant 0 : index
    %151 = vector.load %arg6[%c0_52, %c0_53] : memref<128x384xbf16, #tpu.memory_space<vmem>>, vector<128x384xbf16>
    %cst_54 = arith.constant dense<0.000000e+00> : vector<16x384xf32>
    %152 = tpu.matmul %78, %151, %cst_54 {dimension_numbers = #tpu.dot_dimension_numbers<[1], [0], [0], [1], [0, 0, 1, 1], [], []>} : vector<16x128xbf16>, vector<128x384xbf16>, vector<16x384xf32> -> vector<16x384xf32>
    %c0_55 = arith.constant 0 : index
    %c0_56 = arith.constant 0 : index
    %153 = vector.load %arg8[%c0_55, %c0_56] : memref<1x384xf32, #tpu.memory_space<vmem>>, vector<1x384xf32>
    %154 = vector.broadcast %153 : vector<1x384xf32> to vector<16x384xf32>
    %155 = arith.addf %152, %154 : vector<16x384xf32>
    %156 = arith.truncf %115 : vector<16x128xf32> to vector<16x128xbf16>
    %c0_57 = arith.constant 0 : index
    %c0_58 = arith.constant 0 : index
    %157 = vector.load %arg7[%c0_57, %c0_58] : memref<128x384xbf16, #tpu.memory_space<vmem>>, vector<128x384xbf16>
    %cst_59 = arith.constant dense<0.000000e+00> : vector<16x384xf32>
    %158 = tpu.matmul %156, %157, %cst_59 {dimension_numbers = #tpu.dot_dimension_numbers<[1], [0], [0], [1], [0, 0, 1, 1], [], []>} : vector<16x128xbf16>, vector<128x384xbf16>, vector<16x384xf32> -> vector<16x384xf32>
    %159 = vector.extract_strided_slice %155 {offsets = [0, 0], sizes = [16, 128], strides = [1, 1]} : vector<16x384xf32> to vector<16x128xf32>
    %160 = vector.extract_strided_slice %158 {offsets = [0, 0], sizes = [16, 128], strides = [1, 1]} : vector<16x384xf32> to vector<16x128xf32>
    %161 = arith.addf %159, %160 : vector<16x128xf32>
    %162 = arith.negf %161 : vector<16x128xf32>
    %163 = math.exp %162 : vector<16x128xf32>
    %cst_60 = arith.constant 1.000000e+00 : f32
    %164 = vector.broadcast %cst_60 : f32 to vector<16x128xf32>
    %165 = arith.addf %164, %163 : vector<16x128xf32>
    %166 = arith.divf %164, %165 : vector<16x128xf32>
    %167 = vector.extract_strided_slice %155 {offsets = [0, 128], sizes = [16, 128], strides = [1, 1]} : vector<16x384xf32> to vector<16x128xf32>
    %168 = vector.extract_strided_slice %158 {offsets = [0, 128], sizes = [16, 128], strides = [1, 1]} : vector<16x384xf32> to vector<16x128xf32>
    %169 = arith.addf %167, %168 : vector<16x128xf32>
    %170 = arith.negf %169 : vector<16x128xf32>
    %171 = math.exp %170 : vector<16x128xf32>
    %cst_61 = arith.constant 1.000000e+00 : f32
    %172 = vector.broadcast %cst_61 : f32 to vector<16x128xf32>
    %173 = arith.addf %172, %171 : vector<16x128xf32>
    %174 = arith.divf %172, %173 : vector<16x128xf32>
    %175 = vector.extract_strided_slice %155 {offsets = [0, 256], sizes = [16, 128], strides = [1, 1]} : vector<16x384xf32> to vector<16x128xf32>
    %176 = vector.extract_strided_slice %158 {offsets = [0, 256], sizes = [16, 128], strides = [1, 1]} : vector<16x384xf32> to vector<16x128xf32>
    %c0_62 = arith.constant 0 : index
    %c0_63 = arith.constant 0 : index
    %177 = vector.load %arg9[%c0_62, %c0_63] : memref<1x128xf32, #tpu.memory_space<vmem>>, vector<1x128xf32>
    %178 = vector.broadcast %177 : vector<1x128xf32> to vector<16x128xf32>
    %179 = arith.addf %176, %178 : vector<16x128xf32>
    %180 = arith.mulf %166, %179 : vector<16x128xf32>
    %181 = arith.addf %175, %180 : vector<16x128xf32>
    %182 = math.tanh %181 : vector<16x128xf32>
    %cst_64 = arith.constant 1.000000e+00 : f32
    %183 = vector.broadcast %cst_64 : f32 to vector<16x128xf32>
    %184 = arith.subf %183, %174 : vector<16x128xf32>
    %185 = arith.mulf %184, %182 : vector<16x128xf32>
    %186 = arith.mulf %174, %115 : vector<16x128xf32>
    %187 = arith.addf %185, %186 : vector<16x128xf32>
    %188 = arith.truncf %187 : vector<16x128xf32> to vector<16x128xbf16>
    %c0_65 = arith.constant 0 : index
    %c0_66 = arith.constant 0 : index
    %189 = vector.load %arg10[%c0_65, %c0_66] : memref<128x384xbf16, #tpu.memory_space<vmem>>, vector<128x384xbf16>
    %cst_67 = arith.constant dense<0.000000e+00> : vector<16x384xf32>
    %190 = tpu.matmul %116, %189, %cst_67 {dimension_numbers = #tpu.dot_dimension_numbers<[1], [0], [0], [1], [0, 0, 1, 1], [], []>} : vector<16x128xbf16>, vector<128x384xbf16>, vector<16x384xf32> -> vector<16x384xf32>
    %c0_68 = arith.constant 0 : index
    %c0_69 = arith.constant 0 : index
    %191 = vector.load %arg12[%c0_68, %c0_69] : memref<1x384xf32, #tpu.memory_space<vmem>>, vector<1x384xf32>
    %192 = vector.broadcast %191 : vector<1x384xf32> to vector<16x384xf32>
    %193 = arith.addf %190, %192 : vector<16x384xf32>
    %194 = arith.truncf %9 : vector<16x128xf32> to vector<16x128xbf16>
    %c0_70 = arith.constant 0 : index
    %c0_71 = arith.constant 0 : index
    %195 = vector.load %arg11[%c0_70, %c0_71] : memref<128x384xbf16, #tpu.memory_space<vmem>>, vector<128x384xbf16>
    %cst_72 = arith.constant dense<0.000000e+00> : vector<16x384xf32>
    %196 = tpu.matmul %194, %195, %cst_72 {dimension_numbers = #tpu.dot_dimension_numbers<[1], [0], [0], [1], [0, 0, 1, 1], [], []>} : vector<16x128xbf16>, vector<128x384xbf16>, vector<16x384xf32> -> vector<16x384xf32>
    %197 = vector.extract_strided_slice %193 {offsets = [0, 0], sizes = [16, 128], strides = [1, 1]} : vector<16x384xf32> to vector<16x128xf32>
    %198 = vector.extract_strided_slice %196 {offsets = [0, 0], sizes = [16, 128], strides = [1, 1]} : vector<16x384xf32> to vector<16x128xf32>
    %199 = arith.addf %197, %198 : vector<16x128xf32>
    %200 = arith.negf %199 : vector<16x128xf32>
    %201 = math.exp %200 : vector<16x128xf32>
    %cst_73 = arith.constant 1.000000e+00 : f32
    %202 = vector.broadcast %cst_73 : f32 to vector<16x128xf32>
    %203 = arith.addf %202, %201 : vector<16x128xf32>
    %204 = arith.divf %202, %203 : vector<16x128xf32>
    %205 = vector.extract_strided_slice %193 {offsets = [0, 128], sizes = [16, 128], strides = [1, 1]} : vector<16x384xf32> to vector<16x128xf32>
    %206 = vector.extract_strided_slice %196 {offsets = [0, 128], sizes = [16, 128], strides = [1, 1]} : vector<16x384xf32> to vector<16x128xf32>
    %207 = arith.addf %205, %206 : vector<16x128xf32>
    %208 = arith.negf %207 : vector<16x128xf32>
    %209 = math.exp %208 : vector<16x128xf32>
    %cst_74 = arith.constant 1.000000e+00 : f32
    %210 = vector.broadcast %cst_74 : f32 to vector<16x128xf32>
    %211 = arith.addf %210, %209 : vector<16x128xf32>
    %212 = arith.divf %210, %211 : vector<16x128xf32>
    %213 = vector.extract_strided_slice %193 {offsets = [0, 256], sizes = [16, 128], strides = [1, 1]} : vector<16x384xf32> to vector<16x128xf32>
    %214 = vector.extract_strided_slice %196 {offsets = [0, 256], sizes = [16, 128], strides = [1, 1]} : vector<16x384xf32> to vector<16x128xf32>
    %c0_75 = arith.constant 0 : index
    %c0_76 = arith.constant 0 : index
    %215 = vector.load %arg13[%c0_75, %c0_76] : memref<1x128xf32, #tpu.memory_space<vmem>>, vector<1x128xf32>
    %216 = vector.broadcast %215 : vector<1x128xf32> to vector<16x128xf32>
    %217 = arith.addf %214, %216 : vector<16x128xf32>
    %218 = arith.mulf %204, %217 : vector<16x128xf32>
    %219 = arith.addf %213, %218 : vector<16x128xf32>
    %220 = math.tanh %219 : vector<16x128xf32>
    %cst_77 = arith.constant 1.000000e+00 : f32
    %221 = vector.broadcast %cst_77 : f32 to vector<16x128xf32>
    %222 = arith.subf %221, %212 : vector<16x128xf32>
    %223 = arith.mulf %222, %220 : vector<16x128xf32>
    %224 = arith.mulf %212, %9 : vector<16x128xf32>
    %225 = arith.addf %223, %224 : vector<16x128xf32>
    %226 = arith.truncf %225 : vector<16x128xf32> to vector<16x128xbf16>
    %c3_i32 = arith.constant 3 : i32
    %c16_i32 = arith.constant 16 : i32
    %227 = arith.muli %c3_i32, %c16_i32 : i32
    %228 = tpu.assume_multiple %227, 16 : i32
    %229 = arith.index_cast %228 : i32 to index
    %c0_78 = arith.constant 0 : index
    %230 = vector.load %arg21[%229, %c0_78] : memref<128x384xf32, #tpu.memory_space<vmem>>, vector<16x384xf32>
    %231 = arith.truncf %149 : vector<16x128xf32> to vector<16x128xbf16>
    %c0_79 = arith.constant 0 : index
    %c0_80 = arith.constant 0 : index
    %232 = vector.load %arg3[%c0_79, %c0_80] : memref<128x384xbf16, #tpu.memory_space<vmem>>, vector<128x384xbf16>
    %cst_81 = arith.constant dense<0.000000e+00> : vector<16x384xf32>
    %233 = tpu.matmul %231, %232, %cst_81 {dimension_numbers = #tpu.dot_dimension_numbers<[1], [0], [0], [1], [0, 0, 1, 1], [], []>} : vector<16x128xbf16>, vector<128x384xbf16>, vector<16x384xf32> -> vector<16x384xf32>
    %234 = vector.extract_strided_slice %230 {offsets = [0, 0], sizes = [16, 128], strides = [1, 1]} : vector<16x384xf32> to vector<16x128xf32>
    %235 = vector.extract_strided_slice %233 {offsets = [0, 0], sizes = [16, 128], strides = [1, 1]} : vector<16x384xf32> to vector<16x128xf32>
    %236 = arith.addf %234, %235 : vector<16x128xf32>
    %237 = arith.negf %236 : vector<16x128xf32>
    %238 = math.exp %237 : vector<16x128xf32>
    %cst_82 = arith.constant 1.000000e+00 : f32
    %239 = vector.broadcast %cst_82 : f32 to vector<16x128xf32>
    %240 = arith.addf %239, %238 : vector<16x128xf32>
    %241 = arith.divf %239, %240 : vector<16x128xf32>
    %242 = vector.extract_strided_slice %230 {offsets = [0, 128], sizes = [16, 128], strides = [1, 1]} : vector<16x384xf32> to vector<16x128xf32>
    %243 = vector.extract_strided_slice %233 {offsets = [0, 128], sizes = [16, 128], strides = [1, 1]} : vector<16x384xf32> to vector<16x128xf32>
    %244 = arith.addf %242, %243 : vector<16x128xf32>
    %245 = arith.negf %244 : vector<16x128xf32>
    %246 = math.exp %245 : vector<16x128xf32>
    %cst_83 = arith.constant 1.000000e+00 : f32
    %247 = vector.broadcast %cst_83 : f32 to vector<16x128xf32>
    %248 = arith.addf %247, %246 : vector<16x128xf32>
    %249 = arith.divf %247, %248 : vector<16x128xf32>
    %250 = vector.extract_strided_slice %230 {offsets = [0, 256], sizes = [16, 128], strides = [1, 1]} : vector<16x384xf32> to vector<16x128xf32>
    %251 = vector.extract_strided_slice %233 {offsets = [0, 256], sizes = [16, 128], strides = [1, 1]} : vector<16x384xf32> to vector<16x128xf32>
    %c0_84 = arith.constant 0 : index
    %c0_85 = arith.constant 0 : index
    %252 = vector.load %arg5[%c0_84, %c0_85] : memref<1x128xf32, #tpu.memory_space<vmem>>, vector<1x128xf32>
    %253 = vector.broadcast %252 : vector<1x128xf32> to vector<16x128xf32>
    %254 = arith.addf %251, %253 : vector<16x128xf32>
    %255 = arith.mulf %241, %254 : vector<16x128xf32>
    %256 = arith.addf %250, %255 : vector<16x128xf32>
    %257 = math.tanh %256 : vector<16x128xf32>
    %cst_86 = arith.constant 1.000000e+00 : f32
    %258 = vector.broadcast %cst_86 : f32 to vector<16x128xf32>
    %259 = arith.subf %258, %249 : vector<16x128xf32>
    %260 = arith.mulf %259, %257 : vector<16x128xf32>
    %261 = arith.mulf %249, %149 : vector<16x128xf32>
    %262 = arith.addf %260, %261 : vector<16x128xf32>
    %263 = arith.truncf %262 : vector<16x128xf32> to vector<16x128xbf16>
    %c0_87 = arith.constant 0 : index
    %c0_88 = arith.constant 0 : index
    %264 = vector.load %arg6[%c0_87, %c0_88] : memref<128x384xbf16, #tpu.memory_space<vmem>>, vector<128x384xbf16>
    %cst_89 = arith.constant dense<0.000000e+00> : vector<16x384xf32>
    %265 = tpu.matmul %150, %264, %cst_89 {dimension_numbers = #tpu.dot_dimension_numbers<[1], [0], [0], [1], [0, 0, 1, 1], [], []>} : vector<16x128xbf16>, vector<128x384xbf16>, vector<16x384xf32> -> vector<16x384xf32>
    %c0_90 = arith.constant 0 : index
    %c0_91 = arith.constant 0 : index
    %266 = vector.load %arg8[%c0_90, %c0_91] : memref<1x384xf32, #tpu.memory_space<vmem>>, vector<1x384xf32>
    %267 = vector.broadcast %266 : vector<1x384xf32> to vector<16x384xf32>
    %268 = arith.addf %265, %267 : vector<16x384xf32>
    %269 = arith.truncf %187 : vector<16x128xf32> to vector<16x128xbf16>
    %c0_92 = arith.constant 0 : index
    %c0_93 = arith.constant 0 : index
    %270 = vector.load %arg7[%c0_92, %c0_93] : memref<128x384xbf16, #tpu.memory_space<vmem>>, vector<128x384xbf16>
    %cst_94 = arith.constant dense<0.000000e+00> : vector<16x384xf32>
    %271 = tpu.matmul %269, %270, %cst_94 {dimension_numbers = #tpu.dot_dimension_numbers<[1], [0], [0], [1], [0, 0, 1, 1], [], []>} : vector<16x128xbf16>, vector<128x384xbf16>, vector<16x384xf32> -> vector<16x384xf32>
    %272 = vector.extract_strided_slice %268 {offsets = [0, 0], sizes = [16, 128], strides = [1, 1]} : vector<16x384xf32> to vector<16x128xf32>
    %273 = vector.extract_strided_slice %271 {offsets = [0, 0], sizes = [16, 128], strides = [1, 1]} : vector<16x384xf32> to vector<16x128xf32>
    %274 = arith.addf %272, %273 : vector<16x128xf32>
    %275 = arith.negf %274 : vector<16x128xf32>
    %276 = math.exp %275 : vector<16x128xf32>
    %cst_95 = arith.constant 1.000000e+00 : f32
    %277 = vector.broadcast %cst_95 : f32 to vector<16x128xf32>
    %278 = arith.addf %277, %276 : vector<16x128xf32>
    %279 = arith.divf %277, %278 : vector<16x128xf32>
    %280 = vector.extract_strided_slice %268 {offsets = [0, 128], sizes = [16, 128], strides = [1, 1]} : vector<16x384xf32> to vector<16x128xf32>
    %281 = vector.extract_strided_slice %271 {offsets = [0, 128], sizes = [16, 128], strides = [1, 1]} : vector<16x384xf32> to vector<16x128xf32>
    %282 = arith.addf %280, %281 : vector<16x128xf32>
    %283 = arith.negf %282 : vector<16x128xf32>
    %284 = math.exp %283 : vector<16x128xf32>
    %cst_96 = arith.constant 1.000000e+00 : f32
    %285 = vector.broadcast %cst_96 : f32 to vector<16x128xf32>
    %286 = arith.addf %285, %284 : vector<16x128xf32>
    %287 = arith.divf %285, %286 : vector<16x128xf32>
    %288 = vector.extract_strided_slice %268 {offsets = [0, 256], sizes = [16, 128], strides = [1, 1]} : vector<16x384xf32> to vector<16x128xf32>
    %289 = vector.extract_strided_slice %271 {offsets = [0, 256], sizes = [16, 128], strides = [1, 1]} : vector<16x384xf32> to vector<16x128xf32>
    %c0_97 = arith.constant 0 : index
    %c0_98 = arith.constant 0 : index
    %290 = vector.load %arg9[%c0_97, %c0_98] : memref<1x128xf32, #tpu.memory_space<vmem>>, vector<1x128xf32>
    %291 = vector.broadcast %290 : vector<1x128xf32> to vector<16x128xf32>
    %292 = arith.addf %289, %291 : vector<16x128xf32>
    %293 = arith.mulf %279, %292 : vector<16x128xf32>
    %294 = arith.addf %288, %293 : vector<16x128xf32>
    %295 = math.tanh %294 : vector<16x128xf32>
    %cst_99 = arith.constant 1.000000e+00 : f32
    %296 = vector.broadcast %cst_99 : f32 to vector<16x128xf32>
    %297 = arith.subf %296, %287 : vector<16x128xf32>
    %298 = arith.mulf %297, %295 : vector<16x128xf32>
    %299 = arith.mulf %287, %187 : vector<16x128xf32>
    %300 = arith.addf %298, %299 : vector<16x128xf32>
    %301 = arith.truncf %300 : vector<16x128xf32> to vector<16x128xbf16>
    %c0_100 = arith.constant 0 : index
    %c0_101 = arith.constant 0 : index
    %302 = vector.load %arg10[%c0_100, %c0_101] : memref<128x384xbf16, #tpu.memory_space<vmem>>, vector<128x384xbf16>
    %cst_102 = arith.constant dense<0.000000e+00> : vector<16x384xf32>
    %303 = tpu.matmul %188, %302, %cst_102 {dimension_numbers = #tpu.dot_dimension_numbers<[1], [0], [0], [1], [0, 0, 1, 1], [], []>} : vector<16x128xbf16>, vector<128x384xbf16>, vector<16x384xf32> -> vector<16x384xf32>
    %c0_103 = arith.constant 0 : index
    %c0_104 = arith.constant 0 : index
    %304 = vector.load %arg12[%c0_103, %c0_104] : memref<1x384xf32, #tpu.memory_space<vmem>>, vector<1x384xf32>
    %305 = vector.broadcast %304 : vector<1x384xf32> to vector<16x384xf32>
    %306 = arith.addf %303, %305 : vector<16x384xf32>
    %307 = arith.truncf %225 : vector<16x128xf32> to vector<16x128xbf16>
    %c0_105 = arith.constant 0 : index
    %c0_106 = arith.constant 0 : index
    %308 = vector.load %arg11[%c0_105, %c0_106] : memref<128x384xbf16, #tpu.memory_space<vmem>>, vector<128x384xbf16>
    %cst_107 = arith.constant dense<0.000000e+00> : vector<16x384xf32>
    %309 = tpu.matmul %307, %308, %cst_107 {dimension_numbers = #tpu.dot_dimension_numbers<[1], [0], [0], [1], [0, 0, 1, 1], [], []>} : vector<16x128xbf16>, vector<128x384xbf16>, vector<16x384xf32> -> vector<16x384xf32>
    %310 = vector.extract_strided_slice %306 {offsets = [0, 0], sizes = [16, 128], strides = [1, 1]} : vector<16x384xf32> to vector<16x128xf32>
    %311 = vector.extract_strided_slice %309 {offsets = [0, 0], sizes = [16, 128], strides = [1, 1]} : vector<16x384xf32> to vector<16x128xf32>
    %312 = arith.addf %310, %311 : vector<16x128xf32>
    %313 = arith.negf %312 : vector<16x128xf32>
    %314 = math.exp %313 : vector<16x128xf32>
    %cst_108 = arith.constant 1.000000e+00 : f32
    %315 = vector.broadcast %cst_108 : f32 to vector<16x128xf32>
    %316 = arith.addf %315, %314 : vector<16x128xf32>
    %317 = arith.divf %315, %316 : vector<16x128xf32>
    %318 = vector.extract_strided_slice %306 {offsets = [0, 128], sizes = [16, 128], strides = [1, 1]} : vector<16x384xf32> to vector<16x128xf32>
    %319 = vector.extract_strided_slice %309 {offsets = [0, 128], sizes = [16, 128], strides = [1, 1]} : vector<16x384xf32> to vector<16x128xf32>
    %320 = arith.addf %318, %319 : vector<16x128xf32>
    %321 = arith.negf %320 : vector<16x128xf32>
    %322 = math.exp %321 : vector<16x128xf32>
    %cst_109 = arith.constant 1.000000e+00 : f32
    %323 = vector.broadcast %cst_109 : f32 to vector<16x128xf32>
    %324 = arith.addf %323, %322 : vector<16x128xf32>
    %325 = arith.divf %323, %324 : vector<16x128xf32>
    %326 = vector.extract_strided_slice %306 {offsets = [0, 256], sizes = [16, 128], strides = [1, 1]} : vector<16x384xf32> to vector<16x128xf32>
    %327 = vector.extract_strided_slice %309 {offsets = [0, 256], sizes = [16, 128], strides = [1, 1]} : vector<16x384xf32> to vector<16x128xf32>
    %c0_110 = arith.constant 0 : index
    %c0_111 = arith.constant 0 : index
    %328 = vector.load %arg13[%c0_110, %c0_111] : memref<1x128xf32, #tpu.memory_space<vmem>>, vector<1x128xf32>
    %329 = vector.broadcast %328 : vector<1x128xf32> to vector<16x128xf32>
    %330 = arith.addf %327, %329 : vector<16x128xf32>
    %331 = arith.mulf %317, %330 : vector<16x128xf32>
    %332 = arith.addf %326, %331 : vector<16x128xf32>
    %333 = math.tanh %332 : vector<16x128xf32>
    %cst_112 = arith.constant 1.000000e+00 : f32
    %334 = vector.broadcast %cst_112 : f32 to vector<16x128xf32>
    %335 = arith.subf %334, %325 : vector<16x128xf32>
    %336 = arith.mulf %335, %333 : vector<16x128xf32>
    %337 = arith.mulf %325, %225 : vector<16x128xf32>
    %338 = arith.addf %336, %337 : vector<16x128xf32>
    %339 = arith.truncf %338 : vector<16x128xf32> to vector<16x128xbf16>
    %c0_113 = arith.constant 0 : index
    %c0_114 = arith.constant 0 : index
    %340 = vector.load %arg14[%c0_113, %c0_114] : memref<128x384xbf16, #tpu.memory_space<vmem>>, vector<128x384xbf16>
    %cst_115 = arith.constant dense<0.000000e+00> : vector<16x384xf32>
    %341 = tpu.matmul %226, %340, %cst_115 {dimension_numbers = #tpu.dot_dimension_numbers<[1], [0], [0], [1], [0, 0, 1, 1], [], []>} : vector<16x128xbf16>, vector<128x384xbf16>, vector<16x384xf32> -> vector<16x384xf32>
    %c0_116 = arith.constant 0 : index
    %c0_117 = arith.constant 0 : index
    %342 = vector.load %arg16[%c0_116, %c0_117] : memref<1x384xf32, #tpu.memory_space<vmem>>, vector<1x384xf32>
    %343 = vector.broadcast %342 : vector<1x384xf32> to vector<16x384xf32>
    %344 = arith.addf %341, %343 : vector<16x384xf32>
    %345 = arith.truncf %10 : vector<16x128xf32> to vector<16x128xbf16>
    %c0_118 = arith.constant 0 : index
    %c0_119 = arith.constant 0 : index
    %346 = vector.load %arg15[%c0_118, %c0_119] : memref<128x384xbf16, #tpu.memory_space<vmem>>, vector<128x384xbf16>
    %cst_120 = arith.constant dense<0.000000e+00> : vector<16x384xf32>
    %347 = tpu.matmul %345, %346, %cst_120 {dimension_numbers = #tpu.dot_dimension_numbers<[1], [0], [0], [1], [0, 0, 1, 1], [], []>} : vector<16x128xbf16>, vector<128x384xbf16>, vector<16x384xf32> -> vector<16x384xf32>
    %348 = vector.extract_strided_slice %344 {offsets = [0, 0], sizes = [16, 128], strides = [1, 1]} : vector<16x384xf32> to vector<16x128xf32>
    %349 = vector.extract_strided_slice %347 {offsets = [0, 0], sizes = [16, 128], strides = [1, 1]} : vector<16x384xf32> to vector<16x128xf32>
    %350 = arith.addf %348, %349 : vector<16x128xf32>
    %351 = arith.negf %350 : vector<16x128xf32>
    %352 = math.exp %351 : vector<16x128xf32>
    %cst_121 = arith.constant 1.000000e+00 : f32
    %353 = vector.broadcast %cst_121 : f32 to vector<16x128xf32>
    %354 = arith.addf %353, %352 : vector<16x128xf32>
    %355 = arith.divf %353, %354 : vector<16x128xf32>
    %356 = vector.extract_strided_slice %344 {offsets = [0, 128], sizes = [16, 128], strides = [1, 1]} : vector<16x384xf32> to vector<16x128xf32>
    %357 = vector.extract_strided_slice %347 {offsets = [0, 128], sizes = [16, 128], strides = [1, 1]} : vector<16x384xf32> to vector<16x128xf32>
    %358 = arith.addf %356, %357 : vector<16x128xf32>
    %359 = arith.negf %358 : vector<16x128xf32>
    %360 = math.exp %359 : vector<16x128xf32>
    %cst_122 = arith.constant 1.000000e+00 : f32
    %361 = vector.broadcast %cst_122 : f32 to vector<16x128xf32>
    %362 = arith.addf %361, %360 : vector<16x128xf32>
    %363 = arith.divf %361, %362 : vector<16x128xf32>
    %364 = vector.extract_strided_slice %344 {offsets = [0, 256], sizes = [16, 128], strides = [1, 1]} : vector<16x384xf32> to vector<16x128xf32>
    %365 = vector.extract_strided_slice %347 {offsets = [0, 256], sizes = [16, 128], strides = [1, 1]} : vector<16x384xf32> to vector<16x128xf32>
    %c0_123 = arith.constant 0 : index
    %c0_124 = arith.constant 0 : index
    %366 = vector.load %arg17[%c0_123, %c0_124] : memref<1x128xf32, #tpu.memory_space<vmem>>, vector<1x128xf32>
    %367 = vector.broadcast %366 : vector<1x128xf32> to vector<16x128xf32>
    %368 = arith.addf %365, %367 : vector<16x128xf32>
    %369 = arith.mulf %355, %368 : vector<16x128xf32>
    %370 = arith.addf %364, %369 : vector<16x128xf32>
    %371 = math.tanh %370 : vector<16x128xf32>
    %cst_125 = arith.constant 1.000000e+00 : f32
    %372 = vector.broadcast %cst_125 : f32 to vector<16x128xf32>
    %373 = arith.subf %372, %363 : vector<16x128xf32>
    %374 = arith.mulf %373, %371 : vector<16x128xf32>
    %375 = arith.mulf %363, %10 : vector<16x128xf32>
    %376 = arith.addf %374, %375 : vector<16x128xf32>
    %c4_i32 = arith.constant 4 : i32
    %c16_i32_126 = arith.constant 16 : i32
    %377 = arith.muli %c4_i32, %c16_i32_126 : i32
    %378 = tpu.assume_multiple %377, 16 : i32
    %379 = arith.index_cast %378 : i32 to index
    %c0_127 = arith.constant 0 : index
    %380 = vector.load %arg21[%379, %c0_127] : memref<128x384xf32, #tpu.memory_space<vmem>>, vector<16x384xf32>
    %381 = arith.truncf %262 : vector<16x128xf32> to vector<16x128xbf16>
    %c0_128 = arith.constant 0 : index
    %c0_129 = arith.constant 0 : index
    %382 = vector.load %arg3[%c0_128, %c0_129] : memref<128x384xbf16, #tpu.memory_space<vmem>>, vector<128x384xbf16>
    %cst_130 = arith.constant dense<0.000000e+00> : vector<16x384xf32>
    %383 = tpu.matmul %381, %382, %cst_130 {dimension_numbers = #tpu.dot_dimension_numbers<[1], [0], [0], [1], [0, 0, 1, 1], [], []>} : vector<16x128xbf16>, vector<128x384xbf16>, vector<16x384xf32> -> vector<16x384xf32>
    %384 = vector.extract_strided_slice %380 {offsets = [0, 0], sizes = [16, 128], strides = [1, 1]} : vector<16x384xf32> to vector<16x128xf32>
    %385 = vector.extract_strided_slice %383 {offsets = [0, 0], sizes = [16, 128], strides = [1, 1]} : vector<16x384xf32> to vector<16x128xf32>
    %386 = arith.addf %384, %385 : vector<16x128xf32>
    %387 = arith.negf %386 : vector<16x128xf32>
    %388 = math.exp %387 : vector<16x128xf32>
    %cst_131 = arith.constant 1.000000e+00 : f32
    %389 = vector.broadcast %cst_131 : f32 to vector<16x128xf32>
    %390 = arith.addf %389, %388 : vector<16x128xf32>
    %391 = arith.divf %389, %390 : vector<16x128xf32>
    %392 = vector.extract_strided_slice %380 {offsets = [0, 128], sizes = [16, 128], strides = [1, 1]} : vector<16x384xf32> to vector<16x128xf32>
    %393 = vector.extract_strided_slice %383 {offsets = [0, 128], sizes = [16, 128], strides = [1, 1]} : vector<16x384xf32> to vector<16x128xf32>
    %394 = arith.addf %392, %393 : vector<16x128xf32>
    %395 = arith.negf %394 : vector<16x128xf32>
    %396 = math.exp %395 : vector<16x128xf32>
    %cst_132 = arith.constant 1.000000e+00 : f32
    %397 = vector.broadcast %cst_132 : f32 to vector<16x128xf32>
    %398 = arith.addf %397, %396 : vector<16x128xf32>
    %399 = arith.divf %397, %398 : vector<16x128xf32>
    %400 = vector.extract_strided_slice %380 {offsets = [0, 256], sizes = [16, 128], strides = [1, 1]} : vector<16x384xf32> to vector<16x128xf32>
    %401 = vector.extract_strided_slice %383 {offsets = [0, 256], sizes = [16, 128], strides = [1, 1]} : vector<16x384xf32> to vector<16x128xf32>
    %c0_133 = arith.constant 0 : index
    %c0_134 = arith.constant 0 : index
    %402 = vector.load %arg5[%c0_133, %c0_134] : memref<1x128xf32, #tpu.memory_space<vmem>>, vector<1x128xf32>
    %403 = vector.broadcast %402 : vector<1x128xf32> to vector<16x128xf32>
    %404 = arith.addf %401, %403 : vector<16x128xf32>
    %405 = arith.mulf %391, %404 : vector<16x128xf32>
    %406 = arith.addf %400, %405 : vector<16x128xf32>
    %407 = math.tanh %406 : vector<16x128xf32>
    %cst_135 = arith.constant 1.000000e+00 : f32
    %408 = vector.broadcast %cst_135 : f32 to vector<16x128xf32>
    %409 = arith.subf %408, %399 : vector<16x128xf32>
    %410 = arith.mulf %409, %407 : vector<16x128xf32>
    %411 = arith.mulf %399, %262 : vector<16x128xf32>
    %412 = arith.addf %410, %411 : vector<16x128xf32>
    %413 = arith.truncf %412 : vector<16x128xf32> to vector<16x128xbf16>
    %c0_136 = arith.constant 0 : index
    %c0_137 = arith.constant 0 : index
    %414 = vector.load %arg6[%c0_136, %c0_137] : memref<128x384xbf16, #tpu.memory_space<vmem>>, vector<128x384xbf16>
    %cst_138 = arith.constant dense<0.000000e+00> : vector<16x384xf32>
    %415 = tpu.matmul %263, %414, %cst_138 {dimension_numbers = #tpu.dot_dimension_numbers<[1], [0], [0], [1], [0, 0, 1, 1], [], []>} : vector<16x128xbf16>, vector<128x384xbf16>, vector<16x384xf32> -> vector<16x384xf32>
    %c0_139 = arith.constant 0 : index
    %c0_140 = arith.constant 0 : index
    %416 = vector.load %arg8[%c0_139, %c0_140] : memref<1x384xf32, #tpu.memory_space<vmem>>, vector<1x384xf32>
    %417 = vector.broadcast %416 : vector<1x384xf32> to vector<16x384xf32>
    %418 = arith.addf %415, %417 : vector<16x384xf32>
    %419 = arith.truncf %300 : vector<16x128xf32> to vector<16x128xbf16>
    %c0_141 = arith.constant 0 : index
    %c0_142 = arith.constant 0 : index
    %420 = vector.load %arg7[%c0_141, %c0_142] : memref<128x384xbf16, #tpu.memory_space<vmem>>, vector<128x384xbf16>
    %cst_143 = arith.constant dense<0.000000e+00> : vector<16x384xf32>
    %421 = tpu.matmul %419, %420, %cst_143 {dimension_numbers = #tpu.dot_dimension_numbers<[1], [0], [0], [1], [0, 0, 1, 1], [], []>} : vector<16x128xbf16>, vector<128x384xbf16>, vector<16x384xf32> -> vector<16x384xf32>
    %422 = vector.extract_strided_slice %418 {offsets = [0, 0], sizes = [16, 128], strides = [1, 1]} : vector<16x384xf32> to vector<16x128xf32>
    %423 = vector.extract_strided_slice %421 {offsets = [0, 0], sizes = [16, 128], strides = [1, 1]} : vector<16x384xf32> to vector<16x128xf32>
    %424 = arith.addf %422, %423 : vector<16x128xf32>
    %425 = arith.negf %424 : vector<16x128xf32>
    %426 = math.exp %425 : vector<16x128xf32>
    %cst_144 = arith.constant 1.000000e+00 : f32
    %427 = vector.broadcast %cst_144 : f32 to vector<16x128xf32>
    %428 = arith.addf %427, %426 : vector<16x128xf32>
    %429 = arith.divf %427, %428 : vector<16x128xf32>
    %430 = vector.extract_strided_slice %418 {offsets = [0, 128], sizes = [16, 128], strides = [1, 1]} : vector<16x384xf32> to vector<16x128xf32>
    %431 = vector.extract_strided_slice %421 {offsets = [0, 128], sizes = [16, 128], strides = [1, 1]} : vector<16x384xf32> to vector<16x128xf32>
    %432 = arith.addf %430, %431 : vector<16x128xf32>
    %433 = arith.negf %432 : vector<16x128xf32>
    %434 = math.exp %433 : vector<16x128xf32>
    %cst_145 = arith.constant 1.000000e+00 : f32
    %435 = vector.broadcast %cst_145 : f32 to vector<16x128xf32>
    %436 = arith.addf %435, %434 : vector<16x128xf32>
    %437 = arith.divf %435, %436 : vector<16x128xf32>
    %438 = vector.extract_strided_slice %418 {offsets = [0, 256], sizes = [16, 128], strides = [1, 1]} : vector<16x384xf32> to vector<16x128xf32>
    %439 = vector.extract_strided_slice %421 {offsets = [0, 256], sizes = [16, 128], strides = [1, 1]} : vector<16x384xf32> to vector<16x128xf32>
    %c0_146 = arith.constant 0 : index
    %c0_147 = arith.constant 0 : index
    %440 = vector.load %arg9[%c0_146, %c0_147] : memref<1x128xf32, #tpu.memory_space<vmem>>, vector<1x128xf32>
    %441 = vector.broadcast %440 : vector<1x128xf32> to vector<16x128xf32>
    %442 = arith.addf %439, %441 : vector<16x128xf32>
    %443 = arith.mulf %429, %442 : vector<16x128xf32>
    %444 = arith.addf %438, %443 : vector<16x128xf32>
    %445 = math.tanh %444 : vector<16x128xf32>
    %cst_148 = arith.constant 1.000000e+00 : f32
    %446 = vector.broadcast %cst_148 : f32 to vector<16x128xf32>
    %447 = arith.subf %446, %437 : vector<16x128xf32>
    %448 = arith.mulf %447, %445 : vector<16x128xf32>
    %449 = arith.mulf %437, %300 : vector<16x128xf32>
    %450 = arith.addf %448, %449 : vector<16x128xf32>
    %451 = arith.truncf %450 : vector<16x128xf32> to vector<16x128xbf16>
    %c0_149 = arith.constant 0 : index
    %c0_150 = arith.constant 0 : index
    %452 = vector.load %arg10[%c0_149, %c0_150] : memref<128x384xbf16, #tpu.memory_space<vmem>>, vector<128x384xbf16>
    %cst_151 = arith.constant dense<0.000000e+00> : vector<16x384xf32>
    %453 = tpu.matmul %301, %452, %cst_151 {dimension_numbers = #tpu.dot_dimension_numbers<[1], [0], [0], [1], [0, 0, 1, 1], [], []>} : vector<16x128xbf16>, vector<128x384xbf16>, vector<16x384xf32> -> vector<16x384xf32>
    %c0_152 = arith.constant 0 : index
    %c0_153 = arith.constant 0 : index
    %454 = vector.load %arg12[%c0_152, %c0_153] : memref<1x384xf32, #tpu.memory_space<vmem>>, vector<1x384xf32>
    %455 = vector.broadcast %454 : vector<1x384xf32> to vector<16x384xf32>
    %456 = arith.addf %453, %455 : vector<16x384xf32>
    %457 = arith.truncf %338 : vector<16x128xf32> to vector<16x128xbf16>
    %c0_154 = arith.constant 0 : index
    %c0_155 = arith.constant 0 : index
    %458 = vector.load %arg11[%c0_154, %c0_155] : memref<128x384xbf16, #tpu.memory_space<vmem>>, vector<128x384xbf16>
    %cst_156 = arith.constant dense<0.000000e+00> : vector<16x384xf32>
    %459 = tpu.matmul %457, %458, %cst_156 {dimension_numbers = #tpu.dot_dimension_numbers<[1], [0], [0], [1], [0, 0, 1, 1], [], []>} : vector<16x128xbf16>, vector<128x384xbf16>, vector<16x384xf32> -> vector<16x384xf32>
    %460 = vector.extract_strided_slice %456 {offsets = [0, 0], sizes = [16, 128], strides = [1, 1]} : vector<16x384xf32> to vector<16x128xf32>
    %461 = vector.extract_strided_slice %459 {offsets = [0, 0], sizes = [16, 128], strides = [1, 1]} : vector<16x384xf32> to vector<16x128xf32>
    %462 = arith.addf %460, %461 : vector<16x128xf32>
    %463 = arith.negf %462 : vector<16x128xf32>
    %464 = math.exp %463 : vector<16x128xf32>
    %cst_157 = arith.constant 1.000000e+00 : f32
    %465 = vector.broadcast %cst_157 : f32 to vector<16x128xf32>
    %466 = arith.addf %465, %464 : vector<16x128xf32>
    %467 = arith.divf %465, %466 : vector<16x128xf32>
    %468 = vector.extract_strided_slice %456 {offsets = [0, 128], sizes = [16, 128], strides = [1, 1]} : vector<16x384xf32> to vector<16x128xf32>
    %469 = vector.extract_strided_slice %459 {offsets = [0, 128], sizes = [16, 128], strides = [1, 1]} : vector<16x384xf32> to vector<16x128xf32>
    %470 = arith.addf %468, %469 : vector<16x128xf32>
    %471 = arith.negf %470 : vector<16x128xf32>
    %472 = math.exp %471 : vector<16x128xf32>
    %cst_158 = arith.constant 1.000000e+00 : f32
    %473 = vector.broadcast %cst_158 : f32 to vector<16x128xf32>
    %474 = arith.addf %473, %472 : vector<16x128xf32>
    %475 = arith.divf %473, %474 : vector<16x128xf32>
    %476 = vector.extract_strided_slice %456 {offsets = [0, 256], sizes = [16, 128], strides = [1, 1]} : vector<16x384xf32> to vector<16x128xf32>
    %477 = vector.extract_strided_slice %459 {offsets = [0, 256], sizes = [16, 128], strides = [1, 1]} : vector<16x384xf32> to vector<16x128xf32>
    %c0_159 = arith.constant 0 : index
    %c0_160 = arith.constant 0 : index
    %478 = vector.load %arg13[%c0_159, %c0_160] : memref<1x128xf32, #tpu.memory_space<vmem>>, vector<1x128xf32>
    %479 = vector.broadcast %478 : vector<1x128xf32> to vector<16x128xf32>
    %480 = arith.addf %477, %479 : vector<16x128xf32>
    %481 = arith.mulf %467, %480 : vector<16x128xf32>
    %482 = arith.addf %476, %481 : vector<16x128xf32>
    %483 = math.tanh %482 : vector<16x128xf32>
    %cst_161 = arith.constant 1.000000e+00 : f32
    %484 = vector.broadcast %cst_161 : f32 to vector<16x128xf32>
    %485 = arith.subf %484, %475 : vector<16x128xf32>
    %486 = arith.mulf %485, %483 : vector<16x128xf32>
    %487 = arith.mulf %475, %338 : vector<16x128xf32>
    %488 = arith.addf %486, %487 : vector<16x128xf32>
    %489 = arith.truncf %488 : vector<16x128xf32> to vector<16x128xbf16>
    %c0_162 = arith.constant 0 : index
    %c0_163 = arith.constant 0 : index
    %490 = vector.load %arg14[%c0_162, %c0_163] : memref<128x384xbf16, #tpu.memory_space<vmem>>, vector<128x384xbf16>
    %cst_164 = arith.constant dense<0.000000e+00> : vector<16x384xf32>
    %491 = tpu.matmul %339, %490, %cst_164 {dimension_numbers = #tpu.dot_dimension_numbers<[1], [0], [0], [1], [0, 0, 1, 1], [], []>} : vector<16x128xbf16>, vector<128x384xbf16>, vector<16x384xf32> -> vector<16x384xf32>
    %c0_165 = arith.constant 0 : index
    %c0_166 = arith.constant 0 : index
    %492 = vector.load %arg16[%c0_165, %c0_166] : memref<1x384xf32, #tpu.memory_space<vmem>>, vector<1x384xf32>
    %493 = vector.broadcast %492 : vector<1x384xf32> to vector<16x384xf32>
    %494 = arith.addf %491, %493 : vector<16x384xf32>
    %495 = arith.truncf %376 : vector<16x128xf32> to vector<16x128xbf16>
    %c0_167 = arith.constant 0 : index
    %c0_168 = arith.constant 0 : index
    %496 = vector.load %arg15[%c0_167, %c0_168] : memref<128x384xbf16, #tpu.memory_space<vmem>>, vector<128x384xbf16>
    %cst_169 = arith.constant dense<0.000000e+00> : vector<16x384xf32>
    %497 = tpu.matmul %495, %496, %cst_169 {dimension_numbers = #tpu.dot_dimension_numbers<[1], [0], [0], [1], [0, 0, 1, 1], [], []>} : vector<16x128xbf16>, vector<128x384xbf16>, vector<16x384xf32> -> vector<16x384xf32>
    %498 = vector.extract_strided_slice %494 {offsets = [0, 0], sizes = [16, 128], strides = [1, 1]} : vector<16x384xf32> to vector<16x128xf32>
    %499 = vector.extract_strided_slice %497 {offsets = [0, 0], sizes = [16, 128], strides = [1, 1]} : vector<16x384xf32> to vector<16x128xf32>
    %500 = arith.addf %498, %499 : vector<16x128xf32>
    %501 = arith.negf %500 : vector<16x128xf32>
    %502 = math.exp %501 : vector<16x128xf32>
    %cst_170 = arith.constant 1.000000e+00 : f32
    %503 = vector.broadcast %cst_170 : f32 to vector<16x128xf32>
    %504 = arith.addf %503, %502 : vector<16x128xf32>
    %505 = arith.divf %503, %504 : vector<16x128xf32>
    %506 = vector.extract_strided_slice %494 {offsets = [0, 128], sizes = [16, 128], strides = [1, 1]} : vector<16x384xf32> to vector<16x128xf32>
    %507 = vector.extract_strided_slice %497 {offsets = [0, 128], sizes = [16, 128], strides = [1, 1]} : vector<16x384xf32> to vector<16x128xf32>
    %508 = arith.addf %506, %507 : vector<16x128xf32>
    %509 = arith.negf %508 : vector<16x128xf32>
    %510 = math.exp %509 : vector<16x128xf32>
    %cst_171 = arith.constant 1.000000e+00 : f32
    %511 = vector.broadcast %cst_171 : f32 to vector<16x128xf32>
    %512 = arith.addf %511, %510 : vector<16x128xf32>
    %513 = arith.divf %511, %512 : vector<16x128xf32>
    %514 = vector.extract_strided_slice %494 {offsets = [0, 256], sizes = [16, 128], strides = [1, 1]} : vector<16x384xf32> to vector<16x128xf32>
    %515 = vector.extract_strided_slice %497 {offsets = [0, 256], sizes = [16, 128], strides = [1, 1]} : vector<16x384xf32> to vector<16x128xf32>
    %c0_172 = arith.constant 0 : index
    %c0_173 = arith.constant 0 : index
    %516 = vector.load %arg17[%c0_172, %c0_173] : memref<1x128xf32, #tpu.memory_space<vmem>>, vector<1x128xf32>
    %517 = vector.broadcast %516 : vector<1x128xf32> to vector<16x128xf32>
    %518 = arith.addf %515, %517 : vector<16x128xf32>
    %519 = arith.mulf %505, %518 : vector<16x128xf32>
    %520 = arith.addf %514, %519 : vector<16x128xf32>
    %521 = math.tanh %520 : vector<16x128xf32>
    %cst_174 = arith.constant 1.000000e+00 : f32
    %522 = vector.broadcast %cst_174 : f32 to vector<16x128xf32>
    %523 = arith.subf %522, %513 : vector<16x128xf32>
    %524 = arith.mulf %523, %521 : vector<16x128xf32>
    %525 = arith.mulf %513, %376 : vector<16x128xf32>
    %526 = arith.addf %524, %525 : vector<16x128xf32>
    %c5_i32 = arith.constant 5 : i32
    %c16_i32_175 = arith.constant 16 : i32
    %527 = arith.muli %c5_i32, %c16_i32_175 : i32
    %528 = tpu.assume_multiple %527, 16 : i32
    %529 = arith.index_cast %528 : i32 to index
    %c0_176 = arith.constant 0 : index
    %530 = vector.load %arg21[%529, %c0_176] : memref<128x384xf32, #tpu.memory_space<vmem>>, vector<16x384xf32>
    %531 = arith.truncf %412 : vector<16x128xf32> to vector<16x128xbf16>
    %c0_177 = arith.constant 0 : index
    %c0_178 = arith.constant 0 : index
    %532 = vector.load %arg3[%c0_177, %c0_178] : memref<128x384xbf16, #tpu.memory_space<vmem>>, vector<128x384xbf16>
    %cst_179 = arith.constant dense<0.000000e+00> : vector<16x384xf32>
    %533 = tpu.matmul %531, %532, %cst_179 {dimension_numbers = #tpu.dot_dimension_numbers<[1], [0], [0], [1], [0, 0, 1, 1], [], []>} : vector<16x128xbf16>, vector<128x384xbf16>, vector<16x384xf32> -> vector<16x384xf32>
    %534 = vector.extract_strided_slice %530 {offsets = [0, 0], sizes = [16, 128], strides = [1, 1]} : vector<16x384xf32> to vector<16x128xf32>
    %535 = vector.extract_strided_slice %533 {offsets = [0, 0], sizes = [16, 128], strides = [1, 1]} : vector<16x384xf32> to vector<16x128xf32>
    %536 = arith.addf %534, %535 : vector<16x128xf32>
    %537 = arith.negf %536 : vector<16x128xf32>
    %538 = math.exp %537 : vector<16x128xf32>
    %cst_180 = arith.constant 1.000000e+00 : f32
    %539 = vector.broadcast %cst_180 : f32 to vector<16x128xf32>
    %540 = arith.addf %539, %538 : vector<16x128xf32>
    %541 = arith.divf %539, %540 : vector<16x128xf32>
    %542 = vector.extract_strided_slice %530 {offsets = [0, 128], sizes = [16, 128], strides = [1, 1]} : vector<16x384xf32> to vector<16x128xf32>
    %543 = vector.extract_strided_slice %533 {offsets = [0, 128], sizes = [16, 128], strides = [1, 1]} : vector<16x384xf32> to vector<16x128xf32>
    %544 = arith.addf %542, %543 : vector<16x128xf32>
    %545 = arith.negf %544 : vector<16x128xf32>
    %546 = math.exp %545 : vector<16x128xf32>
    %cst_181 = arith.constant 1.000000e+00 : f32
    %547 = vector.broadcast %cst_181 : f32 to vector<16x128xf32>
    %548 = arith.addf %547, %546 : vector<16x128xf32>
    %549 = arith.divf %547, %548 : vector<16x128xf32>
    %550 = vector.extract_strided_slice %530 {offsets = [0, 256], sizes = [16, 128], strides = [1, 1]} : vector<16x384xf32> to vector<16x128xf32>
    %551 = vector.extract_strided_slice %533 {offsets = [0, 256], sizes = [16, 128], strides = [1, 1]} : vector<16x384xf32> to vector<16x128xf32>
    %c0_182 = arith.constant 0 : index
    %c0_183 = arith.constant 0 : index
    %552 = vector.load %arg5[%c0_182, %c0_183] : memref<1x128xf32, #tpu.memory_space<vmem>>, vector<1x128xf32>
    %553 = vector.broadcast %552 : vector<1x128xf32> to vector<16x128xf32>
    %554 = arith.addf %551, %553 : vector<16x128xf32>
    %555 = arith.mulf %541, %554 : vector<16x128xf32>
    %556 = arith.addf %550, %555 : vector<16x128xf32>
    %557 = math.tanh %556 : vector<16x128xf32>
    %cst_184 = arith.constant 1.000000e+00 : f32
    %558 = vector.broadcast %cst_184 : f32 to vector<16x128xf32>
    %559 = arith.subf %558, %549 : vector<16x128xf32>
    %560 = arith.mulf %559, %557 : vector<16x128xf32>
    %561 = arith.mulf %549, %412 : vector<16x128xf32>
    %562 = arith.addf %560, %561 : vector<16x128xf32>
    %563 = arith.truncf %562 : vector<16x128xf32> to vector<16x128xbf16>
    %c0_185 = arith.constant 0 : index
    %c0_186 = arith.constant 0 : index
    %564 = vector.load %arg6[%c0_185, %c0_186] : memref<128x384xbf16, #tpu.memory_space<vmem>>, vector<128x384xbf16>
    %cst_187 = arith.constant dense<0.000000e+00> : vector<16x384xf32>
    %565 = tpu.matmul %413, %564, %cst_187 {dimension_numbers = #tpu.dot_dimension_numbers<[1], [0], [0], [1], [0, 0, 1, 1], [], []>} : vector<16x128xbf16>, vector<128x384xbf16>, vector<16x384xf32> -> vector<16x384xf32>
    %c0_188 = arith.constant 0 : index
    %c0_189 = arith.constant 0 : index
    %566 = vector.load %arg8[%c0_188, %c0_189] : memref<1x384xf32, #tpu.memory_space<vmem>>, vector<1x384xf32>
    %567 = vector.broadcast %566 : vector<1x384xf32> to vector<16x384xf32>
    %568 = arith.addf %565, %567 : vector<16x384xf32>
    %569 = arith.truncf %450 : vector<16x128xf32> to vector<16x128xbf16>
    %c0_190 = arith.constant 0 : index
    %c0_191 = arith.constant 0 : index
    %570 = vector.load %arg7[%c0_190, %c0_191] : memref<128x384xbf16, #tpu.memory_space<vmem>>, vector<128x384xbf16>
    %cst_192 = arith.constant dense<0.000000e+00> : vector<16x384xf32>
    %571 = tpu.matmul %569, %570, %cst_192 {dimension_numbers = #tpu.dot_dimension_numbers<[1], [0], [0], [1], [0, 0, 1, 1], [], []>} : vector<16x128xbf16>, vector<128x384xbf16>, vector<16x384xf32> -> vector<16x384xf32>
    %572 = vector.extract_strided_slice %568 {offsets = [0, 0], sizes = [16, 128], strides = [1, 1]} : vector<16x384xf32> to vector<16x128xf32>
    %573 = vector.extract_strided_slice %571 {offsets = [0, 0], sizes = [16, 128], strides = [1, 1]} : vector<16x384xf32> to vector<16x128xf32>
    %574 = arith.addf %572, %573 : vector<16x128xf32>
    %575 = arith.negf %574 : vector<16x128xf32>
    %576 = math.exp %575 : vector<16x128xf32>
    %cst_193 = arith.constant 1.000000e+00 : f32
    %577 = vector.broadcast %cst_193 : f32 to vector<16x128xf32>
    %578 = arith.addf %577, %576 : vector<16x128xf32>
    %579 = arith.divf %577, %578 : vector<16x128xf32>
    %580 = vector.extract_strided_slice %568 {offsets = [0, 128], sizes = [16, 128], strides = [1, 1]} : vector<16x384xf32> to vector<16x128xf32>
    %581 = vector.extract_strided_slice %571 {offsets = [0, 128], sizes = [16, 128], strides = [1, 1]} : vector<16x384xf32> to vector<16x128xf32>
    %582 = arith.addf %580, %581 : vector<16x128xf32>
    %583 = arith.negf %582 : vector<16x128xf32>
    %584 = math.exp %583 : vector<16x128xf32>
    %cst_194 = arith.constant 1.000000e+00 : f32
    %585 = vector.broadcast %cst_194 : f32 to vector<16x128xf32>
    %586 = arith.addf %585, %584 : vector<16x128xf32>
    %587 = arith.divf %585, %586 : vector<16x128xf32>
    %588 = vector.extract_strided_slice %568 {offsets = [0, 256], sizes = [16, 128], strides = [1, 1]} : vector<16x384xf32> to vector<16x128xf32>
    %589 = vector.extract_strided_slice %571 {offsets = [0, 256], sizes = [16, 128], strides = [1, 1]} : vector<16x384xf32> to vector<16x128xf32>
    %c0_195 = arith.constant 0 : index
    %c0_196 = arith.constant 0 : index
    %590 = vector.load %arg9[%c0_195, %c0_196] : memref<1x128xf32, #tpu.memory_space<vmem>>, vector<1x128xf32>
    %591 = vector.broadcast %590 : vector<1x128xf32> to vector<16x128xf32>
    %592 = arith.addf %589, %591 : vector<16x128xf32>
    %593 = arith.mulf %579, %592 : vector<16x128xf32>
    %594 = arith.addf %588, %593 : vector<16x128xf32>
    %595 = math.tanh %594 : vector<16x128xf32>
    %cst_197 = arith.constant 1.000000e+00 : f32
    %596 = vector.broadcast %cst_197 : f32 to vector<16x128xf32>
    %597 = arith.subf %596, %587 : vector<16x128xf32>
    %598 = arith.mulf %597, %595 : vector<16x128xf32>
    %599 = arith.mulf %587, %450 : vector<16x128xf32>
    %600 = arith.addf %598, %599 : vector<16x128xf32>
    %601 = arith.truncf %600 : vector<16x128xf32> to vector<16x128xbf16>
    %c0_198 = arith.constant 0 : index
    %c0_199 = arith.constant 0 : index
    %602 = vector.load %arg10[%c0_198, %c0_199] : memref<128x384xbf16, #tpu.memory_space<vmem>>, vector<128x384xbf16>
    %cst_200 = arith.constant dense<0.000000e+00> : vector<16x384xf32>
    %603 = tpu.matmul %451, %602, %cst_200 {dimension_numbers = #tpu.dot_dimension_numbers<[1], [0], [0], [1], [0, 0, 1, 1], [], []>} : vector<16x128xbf16>, vector<128x384xbf16>, vector<16x384xf32> -> vector<16x384xf32>
    %c0_201 = arith.constant 0 : index
    %c0_202 = arith.constant 0 : index
    %604 = vector.load %arg12[%c0_201, %c0_202] : memref<1x384xf32, #tpu.memory_space<vmem>>, vector<1x384xf32>
    %605 = vector.broadcast %604 : vector<1x384xf32> to vector<16x384xf32>
    %606 = arith.addf %603, %605 : vector<16x384xf32>
    %607 = arith.truncf %488 : vector<16x128xf32> to vector<16x128xbf16>
    %c0_203 = arith.constant 0 : index
    %c0_204 = arith.constant 0 : index
    %608 = vector.load %arg11[%c0_203, %c0_204] : memref<128x384xbf16, #tpu.memory_space<vmem>>, vector<128x384xbf16>
    %cst_205 = arith.constant dense<0.000000e+00> : vector<16x384xf32>
    %609 = tpu.matmul %607, %608, %cst_205 {dimension_numbers = #tpu.dot_dimension_numbers<[1], [0], [0], [1], [0, 0, 1, 1], [], []>} : vector<16x128xbf16>, vector<128x384xbf16>, vector<16x384xf32> -> vector<16x384xf32>
    %610 = vector.extract_strided_slice %606 {offsets = [0, 0], sizes = [16, 128], strides = [1, 1]} : vector<16x384xf32> to vector<16x128xf32>
    %611 = vector.extract_strided_slice %609 {offsets = [0, 0], sizes = [16, 128], strides = [1, 1]} : vector<16x384xf32> to vector<16x128xf32>
    %612 = arith.addf %610, %611 : vector<16x128xf32>
    %613 = arith.negf %612 : vector<16x128xf32>
    %614 = math.exp %613 : vector<16x128xf32>
    %cst_206 = arith.constant 1.000000e+00 : f32
    %615 = vector.broadcast %cst_206 : f32 to vector<16x128xf32>
    %616 = arith.addf %615, %614 : vector<16x128xf32>
    %617 = arith.divf %615, %616 : vector<16x128xf32>
    %618 = vector.extract_strided_slice %606 {offsets = [0, 128], sizes = [16, 128], strides = [1, 1]} : vector<16x384xf32> to vector<16x128xf32>
    %619 = vector.extract_strided_slice %609 {offsets = [0, 128], sizes = [16, 128], strides = [1, 1]} : vector<16x384xf32> to vector<16x128xf32>
    %620 = arith.addf %618, %619 : vector<16x128xf32>
    %621 = arith.negf %620 : vector<16x128xf32>
    %622 = math.exp %621 : vector<16x128xf32>
    %cst_207 = arith.constant 1.000000e+00 : f32
    %623 = vector.broadcast %cst_207 : f32 to vector<16x128xf32>
    %624 = arith.addf %623, %622 : vector<16x128xf32>
    %625 = arith.divf %623, %624 : vector<16x128xf32>
    %626 = vector.extract_strided_slice %606 {offsets = [0, 256], sizes = [16, 128], strides = [1, 1]} : vector<16x384xf32> to vector<16x128xf32>
    %627 = vector.extract_strided_slice %609 {offsets = [0, 256], sizes = [16, 128], strides = [1, 1]} : vector<16x384xf32> to vector<16x128xf32>
    %c0_208 = arith.constant 0 : index
    %c0_209 = arith.constant 0 : index
    %628 = vector.load %arg13[%c0_208, %c0_209] : memref<1x128xf32, #tpu.memory_space<vmem>>, vector<1x128xf32>
    %629 = vector.broadcast %628 : vector<1x128xf32> to vector<16x128xf32>
    %630 = arith.addf %627, %629 : vector<16x128xf32>
    %631 = arith.mulf %617, %630 : vector<16x128xf32>
    %632 = arith.addf %626, %631 : vector<16x128xf32>
    %633 = math.tanh %632 : vector<16x128xf32>
    %cst_210 = arith.constant 1.000000e+00 : f32
    %634 = vector.broadcast %cst_210 : f32 to vector<16x128xf32>
    %635 = arith.subf %634, %625 : vector<16x128xf32>
    %636 = arith.mulf %635, %633 : vector<16x128xf32>
    %637 = arith.mulf %625, %488 : vector<16x128xf32>
    %638 = arith.addf %636, %637 : vector<16x128xf32>
    %639 = arith.truncf %638 : vector<16x128xf32> to vector<16x128xbf16>
    %c0_211 = arith.constant 0 : index
    %c0_212 = arith.constant 0 : index
    %640 = vector.load %arg14[%c0_211, %c0_212] : memref<128x384xbf16, #tpu.memory_space<vmem>>, vector<128x384xbf16>
    %cst_213 = arith.constant dense<0.000000e+00> : vector<16x384xf32>
    %641 = tpu.matmul %489, %640, %cst_213 {dimension_numbers = #tpu.dot_dimension_numbers<[1], [0], [0], [1], [0, 0, 1, 1], [], []>} : vector<16x128xbf16>, vector<128x384xbf16>, vector<16x384xf32> -> vector<16x384xf32>
    %c0_214 = arith.constant 0 : index
    %c0_215 = arith.constant 0 : index
    %642 = vector.load %arg16[%c0_214, %c0_215] : memref<1x384xf32, #tpu.memory_space<vmem>>, vector<1x384xf32>
    %643 = vector.broadcast %642 : vector<1x384xf32> to vector<16x384xf32>
    %644 = arith.addf %641, %643 : vector<16x384xf32>
    %645 = arith.truncf %526 : vector<16x128xf32> to vector<16x128xbf16>
    %c0_216 = arith.constant 0 : index
    %c0_217 = arith.constant 0 : index
    %646 = vector.load %arg15[%c0_216, %c0_217] : memref<128x384xbf16, #tpu.memory_space<vmem>>, vector<128x384xbf16>
    %cst_218 = arith.constant dense<0.000000e+00> : vector<16x384xf32>
    %647 = tpu.matmul %645, %646, %cst_218 {dimension_numbers = #tpu.dot_dimension_numbers<[1], [0], [0], [1], [0, 0, 1, 1], [], []>} : vector<16x128xbf16>, vector<128x384xbf16>, vector<16x384xf32> -> vector<16x384xf32>
    %648 = vector.extract_strided_slice %644 {offsets = [0, 0], sizes = [16, 128], strides = [1, 1]} : vector<16x384xf32> to vector<16x128xf32>
    %649 = vector.extract_strided_slice %647 {offsets = [0, 0], sizes = [16, 128], strides = [1, 1]} : vector<16x384xf32> to vector<16x128xf32>
    %650 = arith.addf %648, %649 : vector<16x128xf32>
    %651 = arith.negf %650 : vector<16x128xf32>
    %652 = math.exp %651 : vector<16x128xf32>
    %cst_219 = arith.constant 1.000000e+00 : f32
    %653 = vector.broadcast %cst_219 : f32 to vector<16x128xf32>
    %654 = arith.addf %653, %652 : vector<16x128xf32>
    %655 = arith.divf %653, %654 : vector<16x128xf32>
    %656 = vector.extract_strided_slice %644 {offsets = [0, 128], sizes = [16, 128], strides = [1, 1]} : vector<16x384xf32> to vector<16x128xf32>
    %657 = vector.extract_strided_slice %647 {offsets = [0, 128], sizes = [16, 128], strides = [1, 1]} : vector<16x384xf32> to vector<16x128xf32>
    %658 = arith.addf %656, %657 : vector<16x128xf32>
    %659 = arith.negf %658 : vector<16x128xf32>
    %660 = math.exp %659 : vector<16x128xf32>
    %cst_220 = arith.constant 1.000000e+00 : f32
    %661 = vector.broadcast %cst_220 : f32 to vector<16x128xf32>
    %662 = arith.addf %661, %660 : vector<16x128xf32>
    %663 = arith.divf %661, %662 : vector<16x128xf32>
    %664 = vector.extract_strided_slice %644 {offsets = [0, 256], sizes = [16, 128], strides = [1, 1]} : vector<16x384xf32> to vector<16x128xf32>
    %665 = vector.extract_strided_slice %647 {offsets = [0, 256], sizes = [16, 128], strides = [1, 1]} : vector<16x384xf32> to vector<16x128xf32>
    %c0_221 = arith.constant 0 : index
    %c0_222 = arith.constant 0 : index
    %666 = vector.load %arg17[%c0_221, %c0_222] : memref<1x128xf32, #tpu.memory_space<vmem>>, vector<1x128xf32>
    %667 = vector.broadcast %666 : vector<1x128xf32> to vector<16x128xf32>
    %668 = arith.addf %665, %667 : vector<16x128xf32>
    %669 = arith.mulf %655, %668 : vector<16x128xf32>
    %670 = arith.addf %664, %669 : vector<16x128xf32>
    %671 = math.tanh %670 : vector<16x128xf32>
    %cst_223 = arith.constant 1.000000e+00 : f32
    %672 = vector.broadcast %cst_223 : f32 to vector<16x128xf32>
    %673 = arith.subf %672, %663 : vector<16x128xf32>
    %674 = arith.mulf %673, %671 : vector<16x128xf32>
    %675 = arith.mulf %663, %526 : vector<16x128xf32>
    %676 = arith.addf %674, %675 : vector<16x128xf32>
    %c6_i32 = arith.constant 6 : i32
    %c16_i32_224 = arith.constant 16 : i32
    %677 = arith.muli %c6_i32, %c16_i32_224 : i32
    %678 = tpu.assume_multiple %677, 16 : i32
    %679 = arith.index_cast %678 : i32 to index
    %c0_225 = arith.constant 0 : index
    %680 = vector.load %arg21[%679, %c0_225] : memref<128x384xf32, #tpu.memory_space<vmem>>, vector<16x384xf32>
    %681 = arith.truncf %562 : vector<16x128xf32> to vector<16x128xbf16>
    %c0_226 = arith.constant 0 : index
    %c0_227 = arith.constant 0 : index
    %682 = vector.load %arg3[%c0_226, %c0_227] : memref<128x384xbf16, #tpu.memory_space<vmem>>, vector<128x384xbf16>
    %cst_228 = arith.constant dense<0.000000e+00> : vector<16x384xf32>
    %683 = tpu.matmul %681, %682, %cst_228 {dimension_numbers = #tpu.dot_dimension_numbers<[1], [0], [0], [1], [0, 0, 1, 1], [], []>} : vector<16x128xbf16>, vector<128x384xbf16>, vector<16x384xf32> -> vector<16x384xf32>
    %684 = vector.extract_strided_slice %680 {offsets = [0, 0], sizes = [16, 128], strides = [1, 1]} : vector<16x384xf32> to vector<16x128xf32>
    %685 = vector.extract_strided_slice %683 {offsets = [0, 0], sizes = [16, 128], strides = [1, 1]} : vector<16x384xf32> to vector<16x128xf32>
    %686 = arith.addf %684, %685 : vector<16x128xf32>
    %687 = arith.negf %686 : vector<16x128xf32>
    %688 = math.exp %687 : vector<16x128xf32>
    %cst_229 = arith.constant 1.000000e+00 : f32
    %689 = vector.broadcast %cst_229 : f32 to vector<16x128xf32>
    %690 = arith.addf %689, %688 : vector<16x128xf32>
    %691 = arith.divf %689, %690 : vector<16x128xf32>
    %692 = vector.extract_strided_slice %680 {offsets = [0, 128], sizes = [16, 128], strides = [1, 1]} : vector<16x384xf32> to vector<16x128xf32>
    %693 = vector.extract_strided_slice %683 {offsets = [0, 128], sizes = [16, 128], strides = [1, 1]} : vector<16x384xf32> to vector<16x128xf32>
    %694 = arith.addf %692, %693 : vector<16x128xf32>
    %695 = arith.negf %694 : vector<16x128xf32>
    %696 = math.exp %695 : vector<16x128xf32>
    %cst_230 = arith.constant 1.000000e+00 : f32
    %697 = vector.broadcast %cst_230 : f32 to vector<16x128xf32>
    %698 = arith.addf %697, %696 : vector<16x128xf32>
    %699 = arith.divf %697, %698 : vector<16x128xf32>
    %700 = vector.extract_strided_slice %680 {offsets = [0, 256], sizes = [16, 128], strides = [1, 1]} : vector<16x384xf32> to vector<16x128xf32>
    %701 = vector.extract_strided_slice %683 {offsets = [0, 256], sizes = [16, 128], strides = [1, 1]} : vector<16x384xf32> to vector<16x128xf32>
    %c0_231 = arith.constant 0 : index
    %c0_232 = arith.constant 0 : index
    %702 = vector.load %arg5[%c0_231, %c0_232] : memref<1x128xf32, #tpu.memory_space<vmem>>, vector<1x128xf32>
    %703 = vector.broadcast %702 : vector<1x128xf32> to vector<16x128xf32>
    %704 = arith.addf %701, %703 : vector<16x128xf32>
    %705 = arith.mulf %691, %704 : vector<16x128xf32>
    %706 = arith.addf %700, %705 : vector<16x128xf32>
    %707 = math.tanh %706 : vector<16x128xf32>
    %cst_233 = arith.constant 1.000000e+00 : f32
    %708 = vector.broadcast %cst_233 : f32 to vector<16x128xf32>
    %709 = arith.subf %708, %699 : vector<16x128xf32>
    %710 = arith.mulf %709, %707 : vector<16x128xf32>
    %711 = arith.mulf %699, %562 : vector<16x128xf32>
    %712 = arith.addf %710, %711 : vector<16x128xf32>
    %713 = arith.truncf %712 : vector<16x128xf32> to vector<16x128xbf16>
    %c0_234 = arith.constant 0 : index
    %c0_235 = arith.constant 0 : index
    %714 = vector.load %arg6[%c0_234, %c0_235] : memref<128x384xbf16, #tpu.memory_space<vmem>>, vector<128x384xbf16>
    %cst_236 = arith.constant dense<0.000000e+00> : vector<16x384xf32>
    %715 = tpu.matmul %563, %714, %cst_236 {dimension_numbers = #tpu.dot_dimension_numbers<[1], [0], [0], [1], [0, 0, 1, 1], [], []>} : vector<16x128xbf16>, vector<128x384xbf16>, vector<16x384xf32> -> vector<16x384xf32>
    %c0_237 = arith.constant 0 : index
    %c0_238 = arith.constant 0 : index
    %716 = vector.load %arg8[%c0_237, %c0_238] : memref<1x384xf32, #tpu.memory_space<vmem>>, vector<1x384xf32>
    %717 = vector.broadcast %716 : vector<1x384xf32> to vector<16x384xf32>
    %718 = arith.addf %715, %717 : vector<16x384xf32>
    %719 = arith.truncf %600 : vector<16x128xf32> to vector<16x128xbf16>
    %c0_239 = arith.constant 0 : index
    %c0_240 = arith.constant 0 : index
    %720 = vector.load %arg7[%c0_239, %c0_240] : memref<128x384xbf16, #tpu.memory_space<vmem>>, vector<128x384xbf16>
    %cst_241 = arith.constant dense<0.000000e+00> : vector<16x384xf32>
    %721 = tpu.matmul %719, %720, %cst_241 {dimension_numbers = #tpu.dot_dimension_numbers<[1], [0], [0], [1], [0, 0, 1, 1], [], []>} : vector<16x128xbf16>, vector<128x384xbf16>, vector<16x384xf32> -> vector<16x384xf32>
    %722 = vector.extract_strided_slice %718 {offsets = [0, 0], sizes = [16, 128], strides = [1, 1]} : vector<16x384xf32> to vector<16x128xf32>
    %723 = vector.extract_strided_slice %721 {offsets = [0, 0], sizes = [16, 128], strides = [1, 1]} : vector<16x384xf32> to vector<16x128xf32>
    %724 = arith.addf %722, %723 : vector<16x128xf32>
    %725 = arith.negf %724 : vector<16x128xf32>
    %726 = math.exp %725 : vector<16x128xf32>
    %cst_242 = arith.constant 1.000000e+00 : f32
    %727 = vector.broadcast %cst_242 : f32 to vector<16x128xf32>
    %728 = arith.addf %727, %726 : vector<16x128xf32>
    %729 = arith.divf %727, %728 : vector<16x128xf32>
    %730 = vector.extract_strided_slice %718 {offsets = [0, 128], sizes = [16, 128], strides = [1, 1]} : vector<16x384xf32> to vector<16x128xf32>
    %731 = vector.extract_strided_slice %721 {offsets = [0, 128], sizes = [16, 128], strides = [1, 1]} : vector<16x384xf32> to vector<16x128xf32>
    %732 = arith.addf %730, %731 : vector<16x128xf32>
    %733 = arith.negf %732 : vector<16x128xf32>
    %734 = math.exp %733 : vector<16x128xf32>
    %cst_243 = arith.constant 1.000000e+00 : f32
    %735 = vector.broadcast %cst_243 : f32 to vector<16x128xf32>
    %736 = arith.addf %735, %734 : vector<16x128xf32>
    %737 = arith.divf %735, %736 : vector<16x128xf32>
    %738 = vector.extract_strided_slice %718 {offsets = [0, 256], sizes = [16, 128], strides = [1, 1]} : vector<16x384xf32> to vector<16x128xf32>
    %739 = vector.extract_strided_slice %721 {offsets = [0, 256], sizes = [16, 128], strides = [1, 1]} : vector<16x384xf32> to vector<16x128xf32>
    %c0_244 = arith.constant 0 : index
    %c0_245 = arith.constant 0 : index
    %740 = vector.load %arg9[%c0_244, %c0_245] : memref<1x128xf32, #tpu.memory_space<vmem>>, vector<1x128xf32>
    %741 = vector.broadcast %740 : vector<1x128xf32> to vector<16x128xf32>
    %742 = arith.addf %739, %741 : vector<16x128xf32>
    %743 = arith.mulf %729, %742 : vector<16x128xf32>
    %744 = arith.addf %738, %743 : vector<16x128xf32>
    %745 = math.tanh %744 : vector<16x128xf32>
    %cst_246 = arith.constant 1.000000e+00 : f32
    %746 = vector.broadcast %cst_246 : f32 to vector<16x128xf32>
    %747 = arith.subf %746, %737 : vector<16x128xf32>
    %748 = arith.mulf %747, %745 : vector<16x128xf32>
    %749 = arith.mulf %737, %600 : vector<16x128xf32>
    %750 = arith.addf %748, %749 : vector<16x128xf32>
    %751 = arith.truncf %750 : vector<16x128xf32> to vector<16x128xbf16>
    %c0_247 = arith.constant 0 : index
    %c0_248 = arith.constant 0 : index
    %752 = vector.load %arg10[%c0_247, %c0_248] : memref<128x384xbf16, #tpu.memory_space<vmem>>, vector<128x384xbf16>
    %cst_249 = arith.constant dense<0.000000e+00> : vector<16x384xf32>
    %753 = tpu.matmul %601, %752, %cst_249 {dimension_numbers = #tpu.dot_dimension_numbers<[1], [0], [0], [1], [0, 0, 1, 1], [], []>} : vector<16x128xbf16>, vector<128x384xbf16>, vector<16x384xf32> -> vector<16x384xf32>
    %c0_250 = arith.constant 0 : index
    %c0_251 = arith.constant 0 : index
    %754 = vector.load %arg12[%c0_250, %c0_251] : memref<1x384xf32, #tpu.memory_space<vmem>>, vector<1x384xf32>
    %755 = vector.broadcast %754 : vector<1x384xf32> to vector<16x384xf32>
    %756 = arith.addf %753, %755 : vector<16x384xf32>
    %757 = arith.truncf %638 : vector<16x128xf32> to vector<16x128xbf16>
    %c0_252 = arith.constant 0 : index
    %c0_253 = arith.constant 0 : index
    %758 = vector.load %arg11[%c0_252, %c0_253] : memref<128x384xbf16, #tpu.memory_space<vmem>>, vector<128x384xbf16>
    %cst_254 = arith.constant dense<0.000000e+00> : vector<16x384xf32>
    %759 = tpu.matmul %757, %758, %cst_254 {dimension_numbers = #tpu.dot_dimension_numbers<[1], [0], [0], [1], [0, 0, 1, 1], [], []>} : vector<16x128xbf16>, vector<128x384xbf16>, vector<16x384xf32> -> vector<16x384xf32>
    %760 = vector.extract_strided_slice %756 {offsets = [0, 0], sizes = [16, 128], strides = [1, 1]} : vector<16x384xf32> to vector<16x128xf32>
    %761 = vector.extract_strided_slice %759 {offsets = [0, 0], sizes = [16, 128], strides = [1, 1]} : vector<16x384xf32> to vector<16x128xf32>
    %762 = arith.addf %760, %761 : vector<16x128xf32>
    %763 = arith.negf %762 : vector<16x128xf32>
    %764 = math.exp %763 : vector<16x128xf32>
    %cst_255 = arith.constant 1.000000e+00 : f32
    %765 = vector.broadcast %cst_255 : f32 to vector<16x128xf32>
    %766 = arith.addf %765, %764 : vector<16x128xf32>
    %767 = arith.divf %765, %766 : vector<16x128xf32>
    %768 = vector.extract_strided_slice %756 {offsets = [0, 128], sizes = [16, 128], strides = [1, 1]} : vector<16x384xf32> to vector<16x128xf32>
    %769 = vector.extract_strided_slice %759 {offsets = [0, 128], sizes = [16, 128], strides = [1, 1]} : vector<16x384xf32> to vector<16x128xf32>
    %770 = arith.addf %768, %769 : vector<16x128xf32>
    %771 = arith.negf %770 : vector<16x128xf32>
    %772 = math.exp %771 : vector<16x128xf32>
    %cst_256 = arith.constant 1.000000e+00 : f32
    %773 = vector.broadcast %cst_256 : f32 to vector<16x128xf32>
    %774 = arith.addf %773, %772 : vector<16x128xf32>
    %775 = arith.divf %773, %774 : vector<16x128xf32>
    %776 = vector.extract_strided_slice %756 {offsets = [0, 256], sizes = [16, 128], strides = [1, 1]} : vector<16x384xf32> to vector<16x128xf32>
    %777 = vector.extract_strided_slice %759 {offsets = [0, 256], sizes = [16, 128], strides = [1, 1]} : vector<16x384xf32> to vector<16x128xf32>
    %c0_257 = arith.constant 0 : index
    %c0_258 = arith.constant 0 : index
    %778 = vector.load %arg13[%c0_257, %c0_258] : memref<1x128xf32, #tpu.memory_space<vmem>>, vector<1x128xf32>
    %779 = vector.broadcast %778 : vector<1x128xf32> to vector<16x128xf32>
    %780 = arith.addf %777, %779 : vector<16x128xf32>
    %781 = arith.mulf %767, %780 : vector<16x128xf32>
    %782 = arith.addf %776, %781 : vector<16x128xf32>
    %783 = math.tanh %782 : vector<16x128xf32>
    %cst_259 = arith.constant 1.000000e+00 : f32
    %784 = vector.broadcast %cst_259 : f32 to vector<16x128xf32>
    %785 = arith.subf %784, %775 : vector<16x128xf32>
    %786 = arith.mulf %785, %783 : vector<16x128xf32>
    %787 = arith.mulf %775, %638 : vector<16x128xf32>
    %788 = arith.addf %786, %787 : vector<16x128xf32>
    %789 = arith.truncf %788 : vector<16x128xf32> to vector<16x128xbf16>
    %c0_260 = arith.constant 0 : index
    %c0_261 = arith.constant 0 : index
    %790 = vector.load %arg14[%c0_260, %c0_261] : memref<128x384xbf16, #tpu.memory_space<vmem>>, vector<128x384xbf16>
    %cst_262 = arith.constant dense<0.000000e+00> : vector<16x384xf32>
    %791 = tpu.matmul %639, %790, %cst_262 {dimension_numbers = #tpu.dot_dimension_numbers<[1], [0], [0], [1], [0, 0, 1, 1], [], []>} : vector<16x128xbf16>, vector<128x384xbf16>, vector<16x384xf32> -> vector<16x384xf32>
    %c0_263 = arith.constant 0 : index
    %c0_264 = arith.constant 0 : index
    %792 = vector.load %arg16[%c0_263, %c0_264] : memref<1x384xf32, #tpu.memory_space<vmem>>, vector<1x384xf32>
    %793 = vector.broadcast %792 : vector<1x384xf32> to vector<16x384xf32>
    %794 = arith.addf %791, %793 : vector<16x384xf32>
    %795 = arith.truncf %676 : vector<16x128xf32> to vector<16x128xbf16>
    %c0_265 = arith.constant 0 : index
    %c0_266 = arith.constant 0 : index
    %796 = vector.load %arg15[%c0_265, %c0_266] : memref<128x384xbf16, #tpu.memory_space<vmem>>, vector<128x384xbf16>
    %cst_267 = arith.constant dense<0.000000e+00> : vector<16x384xf32>
    %797 = tpu.matmul %795, %796, %cst_267 {dimension_numbers = #tpu.dot_dimension_numbers<[1], [0], [0], [1], [0, 0, 1, 1], [], []>} : vector<16x128xbf16>, vector<128x384xbf16>, vector<16x384xf32> -> vector<16x384xf32>
    %798 = vector.extract_strided_slice %794 {offsets = [0, 0], sizes = [16, 128], strides = [1, 1]} : vector<16x384xf32> to vector<16x128xf32>
    %799 = vector.extract_strided_slice %797 {offsets = [0, 0], sizes = [16, 128], strides = [1, 1]} : vector<16x384xf32> to vector<16x128xf32>
    %800 = arith.addf %798, %799 : vector<16x128xf32>
    %801 = arith.negf %800 : vector<16x128xf32>
    %802 = math.exp %801 : vector<16x128xf32>
    %cst_268 = arith.constant 1.000000e+00 : f32
    %803 = vector.broadcast %cst_268 : f32 to vector<16x128xf32>
    %804 = arith.addf %803, %802 : vector<16x128xf32>
    %805 = arith.divf %803, %804 : vector<16x128xf32>
    %806 = vector.extract_strided_slice %794 {offsets = [0, 128], sizes = [16, 128], strides = [1, 1]} : vector<16x384xf32> to vector<16x128xf32>
    %807 = vector.extract_strided_slice %797 {offsets = [0, 128], sizes = [16, 128], strides = [1, 1]} : vector<16x384xf32> to vector<16x128xf32>
    %808 = arith.addf %806, %807 : vector<16x128xf32>
    %809 = arith.negf %808 : vector<16x128xf32>
    %810 = math.exp %809 : vector<16x128xf32>
    %cst_269 = arith.constant 1.000000e+00 : f32
    %811 = vector.broadcast %cst_269 : f32 to vector<16x128xf32>
    %812 = arith.addf %811, %810 : vector<16x128xf32>
    %813 = arith.divf %811, %812 : vector<16x128xf32>
    %814 = vector.extract_strided_slice %794 {offsets = [0, 256], sizes = [16, 128], strides = [1, 1]} : vector<16x384xf32> to vector<16x128xf32>
    %815 = vector.extract_strided_slice %797 {offsets = [0, 256], sizes = [16, 128], strides = [1, 1]} : vector<16x384xf32> to vector<16x128xf32>
    %c0_270 = arith.constant 0 : index
    %c0_271 = arith.constant 0 : index
    %816 = vector.load %arg17[%c0_270, %c0_271] : memref<1x128xf32, #tpu.memory_space<vmem>>, vector<1x128xf32>
    %817 = vector.broadcast %816 : vector<1x128xf32> to vector<16x128xf32>
    %818 = arith.addf %815, %817 : vector<16x128xf32>
    %819 = arith.mulf %805, %818 : vector<16x128xf32>
    %820 = arith.addf %814, %819 : vector<16x128xf32>
    %821 = math.tanh %820 : vector<16x128xf32>
    %cst_272 = arith.constant 1.000000e+00 : f32
    %822 = vector.broadcast %cst_272 : f32 to vector<16x128xf32>
    %823 = arith.subf %822, %813 : vector<16x128xf32>
    %824 = arith.mulf %823, %821 : vector<16x128xf32>
    %825 = arith.mulf %813, %676 : vector<16x128xf32>
    %826 = arith.addf %824, %825 : vector<16x128xf32>
    %c7_i32 = arith.constant 7 : i32
    %c16_i32_273 = arith.constant 16 : i32
    %827 = arith.muli %c7_i32, %c16_i32_273 : i32
    %828 = tpu.assume_multiple %827, 16 : i32
    %829 = arith.index_cast %828 : i32 to index
    %c0_274 = arith.constant 0 : index
    %830 = vector.load %arg21[%829, %c0_274] : memref<128x384xf32, #tpu.memory_space<vmem>>, vector<16x384xf32>
    %831 = arith.truncf %712 : vector<16x128xf32> to vector<16x128xbf16>
    %c0_275 = arith.constant 0 : index
    %c0_276 = arith.constant 0 : index
    %832 = vector.load %arg3[%c0_275, %c0_276] : memref<128x384xbf16, #tpu.memory_space<vmem>>, vector<128x384xbf16>
    %cst_277 = arith.constant dense<0.000000e+00> : vector<16x384xf32>
    %833 = tpu.matmul %831, %832, %cst_277 {dimension_numbers = #tpu.dot_dimension_numbers<[1], [0], [0], [1], [0, 0, 1, 1], [], []>} : vector<16x128xbf16>, vector<128x384xbf16>, vector<16x384xf32> -> vector<16x384xf32>
    %834 = vector.extract_strided_slice %830 {offsets = [0, 0], sizes = [16, 128], strides = [1, 1]} : vector<16x384xf32> to vector<16x128xf32>
    %835 = vector.extract_strided_slice %833 {offsets = [0, 0], sizes = [16, 128], strides = [1, 1]} : vector<16x384xf32> to vector<16x128xf32>
    %836 = arith.addf %834, %835 : vector<16x128xf32>
    %837 = arith.negf %836 : vector<16x128xf32>
    %838 = math.exp %837 : vector<16x128xf32>
    %cst_278 = arith.constant 1.000000e+00 : f32
    %839 = vector.broadcast %cst_278 : f32 to vector<16x128xf32>
    %840 = arith.addf %839, %838 : vector<16x128xf32>
    %841 = arith.divf %839, %840 : vector<16x128xf32>
    %842 = vector.extract_strided_slice %830 {offsets = [0, 128], sizes = [16, 128], strides = [1, 1]} : vector<16x384xf32> to vector<16x128xf32>
    %843 = vector.extract_strided_slice %833 {offsets = [0, 128], sizes = [16, 128], strides = [1, 1]} : vector<16x384xf32> to vector<16x128xf32>
    %844 = arith.addf %842, %843 : vector<16x128xf32>
    %845 = arith.negf %844 : vector<16x128xf32>
    %846 = math.exp %845 : vector<16x128xf32>
    %cst_279 = arith.constant 1.000000e+00 : f32
    %847 = vector.broadcast %cst_279 : f32 to vector<16x128xf32>
    %848 = arith.addf %847, %846 : vector<16x128xf32>
    %849 = arith.divf %847, %848 : vector<16x128xf32>
    %850 = vector.extract_strided_slice %830 {offsets = [0, 256], sizes = [16, 128], strides = [1, 1]} : vector<16x384xf32> to vector<16x128xf32>
    %851 = vector.extract_strided_slice %833 {offsets = [0, 256], sizes = [16, 128], strides = [1, 1]} : vector<16x384xf32> to vector<16x128xf32>
    %c0_280 = arith.constant 0 : index
    %c0_281 = arith.constant 0 : index
    %852 = vector.load %arg5[%c0_280, %c0_281] : memref<1x128xf32, #tpu.memory_space<vmem>>, vector<1x128xf32>
    %853 = vector.broadcast %852 : vector<1x128xf32> to vector<16x128xf32>
    %854 = arith.addf %851, %853 : vector<16x128xf32>
    %855 = arith.mulf %841, %854 : vector<16x128xf32>
    %856 = arith.addf %850, %855 : vector<16x128xf32>
    %857 = math.tanh %856 : vector<16x128xf32>
    %cst_282 = arith.constant 1.000000e+00 : f32
    %858 = vector.broadcast %cst_282 : f32 to vector<16x128xf32>
    %859 = arith.subf %858, %849 : vector<16x128xf32>
    %860 = arith.mulf %859, %857 : vector<16x128xf32>
    %861 = arith.mulf %849, %712 : vector<16x128xf32>
    %862 = arith.addf %860, %861 : vector<16x128xf32>
    %863 = arith.truncf %862 : vector<16x128xf32> to vector<16x128xbf16>
    %c0_283 = arith.constant 0 : index
    %c0_284 = arith.constant 0 : index
    %864 = vector.load %arg6[%c0_283, %c0_284] : memref<128x384xbf16, #tpu.memory_space<vmem>>, vector<128x384xbf16>
    %cst_285 = arith.constant dense<0.000000e+00> : vector<16x384xf32>
    %865 = tpu.matmul %713, %864, %cst_285 {dimension_numbers = #tpu.dot_dimension_numbers<[1], [0], [0], [1], [0, 0, 1, 1], [], []>} : vector<16x128xbf16>, vector<128x384xbf16>, vector<16x384xf32> -> vector<16x384xf32>
    %c0_286 = arith.constant 0 : index
    %c0_287 = arith.constant 0 : index
    %866 = vector.load %arg8[%c0_286, %c0_287] : memref<1x384xf32, #tpu.memory_space<vmem>>, vector<1x384xf32>
    %867 = vector.broadcast %866 : vector<1x384xf32> to vector<16x384xf32>
    %868 = arith.addf %865, %867 : vector<16x384xf32>
    %869 = arith.truncf %750 : vector<16x128xf32> to vector<16x128xbf16>
    %c0_288 = arith.constant 0 : index
    %c0_289 = arith.constant 0 : index
    %870 = vector.load %arg7[%c0_288, %c0_289] : memref<128x384xbf16, #tpu.memory_space<vmem>>, vector<128x384xbf16>
    %cst_290 = arith.constant dense<0.000000e+00> : vector<16x384xf32>
    %871 = tpu.matmul %869, %870, %cst_290 {dimension_numbers = #tpu.dot_dimension_numbers<[1], [0], [0], [1], [0, 0, 1, 1], [], []>} : vector<16x128xbf16>, vector<128x384xbf16>, vector<16x384xf32> -> vector<16x384xf32>
    %872 = vector.extract_strided_slice %868 {offsets = [0, 0], sizes = [16, 128], strides = [1, 1]} : vector<16x384xf32> to vector<16x128xf32>
    %873 = vector.extract_strided_slice %871 {offsets = [0, 0], sizes = [16, 128], strides = [1, 1]} : vector<16x384xf32> to vector<16x128xf32>
    %874 = arith.addf %872, %873 : vector<16x128xf32>
    %875 = arith.negf %874 : vector<16x128xf32>
    %876 = math.exp %875 : vector<16x128xf32>
    %cst_291 = arith.constant 1.000000e+00 : f32
    %877 = vector.broadcast %cst_291 : f32 to vector<16x128xf32>
    %878 = arith.addf %877, %876 : vector<16x128xf32>
    %879 = arith.divf %877, %878 : vector<16x128xf32>
    %880 = vector.extract_strided_slice %868 {offsets = [0, 128], sizes = [16, 128], strides = [1, 1]} : vector<16x384xf32> to vector<16x128xf32>
    %881 = vector.extract_strided_slice %871 {offsets = [0, 128], sizes = [16, 128], strides = [1, 1]} : vector<16x384xf32> to vector<16x128xf32>
    %882 = arith.addf %880, %881 : vector<16x128xf32>
    %883 = arith.negf %882 : vector<16x128xf32>
    %884 = math.exp %883 : vector<16x128xf32>
    %cst_292 = arith.constant 1.000000e+00 : f32
    %885 = vector.broadcast %cst_292 : f32 to vector<16x128xf32>
    %886 = arith.addf %885, %884 : vector<16x128xf32>
    %887 = arith.divf %885, %886 : vector<16x128xf32>
    %888 = vector.extract_strided_slice %868 {offsets = [0, 256], sizes = [16, 128], strides = [1, 1]} : vector<16x384xf32> to vector<16x128xf32>
    %889 = vector.extract_strided_slice %871 {offsets = [0, 256], sizes = [16, 128], strides = [1, 1]} : vector<16x384xf32> to vector<16x128xf32>
    %c0_293 = arith.constant 0 : index
    %c0_294 = arith.constant 0 : index
    %890 = vector.load %arg9[%c0_293, %c0_294] : memref<1x128xf32, #tpu.memory_space<vmem>>, vector<1x128xf32>
    %891 = vector.broadcast %890 : vector<1x128xf32> to vector<16x128xf32>
    %892 = arith.addf %889, %891 : vector<16x128xf32>
    %893 = arith.mulf %879, %892 : vector<16x128xf32>
    %894 = arith.addf %888, %893 : vector<16x128xf32>
    %895 = math.tanh %894 : vector<16x128xf32>
    %cst_295 = arith.constant 1.000000e+00 : f32
    %896 = vector.broadcast %cst_295 : f32 to vector<16x128xf32>
    %897 = arith.subf %896, %887 : vector<16x128xf32>
    %898 = arith.mulf %897, %895 : vector<16x128xf32>
    %899 = arith.mulf %887, %750 : vector<16x128xf32>
    %900 = arith.addf %898, %899 : vector<16x128xf32>
    %901 = arith.truncf %900 : vector<16x128xf32> to vector<16x128xbf16>
    %c0_296 = arith.constant 0 : index
    %c0_297 = arith.constant 0 : index
    %902 = vector.load %arg10[%c0_296, %c0_297] : memref<128x384xbf16, #tpu.memory_space<vmem>>, vector<128x384xbf16>
    %cst_298 = arith.constant dense<0.000000e+00> : vector<16x384xf32>
    %903 = tpu.matmul %751, %902, %cst_298 {dimension_numbers = #tpu.dot_dimension_numbers<[1], [0], [0], [1], [0, 0, 1, 1], [], []>} : vector<16x128xbf16>, vector<128x384xbf16>, vector<16x384xf32> -> vector<16x384xf32>
    %c0_299 = arith.constant 0 : index
    %c0_300 = arith.constant 0 : index
    %904 = vector.load %arg12[%c0_299, %c0_300] : memref<1x384xf32, #tpu.memory_space<vmem>>, vector<1x384xf32>
    %905 = vector.broadcast %904 : vector<1x384xf32> to vector<16x384xf32>
    %906 = arith.addf %903, %905 : vector<16x384xf32>
    %907 = arith.truncf %788 : vector<16x128xf32> to vector<16x128xbf16>
    %c0_301 = arith.constant 0 : index
    %c0_302 = arith.constant 0 : index
    %908 = vector.load %arg11[%c0_301, %c0_302] : memref<128x384xbf16, #tpu.memory_space<vmem>>, vector<128x384xbf16>
    %cst_303 = arith.constant dense<0.000000e+00> : vector<16x384xf32>
    %909 = tpu.matmul %907, %908, %cst_303 {dimension_numbers = #tpu.dot_dimension_numbers<[1], [0], [0], [1], [0, 0, 1, 1], [], []>} : vector<16x128xbf16>, vector<128x384xbf16>, vector<16x384xf32> -> vector<16x384xf32>
    %910 = vector.extract_strided_slice %906 {offsets = [0, 0], sizes = [16, 128], strides = [1, 1]} : vector<16x384xf32> to vector<16x128xf32>
    %911 = vector.extract_strided_slice %909 {offsets = [0, 0], sizes = [16, 128], strides = [1, 1]} : vector<16x384xf32> to vector<16x128xf32>
    %912 = arith.addf %910, %911 : vector<16x128xf32>
    %913 = arith.negf %912 : vector<16x128xf32>
    %914 = math.exp %913 : vector<16x128xf32>
    %cst_304 = arith.constant 1.000000e+00 : f32
    %915 = vector.broadcast %cst_304 : f32 to vector<16x128xf32>
    %916 = arith.addf %915, %914 : vector<16x128xf32>
    %917 = arith.divf %915, %916 : vector<16x128xf32>
    %918 = vector.extract_strided_slice %906 {offsets = [0, 128], sizes = [16, 128], strides = [1, 1]} : vector<16x384xf32> to vector<16x128xf32>
    %919 = vector.extract_strided_slice %909 {offsets = [0, 128], sizes = [16, 128], strides = [1, 1]} : vector<16x384xf32> to vector<16x128xf32>
    %920 = arith.addf %918, %919 : vector<16x128xf32>
    %921 = arith.negf %920 : vector<16x128xf32>
    %922 = math.exp %921 : vector<16x128xf32>
    %cst_305 = arith.constant 1.000000e+00 : f32
    %923 = vector.broadcast %cst_305 : f32 to vector<16x128xf32>
    %924 = arith.addf %923, %922 : vector<16x128xf32>
    %925 = arith.divf %923, %924 : vector<16x128xf32>
    %926 = vector.extract_strided_slice %906 {offsets = [0, 256], sizes = [16, 128], strides = [1, 1]} : vector<16x384xf32> to vector<16x128xf32>
    %927 = vector.extract_strided_slice %909 {offsets = [0, 256], sizes = [16, 128], strides = [1, 1]} : vector<16x384xf32> to vector<16x128xf32>
    %c0_306 = arith.constant 0 : index
    %c0_307 = arith.constant 0 : index
    %928 = vector.load %arg13[%c0_306, %c0_307] : memref<1x128xf32, #tpu.memory_space<vmem>>, vector<1x128xf32>
    %929 = vector.broadcast %928 : vector<1x128xf32> to vector<16x128xf32>
    %930 = arith.addf %927, %929 : vector<16x128xf32>
    %931 = arith.mulf %917, %930 : vector<16x128xf32>
    %932 = arith.addf %926, %931 : vector<16x128xf32>
    %933 = math.tanh %932 : vector<16x128xf32>
    %cst_308 = arith.constant 1.000000e+00 : f32
    %934 = vector.broadcast %cst_308 : f32 to vector<16x128xf32>
    %935 = arith.subf %934, %925 : vector<16x128xf32>
    %936 = arith.mulf %935, %933 : vector<16x128xf32>
    %937 = arith.mulf %925, %788 : vector<16x128xf32>
    %938 = arith.addf %936, %937 : vector<16x128xf32>
    %939 = arith.truncf %938 : vector<16x128xf32> to vector<16x128xbf16>
    %c0_309 = arith.constant 0 : index
    %c0_310 = arith.constant 0 : index
    %940 = vector.load %arg14[%c0_309, %c0_310] : memref<128x384xbf16, #tpu.memory_space<vmem>>, vector<128x384xbf16>
    %cst_311 = arith.constant dense<0.000000e+00> : vector<16x384xf32>
    %941 = tpu.matmul %789, %940, %cst_311 {dimension_numbers = #tpu.dot_dimension_numbers<[1], [0], [0], [1], [0, 0, 1, 1], [], []>} : vector<16x128xbf16>, vector<128x384xbf16>, vector<16x384xf32> -> vector<16x384xf32>
    %c0_312 = arith.constant 0 : index
    %c0_313 = arith.constant 0 : index
    %942 = vector.load %arg16[%c0_312, %c0_313] : memref<1x384xf32, #tpu.memory_space<vmem>>, vector<1x384xf32>
    %943 = vector.broadcast %942 : vector<1x384xf32> to vector<16x384xf32>
    %944 = arith.addf %941, %943 : vector<16x384xf32>
    %945 = arith.truncf %826 : vector<16x128xf32> to vector<16x128xbf16>
    %c0_314 = arith.constant 0 : index
    %c0_315 = arith.constant 0 : index
    %946 = vector.load %arg15[%c0_314, %c0_315] : memref<128x384xbf16, #tpu.memory_space<vmem>>, vector<128x384xbf16>
    %cst_316 = arith.constant dense<0.000000e+00> : vector<16x384xf32>
    %947 = tpu.matmul %945, %946, %cst_316 {dimension_numbers = #tpu.dot_dimension_numbers<[1], [0], [0], [1], [0, 0, 1, 1], [], []>} : vector<16x128xbf16>, vector<128x384xbf16>, vector<16x384xf32> -> vector<16x384xf32>
    %948 = vector.extract_strided_slice %944 {offsets = [0, 0], sizes = [16, 128], strides = [1, 1]} : vector<16x384xf32> to vector<16x128xf32>
    %949 = vector.extract_strided_slice %947 {offsets = [0, 0], sizes = [16, 128], strides = [1, 1]} : vector<16x384xf32> to vector<16x128xf32>
    %950 = arith.addf %948, %949 : vector<16x128xf32>
    %951 = arith.negf %950 : vector<16x128xf32>
    %952 = math.exp %951 : vector<16x128xf32>
    %cst_317 = arith.constant 1.000000e+00 : f32
    %953 = vector.broadcast %cst_317 : f32 to vector<16x128xf32>
    %954 = arith.addf %953, %952 : vector<16x128xf32>
    %955 = arith.divf %953, %954 : vector<16x128xf32>
    %956 = vector.extract_strided_slice %944 {offsets = [0, 128], sizes = [16, 128], strides = [1, 1]} : vector<16x384xf32> to vector<16x128xf32>
    %957 = vector.extract_strided_slice %947 {offsets = [0, 128], sizes = [16, 128], strides = [1, 1]} : vector<16x384xf32> to vector<16x128xf32>
    %958 = arith.addf %956, %957 : vector<16x128xf32>
    %959 = arith.negf %958 : vector<16x128xf32>
    %960 = math.exp %959 : vector<16x128xf32>
    %cst_318 = arith.constant 1.000000e+00 : f32
    %961 = vector.broadcast %cst_318 : f32 to vector<16x128xf32>
    %962 = arith.addf %961, %960 : vector<16x128xf32>
    %963 = arith.divf %961, %962 : vector<16x128xf32>
    %964 = vector.extract_strided_slice %944 {offsets = [0, 256], sizes = [16, 128], strides = [1, 1]} : vector<16x384xf32> to vector<16x128xf32>
    %965 = vector.extract_strided_slice %947 {offsets = [0, 256], sizes = [16, 128], strides = [1, 1]} : vector<16x384xf32> to vector<16x128xf32>
    %c0_319 = arith.constant 0 : index
    %c0_320 = arith.constant 0 : index
    %966 = vector.load %arg17[%c0_319, %c0_320] : memref<1x128xf32, #tpu.memory_space<vmem>>, vector<1x128xf32>
    %967 = vector.broadcast %966 : vector<1x128xf32> to vector<16x128xf32>
    %968 = arith.addf %965, %967 : vector<16x128xf32>
    %969 = arith.mulf %955, %968 : vector<16x128xf32>
    %970 = arith.addf %964, %969 : vector<16x128xf32>
    %971 = math.tanh %970 : vector<16x128xf32>
    %cst_321 = arith.constant 1.000000e+00 : f32
    %972 = vector.broadcast %cst_321 : f32 to vector<16x128xf32>
    %973 = arith.subf %972, %963 : vector<16x128xf32>
    %974 = arith.mulf %973, %971 : vector<16x128xf32>
    %975 = arith.mulf %963, %826 : vector<16x128xf32>
    %976 = arith.addf %974, %975 : vector<16x128xf32>
    %c5_i32_322 = arith.constant 5 : i32
    %c0_323 = arith.constant 0 : index
    %c0_324 = arith.constant 0 : index
    %977 = vector.load %arg6[%c0_323, %c0_324] : memref<128x384xbf16, #tpu.memory_space<vmem>>, vector<128x384xbf16>
    %cst_325 = arith.constant dense<0.000000e+00> : vector<16x384xf32>
    %978 = tpu.matmul %863, %977, %cst_325 {dimension_numbers = #tpu.dot_dimension_numbers<[1], [0], [0], [1], [0, 0, 1, 1], [], []>} : vector<16x128xbf16>, vector<128x384xbf16>, vector<16x384xf32> -> vector<16x384xf32>
    %c0_326 = arith.constant 0 : index
    %c0_327 = arith.constant 0 : index
    %979 = vector.load %arg8[%c0_326, %c0_327] : memref<1x384xf32, #tpu.memory_space<vmem>>, vector<1x384xf32>
    %980 = vector.broadcast %979 : vector<1x384xf32> to vector<16x384xf32>
    %981 = arith.addf %978, %980 : vector<16x384xf32>
    %982 = arith.truncf %900 : vector<16x128xf32> to vector<16x128xbf16>
    %c0_328 = arith.constant 0 : index
    %c0_329 = arith.constant 0 : index
    %983 = vector.load %arg7[%c0_328, %c0_329] : memref<128x384xbf16, #tpu.memory_space<vmem>>, vector<128x384xbf16>
    %cst_330 = arith.constant dense<0.000000e+00> : vector<16x384xf32>
    %984 = tpu.matmul %982, %983, %cst_330 {dimension_numbers = #tpu.dot_dimension_numbers<[1], [0], [0], [1], [0, 0, 1, 1], [], []>} : vector<16x128xbf16>, vector<128x384xbf16>, vector<16x384xf32> -> vector<16x384xf32>
    %985 = vector.extract_strided_slice %981 {offsets = [0, 0], sizes = [16, 128], strides = [1, 1]} : vector<16x384xf32> to vector<16x128xf32>
    %986 = vector.extract_strided_slice %984 {offsets = [0, 0], sizes = [16, 128], strides = [1, 1]} : vector<16x384xf32> to vector<16x128xf32>
    %987 = arith.addf %985, %986 : vector<16x128xf32>
    %988 = arith.negf %987 : vector<16x128xf32>
    %989 = math.exp %988 : vector<16x128xf32>
    %cst_331 = arith.constant 1.000000e+00 : f32
    %990 = vector.broadcast %cst_331 : f32 to vector<16x128xf32>
    %991 = arith.addf %990, %989 : vector<16x128xf32>
    %992 = arith.divf %990, %991 : vector<16x128xf32>
    %993 = vector.extract_strided_slice %981 {offsets = [0, 128], sizes = [16, 128], strides = [1, 1]} : vector<16x384xf32> to vector<16x128xf32>
    %994 = vector.extract_strided_slice %984 {offsets = [0, 128], sizes = [16, 128], strides = [1, 1]} : vector<16x384xf32> to vector<16x128xf32>
    %995 = arith.addf %993, %994 : vector<16x128xf32>
    %996 = arith.negf %995 : vector<16x128xf32>
    %997 = math.exp %996 : vector<16x128xf32>
    %cst_332 = arith.constant 1.000000e+00 : f32
    %998 = vector.broadcast %cst_332 : f32 to vector<16x128xf32>
    %999 = arith.addf %998, %997 : vector<16x128xf32>
    %1000 = arith.divf %998, %999 : vector<16x128xf32>
    %1001 = vector.extract_strided_slice %981 {offsets = [0, 256], sizes = [16, 128], strides = [1, 1]} : vector<16x384xf32> to vector<16x128xf32>
    %1002 = vector.extract_strided_slice %984 {offsets = [0, 256], sizes = [16, 128], strides = [1, 1]} : vector<16x384xf32> to vector<16x128xf32>
    %c0_333 = arith.constant 0 : index
    %c0_334 = arith.constant 0 : index
    %1003 = vector.load %arg9[%c0_333, %c0_334] : memref<1x128xf32, #tpu.memory_space<vmem>>, vector<1x128xf32>
    %1004 = vector.broadcast %1003 : vector<1x128xf32> to vector<16x128xf32>
    %1005 = arith.addf %1002, %1004 : vector<16x128xf32>
    %1006 = arith.mulf %992, %1005 : vector<16x128xf32>
    %1007 = arith.addf %1001, %1006 : vector<16x128xf32>
    %1008 = math.tanh %1007 : vector<16x128xf32>
    %cst_335 = arith.constant 1.000000e+00 : f32
    %1009 = vector.broadcast %cst_335 : f32 to vector<16x128xf32>
    %1010 = arith.subf %1009, %1000 : vector<16x128xf32>
    %1011 = arith.mulf %1010, %1008 : vector<16x128xf32>
    %1012 = arith.mulf %1000, %900 : vector<16x128xf32>
    %1013 = arith.addf %1011, %1012 : vector<16x128xf32>
    %1014 = arith.truncf %1013 : vector<16x128xf32> to vector<16x128xbf16>
    %c0_336 = arith.constant 0 : index
    %c0_337 = arith.constant 0 : index
    %1015 = vector.load %arg10[%c0_336, %c0_337] : memref<128x384xbf16, #tpu.memory_space<vmem>>, vector<128x384xbf16>
    %cst_338 = arith.constant dense<0.000000e+00> : vector<16x384xf32>
    %1016 = tpu.matmul %901, %1015, %cst_338 {dimension_numbers = #tpu.dot_dimension_numbers<[1], [0], [0], [1], [0, 0, 1, 1], [], []>} : vector<16x128xbf16>, vector<128x384xbf16>, vector<16x384xf32> -> vector<16x384xf32>
    %c0_339 = arith.constant 0 : index
    %c0_340 = arith.constant 0 : index
    %1017 = vector.load %arg12[%c0_339, %c0_340] : memref<1x384xf32, #tpu.memory_space<vmem>>, vector<1x384xf32>
    %1018 = vector.broadcast %1017 : vector<1x384xf32> to vector<16x384xf32>
    %1019 = arith.addf %1016, %1018 : vector<16x384xf32>
    %1020 = arith.truncf %938 : vector<16x128xf32> to vector<16x128xbf16>
    %c0_341 = arith.constant 0 : index
    %c0_342 = arith.constant 0 : index
    %1021 = vector.load %arg11[%c0_341, %c0_342] : memref<128x384xbf16, #tpu.memory_space<vmem>>, vector<128x384xbf16>
    %cst_343 = arith.constant dense<0.000000e+00> : vector<16x384xf32>
    %1022 = tpu.matmul %1020, %1021, %cst_343 {dimension_numbers = #tpu.dot_dimension_numbers<[1], [0], [0], [1], [0, 0, 1, 1], [], []>} : vector<16x128xbf16>, vector<128x384xbf16>, vector<16x384xf32> -> vector<16x384xf32>
    %1023 = vector.extract_strided_slice %1019 {offsets = [0, 0], sizes = [16, 128], strides = [1, 1]} : vector<16x384xf32> to vector<16x128xf32>
    %1024 = vector.extract_strided_slice %1022 {offsets = [0, 0], sizes = [16, 128], strides = [1, 1]} : vector<16x384xf32> to vector<16x128xf32>
    %1025 = arith.addf %1023, %1024 : vector<16x128xf32>
    %1026 = arith.negf %1025 : vector<16x128xf32>
    %1027 = math.exp %1026 : vector<16x128xf32>
    %cst_344 = arith.constant 1.000000e+00 : f32
    %1028 = vector.broadcast %cst_344 : f32 to vector<16x128xf32>
    %1029 = arith.addf %1028, %1027 : vector<16x128xf32>
    %1030 = arith.divf %1028, %1029 : vector<16x128xf32>
    %1031 = vector.extract_strided_slice %1019 {offsets = [0, 128], sizes = [16, 128], strides = [1, 1]} : vector<16x384xf32> to vector<16x128xf32>
    %1032 = vector.extract_strided_slice %1022 {offsets = [0, 128], sizes = [16, 128], strides = [1, 1]} : vector<16x384xf32> to vector<16x128xf32>
    %1033 = arith.addf %1031, %1032 : vector<16x128xf32>
    %1034 = arith.negf %1033 : vector<16x128xf32>
    %1035 = math.exp %1034 : vector<16x128xf32>
    %cst_345 = arith.constant 1.000000e+00 : f32
    %1036 = vector.broadcast %cst_345 : f32 to vector<16x128xf32>
    %1037 = arith.addf %1036, %1035 : vector<16x128xf32>
    %1038 = arith.divf %1036, %1037 : vector<16x128xf32>
    %1039 = vector.extract_strided_slice %1019 {offsets = [0, 256], sizes = [16, 128], strides = [1, 1]} : vector<16x384xf32> to vector<16x128xf32>
    %1040 = vector.extract_strided_slice %1022 {offsets = [0, 256], sizes = [16, 128], strides = [1, 1]} : vector<16x384xf32> to vector<16x128xf32>
    %c0_346 = arith.constant 0 : index
    %c0_347 = arith.constant 0 : index
    %1041 = vector.load %arg13[%c0_346, %c0_347] : memref<1x128xf32, #tpu.memory_space<vmem>>, vector<1x128xf32>
    %1042 = vector.broadcast %1041 : vector<1x128xf32> to vector<16x128xf32>
    %1043 = arith.addf %1040, %1042 : vector<16x128xf32>
    %1044 = arith.mulf %1030, %1043 : vector<16x128xf32>
    %1045 = arith.addf %1039, %1044 : vector<16x128xf32>
    %1046 = math.tanh %1045 : vector<16x128xf32>
    %cst_348 = arith.constant 1.000000e+00 : f32
    %1047 = vector.broadcast %cst_348 : f32 to vector<16x128xf32>
    %1048 = arith.subf %1047, %1038 : vector<16x128xf32>
    %1049 = arith.mulf %1048, %1046 : vector<16x128xf32>
    %1050 = arith.mulf %1038, %938 : vector<16x128xf32>
    %1051 = arith.addf %1049, %1050 : vector<16x128xf32>
    %1052 = arith.truncf %1051 : vector<16x128xf32> to vector<16x128xbf16>
    %c0_349 = arith.constant 0 : index
    %c0_350 = arith.constant 0 : index
    %1053 = vector.load %arg14[%c0_349, %c0_350] : memref<128x384xbf16, #tpu.memory_space<vmem>>, vector<128x384xbf16>
    %cst_351 = arith.constant dense<0.000000e+00> : vector<16x384xf32>
    %1054 = tpu.matmul %939, %1053, %cst_351 {dimension_numbers = #tpu.dot_dimension_numbers<[1], [0], [0], [1], [0, 0, 1, 1], [], []>} : vector<16x128xbf16>, vector<128x384xbf16>, vector<16x384xf32> -> vector<16x384xf32>
    %c0_352 = arith.constant 0 : index
    %c0_353 = arith.constant 0 : index
    %1055 = vector.load %arg16[%c0_352, %c0_353] : memref<1x384xf32, #tpu.memory_space<vmem>>, vector<1x384xf32>
    %1056 = vector.broadcast %1055 : vector<1x384xf32> to vector<16x384xf32>
    %1057 = arith.addf %1054, %1056 : vector<16x384xf32>
    %1058 = arith.truncf %976 : vector<16x128xf32> to vector<16x128xbf16>
    %c0_354 = arith.constant 0 : index
    %c0_355 = arith.constant 0 : index
    %1059 = vector.load %arg15[%c0_354, %c0_355] : memref<128x384xbf16, #tpu.memory_space<vmem>>, vector<128x384xbf16>
    %cst_356 = arith.constant dense<0.000000e+00> : vector<16x384xf32>
    %1060 = tpu.matmul %1058, %1059, %cst_356 {dimension_numbers = #tpu.dot_dimension_numbers<[1], [0], [0], [1], [0, 0, 1, 1], [], []>} : vector<16x128xbf16>, vector<128x384xbf16>, vector<16x384xf32> -> vector<16x384xf32>
    %1061 = vector.extract_strided_slice %1057 {offsets = [0, 0], sizes = [16, 128], strides = [1, 1]} : vector<16x384xf32> to vector<16x128xf32>
    %1062 = vector.extract_strided_slice %1060 {offsets = [0, 0], sizes = [16, 128], strides = [1, 1]} : vector<16x384xf32> to vector<16x128xf32>
    %1063 = arith.addf %1061, %1062 : vector<16x128xf32>
    %1064 = arith.negf %1063 : vector<16x128xf32>
    %1065 = math.exp %1064 : vector<16x128xf32>
    %cst_357 = arith.constant 1.000000e+00 : f32
    %1066 = vector.broadcast %cst_357 : f32 to vector<16x128xf32>
    %1067 = arith.addf %1066, %1065 : vector<16x128xf32>
    %1068 = arith.divf %1066, %1067 : vector<16x128xf32>
    %1069 = vector.extract_strided_slice %1057 {offsets = [0, 128], sizes = [16, 128], strides = [1, 1]} : vector<16x384xf32> to vector<16x128xf32>
    %1070 = vector.extract_strided_slice %1060 {offsets = [0, 128], sizes = [16, 128], strides = [1, 1]} : vector<16x384xf32> to vector<16x128xf32>
    %1071 = arith.addf %1069, %1070 : vector<16x128xf32>
    %1072 = arith.negf %1071 : vector<16x128xf32>
    %1073 = math.exp %1072 : vector<16x128xf32>
    %cst_358 = arith.constant 1.000000e+00 : f32
    %1074 = vector.broadcast %cst_358 : f32 to vector<16x128xf32>
    %1075 = arith.addf %1074, %1073 : vector<16x128xf32>
    %1076 = arith.divf %1074, %1075 : vector<16x128xf32>
    %1077 = vector.extract_strided_slice %1057 {offsets = [0, 256], sizes = [16, 128], strides = [1, 1]} : vector<16x384xf32> to vector<16x128xf32>
    %1078 = vector.extract_strided_slice %1060 {offsets = [0, 256], sizes = [16, 128], strides = [1, 1]} : vector<16x384xf32> to vector<16x128xf32>
    %c0_359 = arith.constant 0 : index
    %c0_360 = arith.constant 0 : index
    %1079 = vector.load %arg17[%c0_359, %c0_360] : memref<1x128xf32, #tpu.memory_space<vmem>>, vector<1x128xf32>
    %1080 = vector.broadcast %1079 : vector<1x128xf32> to vector<16x128xf32>
    %1081 = arith.addf %1078, %1080 : vector<16x128xf32>
    %1082 = arith.mulf %1068, %1081 : vector<16x128xf32>
    %1083 = arith.addf %1077, %1082 : vector<16x128xf32>
    %1084 = math.tanh %1083 : vector<16x128xf32>
    %cst_361 = arith.constant 1.000000e+00 : f32
    %1085 = vector.broadcast %cst_361 : f32 to vector<16x128xf32>
    %1086 = arith.subf %1085, %1076 : vector<16x128xf32>
    %1087 = arith.mulf %1086, %1084 : vector<16x128xf32>
    %1088 = arith.mulf %1076, %976 : vector<16x128xf32>
    %1089 = arith.addf %1087, %1088 : vector<16x128xf32>
    %c0_362 = arith.constant 0 : index
    %c0_363 = arith.constant 0 : index
    %1090 = vector.load %arg10[%c0_362, %c0_363] : memref<128x384xbf16, #tpu.memory_space<vmem>>, vector<128x384xbf16>
    %cst_364 = arith.constant dense<0.000000e+00> : vector<16x384xf32>
    %1091 = tpu.matmul %1014, %1090, %cst_364 {dimension_numbers = #tpu.dot_dimension_numbers<[1], [0], [0], [1], [0, 0, 1, 1], [], []>} : vector<16x128xbf16>, vector<128x384xbf16>, vector<16x384xf32> -> vector<16x384xf32>
    %c0_365 = arith.constant 0 : index
    %c0_366 = arith.constant 0 : index
    %1092 = vector.load %arg12[%c0_365, %c0_366] : memref<1x384xf32, #tpu.memory_space<vmem>>, vector<1x384xf32>
    %1093 = vector.broadcast %1092 : vector<1x384xf32> to vector<16x384xf32>
    %1094 = arith.addf %1091, %1093 : vector<16x384xf32>
    %1095 = arith.truncf %1051 : vector<16x128xf32> to vector<16x128xbf16>
    %c0_367 = arith.constant 0 : index
    %c0_368 = arith.constant 0 : index
    %1096 = vector.load %arg11[%c0_367, %c0_368] : memref<128x384xbf16, #tpu.memory_space<vmem>>, vector<128x384xbf16>
    %cst_369 = arith.constant dense<0.000000e+00> : vector<16x384xf32>
    %1097 = tpu.matmul %1095, %1096, %cst_369 {dimension_numbers = #tpu.dot_dimension_numbers<[1], [0], [0], [1], [0, 0, 1, 1], [], []>} : vector<16x128xbf16>, vector<128x384xbf16>, vector<16x384xf32> -> vector<16x384xf32>
    %1098 = vector.extract_strided_slice %1094 {offsets = [0, 0], sizes = [16, 128], strides = [1, 1]} : vector<16x384xf32> to vector<16x128xf32>
    %1099 = vector.extract_strided_slice %1097 {offsets = [0, 0], sizes = [16, 128], strides = [1, 1]} : vector<16x384xf32> to vector<16x128xf32>
    %1100 = arith.addf %1098, %1099 : vector<16x128xf32>
    %1101 = arith.negf %1100 : vector<16x128xf32>
    %1102 = math.exp %1101 : vector<16x128xf32>
    %cst_370 = arith.constant 1.000000e+00 : f32
    %1103 = vector.broadcast %cst_370 : f32 to vector<16x128xf32>
    %1104 = arith.addf %1103, %1102 : vector<16x128xf32>
    %1105 = arith.divf %1103, %1104 : vector<16x128xf32>
    %1106 = vector.extract_strided_slice %1094 {offsets = [0, 128], sizes = [16, 128], strides = [1, 1]} : vector<16x384xf32> to vector<16x128xf32>
    %1107 = vector.extract_strided_slice %1097 {offsets = [0, 128], sizes = [16, 128], strides = [1, 1]} : vector<16x384xf32> to vector<16x128xf32>
    %1108 = arith.addf %1106, %1107 : vector<16x128xf32>
    %1109 = arith.negf %1108 : vector<16x128xf32>
    %1110 = math.exp %1109 : vector<16x128xf32>
    %cst_371 = arith.constant 1.000000e+00 : f32
    %1111 = vector.broadcast %cst_371 : f32 to vector<16x128xf32>
    %1112 = arith.addf %1111, %1110 : vector<16x128xf32>
    %1113 = arith.divf %1111, %1112 : vector<16x128xf32>
    %1114 = vector.extract_strided_slice %1094 {offsets = [0, 256], sizes = [16, 128], strides = [1, 1]} : vector<16x384xf32> to vector<16x128xf32>
    %1115 = vector.extract_strided_slice %1097 {offsets = [0, 256], sizes = [16, 128], strides = [1, 1]} : vector<16x384xf32> to vector<16x128xf32>
    %c0_372 = arith.constant 0 : index
    %c0_373 = arith.constant 0 : index
    %1116 = vector.load %arg13[%c0_372, %c0_373] : memref<1x128xf32, #tpu.memory_space<vmem>>, vector<1x128xf32>
    %1117 = vector.broadcast %1116 : vector<1x128xf32> to vector<16x128xf32>
    %1118 = arith.addf %1115, %1117 : vector<16x128xf32>
    %1119 = arith.mulf %1105, %1118 : vector<16x128xf32>
    %1120 = arith.addf %1114, %1119 : vector<16x128xf32>
    %1121 = math.tanh %1120 : vector<16x128xf32>
    %cst_374 = arith.constant 1.000000e+00 : f32
    %1122 = vector.broadcast %cst_374 : f32 to vector<16x128xf32>
    %1123 = arith.subf %1122, %1113 : vector<16x128xf32>
    %1124 = arith.mulf %1123, %1121 : vector<16x128xf32>
    %1125 = arith.mulf %1113, %1051 : vector<16x128xf32>
    %1126 = arith.addf %1124, %1125 : vector<16x128xf32>
    %1127 = arith.truncf %1126 : vector<16x128xf32> to vector<16x128xbf16>
    %c0_375 = arith.constant 0 : index
    %c0_376 = arith.constant 0 : index
    %1128 = vector.load %arg14[%c0_375, %c0_376] : memref<128x384xbf16, #tpu.memory_space<vmem>>, vector<128x384xbf16>
    %cst_377 = arith.constant dense<0.000000e+00> : vector<16x384xf32>
    %1129 = tpu.matmul %1052, %1128, %cst_377 {dimension_numbers = #tpu.dot_dimension_numbers<[1], [0], [0], [1], [0, 0, 1, 1], [], []>} : vector<16x128xbf16>, vector<128x384xbf16>, vector<16x384xf32> -> vector<16x384xf32>
    %c0_378 = arith.constant 0 : index
    %c0_379 = arith.constant 0 : index
    %1130 = vector.load %arg16[%c0_378, %c0_379] : memref<1x384xf32, #tpu.memory_space<vmem>>, vector<1x384xf32>
    %1131 = vector.broadcast %1130 : vector<1x384xf32> to vector<16x384xf32>
    %1132 = arith.addf %1129, %1131 : vector<16x384xf32>
    %1133 = arith.truncf %1089 : vector<16x128xf32> to vector<16x128xbf16>
    %c0_380 = arith.constant 0 : index
    %c0_381 = arith.constant 0 : index
    %1134 = vector.load %arg15[%c0_380, %c0_381] : memref<128x384xbf16, #tpu.memory_space<vmem>>, vector<128x384xbf16>
    %cst_382 = arith.constant dense<0.000000e+00> : vector<16x384xf32>
    %1135 = tpu.matmul %1133, %1134, %cst_382 {dimension_numbers = #tpu.dot_dimension_numbers<[1], [0], [0], [1], [0, 0, 1, 1], [], []>} : vector<16x128xbf16>, vector<128x384xbf16>, vector<16x384xf32> -> vector<16x384xf32>
    %1136 = vector.extract_strided_slice %1132 {offsets = [0, 0], sizes = [16, 128], strides = [1, 1]} : vector<16x384xf32> to vector<16x128xf32>
    %1137 = vector.extract_strided_slice %1135 {offsets = [0, 0], sizes = [16, 128], strides = [1, 1]} : vector<16x384xf32> to vector<16x128xf32>
    %1138 = arith.addf %1136, %1137 : vector<16x128xf32>
    %1139 = arith.negf %1138 : vector<16x128xf32>
    %1140 = math.exp %1139 : vector<16x128xf32>
    %cst_383 = arith.constant 1.000000e+00 : f32
    %1141 = vector.broadcast %cst_383 : f32 to vector<16x128xf32>
    %1142 = arith.addf %1141, %1140 : vector<16x128xf32>
    %1143 = arith.divf %1141, %1142 : vector<16x128xf32>
    %1144 = vector.extract_strided_slice %1132 {offsets = [0, 128], sizes = [16, 128], strides = [1, 1]} : vector<16x384xf32> to vector<16x128xf32>
    %1145 = vector.extract_strided_slice %1135 {offsets = [0, 128], sizes = [16, 128], strides = [1, 1]} : vector<16x384xf32> to vector<16x128xf32>
    %1146 = arith.addf %1144, %1145 : vector<16x128xf32>
    %1147 = arith.negf %1146 : vector<16x128xf32>
    %1148 = math.exp %1147 : vector<16x128xf32>
    %cst_384 = arith.constant 1.000000e+00 : f32
    %1149 = vector.broadcast %cst_384 : f32 to vector<16x128xf32>
    %1150 = arith.addf %1149, %1148 : vector<16x128xf32>
    %1151 = arith.divf %1149, %1150 : vector<16x128xf32>
    %1152 = vector.extract_strided_slice %1132 {offsets = [0, 256], sizes = [16, 128], strides = [1, 1]} : vector<16x384xf32> to vector<16x128xf32>
    %1153 = vector.extract_strided_slice %1135 {offsets = [0, 256], sizes = [16, 128], strides = [1, 1]} : vector<16x384xf32> to vector<16x128xf32>
    %c0_385 = arith.constant 0 : index
    %c0_386 = arith.constant 0 : index
    %1154 = vector.load %arg17[%c0_385, %c0_386] : memref<1x128xf32, #tpu.memory_space<vmem>>, vector<1x128xf32>
    %1155 = vector.broadcast %1154 : vector<1x128xf32> to vector<16x128xf32>
    %1156 = arith.addf %1153, %1155 : vector<16x128xf32>
    %1157 = arith.mulf %1143, %1156 : vector<16x128xf32>
    %1158 = arith.addf %1152, %1157 : vector<16x128xf32>
    %1159 = math.tanh %1158 : vector<16x128xf32>
    %cst_387 = arith.constant 1.000000e+00 : f32
    %1160 = vector.broadcast %cst_387 : f32 to vector<16x128xf32>
    %1161 = arith.subf %1160, %1151 : vector<16x128xf32>
    %1162 = arith.mulf %1161, %1159 : vector<16x128xf32>
    %1163 = arith.mulf %1151, %1089 : vector<16x128xf32>
    %1164 = arith.addf %1162, %1163 : vector<16x128xf32>
    %c0_388 = arith.constant 0 : index
    %c0_389 = arith.constant 0 : index
    %1165 = vector.load %arg14[%c0_388, %c0_389] : memref<128x384xbf16, #tpu.memory_space<vmem>>, vector<128x384xbf16>
    %cst_390 = arith.constant dense<0.000000e+00> : vector<16x384xf32>
    %1166 = tpu.matmul %1127, %1165, %cst_390 {dimension_numbers = #tpu.dot_dimension_numbers<[1], [0], [0], [1], [0, 0, 1, 1], [], []>} : vector<16x128xbf16>, vector<128x384xbf16>, vector<16x384xf32> -> vector<16x384xf32>
    %c0_391 = arith.constant 0 : index
    %c0_392 = arith.constant 0 : index
    %1167 = vector.load %arg16[%c0_391, %c0_392] : memref<1x384xf32, #tpu.memory_space<vmem>>, vector<1x384xf32>
    %1168 = vector.broadcast %1167 : vector<1x384xf32> to vector<16x384xf32>
    %1169 = arith.addf %1166, %1168 : vector<16x384xf32>
    %1170 = arith.truncf %1164 : vector<16x128xf32> to vector<16x128xbf16>
    %c0_393 = arith.constant 0 : index
    %c0_394 = arith.constant 0 : index
    %1171 = vector.load %arg15[%c0_393, %c0_394] : memref<128x384xbf16, #tpu.memory_space<vmem>>, vector<128x384xbf16>
    %cst_395 = arith.constant dense<0.000000e+00> : vector<16x384xf32>
    %1172 = tpu.matmul %1170, %1171, %cst_395 {dimension_numbers = #tpu.dot_dimension_numbers<[1], [0], [0], [1], [0, 0, 1, 1], [], []>} : vector<16x128xbf16>, vector<128x384xbf16>, vector<16x384xf32> -> vector<16x384xf32>
    %1173 = vector.extract_strided_slice %1169 {offsets = [0, 0], sizes = [16, 128], strides = [1, 1]} : vector<16x384xf32> to vector<16x128xf32>
    %1174 = vector.extract_strided_slice %1172 {offsets = [0, 0], sizes = [16, 128], strides = [1, 1]} : vector<16x384xf32> to vector<16x128xf32>
    %1175 = arith.addf %1173, %1174 : vector<16x128xf32>
    %1176 = arith.negf %1175 : vector<16x128xf32>
    %1177 = math.exp %1176 : vector<16x128xf32>
    %cst_396 = arith.constant 1.000000e+00 : f32
    %1178 = vector.broadcast %cst_396 : f32 to vector<16x128xf32>
    %1179 = arith.addf %1178, %1177 : vector<16x128xf32>
    %1180 = arith.divf %1178, %1179 : vector<16x128xf32>
    %1181 = vector.extract_strided_slice %1169 {offsets = [0, 128], sizes = [16, 128], strides = [1, 1]} : vector<16x384xf32> to vector<16x128xf32>
    %1182 = vector.extract_strided_slice %1172 {offsets = [0, 128], sizes = [16, 128], strides = [1, 1]} : vector<16x384xf32> to vector<16x128xf32>
    %1183 = arith.addf %1181, %1182 : vector<16x128xf32>
    %1184 = arith.negf %1183 : vector<16x128xf32>
    %1185 = math.exp %1184 : vector<16x128xf32>
    %cst_397 = arith.constant 1.000000e+00 : f32
    %1186 = vector.broadcast %cst_397 : f32 to vector<16x128xf32>
    %1187 = arith.addf %1186, %1185 : vector<16x128xf32>
    %1188 = arith.divf %1186, %1187 : vector<16x128xf32>
    %1189 = vector.extract_strided_slice %1169 {offsets = [0, 256], sizes = [16, 128], strides = [1, 1]} : vector<16x384xf32> to vector<16x128xf32>
    %1190 = vector.extract_strided_slice %1172 {offsets = [0, 256], sizes = [16, 128], strides = [1, 1]} : vector<16x384xf32> to vector<16x128xf32>
    %c0_398 = arith.constant 0 : index
    %c0_399 = arith.constant 0 : index
    %1191 = vector.load %arg17[%c0_398, %c0_399] : memref<1x128xf32, #tpu.memory_space<vmem>>, vector<1x128xf32>
    %1192 = vector.broadcast %1191 : vector<1x128xf32> to vector<16x128xf32>
    %1193 = arith.addf %1190, %1192 : vector<16x128xf32>
    %1194 = arith.mulf %1180, %1193 : vector<16x128xf32>
    %1195 = arith.addf %1189, %1194 : vector<16x128xf32>
    %1196 = math.tanh %1195 : vector<16x128xf32>
    %cst_400 = arith.constant 1.000000e+00 : f32
    %1197 = vector.broadcast %cst_400 : f32 to vector<16x128xf32>
    %1198 = arith.subf %1197, %1188 : vector<16x128xf32>
    %1199 = arith.mulf %1198, %1196 : vector<16x128xf32>
    %1200 = arith.mulf %1188, %1164 : vector<16x128xf32>
    %1201 = arith.addf %1199, %1200 : vector<16x128xf32>
    %1202 = arith.truncf %1201 : vector<16x128xf32> to vector<16x128xbf16>
    %c0_401 = arith.constant 0 : index
    %c0_402 = arith.constant 0 : index
    %1203 = vector.load %arg18[%c0_401, %c0_402] : memref<128x128xbf16, #tpu.memory_space<vmem>>, vector<128x128xbf16>
    %cst_403 = arith.constant dense<0.000000e+00> : vector<16x128xf32>
    %1204 = tpu.matmul %1202, %1203, %cst_403 {dimension_numbers = #tpu.dot_dimension_numbers<[1], [0], [0], [1], [0, 0, 1, 1], [], []>} : vector<16x128xbf16>, vector<128x128xbf16>, vector<16x128xf32> -> vector<16x128xf32>
    %c0_404 = arith.constant 0 : index
    %c0_405 = arith.constant 0 : index
    %1205 = vector.load %arg19[%c0_404, %c0_405] : memref<1x128xf32, #tpu.memory_space<vmem>>, vector<1x128xf32>
    %1206 = vector.broadcast %1205 : vector<1x128xf32> to vector<16x128xf32>
    %1207 = arith.addf %1204, %1206 : vector<16x128xf32>
    %c0_406 = arith.constant 0 : index
    %c0_407 = arith.constant 0 : index
    %1208 = vector.load %arg20[%c0_406, %c0_407] : memref<16x128xf32, #tpu.memory_space<vmem>>, vector<16x128xf32>
    tpu.vector_store %arg20[%c0_406, %c0_407], %1207 {strides = array<i32>} : memref<16x128xf32, #tpu.memory_space<vmem>>, vector<16x128xf32>,
    return
  }
  func.func @transform_0(%arg0: i32) -> (i32, i32) {
    %c0_i32 = arith.constant 0 : i32
    %c0_i32_0 = arith.constant 0 : i32
    return %arg0, %c0_i32 : i32, i32
  }
  func.func @transform_1(%arg0: i32) -> (i32, i32) {
    %c0_i32 = arith.constant 0 : i32
    %c0_i32_0 = arith.constant 0 : i32
    %c0_i32_1 = arith.constant 0 : i32
    return %c0_i32, %c0_i32_0 : i32, i32
  }
  func.func @transform_2(%arg0: i32) -> (i32, i32) {
    %c0_i32 = arith.constant 0 : i32
    %c0_i32_0 = arith.constant 0 : i32
    %c0_i32_1 = arith.constant 0 : i32
    return %c0_i32, %c0_i32_0 : i32, i32
  }
  func.func @transform_3(%arg0: i32) -> (i32, i32) {
    %c0_i32 = arith.constant 0 : i32
    %c0_i32_0 = arith.constant 0 : i32
    %c0_i32_1 = arith.constant 0 : i32
    return %c0_i32, %c0_i32_0 : i32, i32
  }
  func.func @transform_4(%arg0: i32) -> (i32, i32) {
    %c0_i32 = arith.constant 0 : i32
    %c0_i32_0 = arith.constant 0 : i32
    %c0_i32_1 = arith.constant 0 : i32
    return %c0_i32, %c0_i32_0 : i32, i32
  }
  func.func @transform_5(%arg0: i32) -> (i32, i32) {
    %c0_i32 = arith.constant 0 : i32
    %c0_i32_0 = arith.constant 0 : i32
    %c0_i32_1 = arith.constant 0 : i32
    return %c0_i32, %c0_i32_0 : i32, i32
  }
  func.func @transform_6(%arg0: i32) -> (i32, i32) {
    %c0_i32 = arith.constant 0 : i32
    %c0_i32_0 = arith.constant 0 : i32
    %c0_i32_1 = arith.constant 0 : i32
    return %c0_i32, %c0_i32_0 : i32, i32
  }
  func.func @transform_7(%arg0: i32) -> (i32, i32) {
    %c0_i32 = arith.constant 0 : i32
    %c0_i32_0 = arith.constant 0 : i32
    %c0_i32_1 = arith.constant 0 : i32
    return %c0_i32, %c0_i32_0 : i32, i32
  }
  func.func @transform_8(%arg0: i32) -> (i32, i32) {
    %c0_i32 = arith.constant 0 : i32
    %c0_i32_0 = arith.constant 0 : i32
    %c0_i32_1 = arith.constant 0 : i32
    return %c0_i32, %c0_i32_0 : i32, i32
  }
  func.func @transform_9(%arg0: i32) -> (i32, i32) {
    %c0_i32 = arith.constant 0 : i32
    %c0_i32_0 = arith.constant 0 : i32
    %c0_i32_1 = arith.constant 0 : i32
    return %c0_i32, %c0_i32_0 : i32, i32
  }
  func.func @transform_10(%arg0: i32) -> (i32, i32) {
    %c0_i32 = arith.constant 0 : i32
    %c0_i32_0 = arith.constant 0 : i32
    %c0_i32_1 = arith.constant 0 : i32
    return %c0_i32, %c0_i32_0 : i32, i32
  }
  func.func @transform_11(%arg0: i32) -> (i32, i32) {
    %c0_i32 = arith.constant 0 : i32
    %c0_i32_0 = arith.constant 0 : i32
    %c0_i32_1 = arith.constant 0 : i32
    return %c0_i32, %c0_i32_0 : i32, i32
  }
  func.func @transform_12(%arg0: i32) -> (i32, i32) {
    %c0_i32 = arith.constant 0 : i32
    %c0_i32_0 = arith.constant 0 : i32
    %c0_i32_1 = arith.constant 0 : i32
    return %c0_i32, %c0_i32_0 : i32, i32
  }
  func.func @transform_13(%arg0: i32) -> (i32, i32) {
    %c0_i32 = arith.constant 0 : i32
    %c0_i32_0 = arith.constant 0 : i32
    %c0_i32_1 = arith.constant 0 : i32
    return %c0_i32, %c0_i32_0 : i32, i32
  }
  func.func @transform_14(%arg0: i32) -> (i32, i32) {
    %c0_i32 = arith.constant 0 : i32
    %c0_i32_0 = arith.constant 0 : i32
    %c0_i32_1 = arith.constant 0 : i32
    return %c0_i32, %c0_i32_0 : i32, i32
  }
  func.func @transform_15(%arg0: i32) -> (i32, i32) {
    %c0_i32 = arith.constant 0 : i32
    %c0_i32_0 = arith.constant 0 : i32
    %c0_i32_1 = arith.constant 0 : i32
    return %c0_i32, %c0_i32_0 : i32, i32
  }
  func.func @transform_16(%arg0: i32) -> (i32, i32) {
    %c0_i32 = arith.constant 0 : i32
    %c0_i32_0 = arith.constant 0 : i32
    %c0_i32_1 = arith.constant 0 : i32
    return %c0_i32, %c0_i32_0 : i32, i32
  }
  func.func @transform_17(%arg0: i32) -> (i32, i32) {
    %c0_i32 = arith.constant 0 : i32
    %c0_i32_0 = arith.constant 0 : i32
    %c0_i32_1 = arith.constant 0 : i32
    return %c0_i32, %c0_i32_0 : i32, i32
  }
  func.func @transform_18(%arg0: i32) -> (i32, i32) {
    %c0_i32 = arith.constant 0 : i32
    %c0_i32_0 = arith.constant 0 : i32
    %c0_i32_1 = arith.constant 0 : i32
    return %c0_i32, %c0_i32_0 : i32, i32
  }
  func.func @transform_19(%arg0: i32) -> (i32, i32) {
    %c0_i32 = arith.constant 0 : i32
    %c0_i32_0 = arith.constant 0 : i32
    return %arg0, %c0_i32 : i32, i32
  }
}

</mosaic_0001>

<llo_original>
// kernel: tpu_custom_call.1
$region0: #{tpu_custom_call.1}
  #allocation0 [shape = 'u32[]', space=smem, size = 0x4, offset = 0x4, fixed_abs, tag = 'smem constant byte address 0x4 - core index']
  #allocation1 [shape = 'u32[72,128]{1,0:T(1,128)}', space=vmem, size = 0x9000, scoped, tag = 'internal scratch']
  #allocation2 [shape = 'f32[128,384]{1,0:T(8,128)}', space=vmem, size = 0x30000, scoped, tag = 'scratch operand']
  %s0 = inlined_call_operand.vmem [shape: bf16[128,5], index: 0, kind: input, shape index: {}]
  %s1 = inlined_call_operand.vmem [shape: bf16[5,384], index: 1, kind: input, shape index: {}]
  %s2 = inlined_call_operand.hbm [shape: bf16[128,384], index: 2, kind: input, shape index: {}]
  %s3 = inlined_call_operand.vmem [shape: f32[1,384], index: 3, kind: input, shape index: {}]
  %s4 = inlined_call_operand.vmem [shape: f32[1,128], index: 4, kind: input, shape index: {}]
  %s5 = inlined_call_operand.hbm [shape: bf16[128,384], index: 5, kind: input, shape index: {}]
  %s6 = inlined_call_operand.hbm [shape: bf16[128,384], index: 6, kind: input, shape index: {}]
  %s7 = inlined_call_operand.vmem [shape: f32[1,384], index: 7, kind: input, shape index: {}]
  %s8 = inlined_call_operand.vmem [shape: f32[1,128], index: 8, kind: input, shape index: {}]
  %s9 = inlined_call_operand.hbm [shape: bf16[128,384], index: 9, kind: input, shape index: {}]
  %s10 = inlined_call_operand.hbm [shape: bf16[128,384], index: 10, kind: input, shape index: {}]
  %s11 = inlined_call_operand.hbm [shape: f32[1,384], index: 11, kind: input, shape index: {}]
  %s12 = inlined_call_operand.hbm [shape: f32[1,128], index: 12, kind: input, shape index: {}]
  %s13 = inlined_call_operand.hbm [shape: bf16[128,384], index: 13, kind: input, shape index: {}]
  %s14 = inlined_call_operand.hbm [shape: bf16[128,384], index: 14, kind: input, shape index: {}]
  %s15 = inlined_call_operand.hbm [shape: f32[1,384], index: 15, kind: input, shape index: {}]
  %s16 = inlined_call_operand.hbm [shape: f32[1,128], index: 16, kind: input, shape index: {}]
  %s17 = inlined_call_operand.vmem [shape: bf16[128,128], index: 17, kind: input, shape index: {}]
  %s18 = inlined_call_operand.vmem [shape: f32[1,128], index: 18, kind: input, shape index: {}]
  %s19 = inlined_call_operand.hbm [shape: f32[16,128], index: 19, kind: output, shape index: {}]
  %s20 = sld [smem:[#allocation0]]
  $region130: #{tpu_custom_call.1} parent=0
    _
  %s22 = ssub.s32 1, %s20
  %s23 = scalar_select 0, %s22, %s20
  $region1: #{tpu_custom_call.1} parent=0
    #allocation3 [shape = 'u8[98304]{0}', space=vmem, size = 0x18000, scoped, tag = 'input window, operand 2, single buffered']
    #allocation4 [shape = 's32[1]{0}', space=sflag, size = 0x4, scoped, tag = 'scoped memory for tpu_custom_call.1']
    #allocation5 [shape = 's32[1]{0}', space=sflag, size = 0x4, scoped, tag = 'scoped memory for tpu_custom_call.1']
    #allocation6 [shape = 'u8[98304]{0}', space=vmem, size = 0x18000, scoped, tag = 'input window, operand 5, single buffered']
    #allocation7 [shape = 's32[1]{0}', space=sflag, size = 0x4, scoped, tag = 'scoped memory for tpu_custom_call.1']
    #allocation8 [shape = 'u8[98304]{0}', space=vmem, size = 0x18000, scoped, tag = 'input window, operand 6, single buffered']
    #allocation9 [shape = 'u8[98304]{0}', space=vmem, size = 0x18000, scoped, tag = 'input window, operand 9, single buffered']
    #allocation10 [shape = 's32[1]{0}', space=sflag, size = 0x4, scoped, tag = 'scoped memory for tpu_custom_call.1']
    #allocation11 [shape = 'u8[98304]{0}', space=vmem, size = 0x18000, scoped, tag = 'input window, operand 10, single buffered']
    #allocation12 [shape = 'u8[1536]{0}', space=vmem, size = 0x800, scoped, tag = 'input window, operand 11, single buffered']
    #allocation13 [shape = 's32[1]{0}', space=sflag, size = 0x4, scoped, tag = 'scoped memory for tpu_custom_call.1']
    #allocation14 [shape = 'u8[512]{0}', space=vmem, size = 0x400, scoped, tag = 'input window, operand 12, single buffered']
    #allocation15 [shape = 'u8[98304]{0}', space=vmem, size = 0x18000, scoped, tag = 'input window, operand 13, single buffered']
    #allocation16 [shape = 's32[1]{0}', space=sflag, size = 0x4, scoped, tag = 'scoped memory for tpu_custom_call.1']
    #allocation17 [shape = 'u8[98304]{0}', space=vmem, size = 0x18000, scoped, tag = 'input window, operand 14, single buffered']
    #allocation18 [shape = 'u8[1536]{0}', space=vmem, size = 0x800, scoped, tag = 'input window, operand 15, single buffered']
    #allocation19 [shape = 's32[1]{0}', space=sflag, size = 0x4, scoped, tag = 'scoped memory for tpu_custom_call.1']
    #allocation20 [shape = 'u8[512]{0}', space=vmem, size = 0x400, scoped, tag = 'input window, operand 16, single buffered']
    #allocation21 [shape = 'u8[8192]{0}', space=vmem, size = 0x2000, scoped, tag = 'output window, operand 0, single buffered']
    %24 = vsyncpa [#allocation4], 0
    %25 = vsyncpa [#allocation7], 0
    %26 = vsyncpa [#allocation10], 0
    %27 = vsyncpa [#allocation13], 0
    %28 = vsyncpa [#allocation16], 0
    %29 = vsyncpa [#allocation19], 0
    %30 = vsyncpa [#allocation5], 0
    // Predicated region
    $region2: #{tpu_custom_call.1} parent=1 // pred_check
      _
    $region3: #{tpu_custom_call.1} parent=1 // pred_check_branch
      %32 = sbr.rel (0) target = $region5
    $region4: #{tpu_custom_call.1} parent=1 // pred_region
      _
    $region5: #{tpu_custom_call.1} parent=1 // pred_fallthru
      _
    // Predicated region
    $region6: #{tpu_custom_call.1} parent=1 // pred_check
      _
    $region7: #{tpu_custom_call.1} parent=1 // pred_check_branch
      %34 = sbr.rel (0) target = $region9
    $region8: #{tpu_custom_call.1} parent=1 // pred_region
      _
    $region9: #{tpu_custom_call.1} parent=1 // pred_fallthru
      _
    // Predicated region
    $region10: #{tpu_custom_call.1} parent=1 // pred_check
      _
    $region11: #{tpu_custom_call.1} parent=1 // pred_check_branch
      %36 = sbr.rel (0) target = $region13
    $region12: #{tpu_custom_call.1} parent=1 // pred_region
      %38 = vsyncadd [#allocation4], 0
      %s39 = sshll.u32 %s2, 4
      %s40 = int_to_ptr.hbm [resolvable:$true] %s39
      %s41 = sshll.u32 [#allocation3], 4
      %s42 = int_to_ptr.vmem [resolvable:$true] %s41
      %47 = dma.hbm_to_vmem [thread:$0]  %s40, 3072, %s42, [#allocation4], 192, 192, 12
    $region13: #{tpu_custom_call.1} parent=1 // pred_fallthru
      _
    // Predicated region
    $region14: #{tpu_custom_call.1} parent=1 // pred_check
      _
    $region15: #{tpu_custom_call.1} parent=1 // pred_check_branch
      %49 = sbr.rel (0) target = $region17
    $region16: #{tpu_custom_call.1} parent=1 // pred_region
      _
    $region17: #{tpu_custom_call.1} parent=1 // pred_fallthru
      _
    // Predicated region
    $region18: #{tpu_custom_call.1} parent=1 // pred_check
      _
    $region19: #{tpu_custom_call.1} parent=1 // pred_check_branch
      %51 = sbr.rel (0) target = $region21
    $region20: #{tpu_custom_call.1} parent=1 // pred_region
      _
    $region21: #{tpu_custom_call.1} parent=1 // pred_fallthru
      _
    // Predicated region
    $region22: #{tpu_custom_call.1} parent=1 // pred_check
      _
    $region23: #{tpu_custom_call.1} parent=1 // pred_check_branch
      %53 = sbr.rel (0) target = $region25
    $region24: #{tpu_custom_call.1} parent=1 // pred_region
      %55 = vsyncadd [#allocation7], 0
      %s56 = sshll.u32 %s5, 4
      %s57 = int_to_ptr.hbm [resolvable:$true] %s56
      %s58 = sshll.u32 [#allocation6], 4
      %s59 = int_to_ptr.vmem [resolvable:$true] %s58
      %64 = dma.hbm_to_vmem [thread:$0]  %s57, 3072, %s59, [#allocation7], 192, 192, 12
    $region25: #{tpu_custom_call.1} parent=1 // pred_fallthru
      _
    // Predicated region
    $region26: #{tpu_custom_call.1} parent=1 // pred_check
      _
    $region27: #{tpu_custom_call.1} parent=1 // pred_check_branch
      %66 = sbr.rel (0) target = $region29
    $region28: #{tpu_custom_call.1} parent=1 // pred_region
      %68 = vsyncadd [#allocation7], 0
      %s69 = sshll.u32 %s6, 4
      %s70 = int_to_ptr.hbm [resolvable:$true] %s69
      %s71 = sshll.u32 [#allocation8], 4
      %s72 = int_to_ptr.vmem [resolvable:$true] %s71
      %77 = dma.hbm_to_vmem [thread:$0]  %s70, 3072, %s72, [#allocation7], 192, 192, 12
    $region29: #{tpu_custom_call.1} parent=1 // pred_fallthru
      _
    // Predicated region
    $region30: #{tpu_custom_call.1} parent=1 // pred_check
      _
    $region31: #{tpu_custom_call.1} parent=1 // pred_check_branch
      %79 = sbr.rel (0) target = $region33
    $region32: #{tpu_custom_call.1} parent=1 // pred_region
      _
    $region33: #{tpu_custom_call.1} parent=1 // pred_fallthru
      _
    // Predicated region
    $region34: #{tpu_custom_call.1} parent=1 // pred_check
      _
    $region35: #{tpu_custom_call.1} parent=1 // pred_check_branch
      %81 = sbr.rel (0) target = $region37
    $region36: #{tpu_custom_call.1} parent=1 // pred_region
      _
    $region37: #{tpu_custom_call.1} parent=1 // pred_fallthru
      _
    // Predicated region
    $region38: #{tpu_custom_call.1} parent=1 // pred_check
      _
    $region39: #{tpu_custom_call.1} parent=1 // pred_check_branch
      %83 = sbr.rel (0) target = $region41
    $region40: #{tpu_custom_call.1} parent=1 // pred_region
      %85 = vsyncadd [#allocation10], 0
      %s86 = sshll.u32 %s9, 4
      %s87 = int_to_ptr.hbm [resolvable:$true] %s86
      %s88 = sshll.u32 [#allocation9], 4
      %s89 = int_to_ptr.vmem [resolvable:$true] %s88
      %94 = dma.hbm_to_vmem [thread:$0]  %s87, 3072, %s89, [#allocation10], 192, 192, 12
    $region41: #{tpu_custom_call.1} parent=1 // pred_fallthru
      _
    // Predicated region
    $region42: #{tpu_custom_call.1} parent=1 // pred_check
      _
    $region43: #{tpu_custom_call.1} parent=1 // pred_check_branch
      %96 = sbr.rel (0) target = $region45
    $region44: #{tpu_custom_call.1} parent=1 // pred_region
      %98 = vsyncadd [#allocation10], 0
      %s99 = sshll.u32 %s10, 4
      %s100 = int_to_ptr.hbm [resolvable:$true] %s99
      %s101 = sshll.u32 [#allocation11], 4
      %s102 = int_to_ptr.vmem [resolvable:$true] %s101
      %107 = dma.hbm_to_vmem [thread:$0]  %s100, 3072, %s102, [#allocation10], 192, 192, 12
    $region45: #{tpu_custom_call.1} parent=1 // pred_fallthru
      _
    // Predicated region
    $region46: #{tpu_custom_call.1} parent=1 // pred_check
      _
    $region47: #{tpu_custom_call.1} parent=1 // pred_check_branch
      %109 = sbr.rel (0) target = $region49
    $region48: #{tpu_custom_call.1} parent=1 // pred_region
      %111 = vsyncadd [#allocation13], 0
      %s113 = sshll.u32 %s11, 4
      %s114 = int_to_ptr.hbm [resolvable:$true] %s113
      %s115 = sshll.u32 [#allocation12], 4
      %s116 = int_to_ptr.vmem [resolvable:$true] %s115
      %118 = dma.hbm_to_vmem [thread:$0]  %s114, 48, %s116, [#allocation13]
    $region49: #{tpu_custom_call.1} parent=1 // pred_fallthru
      _
    // Predicated region
    $region50: #{tpu_custom_call.1} parent=1 // pred_check
      _
    $region51: #{tpu_custom_call.1} parent=1 // pred_check_branch
      %120 = sbr.rel (0) target = $region53
    $region52: #{tpu_custom_call.1} parent=1 // pred_region
      %122 = vsyncadd [#allocation13], 0
      %s124 = sshll.u32 %s12, 4
      %s125 = int_to_ptr.hbm [resolvable:$true] %s124
      %s126 = sshll.u32 [#allocation14], 4
      %s127 = int_to_ptr.vmem [resolvable:$true] %s126
      %129 = dma.hbm_to_vmem [thread:$0]  %s125, 16, %s127, [#allocation13]
    $region53: #{tpu_custom_call.1} parent=1 // pred_fallthru
      _
    // Predicated region
    $region54: #{tpu_custom_call.1} parent=1 // pred_check
      _
    $region55: #{tpu_custom_call.1} parent=1 // pred_check_branch
      %131 = sbr.rel (0) target = $region57
    $region56: #{tpu_custom_call.1} parent=1 // pred_region
      %133 = vsyncadd [#allocation16], 0
      %s134 = sshll.u32 %s13, 4
      %s135 = int_to_ptr.hbm [resolvable:$true] %s134
      %s136 = sshll.u32 [#allocation15], 4
      %s137 = int_to_ptr.vmem [resolvable:$true] %s136
      %142 = dma.hbm_to_vmem [thread:$0]  %s135, 3072, %s137, [#allocation16], 192, 192, 12
    $region57: #{tpu_custom_call.1} parent=1 // pred_fallthru
      _
    // Predicated region
    $region58: #{tpu_custom_call.1} parent=1 // pred_check
      _
    $region59: #{tpu_custom_call.1} parent=1 // pred_check_branch
      %144 = sbr.rel (0) target = $region61
    $region60: #{tpu_custom_call.1} parent=1 // pred_region
      %146 = vsyncadd [#allocation16], 0
      %s147 = sshll.u32 %s14, 4
      %s148 = int_to_ptr.hbm [resolvable:$true] %s147
      %s149 = sshll.u32 [#allocation17], 4
      %s150 = int_to_ptr.vmem [resolvable:$true] %s149
      %155 = dma.hbm_to_vmem [thread:$0]  %s148, 3072, %s150, [#allocation16], 192, 192, 12
    $region61: #{tpu_custom_call.1} parent=1 // pred_fallthru
      _
    // Predicated region
    $region62: #{tpu_custom_call.1} parent=1 // pred_check
      _
    $region63: #{tpu_custom_call.1} parent=1 // pred_check_branch
      %157 = sbr.rel (0) target = $region65
    $region64: #{tpu_custom_call.1} parent=1 // pred_region
      %159 = vsyncadd [#allocation19], 0
      %s161 = sshll.u32 %s15, 4
      %s162 = int_to_ptr.hbm [resolvable:$true] %s161
      %s163 = sshll.u32 [#allocation18], 4
      %s164 = int_to_ptr.vmem [resolvable:$true] %s163
      %166 = dma.hbm_to_vmem [thread:$0]  %s162, 48, %s164, [#allocation19]
    $region65: #{tpu_custom_call.1} parent=1 // pred_fallthru
      _
    // Predicated region
    $region66: #{tpu_custom_call.1} parent=1 // pred_check
      _
    $region67: #{tpu_custom_call.1} parent=1 // pred_check_branch
      %168 = sbr.rel (0) target = $region69
    $region68: #{tpu_custom_call.1} parent=1 // pred_region
      %170 = vsyncadd [#allocation19], 0
      %s172 = sshll.u32 %s16, 4
      %s173 = int_to_ptr.hbm [resolvable:$true] %s172
      %s174 = sshll.u32 [#allocation20], 4
      %s175 = int_to_ptr.vmem [resolvable:$true] %s174
      %177 = dma.hbm_to_vmem [thread:$0]  %s173, 16, %s175, [#allocation19]
    $region69: #{tpu_custom_call.1} parent=1 // pred_fallthru
      _
    // Predicated region
    $region70: #{tpu_custom_call.1} parent=1 // pred_check
      _
    $region71: #{tpu_custom_call.1} parent=1 // pred_check_branch
      %179 = sbr.rel (0) target = $region73
    $region72: #{tpu_custom_call.1} parent=1 // pred_region
      _
    $region73: #{tpu_custom_call.1} parent=1 // pred_fallthru
      _
    // Predicated region
    $region74: #{tpu_custom_call.1} parent=1 // pred_check
      _
    $region75: #{tpu_custom_call.1} parent=1 // pred_check_branch
      %181 = sbr.rel (0) target = $region77
    $region76: #{tpu_custom_call.1} parent=1 // pred_region
      _
    $region77: #{tpu_custom_call.1} parent=1 // pred_fallthru
      _
    // Predicated region
    $region78: #{tpu_custom_call.1} parent=1 // pred_check
      _
    $region79: #{tpu_custom_call.1} parent=1 // pred_check_branch
      %183 = sbr.rel (0) target = $region81
    $region80: #{tpu_custom_call.1} parent=1 // pred_region
      %185 = dma.done [#allocation4], 3072
    $region81: #{tpu_custom_call.1} parent=1 // pred_fallthru
      _
    // Predicated region
    $region82: #{tpu_custom_call.1} parent=1 // pred_check
      _
    $region83: #{tpu_custom_call.1} parent=1 // pred_check_branch
      %187 = sbr.rel (0) target = $region85
    $region84: #{tpu_custom_call.1} parent=1 // pred_region
      %189 = dma.done [#allocation7], 3072
    $region85: #{tpu_custom_call.1} parent=1 // pred_fallthru
      _
    // Predicated region
    $region86: #{tpu_custom_call.1} parent=1 // pred_check
      _
    $region87: #{tpu_custom_call.1} parent=1 // pred_check_branch
      %191 = sbr.rel (0) target = $region89
    $region88: #{tpu_custom_call.1} parent=1 // pred_region
      %193 = dma.done [#allocation7], 3072
    $region89: #{tpu_custom_call.1} parent=1 // pred_fallthru
      _
    // Predicated region
    $region90: #{tpu_custom_call.1} parent=1 // pred_check
      _
    $region91: #{tpu_custom_call.1} parent=1 // pred_check_branch
      %195 = sbr.rel (0) target = $region93
    $region92: #{tpu_custom_call.1} parent=1 // pred_region
      %197 = dma.done [#allocation10], 3072
    $region93: #{tpu_custom_call.1} parent=1 // pred_fallthru
      _
    // Predicated region
    $region94: #{tpu_custom_call.1} parent=1 // pred_check
      _
    $region95: #{tpu_custom_call.1} parent=1 // pred_check_branch
      %199 = sbr.rel (0) target = $region97
    $region96: #{tpu_custom_call.1} parent=1 // pred_region
      %201 = dma.done [#allocation10], 3072
    $region97: #{tpu_custom_call.1} parent=1 // pred_fallthru
      _
    // Predicated region
    $region98: #{tpu_custom_call.1} parent=1 // pred_check
      _
    $region99: #{tpu_custom_call.1} parent=1 // pred_check_branch
      %203 = sbr.rel (0) target = $region101
    $region100: #{tpu_custom_call.1} parent=1 // pred_region
      %205 = dma.done [#allocation13], 48
    $region101: #{tpu_custom_call.1} parent=1 // pred_fallthru
      _
    // Predicated region
    $region102: #{tpu_custom_call.1} parent=1 // pred_check
      _
    $region103: #{tpu_custom_call.1} parent=1 // pred_check_branch
      %207 = sbr.rel (0) target = $region105
    $region104: #{tpu_custom_call.1} parent=1 // pred_region
      %209 = dma.done [#allocation13], 16
    $region105: #{tpu_custom_call.1} parent=1 // pred_fallthru
      _
    // Predicated region
    $region106: #{tpu_custom_call.1} parent=1 // pred_check
      _
    $region107: #{tpu_custom_call.1} parent=1 // pred_check_branch
      %211 = sbr.rel (0) target = $region109
    $region108: #{tpu_custom_call.1} parent=1 // pred_region
      %213 = dma.done [#allocation16], 3072
    $region109: #{tpu_custom_call.1} parent=1 // pred_fallthru
      _
    // Predicated region
    $region110: #{tpu_custom_call.1} parent=1 // pred_check
      _
    $region111: #{tpu_custom_call.1} parent=1 // pred_check_branch
      %215 = sbr.rel (0) target = $region113
    $region112: #{tpu_custom_call.1} parent=1 // pred_region
      %217 = dma.done [#allocation16], 3072
    $region113: #{tpu_custom_call.1} parent=1 // pred_fallthru
      _
    // Predicated region
    $region114: #{tpu_custom_call.1} parent=1 // pred_check
      _
    $region115: #{tpu_custom_call.1} parent=1 // pred_check_branch
      %219 = sbr.rel (0) target = $region117
    $region116: #{tpu_custom_call.1} parent=1 // pred_region
      %221 = dma.done [#allocation19], 48
    $region117: #{tpu_custom_call.1} parent=1 // pred_fallthru
      _
    // Predicated region
    $region118: #{tpu_custom_call.1} parent=1 // pred_check
      _
    $region119: #{tpu_custom_call.1} parent=1 // pred_check_branch
      %223 = sbr.rel (0) target = $region121
    $region120: #{tpu_custom_call.1} parent=1 // pred_region
      %225 = dma.done [#allocation19], 16
    $region121: #{tpu_custom_call.1} parent=1 // pred_fallthru
      _
    %v227 = vld [vmem:[%s0] sm:$0xf]
    %v228 = vld [vmem:[%s0 + $0x4] sm:$0xf]
    %v229 = vld [vmem:[%s0 + $0x8] sm:$0xf]
    %v230 = vld [vmem:[%s0 + $0xc] sm:$0xf]
    %v231 = vld [vmem:[%s0 + $0x10] sm:$0xf]
    %v232 = vld [vmem:[%s0 + $0x14] sm:$0xf]
    %v233 = vld [vmem:[%s0 + $0x18] sm:$0xf]
    %v234 = vld [vmem:[%s0 + $0x1c] sm:$0xf]
    %v235 = vld [vmem:[%s0 + $0x20] sm:$0xf]
    %v236 = vld [vmem:[%s0 + $0x24] sm:$0xf]
    %v237 = vld [vmem:[%s0 + $0x28] sm:$0xf]
    %v238 = vld [vmem:[%s0 + $0x2c] sm:$0xf]
    %v239 = vld [vmem:[%s0 + $0x30] sm:$0xf]
    %v240 = vld [vmem:[%s0 + $0x34] sm:$0xf]
    %v241 = vld [vmem:[%s0 + $0x38] sm:$0xf]
    %v242 = vld [vmem:[%s0 + $0x3c] sm:$0xf]
    %v243 = vld [vmem:[%s1] sm:$0x77]
    %v244 = vld [vmem:[%s1 + $0x8] sm:$0x7]
    %v245 = vld [vmem:[%s3] sm:$0x7]
    %v247 = vperm.slane %v245, 0
    %v248 = vperm.slane %v245, 1
    %v249 = vperm.slane %v245, 2
    %v269 = vunpack.c.l.b16 %v227
    %v270 = vunpack.c.l.b16 %v228
    %v271 = vunpack.c.l.b16 %v229
    %v272 = vunpack.c.l.b16 %v230
    %v273 = vunpack.c.l.b16 %v231
    %v274 = vunpack.c.l.b16 %v232
    %v275 = vunpack.c.l.b16 %v233
    %v276 = vunpack.c.l.b16 %v234
    %v277 = vunpack.c.l.b16 %v235
    %v278 = vunpack.c.l.b16 %v236
    %v279 = vunpack.c.l.b16 %v237
    %v280 = vunpack.c.l.b16 %v238
    %v281 = vunpack.c.l.b16 %v239
    %v282 = vunpack.c.l.b16 %v240
    %v283 = vunpack.c.l.b16 %v241
    %v284 = vunpack.c.l.b16 %v242
    %v285 = vpack.c.b16 %v270, %v269
    %v286 = vpack.c.b16 %v272, %v271
    %v287 = vpack.c.b16 %v274, %v273
    %v288 = vpack.c.b16 %v276, %v275
    %v289 = vpack.c.b16 %v278, %v277
    %v290 = vpack.c.b16 %v280, %v279
    %v291 = vpack.c.b16 %v282, %v281
    %v292 = vpack.c.b16 %v284, %v283
    %v295 = vunpack.c.l.b16 %v243
    %v296 = vunpack.c.h.b16 %v243
    %v297 = vunpack.c.l.b16 %v244
    %v298 = vpack.c.b16 %v295, %v295
    %v299 = vpack.c.b16 %v296, %v296
    %v300 = vpack.c.b16 %v297, %v297
    %vm301 = vcmask 39936
    %v303 = vsel %vm301, %v285, 0
    %v306 = vsel %vm301, %v286, 0
    %v309 = vsel %vm301, %v287, 0
    %v312 = vsel %vm301, %v288, 0
    %v315 = vsel %vm301, %v289, 0
    %v318 = vsel %vm301, %v290, 0
    %v321 = vsel %vm301, %v291, 0
    %v324 = vsel %vm301, %v292, 0
    %vm326 = vcmask 1041408
    %vm327 = vcmask 1042432
    %v328 = vsel %vm326, 4294967295, 65535
    %v329 = vsel %vm327, %v328, 0
    %v331 = vand.u32 %v298, %v329
    %v334 = vand.u32 %v299, %v329
    %v337 = vand.u32 %v300, %v329
    %339 = vmatpush.bf16.msra.mxu0 0
    %340 = vmatpush.bf16.msra.mxu0 0
    %341 = vmatpush.bf16.msra.mxu0 0
    %342 = vmatpush.bf16.msra.mxu0 0
    %343 = vmatpush.bf16.msra.mxu0 0
    %344 = vmatpush.bf16.msra.mxu0 0
    %345 = vmatpush.bf16.msra.mxu0 0
    %346 = vmatpush.bf16.msra.mxu0 %v331
    %347 = vmatmul.bf16.gmra.mxu0 %v303
    %v348 = vpop.f32.mrf.mxu0
    %v349 = vadd.f32 %v247, %v348
    %v350 = vpop.f32.mrf.mxu0
    %v351 = vadd.f32 %v247, %v350
    %352 = vmatmul.bf16.gmra.mxu0 %v306
    %v353 = vpop.f32.mrf.mxu0
    %v354 = vadd.f32 %v247, %v353
    %v355 = vpop.f32.mrf.mxu0
    %v356 = vadd.f32 %v247, %v355
    %357 = vmatmul.bf16.gmra.mxu0 %v309
    %v358 = vpop.f32.mrf.mxu0
    %v359 = vadd.f32 %v247, %v358
    %v360 = vpop.f32.mrf.mxu0
    %v361 = vadd.f32 %v247, %v360
    %362 = vmatmul.bf16.gmra.mxu0 %v312
    %v363 = vpop.f32.mrf.mxu0
    %v364 = vadd.f32 %v247, %v363
    %v365 = vpop.f32.mrf.mxu0
    %v366 = vadd.f32 %v247, %v365
    %367 = vmatmul.bf16.gmra.mxu0 %v315
    %v368 = vpop.f32.mrf.mxu0
    %v369 = vadd.f32 %v247, %v368
    %v370 = vpop.f32.mrf.mxu0
    %v371 = vadd.f32 %v247, %v370
    %372 = vmatmul.bf16.gmra.mxu0 %v318
    %v373 = vpop.f32.mrf.mxu0
    %v374 = vadd.f32 %v247, %v373
    %v375 = vpop.f32.mrf.mxu0
    %v376 = vadd.f32 %v247, %v375
    %377 = vmatmul.bf16.gmra.mxu0 %v321
    %v378 = vpop.f32.mrf.mxu0
    %v379 = vadd.f32 %v247, %v378
    %v380 = vpop.f32.mrf.mxu0
    %v381 = vadd.f32 %v247, %v380
    %382 = vmatmul.bf16.gmra.mxu0 %v324
    %v383 = vpop.f32.mrf.mxu0
    %v384 = vadd.f32 %v247, %v383
    %v385 = vpop.f32.mrf.mxu0
    %v386 = vadd.f32 %v247, %v385
    %387 = vdwg.mxu0
    %388 = vmatpush.bf16.msra.mxu0 0
    %389 = vmatpush.bf16.msra.mxu0 0
    %390 = vmatpush.bf16.msra.mxu0 0
    %391 = vmatpush.bf16.msra.mxu0 0
    %392 = vmatpush.bf16.msra.mxu0 0
    %393 = vmatpush.bf16.msra.mxu0 0
    %394 = vmatpush.bf16.msra.mxu0 0
    %395 = vmatpush.bf16.msra.mxu0 %v334
    %396 = vmatmul.bf16.gmra.mxu0 %v303
    %v397 = vpop.f32.mrf.mxu0
    %v398 = vadd.f32 %v248, %v397
    %v399 = vpop.f32.mrf.mxu0
    %v400 = vadd.f32 %v248, %v399
    %401 = vmatmul.bf16.gmra.mxu0 %v306
    %v402 = vpop.f32.mrf.mxu0
    %v403 = vadd.f32 %v248, %v402
    %v404 = vpop.f32.mrf.mxu0
    %v405 = vadd.f32 %v248, %v404
    %406 = vmatmul.bf16.gmra.mxu0 %v309
    %v407 = vpop.f32.mrf.mxu0
    %v408 = vadd.f32 %v248, %v407
    %v409 = vpop.f32.mrf.mxu0
    %v410 = vadd.f32 %v248, %v409
    %411 = vmatmul.bf16.gmra.mxu0 %v312
    %v412 = vpop.f32.mrf.mxu0
    %v413 = vadd.f32 %v248, %v412
    %v414 = vpop.f32.mrf.mxu0
    %v415 = vadd.f32 %v248, %v414
    %416 = vmatmul.bf16.gmra.mxu0 %v315
    %v417 = vpop.f32.mrf.mxu0
    %v418 = vadd.f32 %v248, %v417
    %v419 = vpop.f32.mrf.mxu0
    %v420 = vadd.f32 %v248, %v419
    %421 = vmatmul.bf16.gmra.mxu0 %v318
    %v422 = vpop.f32.mrf.mxu0
    %v423 = vadd.f32 %v248, %v422
    %v424 = vpop.f32.mrf.mxu0
    %v425 = vadd.f32 %v248, %v424
    %426 = vmatmul.bf16.gmra.mxu0 %v321
    %v427 = vpop.f32.mrf.mxu0
    %v428 = vadd.f32 %v248, %v427
    %v429 = vpop.f32.mrf.mxu0
    %v430 = vadd.f32 %v248, %v429
    %431 = vmatmul.bf16.gmra.mxu0 %v324
    %v432 = vpop.f32.mrf.mxu0
    %v433 = vadd.f32 %v248, %v432
    %v434 = vpop.f32.mrf.mxu0
    %v435 = vadd.f32 %v248, %v434
    %436 = vdwg.mxu0
    %437 = vmatpush.bf16.msra.mxu0 0
    %438 = vmatpush.bf16.msra.mxu0 0
    %439 = vmatpush.bf16.msra.mxu0 0
    %440 = vmatpush.bf16.msra.mxu0 0
    %441 = vmatpush.bf16.msra.mxu0 0
    %442 = vmatpush.bf16.msra.mxu0 0
    %443 = vmatpush.bf16.msra.mxu0 0
    %444 = vmatpush.bf16.msra.mxu0 %v337
    %445 = vmatmul.bf16.gmra.mxu0 %v303
    %v446 = vpop.f32.mrf.mxu0
    %v447 = vadd.f32 %v249, %v446
    %v448 = vpop.f32.mrf.mxu0
    %v449 = vadd.f32 %v249, %v448
    %450 = vmatmul.bf16.gmra.mxu0 %v306
    %v451 = vpop.f32.mrf.mxu0
    %v452 = vadd.f32 %v249, %v451
    %v453 = vpop.f32.mrf.mxu0
    %v454 = vadd.f32 %v249, %v453
    %455 = vmatmul.bf16.gmra.mxu0 %v309
    %v456 = vpop.f32.mrf.mxu0
    %v457 = vadd.f32 %v249, %v456
    %v458 = vpop.f32.mrf.mxu0
    %v459 = vadd.f32 %v249, %v458
    %460 = vmatmul.bf16.gmra.mxu0 %v312
    %v461 = vpop.f32.mrf.mxu0
    %v462 = vadd.f32 %v249, %v461
    %v463 = vpop.f32.mrf.mxu0
    %v464 = vadd.f32 %v249, %v463
    %465 = vmatmul.bf16.gmra.mxu0 %v315
    %v466 = vpop.f32.mrf.mxu0
    %v467 = vadd.f32 %v249, %v466
    %v468 = vpop.f32.mrf.mxu0
    %v469 = vadd.f32 %v249, %v468
    %470 = vmatmul.bf16.gmra.mxu0 %v318
    %v471 = vpop.f32.mrf.mxu0
    %v472 = vadd.f32 %v249, %v471
    %v473 = vpop.f32.mrf.mxu0
    %v474 = vadd.f32 %v249, %v473
    %475 = vmatmul.bf16.gmra.mxu0 %v321
    %v476 = vpop.f32.mrf.mxu0
    %v477 = vadd.f32 %v249, %v476
    %v478 = vpop.f32.mrf.mxu0
    %v479 = vadd.f32 %v249, %v478
    %480 = vmatmul.bf16.gmra.mxu0 %v324
    %v481 = vpop.f32.mrf.mxu0
    %v482 = vadd.f32 %v249, %v481
    %v483 = vpop.f32.mrf.mxu0
    %v484 = vadd.f32 %v249, %v483
    %485 = vdwg.mxu0
    %486 = vst [vmem:[#allocation2] sm:$0xff] %v349
    %487 = vst [vmem:[#allocation2 + $0x8] sm:$0xff] %v398
    %488 = vst [vmem:[#allocation2 + $0x10] sm:$0xff] %v447
    %489 = vst [vmem:[#allocation2 + $0x18] sm:$0xff] %v351
    %490 = vst [vmem:[#allocation2 + $0x20] sm:$0xff] %v400
    %491 = vst [vmem:[#allocation2 + $0x28] sm:$0xff] %v449
    %492 = vst [vmem:[#allocation2 + $0x30] sm:$0xff] %v354
    %493 = vst [vmem:[#allocation2 + $0x38] sm:$0xff] %v403
    %494 = vst [vmem:[#allocation2 + $0x40] sm:$0xff] %v452
    %495 = vst [vmem:[#allocation2 + $0x48] sm:$0xff] %v356
    %496 = vst [vmem:[#allocation2 + $0x50] sm:$0xff] %v405
    %497 = vst [vmem:[#allocation2 + $0x58] sm:$0xff] %v454
    %498 = vst [vmem:[#allocation2 + $0x60] sm:$0xff] %v359
    %499 = vst [vmem:[#allocation2 + $0x68] sm:$0xff] %v408
    %500 = vst [vmem:[#allocation2 + $0x70] sm:$0xff] %v457
    %501 = vst [vmem:[#allocation2 + $0x78] sm:$0xff] %v361
    %502 = vst [vmem:[#allocation2 + $0x80] sm:$0xff] %v410
    %503 = vst [vmem:[#allocation2 + $0x88] sm:$0xff] %v459
    %504 = vst [vmem:[#allocation2 + $0x90] sm:$0xff] %v364
    %505 = vst [vmem:[#allocation2 + $0x98] sm:$0xff] %v413
    %506 = vst [vmem:[#allocation2 + $0xa0] sm:$0xff] %v462
    %507 = vst [vmem:[#allocation2 + $0xa8] sm:$0xff] %v366
    %508 = vst [vmem:[#allocation2 + $0xb0] sm:$0xff] %v415
    %509 = vst [vmem:[#allocation2 + $0xb8] sm:$0xff] %v464
    %510 = vst [vmem:[#allocation2 + $0xc0] sm:$0xff] %v369
    %511 = vst [vmem:[#allocation2 + $0xc8] sm:$0xff] %v418
    %512 = vst [vmem:[#allocation2 + $0xd0] sm:$0xff] %v467
    %513 = vst [vmem:[#allocation2 + $0xd8] sm:$0xff] %v371
    %514 = vst [vmem:[#allocation2 + $0xe0] sm:$0xff] %v420
    %515 = vst [vmem:[#allocation2 + $0xe8] sm:$0xff] %v469
    %516 = vst [vmem:[#allocation2 + $0xf0] sm:$0xff] %v374
    %517 = vst [vmem:[#allocation2 + $0xf8] sm:$0xff] %v423
    %518 = vst [vmem:[#allocation2 + $0x100] sm:$0xff] %v472
    %519 = vst [vmem:[#allocation2 + $0x108] sm:$0xff] %v376
    %520 = vst [vmem:[#allocation2 + $0x110] sm:$0xff] %v425
    %521 = vst [vmem:[#allocation2 + $0x118] sm:$0xff] %v474
    %522 = vst [vmem:[#allocation2 + $0x120] sm:$0xff] %v379
    %523 = vst [vmem:[#allocation2 + $0x128] sm:$0xff] %v428
    %524 = vst [vmem:[#allocation2 + $0x130] sm:$0xff] %v477
    %525 = vst [vmem:[#allocation2 + $0x138] sm:$0xff] %v381
    %526 = vst [vmem:[#allocation2 + $0x140] sm:$0xff] %v430
    %527 = vst [vmem:[#allocation2 + $0x148] sm:$0xff] %v479
    %528 = vst [vmem:[#allocation2 + $0x150] sm:$0xff] %v384
    %529 = vst [vmem:[#allocation2 + $0x158] sm:$0xff] %v433
    %530 = vst [vmem:[#allocation2 + $0x160] sm:$0xff] %v482
    %531 = vst [vmem:[#allocation2 + $0x168] sm:$0xff] %v386
    %532 = vst [vmem:[#allocation2 + $0x170] sm:$0xff] %v435
    %533 = vst [vmem:[#allocation2 + $0x178] sm:$0xff] %v484
    %v534 = vld [vmem:[#allocation2] sm:$0xff]
    %v535 = vld [vmem:[#allocation2 + $0x8] sm:$0xff]
    %v536 = vld [vmem:[#allocation2 + $0x10] sm:$0xff]
    %v537 = vld [vmem:[#allocation2 + $0x18] sm:$0xff]
    %v538 = vld [vmem:[#allocation2 + $0x20] sm:$0xff]
    %v539 = vld [vmem:[#allocation2 + $0x28] sm:$0xff]
    %v540 = vld [vmem:[#allocation3] sm:$0xff]
    %v541 = vld [vmem:[#allocation3 + $0x8] sm:$0xf]
    %v542 = vld [vmem:[#allocation3 + $0xc] sm:$0xff]
    %v543 = vld [vmem:[#allocation3 + $0x14] sm:$0xf]
    %v544 = vld [vmem:[#allocation3 + $0x18] sm:$0xff]
    %v545 = vld [vmem:[#allocation3 + $0x20] sm:$0xf]
    %v546 = vld [vmem:[#allocation3 + $0x24] sm:$0xff]
    %v547 = vld [vmem:[#allocation3 + $0x2c] sm:$0xf]
    %v548 = vld [vmem:[#allocation3 + $0x30] sm:$0xff]
    %v549 = vld [vmem:[#allocation3 + $0x38] sm:$0xf]
    %v550 = vld [vmem:[#allocation3 + $0x3c] sm:$0xff]
    %v551 = vld [vmem:[#allocation3 + $0x44] sm:$0xf]
    %v552 = vld [vmem:[#allocation3 + $0x48] sm:$0xff]
    %v553 = vld [vmem:[#allocation3 + $0x50] sm:$0xf]
    %v554 = vld [vmem:[#allocation3 + $0x54] sm:$0xff]
    %v555 = vld [vmem:[#allocation3 + $0x5c] sm:$0xf]
    %v556 = vld [vmem:[#allocation3 + $0x60] sm:$0xff]
    %v557 = vld [vmem:[#allocation3 + $0x68] sm:$0xf]
    %v558 = vld [vmem:[#allocation3 + $0x6c] sm:$0xff]
    %v559 = vld [vmem:[#allocation3 + $0x74] sm:$0xf]
    %v560 = vld [vmem:[#allocation3 + $0x78] sm:$0xff]
    %v561 = vld [vmem:[#allocation3 + $0x80] sm:$0xf]
    %v562 = vld [vmem:[#allocation3 + $0x84] sm:$0xff]
    %v563 = vld [vmem:[#allocation3 + $0x8c] sm:$0xf]
    %v564 = vld [vmem:[#allocation3 + $0x90] sm:$0xff]
    %v565 = vld [vmem:[#allocation3 + $0x98] sm:$0xf]
    %v566 = vld [vmem:[#allocation3 + $0x9c] sm:$0xff]
    %v567 = vld [vmem:[#allocation3 + $0xa4] sm:$0xf]
    %v568 = vld [vmem:[#allocation3 + $0xa8] sm:$0xff]
    %v569 = vld [vmem:[#allocation3 + $0xb0] sm:$0xf]
    %v570 = vld [vmem:[#allocation3 + $0xb4] sm:$0xff]
    %v571 = vld [vmem:[#allocation3 + $0xbc] sm:$0xf]
    %v604 = vunpack.c.l.b16 %v540
    %v605 = vunpack.c.h.b16 %v540
    %v606 = vunpack.c.l.b16 %v541
    %v607 = vunpack.c.l.b16 %v542
    %v608 = vunpack.c.h.b16 %v542
    %v609 = vunpack.c.l.b16 %v543
    %v610 = vunpack.c.l.b16 %v544
    %v611 = vunpack.c.h.b16 %v544
    %v612 = vunpack.c.l.b16 %v545
    %v613 = vunpack.c.l.b16 %v546
    %v614 = vunpack.c.h.b16 %v546
    %v615 = vunpack.c.l.b16 %v547
    %v616 = vunpack.c.l.b16 %v548
    %v617 = vunpack.c.h.b16 %v548
    %v618 = vunpack.c.l.b16 %v549
    %v619 = vunpack.c.l.b16 %v550
    %v620 = vunpack.c.h.b16 %v550
    %v621 = vunpack.c.l.b16 %v551
    %v622 = vunpack.c.l.b16 %v552
    %v623 = vunpack.c.h.b16 %v552
    %v624 = vunpack.c.l.b16 %v553
    %v625 = vunpack.c.l.b16 %v554
    %v626 = vunpack.c.h.b16 %v554
    %v627 = vunpack.c.l.b16 %v555
    %v628 = vunpack.c.l.b16 %v556
    %v629 = vunpack.c.h.b16 %v556
    %v630 = vunpack.c.l.b16 %v557
    %v631 = vunpack.c.l.b16 %v558
    %v632 = vunpack.c.h.b16 %v558
    %v633 = vunpack.c.l.b16 %v559
    %v634 = vunpack.c.l.b16 %v560
    %v635 = vunpack.c.h.b16 %v560
    %v636 = vunpack.c.l.b16 %v561
    %v637 = vunpack.c.l.b16 %v562
    %v638 = vunpack.c.h.b16 %v562
    %v639 = vunpack.c.l.b16 %v563
    %v640 = vunpack.c.l.b16 %v564
    %v641 = vunpack.c.h.b16 %v564
    %v642 = vunpack.c.l.b16 %v565
    %v643 = vunpack.c.l.b16 %v566
    %v644 = vunpack.c.h.b16 %v566
    %v645 = vunpack.c.l.b16 %v567
    %v646 = vunpack.c.l.b16 %v568
    %v647 = vunpack.c.h.b16 %v568
    %v648 = vunpack.c.l.b16 %v569
    %v649 = vunpack.c.l.b16 %v570
    %v650 = vunpack.c.h.b16 %v570
    %v651 = vunpack.c.l.b16 %v571
    %v652 = vpack.c.b16 %v607, %v604
    %v653 = vpack.c.b16 %v608, %v605
    %v654 = vpack.c.b16 %v609, %v606
    %v655 = vpack.c.b16 %v613, %v610
    %v656 = vpack.c.b16 %v614, %v611
    %v657 = vpack.c.b16 %v615, %v612
    %v658 = vpack.c.b16 %v619, %v616
    %v659 = vpack.c.b16 %v620, %v617
    %v660 = vpack.c.b16 %v621, %v618
    %v661 = vpack.c.b16 %v625, %v622
    %v662 = vpack.c.b16 %v626, %v623
    %v663 = vpack.c.b16 %v627, %v624
    %v664 = vpack.c.b16 %v631, %v628
    %v665 = vpack.c.b16 %v632, %v629
    %v666 = vpack.c.b16 %v633, %v630
    %v667 = vpack.c.b16 %v637, %v634
    %v668 = vpack.c.b16 %v638, %v635
    %v669 = vpack.c.b16 %v639, %v636
    %v670 = vpack.c.b16 %v643, %v640
    %v671 = vpack.c.b16 %v644, %v641
    %v672 = vpack.c.b16 %v645, %v642
    %v673 = vpack.c.b16 %v649, %v646
    %v674 = vpack.c.b16 %v650, %v647
    %v675 = vpack.c.b16 %v651, %v648
    %700 = vmatpush.bf16.msra.mxu0 %v673
    %701 = vmatpush.bf16.msra.mxu0 %v670
    %702 = vmatpush.bf16.msra.mxu0 %v667
    %703 = vmatpush.bf16.msra.mxu0 %v664
    %704 = vmatpush.bf16.msra.mxu0 %v661
    %705 = vmatpush.bf16.msra.mxu0 %v658
    %706 = vmatpush.bf16.msra.mxu0 %v655
    %707 = vmatpush.bf16.msra.mxu0 %v652
    %708 = vmatmul.bf16.gmra.mxu0 0
    %v709 = vpop.f32.mrf.mxu0
    %v710 = vadd.f32 0.0, %v709
    %v711 = vpop.f32.mrf.mxu0
    %v712 = vadd.f32 0.0, %v711
    %713 = vdwg.mxu0
    %714 = vmatpush.bf16.msra.mxu0 %v674
    %715 = vmatpush.bf16.msra.mxu0 %v671
    %716 = vmatpush.bf16.msra.mxu0 %v668
    %717 = vmatpush.bf16.msra.mxu0 %v665
    %718 = vmatpush.bf16.msra.mxu0 %v662
    %719 = vmatpush.bf16.msra.mxu0 %v659
    %720 = vmatpush.bf16.msra.mxu0 %v656
    %721 = vmatpush.bf16.msra.mxu0 %v653
    %722 = vmatmul.bf16.gmra.mxu0 0
    %v723 = vpop.f32.mrf.mxu0
    %v724 = vadd.f32 0.0, %v723
    %v725 = vpop.f32.mrf.mxu0
    %v726 = vadd.f32 0.0, %v725
    %727 = vdwg.mxu0
    %728 = vmatpush.bf16.msra.mxu0 %v675
    %729 = vmatpush.bf16.msra.mxu0 %v672
    %730 = vmatpush.bf16.msra.mxu0 %v669
    %731 = vmatpush.bf16.msra.mxu0 %v666
    %732 = vmatpush.bf16.msra.mxu0 %v663
    %733 = vmatpush.bf16.msra.mxu0 %v660
    %734 = vmatpush.bf16.msra.mxu0 %v657
    %735 = vmatpush.bf16.msra.mxu0 %v654
    %736 = vmatmul.bf16.gmra.mxu0 0
    %v737 = vpop.f32.mrf.mxu0
    %v738 = vadd.f32 0.0, %v737
    %v739 = vpop.f32.mrf.mxu0
    %v740 = vadd.f32 0.0, %v739
    %741 = vdwg.mxu0
    %v742 = vadd.f32 %v534, %v710
    %v743 = vadd.f32 %v537, %v712
    %v744 = vxor.u32 %v742, 2147483648
    %v745 = vxor.u32 %v743, 2147483648
    %v746 = vmul.f32 %v744, 1.442695
    %v747 = vpow.pop %v746
    %v748 = vmul.f32 %v745, 1.442695
    %v749 = vpow.pop %v748
    %v750 = vadd.f32 %v747, 1.0
    %v751 = vadd.f32 %v749, 1.0
    %v752 = vrcp.pop %v750
    %v753 = vmul.f32 %v750, %v752
    %v754 = vsub.f32 1.0, %v753
    %v755 = vmul.f32 %v752, %v754
    %v756 = vadd.f32 %v752, %v755
    %vm757 = vweird.f32 %v750
    %vm758 = vweird.f32 %v752
    %vm759 = vmor %vm757, %vm758
    %v760 = vsel %vm759, %v752, %v756
    %v761 = vand.u32 2147483647, %v750
    %vm762 = vcmp.eq.f32.partialorder %v761, 8.507059e+37
    %v763 = vand.u32 %v750, 2147483648
    %v764 = vor.u32 1.1754944e-38, %v763
    %v765 = vsel %vm762, %v764, %v760
    %v766 = vmul.f32 1.0, %v765
    %v767 = vrcp.pop %v751
    %v768 = vmul.f32 %v751, %v767
    %v769 = vsub.f32 1.0, %v768
    %v770 = vmul.f32 %v767, %v769
    %v771 = vadd.f32 %v767, %v770
    %vm772 = vweird.f32 %v751
    %vm773 = vweird.f32 %v767
    %vm774 = vmor %vm772, %vm773
    %v775 = vsel %vm774, %v767, %v771
    %v776 = vand.u32 2147483647, %v751
    %vm777 = vcmp.eq.f32.partialorder %v776, 8.507059e+37
    %v778 = vand.u32 %v751, 2147483648
    %v779 = vor.u32 1.1754944e-38, %v778
    %v780 = vsel %vm777, %v779, %v775
    %v781 = vmul.f32 1.0, %v780
    %v782 = vadd.f32 %v535, %v724
    %v783 = vadd.f32 %v538, %v726
    %v784 = vxor.u32 %v782, 2147483648
    %v785 = vxor.u32 %v783, 2147483648
    %v786 = vmul.f32 %v784, 1.442695
    %v787 = vpow.pop %v786
    %v788 = vmul.f32 %v785, 1.442695
    %v789 = vpow.pop %v788
    %v790 = vadd.f32 %v787, 1.0
    %v791 = vadd.f32 %v789, 1.0
    %v792 = vrcp.pop %v790
    %v793 = vmul.f32 %v790, %v792
    %v794 = vsub.f32 1.0, %v793
    %v795 = vmul.f32 %v792, %v794
    %v796 = vadd.f32 %v792, %v795
    %vm797 = vweird.f32 %v790
    %vm798 = vweird.f32 %v792
    %vm799 = vmor %vm797, %vm798
    %v800 = vsel %vm799, %v792, %v796
    %v801 = vand.u32 2147483647, %v790
    %vm802 = vcmp.eq.f32.partialorder %v801, 8.507059e+37
    %v803 = vand.u32 %v790, 2147483648
    %v804 = vor.u32 1.1754944e-38, %v803
    %v805 = vsel %vm802, %v804, %v800
    %v806 = vmul.f32 1.0, %v805
    %v807 = vrcp.pop %v791
    %v808 = vmul.f32 %v791, %v807
    %v809 = vsub.f32 1.0, %v808
    %v810 = vmul.f32 %v807, %v809
    %v811 = vadd.f32 %v807, %v810
    %vm812 = vweird.f32 %v791
    %vm813 = vweird.f32 %v807
    %vm814 = vmor %vm812, %vm813
    %v815 = vsel %vm814, %v807, %v811
    %v816 = vand.u32 2147483647, %v791
    %vm817 = vcmp.eq.f32.partialorder %v816, 8.507059e+37
    %v818 = vand.u32 %v791, 2147483648
    %v819 = vor.u32 1.1754944e-38, %v818
    %v820 = vsel %vm817, %v819, %v815
    %v821 = vmul.f32 1.0, %v820
    %v822 = vld [vmem:[%s4] sm:$0x1]
    %v824 = vperm.slane %v822, 0
    %v826 = vadd.f32 %v738, %v824
    %v827 = vadd.f32 %v740, %v824
    %v828 = vmul.f32 %v766, %v826
    %v829 = vmul.f32 %v781, %v827
    %v830 = vadd.f32 %v536, %v828
    %v831 = vadd.f32 %v539, %v829
    %v832 = vtanh.pop %v830
    %v833 = vtanh.pop %v831
    %v834 = vsub.f32 1.0, %v806
    %v835 = vsub.f32 1.0, %v821
    %v836 = vmul.f32 %v834, %v832
    %v837 = vmul.f32 %v835, %v833
    %v838 = vmul.f32 %v806, 0.0
    %v839 = vmul.f32 %v821, 0.0
    %v840 = vadd.f32 %v836, %v838
    %v841 = vadd.f32 %v837, %v839
    %v842 = vpack.c.bf16 %v841, %v840
    %v843 = vld [vmem:[#allocation2 + $0x30] sm:$0xff]
    %v844 = vld [vmem:[#allocation2 + $0x38] sm:$0xff]
    %v845 = vld [vmem:[#allocation2 + $0x40] sm:$0xff]
    %v846 = vld [vmem:[#allocation2 + $0x48] sm:$0xff]
    %v847 = vld [vmem:[#allocation2 + $0x50] sm:$0xff]
    %v848 = vld [vmem:[#allocation2 + $0x58] sm:$0xff]
    %849 = vmatpush.bf16.msra.mxu0 %v673
    %850 = vmatpush.bf16.msra.mxu0 %v670
    %851 = vmatpush.bf16.msra.mxu0 %v667
    %852 = vmatpush.bf16.msra.mxu0 %v664
    %853 = vmatpush.bf16.msra.mxu0 %v661
    %854 = vmatpush.bf16.msra.mxu0 %v658
    %855 = vmatpush.bf16.msra.mxu0 %v655
    %856 = vmatpush.bf16.msra.mxu0 %v652
    %857 = vmatmul.bf16.gmra.mxu0 %v842
    %v858 = vpop.f32.mrf.mxu0
    %v859 = vadd.f32 0.0, %v858
    %v860 = vpop.f32.mrf.mxu0
    %v861 = vadd.f32 0.0, %v860
    %862 = vdwg.mxu0
    %863 = vmatpush.bf16.msra.mxu0 %v674
    %864 = vmatpush.bf16.msra.mxu0 %v671
    %865 = vmatpush.bf16.msra.mxu0 %v668
    %866 = vmatpush.bf16.msra.mxu0 %v665
    %867 = vmatpush.bf16.msra.mxu0 %v662
    %868 = vmatpush.bf16.msra.mxu0 %v659
    %869 = vmatpush.bf16.msra.mxu0 %v656
    %870 = vmatpush.bf16.msra.mxu0 %v653
    %871 = vmatmul.bf16.gmra.mxu0 %v842
    %v872 = vpop.f32.mrf.mxu0
    %v873 = vadd.f32 0.0, %v872
    %v874 = vpop.f32.mrf.mxu0
    %v875 = vadd.f32 0.0, %v874
    %876 = vdwg.mxu0
    %877 = vmatpush.bf16.msra.mxu0 %v675
    %878 = vmatpush.bf16.msra.mxu0 %v672
    %879 = vmatpush.bf16.msra.mxu0 %v669
    %880 = vmatpush.bf16.msra.mxu0 %v666
    %881 = vmatpush.bf16.msra.mxu0 %v663
    %882 = vmatpush.bf16.msra.mxu0 %v660
    %883 = vmatpush.bf16.msra.mxu0 %v657
    %884 = vmatpush.bf16.msra.mxu0 %v654
    %885 = vmatmul.bf16.gmra.mxu0 %v842
    %v886 = vpop.f32.mrf.mxu0
    %v887 = vadd.f32 0.0, %v886
    %v888 = vpop.f32.mrf.mxu0
    %v889 = vadd.f32 0.0, %v888
    %890 = vdwg.mxu0
    %v891 = vadd.f32 %v843, %v859
    %v892 = vadd.f32 %v846, %v861
    %v893 = vxor.u32 %v891, 2147483648
    %v894 = vxor.u32 %v892, 2147483648
    %v895 = vmul.f32 %v893, 1.442695
    %v896 = vpow.pop %v895
    %v897 = vmul.f32 %v894, 1.442695
    %v898 = vpow.pop %v897
    %v899 = vadd.f32 %v896, 1.0
    %v900 = vadd.f32 %v898, 1.0
    %v901 = vrcp.pop %v899
    %v902 = vmul.f32 %v899, %v901
    %v903 = vsub.f32 1.0, %v902
    %v904 = vmul.f32 %v901, %v903
    %v905 = vadd.f32 %v901, %v904
    %vm906 = vweird.f32 %v899
    %vm907 = vweird.f32 %v901
    %vm908 = vmor %vm906, %vm907
    %v909 = vsel %vm908, %v901, %v905
    %v910 = vand.u32 2147483647, %v899
    %vm911 = vcmp.eq.f32.partialorder %v910, 8.507059e+37
    %v912 = vand.u32 %v899, 2147483648
    %v913 = vor.u32 1.1754944e-38, %v912
    %v914 = vsel %vm911, %v913, %v909
    %v915 = vmul.f32 1.0, %v914
    %v916 = vrcp.pop %v900
    %v917 = vmul.f32 %v900, %v916
    %v918 = vsub.f32 1.0, %v917
    %v919 = vmul.f32 %v916, %v918
    %v920 = vadd.f32 %v916, %v919
    %vm921 = vweird.f32 %v900
    %vm922 = vweird.f32 %v916
    %vm923 = vmor %vm921, %vm922
    %v924 = vsel %vm923, %v916, %v920
    %v925 = vand.u32 2147483647, %v900
    %vm926 = vcmp.eq.f32.partialorder %v925, 8.507059e+37
    %v927 = vand.u32 %v900, 2147483648
    %v928 = vor.u32 1.1754944e-38, %v927
    %v929 = vsel %vm926, %v928, %v924
    %v930 = vmul.f32 1.0, %v929
    %v931 = vadd.f32 %v844, %v873
    %v932 = vadd.f32 %v847, %v875
    %v933 = vxor.u32 %v931, 2147483648
    %v934 = vxor.u32 %v932, 2147483648
    %v935 = vmul.f32 %v933, 1.442695
    %v936 = vpow.pop %v935
    %v937 = vmul.f32 %v934, 1.442695
    %v938 = vpow.pop %v937
    %v939 = vadd.f32 %v936, 1.0
    %v940 = vadd.f32 %v938, 1.0
    %v941 = vrcp.pop %v939
    %v942 = vmul.f32 %v939, %v941
    %v943 = vsub.f32 1.0, %v942
    %v944 = vmul.f32 %v941, %v943
    %v945 = vadd.f32 %v941, %v944
    %vm946 = vweird.f32 %v939
    %vm947 = vweird.f32 %v941
    %vm948 = vmor %vm946, %vm947
    %v949 = vsel %vm948, %v941, %v945
    %v950 = vand.u32 2147483647, %v939
    %vm951 = vcmp.eq.f32.partialorder %v950, 8.507059e+37
    %v952 = vand.u32 %v939, 2147483648
    %v953 = vor.u32 1.1754944e-38, %v952
    %v954 = vsel %vm951, %v953, %v949
    %v955 = vmul.f32 1.0, %v954
    %v956 = vrcp.pop %v940
    %v957 = vmul.f32 %v940, %v956
    %v958 = vsub.f32 1.0, %v957
    %v959 = vmul.f32 %v956, %v958
    %v960 = vadd.f32 %v956, %v959
    %vm961 = vweird.f32 %v940
    %vm962 = vweird.f32 %v956
    %vm963 = vmor %vm961, %vm962
    %v964 = vsel %vm963, %v956, %v960
    %v965 = vand.u32 2147483647, %v940
    %vm966 = vcmp.eq.f32.partialorder %v965, 8.507059e+37
    %v967 = vand.u32 %v940, 2147483648
    %v968 = vor.u32 1.1754944e-38, %v967
    %v969 = vsel %vm966, %v968, %v964
    %v970 = vmul.f32 1.0, %v969
    %v971 = vadd.f32 %v887, %v824
    %v972 = vadd.f32 %v889, %v824
    %v973 = vmul.f32 %v915, %v971
    %v974 = vmul.f32 %v930, %v972
    %v975 = vadd.f32 %v845, %v973
    %v976 = vadd.f32 %v848, %v974
    %v977 = vtanh.pop %v975
    %v978 = vtanh.pop %v976
    %v979 = vsub.f32 1.0, %v955
    %v980 = vsub.f32 1.0, %v970
    %v981 = vmul.f32 %v979, %v977
    %v982 = vmul.f32 %v980, %v978
    %v983 = vmul.f32 %v955, %v840
    %v984 = vmul.f32 %v970, %v841
    %v985 = vadd.f32 %v981, %v983
    %v986 = vadd.f32 %v982, %v984
    %v987 = vpack.c.bf16 %v986, %v985
    %v988 = vld [vmem:[#allocation6] sm:$0xff]
    %v989 = vld [vmem:[#allocation6 + $0x8] sm:$0xf]
    %v990 = vld [vmem:[#allocation6 + $0xc] sm:$0xff]
    %v991 = vld [vmem:[#allocation6 + $0x14] sm:$0xf]
    %v992 = vld [vmem:[#allocation6 + $0x18] sm:$0xff]
    %v993 = vld [vmem:[#allocation6 + $0x20] sm:$0xf]
    %v994 = vld [vmem:[#allocation6 + $0x24] sm:$0xff]
    %v995 = vld [vmem:[#allocation6 + $0x2c] sm:$0xf]
    %v996 = vld [vmem:[#allocation6 + $0x30] sm:$0xff]
    %v997 = vld [vmem:[#allocation6 + $0x38] sm:$0xf]
    %v998 = vld [vmem:[#allocation6 + $0x3c] sm:$0xff]
    %v999 = vld [vmem:[#allocation6 + $0x44] sm:$0xf]
    %v1000 = vld [vmem:[#allocation6 + $0x48] sm:$0xff]
    %v1001 = vld [vmem:[#allocation6 + $0x50] sm:$0xf]
    %v1002 = vld [vmem:[#allocation6 + $0x54] sm:$0xff]
    %v1003 = vld [vmem:[#allocation6 + $0x5c] sm:$0xf]
    %v1004 = vld [vmem:[#allocation6 + $0x60] sm:$0xff]
    %v1005 = vld [vmem:[#allocation6 + $0x68] sm:$0xf]
    %v1006 = vld [vmem:[#allocation6 + $0x6c] sm:$0xff]
    %v1007 = vld [vmem:[#allocation6 + $0x74] sm:$0xf]
    %v1008 = vld [vmem:[#allocation6 + $0x78] sm:$0xff]
    %v1009 = vld [vmem:[#allocation6 + $0x80] sm:$0xf]
    %v1010 = vld [vmem:[#allocation6 + $0x84] sm:$0xff]
    %v1011 = vld [vmem:[#allocation6 + $0x8c] sm:$0xf]
    %v1012 = vld [vmem:[#allocation6 + $0x90] sm:$0xff]
    %v1013 = vld [vmem:[#allocation6 + $0x98] sm:$0xf]
    %v1014 = vld [vmem:[#allocation6 + $0x9c] sm:$0xff]
    %v1015 = vld [vmem:[#allocation6 + $0xa4] sm:$0xf]
    %v1016 = vld [vmem:[#allocation6 + $0xa8] sm:$0xff]
    %v1017 = vld [vmem:[#allocation6 + $0xb0] sm:$0xf]
    %v1018 = vld [vmem:[#allocation6 + $0xb4] sm:$0xff]
    %v1019 = vld [vmem:[#allocation6 + $0xbc] sm:$0xf]
    %v1020 = vld [vmem:[%s7] sm:$0x7]
    %v1022 = vperm.slane %v1020, 0
    %v1023 = vperm.slane %v1020, 1
    %v1024 = vperm.slane %v1020, 2
    %v1060 = vunpack.c.l.b16 %v988
    %v1061 = vunpack.c.h.b16 %v988
    %v1062 = vunpack.c.l.b16 %v989
    %v1063 = vunpack.c.l.b16 %v990
    %v1064 = vunpack.c.h.b16 %v990
    %v1065 = vunpack.c.l.b16 %v991
    %v1066 = vunpack.c.l.b16 %v992
    %v1067 = vunpack.c.h.b16 %v992
    %v1068 = vunpack.c.l.b16 %v993
    %v1069 = vunpack.c.l.b16 %v994
    %v1070 = vunpack.c.h.b16 %v994
    %v1071 = vunpack.c.l.b16 %v995
    %v1072 = vunpack.c.l.b16 %v996
    %v1073 = vunpack.c.h.b16 %v996
    %v1074 = vunpack.c.l.b16 %v997
    %v1075 = vunpack.c.l.b16 %v998
    %v1076 = vunpack.c.h.b16 %v998
    %v1077 = vunpack.c.l.b16 %v999
    %v1078 = vunpack.c.l.b16 %v1000
    %v1079 = vunpack.c.h.b16 %v1000
    %v1080 = vunpack.c.l.b16 %v1001
    %v1081 = vunpack.c.l.b16 %v1002
    %v1082 = vunpack.c.h.b16 %v1002
    %v1083 = vunpack.c.l.b16 %v1003
    %v1084 = vunpack.c.l.b16 %v1004
    %v1085 = vunpack.c.h.b16 %v1004
    %v1086 = vunpack.c.l.b16 %v1005
    %v1087 = vunpack.c.l.b16 %v1006
    %v1088 = vunpack.c.h.b16 %v1006
    %v1089 = vunpack.c.l.b16 %v1007
    %v1090 = vunpack.c.l.b16 %v1008
    %v1091 = vunpack.c.h.b16 %v1008
    %v1092 = vunpack.c.l.b16 %v1009
    %v1093 = vunpack.c.l.b16 %v1010
    %v1094 = vunpack.c.h.b16 %v1010
    %v1095 = vunpack.c.l.b16 %v1011
    %v1096 = vunpack.c.l.b16 %v1012
    %v1097 = vunpack.c.h.b16 %v1012
    %v1098 = vunpack.c.l.b16 %v1013
    %v1099 = vunpack.c.l.b16 %v1014
    %v1100 = vunpack.c.h.b16 %v1014
    %v1101 = vunpack.c.l.b16 %v1015
    %v1102 = vunpack.c.l.b16 %v1016
    %v1103 = vunpack.c.h.b16 %v1016
    %v1104 = vunpack.c.l.b16 %v1017
    %v1105 = vunpack.c.l.b16 %v1018
    %v1106 = vunpack.c.h.b16 %v1018
    %v1107 = vunpack.c.l.b16 %v1019
    %v1108 = vpack.c.b16 %v1063, %v1060
    %v1109 = vpack.c.b16 %v1064, %v1061
    %v1110 = vpack.c.b16 %v1065, %v1062
    %v1111 = vpack.c.b16 %v1069, %v1066
    %v1112 = vpack.c.b16 %v1070, %v1067
    %v1113 = vpack.c.b16 %v1071, %v1068
    %v1114 = vpack.c.b16 %v1075, %v1072
    %v1115 = vpack.c.b16 %v1076, %v1073
    %v1116 = vpack.c.b16 %v1077, %v1074
    %v1117 = vpack.c.b16 %v1081, %v1078
    %v1118 = vpack.c.b16 %v1082, %v1079
    %v1119 = vpack.c.b16 %v1083, %v1080
    %v1120 = vpack.c.b16 %v1087, %v1084
    %v1121 = vpack.c.b16 %v1088, %v1085
    %v1122 = vpack.c.b16 %v1089, %v1086
    %v1123 = vpack.c.b16 %v1093, %v1090
    %v1124 = vpack.c.b16 %v1094, %v1091
    %v1125 = vpack.c.b16 %v1095, %v1092
    %v1126 = vpack.c.b16 %v1099, %v1096
    %v1127 = vpack.c.b16 %v1100, %v1097
    %v1128 = vpack.c.b16 %v1101, %v1098
    %v1129 = vpack.c.b16 %v1105, %v1102
    %v1130 = vpack.c.b16 %v1106, %v1103
    %v1131 = vpack.c.b16 %v1107, %v1104
    %1156 = vmatpush.bf16.msra.mxu0 %v1129
    %1157 = vmatpush.bf16.msra.mxu0 %v1126
    %1158 = vmatpush.bf16.msra.mxu0 %v1123
    %1159 = vmatpush.bf16.msra.mxu0 %v1120
    %1160 = vmatpush.bf16.msra.mxu0 %v1117
    %1161 = vmatpush.bf16.msra.mxu0 %v1114
    %1162 = vmatpush.bf16.msra.mxu0 %v1111
    %1163 = vmatpush.bf16.msra.mxu0 %v1108
    %1164 = vmatmul.bf16.gmra.mxu0 %v842
    %v1165 = vpop.f32.mrf.mxu0
    %v1166 = vadd.f32 %v1022, %v1165
    %v1167 = vpop.f32.mrf.mxu0
    %v1168 = vadd.f32 %v1022, %v1167
    %1169 = vdwg.mxu0
    %1170 = vmatpush.bf16.msra.mxu0 %v1130
    %1171 = vmatpush.bf16.msra.mxu0 %v1127
    %1172 = vmatpush.bf16.msra.mxu0 %v1124
    %1173 = vmatpush.bf16.msra.mxu0 %v1121
    %1174 = vmatpush.bf16.msra.mxu0 %v1118
    %1175 = vmatpush.bf16.msra.mxu0 %v1115
    %1176 = vmatpush.bf16.msra.mxu0 %v1112
    %1177 = vmatpush.bf16.msra.mxu0 %v1109
    %1178 = vmatmul.bf16.gmra.mxu0 %v842
    %v1179 = vpop.f32.mrf.mxu0
    %v1180 = vadd.f32 %v1023, %v1179
    %v1181 = vpop.f32.mrf.mxu0
    %v1182 = vadd.f32 %v1023, %v1181
    %1183 = vdwg.mxu0
    %1184 = vmatpush.bf16.msra.mxu0 %v1131
    %1185 = vmatpush.bf16.msra.mxu0 %v1128
    %1186 = vmatpush.bf16.msra.mxu0 %v1125
    %1187 = vmatpush.bf16.msra.mxu0 %v1122
    %1188 = vmatpush.bf16.msra.mxu0 %v1119
    %1189 = vmatpush.bf16.msra.mxu0 %v1116
    %1190 = vmatpush.bf16.msra.mxu0 %v1113
    %1191 = vmatpush.bf16.msra.mxu0 %v1110
    %1192 = vmatmul.bf16.gmra.mxu0 %v842
    %v1193 = vpop.f32.mrf.mxu0
    %v1194 = vadd.f32 %v1024, %v1193
    %v1195 = vpop.f32.mrf.mxu0
    %v1196 = vadd.f32 %v1024, %v1195
    %1197 = vdwg.mxu0
    %v1198 = vld [vmem:[#allocation8] sm:$0xff]
    %v1199 = vld [vmem:[#allocation8 + $0x8] sm:$0xf]
    %v1200 = vld [vmem:[#allocation8 + $0xc] sm:$0xff]
    %v1201 = vld [vmem:[#allocation8 + $0x14] sm:$0xf]
    %v1202 = vld [vmem:[#allocation8 + $0x18] sm:$0xff]
    %v1203 = vld [vmem:[#allocation8 + $0x20] sm:$0xf]
    %v1204 = vld [vmem:[#allocation8 + $0x24] sm:$0xff]
    %v1205 = vld [vmem:[#allocation8 + $0x2c] sm:$0xf]
    %v1206 = vld [vmem:[#allocation8 + $0x30] sm:$0xff]
    %v1207 = vld [vmem:[#allocation8 + $0x38] sm:$0xf]
    %v1208 = vld [vmem:[#allocation8 + $0x3c] sm:$0xff]
    %v1209 = vld [vmem:[#allocation8 + $0x44] sm:$0xf]
    %v1210 = vld [vmem:[#allocation8 + $0x48] sm:$0xff]
    %v1211 = vld [vmem:[#allocation8 + $0x50] sm:$0xf]
    %v1212 = vld [vmem:[#allocation8 + $0x54] sm:$0xff]
    %v1213 = vld [vmem:[#allocation8 + $0x5c] sm:$0xf]
    %v1214 = vld [vmem:[#allocation8 + $0x60] sm:$0xff]
    %v1215 = vld [vmem:[#allocation8 + $0x68] sm:$0xf]
    %v1216 = vld [vmem:[#allocation8 + $0x6c] sm:$0xff]
    %v1217 = vld [vmem:[#allocation8 + $0x74] sm:$0xf]
    %v1218 = vld [vmem:[#allocation8 + $0x78] sm:$0xff]
    %v1219 = vld [vmem:[#allocation8 + $0x80] sm:$0xf]
    %v1220 = vld [vmem:[#allocation8 + $0x84] sm:$0xff]
    %v1221 = vld [vmem:[#allocation8 + $0x8c] sm:$0xf]
    %v1222 = vld [vmem:[#allocation8 + $0x90] sm:$0xff]
    %v1223 = vld [vmem:[#allocation8 + $0x98] sm:$0xf]
    %v1224 = vld [vmem:[#allocation8 + $0x9c] sm:$0xff]
    %v1225 = vld [vmem:[#allocation8 + $0xa4] sm:$0xf]
    %v1226 = vld [vmem:[#allocation8 + $0xa8] sm:$0xff]
    %v1227 = vld [vmem:[#allocation8 + $0xb0] sm:$0xf]
    %v1228 = vld [vmem:[#allocation8 + $0xb4] sm:$0xff]
    %v1229 = vld [vmem:[#allocation8 + $0xbc] sm:$0xf]
    %v1262 = vunpack.c.l.b16 %v1198
    %v1263 = vunpack.c.h.b16 %v1198
    %v1264 = vunpack.c.l.b16 %v1199
    %v1265 = vunpack.c.l.b16 %v1200
    %v1266 = vunpack.c.h.b16 %v1200
    %v1267 = vunpack.c.l.b16 %v1201
    %v1268 = vunpack.c.l.b16 %v1202
    %v1269 = vunpack.c.h.b16 %v1202
    %v1270 = vunpack.c.l.b16 %v1203
    %v1271 = vunpack.c.l.b16 %v1204
    %v1272 = vunpack.c.h.b16 %v1204
    %v1273 = vunpack.c.l.b16 %v1205
    %v1274 = vunpack.c.l.b16 %v1206
    %v1275 = vunpack.c.h.b16 %v1206
    %v1276 = vunpack.c.l.b16 %v1207
    %v1277 = vunpack.c.l.b16 %v1208
    %v1278 = vunpack.c.h.b16 %v1208
    %v1279 = vunpack.c.l.b16 %v1209
    %v1280 = vunpack.c.l.b16 %v1210
    %v1281 = vunpack.c.h.b16 %v1210
    %v1282 = vunpack.c.l.b16 %v1211
    %v1283 = vunpack.c.l.b16 %v1212
    %v1284 = vunpack.c.h.b16 %v1212
    %v1285 = vunpack.c.l.b16 %v1213
    %v1286 = vunpack.c.l.b16 %v1214
    %v1287 = vunpack.c.h.b16 %v1214
    %v1288 = vunpack.c.l.b16 %v1215
    %v1289 = vunpack.c.l.b16 %v1216
    %v1290 = vunpack.c.h.b16 %v1216
    %v1291 = vunpack.c.l.b16 %v1217
    %v1292 = vunpack.c.l.b16 %v1218
    %v1293 = vunpack.c.h.b16 %v1218
    %v1294 = vunpack.c.l.b16 %v1219
    %v1295 = vunpack.c.l.b16 %v1220
    %v1296 = vunpack.c.h.b16 %v1220
    %v1297 = vunpack.c.l.b16 %v1221
    %v1298 = vunpack.c.l.b16 %v1222
    %v1299 = vunpack.c.h.b16 %v1222
    %v1300 = vunpack.c.l.b16 %v1223
    %v1301 = vunpack.c.l.b16 %v1224
    %v1302 = vunpack.c.h.b16 %v1224
    %v1303 = vunpack.c.l.b16 %v1225
    %v1304 = vunpack.c.l.b16 %v1226
    %v1305 = vunpack.c.h.b16 %v1226
    %v1306 = vunpack.c.l.b16 %v1227
    %v1307 = vunpack.c.l.b16 %v1228
    %v1308 = vunpack.c.h.b16 %v1228
    %v1309 = vunpack.c.l.b16 %v1229
    %v1310 = vpack.c.b16 %v1265, %v1262
    %v1311 = vpack.c.b16 %v1266, %v1263
    %v1312 = vpack.c.b16 %v1267, %v1264
    %v1313 = vpack.c.b16 %v1271, %v1268
    %v1314 = vpack.c.b16 %v1272, %v1269
    %v1315 = vpack.c.b16 %v1273, %v1270
    %v1316 = vpack.c.b16 %v1277, %v1274
    %v1317 = vpack.c.b16 %v1278, %v1275
    %v1318 = vpack.c.b16 %v1279, %v1276
    %v1319 = vpack.c.b16 %v1283, %v1280
    %v1320 = vpack.c.b16 %v1284, %v1281
    %v1321 = vpack.c.b16 %v1285, %v1282
    %v1322 = vpack.c.b16 %v1289, %v1286
    %v1323 = vpack.c.b16 %v1290, %v1287
    %v1324 = vpack.c.b16 %v1291, %v1288
    %v1325 = vpack.c.b16 %v1295, %v1292
    %v1326 = vpack.c.b16 %v1296, %v1293
    %v1327 = vpack.c.b16 %v1297, %v1294
    %v1328 = vpack.c.b16 %v1301, %v1298
    %v1329 = vpack.c.b16 %v1302, %v1299
    %v1330 = vpack.c.b16 %v1303, %v1300
    %v1331 = vpack.c.b16 %v1307, %v1304
    %v1332 = vpack.c.b16 %v1308, %v1305
    %v1333 = vpack.c.b16 %v1309, %v1306
    %1358 = vmatpush.bf16.msra.mxu0 %v1331
    %1359 = vmatpush.bf16.msra.mxu0 %v1328
    %1360 = vmatpush.bf16.msra.mxu0 %v1325
    %1361 = vmatpush.bf16.msra.mxu0 %v1322
    %1362 = vmatpush.bf16.msra.mxu0 %v1319
    %1363 = vmatpush.bf16.msra.mxu0 %v1316
    %1364 = vmatpush.bf16.msra.mxu0 %v1313
    %1365 = vmatpush.bf16.msra.mxu0 %v1310
    %1366 = vmatmul.bf16.gmra.mxu0 0
    %v1367 = vpop.f32.mrf.mxu0
    %v1368 = vadd.f32 0.0, %v1367
    %v1369 = vpop.f32.mrf.mxu0
    %v1370 = vadd.f32 0.0, %v1369
    %1371 = vdwg.mxu0
    %1372 = vmatpush.bf16.msra.mxu0 %v1332
    %1373 = vmatpush.bf16.msra.mxu0 %v1329
    %1374 = vmatpush.bf16.msra.mxu0 %v1326
    %1375 = vmatpush.bf16.msra.mxu0 %v1323
    %1376 = vmatpush.bf16.msra.mxu0 %v1320
    %1377 = vmatpush.bf16.msra.mxu0 %v1317
    %1378 = vmatpush.bf16.msra.mxu0 %v1314
    %1379 = vmatpush.bf16.msra.mxu0 %v1311
    %1380 = vmatmul.bf16.gmra.mxu0 0
    %v1381 = vpop.f32.mrf.mxu0
    %v1382 = vadd.f32 0.0, %v1381
    %v1383 = vpop.f32.mrf.mxu0
    %v1384 = vadd.f32 0.0, %v1383
    %1385 = vdwg.mxu0
    %1386 = vmatpush.bf16.msra.mxu0 %v1333
    %1387 = vmatpush.bf16.msra.mxu0 %v1330
    %1388 = vmatpush.bf16.msra.mxu0 %v1327
    %1389 = vmatpush.bf16.msra.mxu0 %v1324
    %1390 = vmatpush.bf16.msra.mxu0 %v1321
    %1391 = vmatpush.bf16.msra.mxu0 %v1318
    %1392 = vmatpush.bf16.msra.mxu0 %v1315
    %1393 = vmatpush.bf16.msra.mxu0 %v1312
    %1394 = vmatmul.bf16.gmra.mxu0 0
    %v1395 = vpop.f32.mrf.mxu0
    %v1396 = vadd.f32 0.0, %v1395
    %v1397 = vpop.f32.mrf.mxu0
    %v1398 = vadd.f32 0.0, %v1397
    %1399 = vdwg.mxu0
    %v1400 = vadd.f32 %v1166, %v1368
    %v1401 = vadd.f32 %v1168, %v1370
    %v1402 = vxor.u32 %v1400, 2147483648
    %v1403 = vxor.u32 %v1401, 2147483648
    %v1404 = vmul.f32 %v1402, 1.442695
    %v1405 = vpow.pop %v1404
    %v1406 = vmul.f32 %v1403, 1.442695
    %v1407 = vpow.pop %v1406
    %v1408 = vadd.f32 %v1405, 1.0
    %v1409 = vadd.f32 %v1407, 1.0
    %v1410 = vrcp.pop %v1408
    %v1411 = vmul.f32 %v1408, %v1410
    %v1412 = vsub.f32 1.0, %v1411
    %v1413 = vmul.f32 %v1410, %v1412
    %v1414 = vadd.f32 %v1410, %v1413
    %vm1415 = vweird.f32 %v1408
    %vm1416 = vweird.f32 %v1410
    %vm1417 = vmor %vm1415, %vm1416
    %v1418 = vsel %vm1417, %v1410, %v1414
    %v1419 = vand.u32 2147483647, %v1408
    %vm1420 = vcmp.eq.f32.partialorder %v1419, 8.507059e+37
    %v1421 = vand.u32 %v1408, 2147483648
    %v1422 = vor.u32 1.1754944e-38, %v1421
    %v1423 = vsel %vm1420, %v1422, %v1418
    %v1424 = vmul.f32 1.0, %v1423
    %v1425 = vrcp.pop %v1409
    %v1426 = vmul.f32 %v1409, %v1425
    %v1427 = vsub.f32 1.0, %v1426
    %v1428 = vmul.f32 %v1425, %v1427
    %v1429 = vadd.f32 %v1425, %v1428
    %vm1430 = vweird.f32 %v1409
    %vm1431 = vweird.f32 %v1425
    %vm1432 = vmor %vm1430, %vm1431
    %v1433 = vsel %vm1432, %v1425, %v1429
    %v1434 = vand.u32 2147483647, %v1409
    %vm1435 = vcmp.eq.f32.partialorder %v1434, 8.507059e+37
    %v1436 = vand.u32 %v1409, 2147483648
    %v1437 = vor.u32 1.1754944e-38, %v1436
    %v1438 = vsel %vm1435, %v1437, %v1433
    %v1439 = vmul.f32 1.0, %v1438
    %v1440 = vadd.f32 %v1180, %v1382
    %v1441 = vadd.f32 %v1182, %v1384
    %v1442 = vxor.u32 %v1440, 2147483648
    %v1443 = vxor.u32 %v1441, 2147483648
    %v1444 = vmul.f32 %v1442, 1.442695
    %v1445 = vpow.pop %v1444
    %v1446 = vmul.f32 %v1443, 1.442695
    %v1447 = vpow.pop %v1446
    %v1448 = vadd.f32 %v1445, 1.0
    %v1449 = vadd.f32 %v1447, 1.0
    %v1450 = vrcp.pop %v1448
    %v1451 = vmul.f32 %v1448, %v1450
    %v1452 = vsub.f32 1.0, %v1451
    %v1453 = vmul.f32 %v1450, %v1452
    %v1454 = vadd.f32 %v1450, %v1453
    %vm1455 = vweird.f32 %v1448
    %vm1456 = vweird.f32 %v1450
    %vm1457 = vmor %vm1455, %vm1456
    %v1458 = vsel %vm1457, %v1450, %v1454
    %v1459 = vand.u32 2147483647, %v1448
    %vm1460 = vcmp.eq.f32.partialorder %v1459, 8.507059e+37
    %v1461 = vand.u32 %v1448, 2147483648
    %v1462 = vor.u32 1.1754944e-38, %v1461
    %v1463 = vsel %vm1460, %v1462, %v1458
    %v1464 = vmul.f32 1.0, %v1463
    %v1465 = vrcp.pop %v1449
    %v1466 = vmul.f32 %v1449, %v1465
    %v1467 = vsub.f32 1.0, %v1466
    %v1468 = vmul.f32 %v1465, %v1467
    %v1469 = vadd.f32 %v1465, %v1468
    %vm1470 = vweird.f32 %v1449
    %vm1471 = vweird.f32 %v1465
    %vm1472 = vmor %vm1470, %vm1471
    %v1473 = vsel %vm1472, %v1465, %v1469
    %v1474 = vand.u32 2147483647, %v1449
    %vm1475 = vcmp.eq.f32.partialorder %v1474, 8.507059e+37
    %v1476 = vand.u32 %v1449, 2147483648
    %v1477 = vor.u32 1.1754944e-38, %v1476
    %v1478 = vsel %vm1475, %v1477, %v1473
    %v1479 = vmul.f32 1.0, %v1478
    %v1480 = vld [vmem:[%s8] sm:$0x1]
    %v1482 = vperm.slane %v1480, 0
    %v1484 = vadd.f32 %v1396, %v1482
    %v1485 = vadd.f32 %v1398, %v1482
    %v1486 = vmul.f32 %v1424, %v1484
    %v1487 = vmul.f32 %v1439, %v1485
    %v1488 = vadd.f32 %v1194, %v1486
    %v1489 = vadd.f32 %v1196, %v1487
    %v1490 = vtanh.pop %v1488
    %v1491 = vtanh.pop %v1489
    %v1492 = vsub.f32 1.0, %v1464
    %v1493 = vsub.f32 1.0, %v1479
    %v1494 = vmul.f32 %v1492, %v1490
    %v1495 = vmul.f32 %v1493, %v1491
    %v1496 = vmul.f32 %v1464, 0.0
    %v1497 = vmul.f32 %v1479, 0.0
    %v1498 = vadd.f32 %v1494, %v1496
    %v1499 = vadd.f32 %v1495, %v1497
    %v1500 = vpack.c.bf16 %v1499, %v1498
    %v1501 = vld [vmem:[#allocation2 + $0x60] sm:$0xff]
    %v1502 = vld [vmem:[#allocation2 + $0x68] sm:$0xff]
    %v1503 = vld [vmem:[#allocation2 + $0x70] sm:$0xff]
    %v1504 = vld [vmem:[#allocation2 + $0x78] sm:$0xff]
    %v1505 = vld [vmem:[#allocation2 + $0x80] sm:$0xff]
    %v1506 = vld [vmem:[#allocation2 + $0x88] sm:$0xff]
    %1507 = vmatpush.bf16.msra.mxu0 %v673
    %1508 = vmatpush.bf16.msra.mxu0 %v670
    %1509 = vmatpush.bf16.msra.mxu0 %v667
    %1510 = vmatpush.bf16.msra.mxu0 %v664
    %1511 = vmatpush.bf16.msra.mxu0 %v661
    %1512 = vmatpush.bf16.msra.mxu0 %v658
    %1513 = vmatpush.bf16.msra.mxu0 %v655
    %1514 = vmatpush.bf16.msra.mxu0 %v652
    %1515 = vmatmul.bf16.gmra.mxu0 %v987
    %v1516 = vpop.f32.mrf.mxu0
    %v1517 = vadd.f32 0.0, %v1516
    %v1518 = vpop.f32.mrf.mxu0
    %v1519 = vadd.f32 0.0, %v1518
    %1520 = vdwg.mxu0
    %1521 = vmatpush.bf16.msra.mxu0 %v674
    %1522 = vmatpush.bf16.msra.mxu0 %v671
    %1523 = vmatpush.bf16.msra.mxu0 %v668
    %1524 = vmatpush.bf16.msra.mxu0 %v665
    %1525 = vmatpush.bf16.msra.mxu0 %v662
    %1526 = vmatpush.bf16.msra.mxu0 %v659
    %1527 = vmatpush.bf16.msra.mxu0 %v656
    %1528 = vmatpush.bf16.msra.mxu0 %v653
    %1529 = vmatmul.bf16.gmra.mxu0 %v987
    %v1530 = vpop.f32.mrf.mxu0
    %v1531 = vadd.f32 0.0, %v1530
    %v1532 = vpop.f32.mrf.mxu0
    %v1533 = vadd.f32 0.0, %v1532
    %1534 = vdwg.mxu0
    %1535 = vmatpush.bf16.msra.mxu0 %v675
    %1536 = vmatpush.bf16.msra.mxu0 %v672
    %1537 = vmatpush.bf16.msra.mxu0 %v669
    %1538 = vmatpush.bf16.msra.mxu0 %v666
    %1539 = vmatpush.bf16.msra.mxu0 %v663
    %1540 = vmatpush.bf16.msra.mxu0 %v660
    %1541 = vmatpush.bf16.msra.mxu0 %v657
    %1542 = vmatpush.bf16.msra.mxu0 %v654
    %1543 = vmatmul.bf16.gmra.mxu0 %v987
    %v1544 = vpop.f32.mrf.mxu0
    %v1545 = vadd.f32 0.0, %v1544
    %v1546 = vpop.f32.mrf.mxu0
    %v1547 = vadd.f32 0.0, %v1546
    %1548 = vdwg.mxu0
    %v1549 = vadd.f32 %v1501, %v1517
    %v1550 = vadd.f32 %v1504, %v1519
    %v1551 = vxor.u32 %v1549, 2147483648
    %v1552 = vxor.u32 %v1550, 2147483648
    %v1553 = vmul.f32 %v1551, 1.442695
    %v1554 = vpow.pop %v1553
    %v1555 = vmul.f32 %v1552, 1.442695
    %v1556 = vpow.pop %v1555
    %v1557 = vadd.f32 %v1554, 1.0
    %v1558 = vadd.f32 %v1556, 1.0
    %v1559 = vrcp.pop %v1557
    %v1560 = vmul.f32 %v1557, %v1559
    %v1561 = vsub.f32 1.0, %v1560
    %v1562 = vmul.f32 %v1559, %v1561
    %v1563 = vadd.f32 %v1559, %v1562
    %vm1564 = vweird.f32 %v1557
    %vm1565 = vweird.f32 %v1559
    %vm1566 = vmor %vm1564, %vm1565
    %v1567 = vsel %vm1566, %v1559, %v1563
    %v1568 = vand.u32 2147483647, %v1557
    %vm1569 = vcmp.eq.f32.partialorder %v1568, 8.507059e+37
    %v1570 = vand.u32 %v1557, 2147483648
    %v1571 = vor.u32 1.1754944e-38, %v1570
    %v1572 = vsel %vm1569, %v1571, %v1567
    %v1573 = vmul.f32 1.0, %v1572
    %v1574 = vrcp.pop %v1558
    %v1575 = vmul.f32 %v1558, %v1574
    %v1576 = vsub.f32 1.0, %v1575
    %v1577 = vmul.f32 %v1574, %v1576
    %v1578 = vadd.f32 %v1574, %v1577
    %vm1579 = vweird.f32 %v1558
    %vm1580 = vweird.f32 %v1574
    %vm1581 = vmor %vm1579, %vm1580
    %v1582 = vsel %vm1581, %v1574, %v1578
    %v1583 = vand.u32 2147483647, %v1558
    %vm1584 = vcmp.eq.f32.partialorder %v1583, 8.507059e+37
    %v1585 = vand.u32 %v1558, 2147483648
    %v1586 = vor.u32 1.1754944e-38, %v1585
    %v1587 = vsel %vm1584, %v1586, %v1582
    %v1588 = vmul.f32 1.0, %v1587
    %v1589 = vadd.f32 %v1502, %v1531
    %v1590 = vadd.f32 %v1505, %v1533
    %v1591 = vxor.u32 %v1589, 2147483648
    %v1592 = vxor.u32 %v1590, 2147483648
    %v1593 = vmul.f32 %v1591, 1.442695
    %v1594 = vpow.pop %v1593
    %v1595 = vmul.f32 %v1592, 1.442695
    %v1596 = vpow.pop %v1595
    %v1597 = vadd.f32 %v1594, 1.0
    %v1598 = vadd.f32 %v1596, 1.0
    %v1599 = vrcp.pop %v1597
    %v1600 = vmul.f32 %v1597, %v1599
    %v1601 = vsub.f32 1.0, %v1600
    %v1602 = vmul.f32 %v1599, %v1601
    %v1603 = vadd.f32 %v1599, %v1602
    %vm1604 = vweird.f32 %v1597
    %vm1605 = vweird.f32 %v1599
    %vm1606 = vmor %vm1604, %vm1605
    %v1607 = vsel %vm1606, %v1599, %v1603
    %v1608 = vand.u32 2147483647, %v1597
    %vm1609 = vcmp.eq.f32.partialorder %v1608, 8.507059e+37
    %v1610 = vand.u32 %v1597, 2147483648
    %v1611 = vor.u32 1.1754944e-38, %v1610
    %v1612 = vsel %vm1609, %v1611, %v1607
    %v1613 = vmul.f32 1.0, %v1612
    %v1614 = vrcp.pop %v1598
    %v1615 = vmul.f32 %v1598, %v1614
    %v1616 = vsub.f32 1.0, %v1615
    %v1617 = vmul.f32 %v1614, %v1616
    %v1618 = vadd.f32 %v1614, %v1617
    %vm1619 = vweird.f32 %v1598
    %vm1620 = vweird.f32 %v1614
    %vm1621 = vmor %vm1619, %vm1620
    %v1622 = vsel %vm1621, %v1614, %v1618
    %v1623 = vand.u32 2147483647, %v1598
    %vm1624 = vcmp.eq.f32.partialorder %v1623, 8.507059e+37
    %v1625 = vand.u32 %v1598, 2147483648
    %v1626 = vor.u32 1.1754944e-38, %v1625
    %v1627 = vsel %vm1624, %v1626, %v1622
    %v1628 = vmul.f32 1.0, %v1627
    %v1629 = vadd.f32 %v1545, %v824
    %v1630 = vadd.f32 %v1547, %v824
    %v1631 = vmul.f32 %v1573, %v1629
    %v1632 = vmul.f32 %v1588, %v1630
    %v1633 = vadd.f32 %v1503, %v1631
    %v1634 = vadd.f32 %v1506, %v1632
    %v1635 = vtanh.pop %v1633
    %v1636 = vtanh.pop %v1634
    %v1637 = vsub.f32 1.0, %v1613
    %v1638 = vsub.f32 1.0, %v1628
    %v1639 = vmul.f32 %v1637, %v1635
    %v1640 = vmul.f32 %v1638, %v1636
    %v1641 = vmul.f32 %v1613, %v985
    %v1642 = vmul.f32 %v1628, %v986
    %v1643 = vadd.f32 %v1639, %v1641
    %v1644 = vadd.f32 %v1640, %v1642
    %v1645 = vpack.c.bf16 %v1644, %v1643
    %1646 = vmatpush.bf16.msra.mxu0 %v1129
    %1647 = vmatpush.bf16.msra.mxu0 %v1126
    %1648 = vmatpush.bf16.msra.mxu0 %v1123
    %1649 = vmatpush.bf16.msra.mxu0 %v1120
    %1650 = vmatpush.bf16.msra.mxu0 %v1117
    %1651 = vmatpush.bf16.msra.mxu0 %v1114
    %1652 = vmatpush.bf16.msra.mxu0 %v1111
    %1653 = vmatpush.bf16.msra.mxu0 %v1108
    %1654 = vmatmul.bf16.gmra.mxu0 %v987
    %v1655 = vpop.f32.mrf.mxu0
    %v1656 = vadd.f32 %v1022, %v1655
    %v1657 = vpop.f32.mrf.mxu0
    %v1658 = vadd.f32 %v1022, %v1657
    %1659 = vdwg.mxu0
    %1660 = vmatpush.bf16.msra.mxu0 %v1130
    %1661 = vmatpush.bf16.msra.mxu0 %v1127
    %1662 = vmatpush.bf16.msra.mxu0 %v1124
    %1663 = vmatpush.bf16.msra.mxu0 %v1121
    %1664 = vmatpush.bf16.msra.mxu0 %v1118
    %1665 = vmatpush.bf16.msra.mxu0 %v1115
    %1666 = vmatpush.bf16.msra.mxu0 %v1112
    %1667 = vmatpush.bf16.msra.mxu0 %v1109
    %1668 = vmatmul.bf16.gmra.mxu0 %v987
    %v1669 = vpop.f32.mrf.mxu0
    %v1670 = vadd.f32 %v1023, %v1669
    %v1671 = vpop.f32.mrf.mxu0
    %v1672 = vadd.f32 %v1023, %v1671
    %1673 = vdwg.mxu0
    %1674 = vmatpush.bf16.msra.mxu0 %v1131
    %1675 = vmatpush.bf16.msra.mxu0 %v1128
    %1676 = vmatpush.bf16.msra.mxu0 %v1125
    %1677 = vmatpush.bf16.msra.mxu0 %v1122
    %1678 = vmatpush.bf16.msra.mxu0 %v1119
    %1679 = vmatpush.bf16.msra.mxu0 %v1116
    %1680 = vmatpush.bf16.msra.mxu0 %v1113
    %1681 = vmatpush.bf16.msra.mxu0 %v1110
    %1682 = vmatmul.bf16.gmra.mxu0 %v987
    %v1683 = vpop.f32.mrf.mxu0
    %v1684 = vadd.f32 %v1024, %v1683
    %v1685 = vpop.f32.mrf.mxu0
    %v1686 = vadd.f32 %v1024, %v1685
    %1687 = vdwg.mxu0
    %1688 = vmatpush.bf16.msra.mxu0 %v1331
    %1689 = vmatpush.bf16.msra.mxu0 %v1328
    %1690 = vmatpush.bf16.msra.mxu0 %v1325
    %1691 = vmatpush.bf16.msra.mxu0 %v1322
    %1692 = vmatpush.bf16.msra.mxu0 %v1319
    %1693 = vmatpush.bf16.msra.mxu0 %v1316
    %1694 = vmatpush.bf16.msra.mxu0 %v1313
    %1695 = vmatpush.bf16.msra.mxu0 %v1310
    %1696 = vmatmul.bf16.gmra.mxu0 %v1500
    %v1697 = vpop.f32.mrf.mxu0
    %v1698 = vadd.f32 0.0, %v1697
    %v1699 = vpop.f32.mrf.mxu0
    %v1700 = vadd.f32 0.0, %v1699
    %1701 = vdwg.mxu0
    %1702 = vmatpush.bf16.msra.mxu0 %v1332
    %1703 = vmatpush.bf16.msra.mxu0 %v1329
    %1704 = vmatpush.bf16.msra.mxu0 %v1326
    %1705 = vmatpush.bf16.msra.mxu0 %v1323
    %1706 = vmatpush.bf16.msra.mxu0 %v1320
    %1707 = vmatpush.bf16.msra.mxu0 %v1317
    %1708 = vmatpush.bf16.msra.mxu0 %v1314
    %1709 = vmatpush.bf16.msra.mxu0 %v1311
    %1710 = vmatmul.bf16.gmra.mxu0 %v1500
    %v1711 = vpop.f32.mrf.mxu0
    %v1712 = vadd.f32 0.0, %v1711
    %v1713 = vpop.f32.mrf.mxu0
    %v1714 = vadd.f32 0.0, %v1713
    %1715 = vdwg.mxu0
    %1716 = vmatpush.bf16.msra.mxu0 %v1333
    %1717 = vmatpush.bf16.msra.mxu0 %v1330
    %1718 = vmatpush.bf16.msra.mxu0 %v1327
    %1719 = vmatpush.bf16.msra.mxu0 %v1324
    %1720 = vmatpush.bf16.msra.mxu0 %v1321
    %1721 = vmatpush.bf16.msra.mxu0 %v1318
    %1722 = vmatpush.bf16.msra.mxu0 %v1315
    %1723 = vmatpush.bf16.msra.mxu0 %v1312
    %1724 = vmatmul.bf16.gmra.mxu0 %v1500
    %v1725 = vpop.f32.mrf.mxu0
    %v1726 = vadd.f32 0.0, %v1725
    %v1727 = vpop.f32.mrf.mxu0
    %v1728 = vadd.f32 0.0, %v1727
    %1729 = vdwg.mxu0
    %v1730 = vadd.f32 %v1656, %v1698
    %v1731 = vadd.f32 %v1658, %v1700
    %v1732 = vxor.u32 %v1730, 2147483648
    %v1733 = vxor.u32 %v1731, 2147483648
    %v1734 = vmul.f32 %v1732, 1.442695
    %v1735 = vpow.pop %v1734
    %v1736 = vmul.f32 %v1733, 1.442695
    %v1737 = vpow.pop %v1736
    %v1738 = vadd.f32 %v1735, 1.0
    %v1739 = vadd.f32 %v1737, 1.0
    %v1740 = vrcp.pop %v1738
    %v1741 = vmul.f32 %v1738, %v1740
    %v1742 = vsub.f32 1.0, %v1741
    %v1743 = vmul.f32 %v1740, %v1742
    %v1744 = vadd.f32 %v1740, %v1743
    %vm1745 = vweird.f32 %v1738
    %vm1746 = vweird.f32 %v1740
    %vm1747 = vmor %vm1745, %vm1746
    %v1748 = vsel %vm1747, %v1740, %v1744
    %v1749 = vand.u32 2147483647, %v1738
    %vm1750 = vcmp.eq.f32.partialorder %v1749, 8.507059e+37
    %v1751 = vand.u32 %v1738, 2147483648
    %v1752 = vor.u32 1.1754944e-38, %v1751
    %v1753 = vsel %vm1750, %v1752, %v1748
    %v1754 = vmul.f32 1.0, %v1753
    %v1755 = vrcp.pop %v1739
    %v1756 = vmul.f32 %v1739, %v1755
    %v1757 = vsub.f32 1.0, %v1756
    %v1758 = vmul.f32 %v1755, %v1757
    %v1759 = vadd.f32 %v1755, %v1758
    %vm1760 = vweird.f32 %v1739
    %vm1761 = vweird.f32 %v1755
    %vm1762 = vmor %vm1760, %vm1761
    %v1763 = vsel %vm1762, %v1755, %v1759
    %v1764 = vand.u32 2147483647, %v1739
    %vm1765 = vcmp.eq.f32.partialorder %v1764, 8.507059e+37
    %v1766 = vand.u32 %v1739, 2147483648
    %v1767 = vor.u32 1.1754944e-38, %v1766
    %v1768 = vsel %vm1765, %v1767, %v1763
    %v1769 = vmul.f32 1.0, %v1768
    %v1770 = vadd.f32 %v1670, %v1712
    %v1771 = vadd.f32 %v1672, %v1714
    %v1772 = vxor.u32 %v1770, 2147483648
    %v1773 = vxor.u32 %v1771, 2147483648
    %v1774 = vmul.f32 %v1772, 1.442695
    %v1775 = vpow.pop %v1774
    %v1776 = vmul.f32 %v1773, 1.442695
    %v1777 = vpow.pop %v1776
    %v1778 = vadd.f32 %v1775, 1.0
    %v1779 = vadd.f32 %v1777, 1.0
    %v1780 = vrcp.pop %v1778
    %v1781 = vmul.f32 %v1778, %v1780
    %v1782 = vsub.f32 1.0, %v1781
    %v1783 = vmul.f32 %v1780, %v1782
    %v1784 = vadd.f32 %v1780, %v1783
    %vm1785 = vweird.f32 %v1778
    %vm1786 = vweird.f32 %v1780
    %vm1787 = vmor %vm1785, %vm1786
    %v1788 = vsel %vm1787, %v1780, %v1784
    %v1789 = vand.u32 2147483647, %v1778
    %vm1790 = vcmp.eq.f32.partialorder %v1789, 8.507059e+37
    %v1791 = vand.u32 %v1778, 2147483648
    %v1792 = vor.u32 1.1754944e-38, %v1791
    %v1793 = vsel %vm1790, %v1792, %v1788
    %v1794 = vmul.f32 1.0, %v1793
    %v1795 = vrcp.pop %v1779
    %v1796 = vmul.f32 %v1779, %v1795
    %v1797 = vsub.f32 1.0, %v1796
    %v1798 = vmul.f32 %v1795, %v1797
    %v1799 = vadd.f32 %v1795, %v1798
    %vm1800 = vweird.f32 %v1779
    %vm1801 = vweird.f32 %v1795
    %vm1802 = vmor %vm1800, %vm1801
    %v1803 = vsel %vm1802, %v1795, %v1799
    %v1804 = vand.u32 2147483647, %v1779
    %vm1805 = vcmp.eq.f32.partialorder %v1804, 8.507059e+37
    %v1806 = vand.u32 %v1779, 2147483648
    %v1807 = vor.u32 1.1754944e-38, %v1806
    %v1808 = vsel %vm1805, %v1807, %v1803
    %v1809 = vmul.f32 1.0, %v1808
    %v1810 = vadd.f32 %v1726, %v1482
    %v1811 = vadd.f32 %v1728, %v1482
    %v1812 = vmul.f32 %v1754, %v1810
    %v1813 = vmul.f32 %v1769, %v1811
    %v1814 = vadd.f32 %v1684, %v1812
    %v1815 = vadd.f32 %v1686, %v1813
    %v1816 = vtanh.pop %v1814
    %v1817 = vtanh.pop %v1815
    %v1818 = vsub.f32 1.0, %v1794
    %v1819 = vsub.f32 1.0, %v1809
    %v1820 = vmul.f32 %v1818, %v1816
    %v1821 = vmul.f32 %v1819, %v1817
    %v1822 = vmul.f32 %v1794, %v1498
    %v1823 = vmul.f32 %v1809, %v1499
    %v1824 = vadd.f32 %v1820, %v1822
    %v1825 = vadd.f32 %v1821, %v1823
    %v1826 = vpack.c.bf16 %v1825, %v1824
    %v1827 = vld [vmem:[#allocation9] sm:$0xff]
    %v1828 = vld [vmem:[#allocation9 + $0x8] sm:$0xf]
    %v1829 = vld [vmem:[#allocation9 + $0xc] sm:$0xff]
    %v1830 = vld [vmem:[#allocation9 + $0x14] sm:$0xf]
    %v1831 = vld [vmem:[#allocation9 + $0x18] sm:$0xff]
    %v1832 = vld [vmem:[#allocation9 + $0x20] sm:$0xf]
    %v1833 = vld [vmem:[#allocation9 + $0x24] sm:$0xff]
    %v1834 = vld [vmem:[#allocation9 + $0x2c] sm:$0xf]
    %v1835 = vld [vmem:[#allocation9 + $0x30] sm:$0xff]
    %v1836 = vld [vmem:[#allocation9 + $0x38] sm:$0xf]
    %v1837 = vld [vmem:[#allocation9 + $0x3c] sm:$0xff]
    %v1838 = vld [vmem:[#allocation9 + $0x44] sm:$0xf]
    %v1839 = vld [vmem:[#allocation9 + $0x48] sm:$0xff]
    %v1840 = vld [vmem:[#allocation9 + $0x50] sm:$0xf]
    %v1841 = vld [vmem:[#allocation9 + $0x54] sm:$0xff]
    %v1842 = vld [vmem:[#allocation9 + $0x5c] sm:$0xf]
    %v1843 = vld [vmem:[#allocation9 + $0x60] sm:$0xff]
    %v1844 = vld [vmem:[#allocation9 + $0x68] sm:$0xf]
    %v1845 = vld [vmem:[#allocation9 + $0x6c] sm:$0xff]
    %v1846 = vld [vmem:[#allocation9 + $0x74] sm:$0xf]
    %v1847 = vld [vmem:[#allocation9 + $0x78] sm:$0xff]
    %v1848 = vld [vmem:[#allocation9 + $0x80] sm:$0xf]
    %v1849 = vld [vmem:[#allocation9 + $0x84] sm:$0xff]
    %v1850 = vld [vmem:[#allocation9 + $0x8c] sm:$0xf]
    %v1851 = vld [vmem:[#allocation9 + $0x90] sm:$0xff]
    %v1852 = vld [vmem:[#allocation9 + $0x98] sm:$0xf]
    %v1853 = vld [vmem:[#allocation9 + $0x9c] sm:$0xff]
    %v1854 = vld [vmem:[#allocation9 + $0xa4] sm:$0xf]
    %v1855 = vld [vmem:[#allocation9 + $0xa8] sm:$0xff]
    %v1856 = vld [vmem:[#allocation9 + $0xb0] sm:$0xf]
    %v1857 = vld [vmem:[#allocation9 + $0xb4] sm:$0xff]
    %v1858 = vld [vmem:[#allocation9 + $0xbc] sm:$0xf]
    %v1859 = vld [vmem:[#allocation12] sm:$0x7]
    %v1861 = vperm.slane %v1859, 0
    %v1862 = vperm.slane %v1859, 1
    %v1863 = vperm.slane %v1859, 2
    %v1899 = vunpack.c.l.b16 %v1827
    %v1900 = vunpack.c.h.b16 %v1827
    %v1901 = vunpack.c.l.b16 %v1828
    %v1902 = vunpack.c.l.b16 %v1829
    %v1903 = vunpack.c.h.b16 %v1829
    %v1904 = vunpack.c.l.b16 %v1830
    %v1905 = vunpack.c.l.b16 %v1831
    %v1906 = vunpack.c.h.b16 %v1831
    %v1907 = vunpack.c.l.b16 %v1832
    %v1908 = vunpack.c.l.b16 %v1833
    %v1909 = vunpack.c.h.b16 %v1833
    %v1910 = vunpack.c.l.b16 %v1834
    %v1911 = vunpack.c.l.b16 %v1835
    %v1912 = vunpack.c.h.b16 %v1835
    %v1913 = vunpack.c.l.b16 %v1836
    %v1914 = vunpack.c.l.b16 %v1837
    %v1915 = vunpack.c.h.b16 %v1837
    %v1916 = vunpack.c.l.b16 %v1838
    %v1917 = vunpack.c.l.b16 %v1839
    %v1918 = vunpack.c.h.b16 %v1839
    %v1919 = vunpack.c.l.b16 %v1840
    %v1920 = vunpack.c.l.b16 %v1841
    %v1921 = vunpack.c.h.b16 %v1841
    %v1922 = vunpack.c.l.b16 %v1842
    %v1923 = vunpack.c.l.b16 %v1843
    %v1924 = vunpack.c.h.b16 %v1843
    %v1925 = vunpack.c.l.b16 %v1844
    %v1926 = vunpack.c.l.b16 %v1845
    %v1927 = vunpack.c.h.b16 %v1845
    %v1928 = vunpack.c.l.b16 %v1846
    %v1929 = vunpack.c.l.b16 %v1847
    %v1930 = vunpack.c.h.b16 %v1847
    %v1931 = vunpack.c.l.b16 %v1848
    %v1932 = vunpack.c.l.b16 %v1849
    %v1933 = vunpack.c.h.b16 %v1849
    %v1934 = vunpack.c.l.b16 %v1850
    %v1935 = vunpack.c.l.b16 %v1851
    %v1936 = vunpack.c.h.b16 %v1851
    %v1937 = vunpack.c.l.b16 %v1852
    %v1938 = vunpack.c.l.b16 %v1853
    %v1939 = vunpack.c.h.b16 %v1853
    %v1940 = vunpack.c.l.b16 %v1854
    %v1941 = vunpack.c.l.b16 %v1855
    %v1942 = vunpack.c.h.b16 %v1855
    %v1943 = vunpack.c.l.b16 %v1856
    %v1944 = vunpack.c.l.b16 %v1857
    %v1945 = vunpack.c.h.b16 %v1857
    %v1946 = vunpack.c.l.b16 %v1858
    %v1947 = vpack.c.b16 %v1902, %v1899
    %v1948 = vpack.c.b16 %v1903, %v1900
    %v1949 = vpack.c.b16 %v1904, %v1901
    %v1950 = vpack.c.b16 %v1908, %v1905
    %v1951 = vpack.c.b16 %v1909, %v1906
    %v1952 = vpack.c.b16 %v1910, %v1907
    %v1953 = vpack.c.b16 %v1914, %v1911
    %v1954 = vpack.c.b16 %v1915, %v1912
    %v1955 = vpack.c.b16 %v1916, %v1913
    %v1956 = vpack.c.b16 %v1920, %v1917
    %v1957 = vpack.c.b16 %v1921, %v1918
    %v1958 = vpack.c.b16 %v1922, %v1919
    %v1959 = vpack.c.b16 %v1926, %v1923
    %v1960 = vpack.c.b16 %v1927, %v1924
    %v1961 = vpack.c.b16 %v1928, %v1925
    %v1962 = vpack.c.b16 %v1932, %v1929
    %v1963 = vpack.c.b16 %v1933, %v1930
    %v1964 = vpack.c.b16 %v1934, %v1931
    %v1965 = vpack.c.b16 %v1938, %v1935
    %v1966 = vpack.c.b16 %v1939, %v1936
    %v1967 = vpack.c.b16 %v1940, %v1937
    %v1968 = vpack.c.b16 %v1944, %v1941
    %v1969 = vpack.c.b16 %v1945, %v1942
    %v1970 = vpack.c.b16 %v1946, %v1943
    %1995 = vmatpush.bf16.msra.mxu0 %v1968
    %1996 = vmatpush.bf16.msra.mxu0 %v1965
    %1997 = vmatpush.bf16.msra.mxu0 %v1962
    %1998 = vmatpush.bf16.msra.mxu0 %v1959
    %1999 = vmatpush.bf16.msra.mxu0 %v1956
    %2000 = vmatpush.bf16.msra.mxu0 %v1953
    %2001 = vmatpush.bf16.msra.mxu0 %v1950
    %2002 = vmatpush.bf16.msra.mxu0 %v1947
    %2003 = vmatmul.bf16.gmra.mxu0 %v1500
    %v2004 = vpop.f32.mrf.mxu0
    %v2005 = vadd.f32 %v1861, %v2004
    %v2006 = vpop.f32.mrf.mxu0
    %v2007 = vadd.f32 %v1861, %v2006
    %2008 = vdwg.mxu0
    %2009 = vmatpush.bf16.msra.mxu0 %v1969
    %2010 = vmatpush.bf16.msra.mxu0 %v1966
    %2011 = vmatpush.bf16.msra.mxu0 %v1963
    %2012 = vmatpush.bf16.msra.mxu0 %v1960
    %2013 = vmatpush.bf16.msra.mxu0 %v1957
    %2014 = vmatpush.bf16.msra.mxu0 %v1954
    %2015 = vmatpush.bf16.msra.mxu0 %v1951
    %2016 = vmatpush.bf16.msra.mxu0 %v1948
    %2017 = vmatmul.bf16.gmra.mxu0 %v1500
    %v2018 = vpop.f32.mrf.mxu0
    %v2019 = vadd.f32 %v1862, %v2018
    %v2020 = vpop.f32.mrf.mxu0
    %v2021 = vadd.f32 %v1862, %v2020
    %2022 = vdwg.mxu0
    %2023 = vmatpush.bf16.msra.mxu0 %v1970
    %2024 = vmatpush.bf16.msra.mxu0 %v1967
    %2025 = vmatpush.bf16.msra.mxu0 %v1964
    %2026 = vmatpush.bf16.msra.mxu0 %v1961
    %2027 = vmatpush.bf16.msra.mxu0 %v1958
    %2028 = vmatpush.bf16.msra.mxu0 %v1955
    %2029 = vmatpush.bf16.msra.mxu0 %v1952
    %2030 = vmatpush.bf16.msra.mxu0 %v1949
    %2031 = vmatmul.bf16.gmra.mxu0 %v1500
    %v2032 = vpop.f32.mrf.mxu0
    %v2033 = vadd.f32 %v1863, %v2032
    %v2034 = vpop.f32.mrf.mxu0
    %v2035 = vadd.f32 %v1863, %v2034
    %2036 = vdwg.mxu0
    %v2037 = vld [vmem:[#allocation11] sm:$0xff]
    %v2038 = vld [vmem:[#allocation11 + $0x8] sm:$0xf]
    %v2039 = vld [vmem:[#allocation11 + $0xc] sm:$0xff]
    %v2040 = vld [vmem:[#allocation11 + $0x14] sm:$0xf]
    %v2041 = vld [vmem:[#allocation11 + $0x18] sm:$0xff]
    %v2042 = vld [vmem:[#allocation11 + $0x20] sm:$0xf]
    %v2043 = vld [vmem:[#allocation11 + $0x24] sm:$0xff]
    %v2044 = vld [vmem:[#allocation11 + $0x2c] sm:$0xf]
    %v2045 = vld [vmem:[#allocation11 + $0x30] sm:$0xff]
    %v2046 = vld [vmem:[#allocation11 + $0x38] sm:$0xf]
    %v2047 = vld [vmem:[#allocation11 + $0x3c] sm:$0xff]
    %v2048 = vld [vmem:[#allocation11 + $0x44] sm:$0xf]
    %v2049 = vld [vmem:[#allocation11 + $0x48] sm:$0xff]
    %v2050 = vld [vmem:[#allocation11 + $0x50] sm:$0xf]
    %v2051 = vld [vmem:[#allocation11 + $0x54] sm:$0xff]
    %v2052 = vld [vmem:[#allocation11 + $0x5c] sm:$0xf]
    %v2053 = vld [vmem:[#allocation11 + $0x60] sm:$0xff]
    %v2054 = vld [vmem:[#allocation11 + $0x68] sm:$0xf]
    %v2055 = vld [vmem:[#allocation11 + $0x6c] sm:$0xff]
    %v2056 = vld [vmem:[#allocation11 + $0x74] sm:$0xf]
    %v2057 = vld [vmem:[#allocation11 + $0x78] sm:$0xff]
    %v2058 = vld [vmem:[#allocation11 + $0x80] sm:$0xf]
    %v2059 = vld [vmem:[#allocation11 + $0x84] sm:$0xff]
    %v2060 = vld [vmem:[#allocation11 + $0x8c] sm:$0xf]
    %v2061 = vld [vmem:[#allocation11 + $0x90] sm:$0xff]
    %v2062 = vld [vmem:[#allocation11 + $0x98] sm:$0xf]
    %v2063 = vld [vmem:[#allocation11 + $0x9c] sm:$0xff]
    %v2064 = vld [vmem:[#allocation11 + $0xa4] sm:$0xf]
    %v2065 = vld [vmem:[#allocation11 + $0xa8] sm:$0xff]
    %v2066 = vld [vmem:[#allocation11 + $0xb0] sm:$0xf]
    %v2067 = vld [vmem:[#allocation11 + $0xb4] sm:$0xff]
    %v2068 = vld [vmem:[#allocation11 + $0xbc] sm:$0xf]
    %v2101 = vunpack.c.l.b16 %v2037
    %v2102 = vunpack.c.h.b16 %v2037
    %v2103 = vunpack.c.l.b16 %v2038
    %v2104 = vunpack.c.l.b16 %v2039
    %v2105 = vunpack.c.h.b16 %v2039
    %v2106 = vunpack.c.l.b16 %v2040
    %v2107 = vunpack.c.l.b16 %v2041
    %v2108 = vunpack.c.h.b16 %v2041
    %v2109 = vunpack.c.l.b16 %v2042
    %v2110 = vunpack.c.l.b16 %v2043
    %v2111 = vunpack.c.h.b16 %v2043
    %v2112 = vunpack.c.l.b16 %v2044
    %v2113 = vunpack.c.l.b16 %v2045
    %v2114 = vunpack.c.h.b16 %v2045
    %v2115 = vunpack.c.l.b16 %v2046
    %v2116 = vunpack.c.l.b16 %v2047
    %v2117 = vunpack.c.h.b16 %v2047
    %v2118 = vunpack.c.l.b16 %v2048
    %v2119 = vunpack.c.l.b16 %v2049
    %v2120 = vunpack.c.h.b16 %v2049
    %v2121 = vunpack.c.l.b16 %v2050
    %v2122 = vunpack.c.l.b16 %v2051
    %v2123 = vunpack.c.h.b16 %v2051
    %v2124 = vunpack.c.l.b16 %v2052
    %v2125 = vunpack.c.l.b16 %v2053
    %v2126 = vunpack.c.h.b16 %v2053
    %v2127 = vunpack.c.l.b16 %v2054
    %v2128 = vunpack.c.l.b16 %v2055
    %v2129 = vunpack.c.h.b16 %v2055
    %v2130 = vunpack.c.l.b16 %v2056
    %v2131 = vunpack.c.l.b16 %v2057
    %v2132 = vunpack.c.h.b16 %v2057
    %v2133 = vunpack.c.l.b16 %v2058
    %v2134 = vunpack.c.l.b16 %v2059
    %v2135 = vunpack.c.h.b16 %v2059
    %v2136 = vunpack.c.l.b16 %v2060
    %v2137 = vunpack.c.l.b16 %v2061
    %v2138 = vunpack.c.h.b16 %v2061
    %v2139 = vunpack.c.l.b16 %v2062
    %v2140 = vunpack.c.l.b16 %v2063
    %v2141 = vunpack.c.h.b16 %v2063
    %v2142 = vunpack.c.l.b16 %v2064
    %v2143 = vunpack.c.l.b16 %v2065
    %v2144 = vunpack.c.h.b16 %v2065
    %v2145 = vunpack.c.l.b16 %v2066
    %v2146 = vunpack.c.l.b16 %v2067
    %v2147 = vunpack.c.h.b16 %v2067
    %v2148 = vunpack.c.l.b16 %v2068
    %v2149 = vpack.c.b16 %v2104, %v2101
    %v2150 = vpack.c.b16 %v2105, %v2102
    %v2151 = vpack.c.b16 %v2106, %v2103
    %v2152 = vpack.c.b16 %v2110, %v2107
    %v2153 = vpack.c.b16 %v2111, %v2108
    %v2154 = vpack.c.b16 %v2112, %v2109
    %v2155 = vpack.c.b16 %v2116, %v2113
    %v2156 = vpack.c.b16 %v2117, %v2114
    %v2157 = vpack.c.b16 %v2118, %v2115
    %v2158 = vpack.c.b16 %v2122, %v2119
    %v2159 = vpack.c.b16 %v2123, %v2120
    %v2160 = vpack.c.b16 %v2124, %v2121
    %v2161 = vpack.c.b16 %v2128, %v2125
    %v2162 = vpack.c.b16 %v2129, %v2126
    %v2163 = vpack.c.b16 %v2130, %v2127
    %v2164 = vpack.c.b16 %v2134, %v2131
    %v2165 = vpack.c.b16 %v2135, %v2132
    %v2166 = vpack.c.b16 %v2136, %v2133
    %v2167 = vpack.c.b16 %v2140, %v2137
    %v2168 = vpack.c.b16 %v2141, %v2138
    %v2169 = vpack.c.b16 %v2142, %v2139
    %v2170 = vpack.c.b16 %v2146, %v2143
    %v2171 = vpack.c.b16 %v2147, %v2144
    %v2172 = vpack.c.b16 %v2148, %v2145
    %2197 = vmatpush.bf16.msra.mxu0 %v2170
    %2198 = vmatpush.bf16.msra.mxu0 %v2167
    %2199 = vmatpush.bf16.msra.mxu0 %v2164
    %2200 = vmatpush.bf16.msra.mxu0 %v2161
    %2201 = vmatpush.bf16.msra.mxu0 %v2158
    %2202 = vmatpush.bf16.msra.mxu0 %v2155
    %2203 = vmatpush.bf16.msra.mxu0 %v2152
    %2204 = vmatpush.bf16.msra.mxu0 %v2149
    %2205 = vmatmul.bf16.gmra.mxu0 0
    %v2206 = vpop.f32.mrf.mxu0
    %v2207 = vadd.f32 0.0, %v2206
    %v2208 = vpop.f32.mrf.mxu0
    %v2209 = vadd.f32 0.0, %v2208
    %2210 = vdwg.mxu0
    %2211 = vmatpush.bf16.msra.mxu0 %v2171
    %2212 = vmatpush.bf16.msra.mxu0 %v2168
    %2213 = vmatpush.bf16.msra.mxu0 %v2165
    %2214 = vmatpush.bf16.msra.mxu0 %v2162
    %2215 = vmatpush.bf16.msra.mxu0 %v2159
    %2216 = vmatpush.bf16.msra.mxu0 %v2156
    %2217 = vmatpush.bf16.msra.mxu0 %v2153
    %2218 = vmatpush.bf16.msra.mxu0 %v2150
    %2219 = vmatmul.bf16.gmra.mxu0 0
    %v2220 = vpop.f32.mrf.mxu0
    %v2221 = vadd.f32 0.0, %v2220
    %v2222 = vpop.f32.mrf.mxu0
    %v2223 = vadd.f32 0.0, %v2222
    %2224 = vdwg.mxu0
    %2225 = vmatpush.bf16.msra.mxu0 %v2172
    %2226 = vmatpush.bf16.msra.mxu0 %v2169
    %2227 = vmatpush.bf16.msra.mxu0 %v2166
    %2228 = vmatpush.bf16.msra.mxu0 %v2163
    %2229 = vmatpush.bf16.msra.mxu0 %v2160
    %2230 = vmatpush.bf16.msra.mxu0 %v2157
    %2231 = vmatpush.bf16.msra.mxu0 %v2154
    %2232 = vmatpush.bf16.msra.mxu0 %v2151
    %2233 = vmatmul.bf16.gmra.mxu0 0
    %v2234 = vpop.f32.mrf.mxu0
    %v2235 = vadd.f32 0.0, %v2234
    %v2236 = vpop.f32.mrf.mxu0
    %v2237 = vadd.f32 0.0, %v2236
    %2238 = vdwg.mxu0
    %v2239 = vadd.f32 %v2005, %v2207
    %v2240 = vadd.f32 %v2007, %v2209
    %v2241 = vxor.u32 %v2239, 2147483648
    %v2242 = vxor.u32 %v2240, 2147483648
    %v2243 = vmul.f32 %v2241, 1.442695
    %v2244 = vpow.pop %v2243
    %v2245 = vmul.f32 %v2242, 1.442695
    %v2246 = vpow.pop %v2245
    %v2247 = vadd.f32 %v2244, 1.0
    %v2248 = vadd.f32 %v2246, 1.0
    %v2249 = vrcp.pop %v2247
    %v2250 = vmul.f32 %v2247, %v2249
    %v2251 = vsub.f32 1.0, %v2250
    %v2252 = vmul.f32 %v2249, %v2251
    %v2253 = vadd.f32 %v2249, %v2252
    %vm2254 = vweird.f32 %v2247
    %vm2255 = vweird.f32 %v2249
    %vm2256 = vmor %vm2254, %vm2255
    %v2257 = vsel %vm2256, %v2249, %v2253
    %v2258 = vand.u32 2147483647, %v2247
    %vm2259 = vcmp.eq.f32.partialorder %v2258, 8.507059e+37
    %v2260 = vand.u32 %v2247, 2147483648
    %v2261 = vor.u32 1.1754944e-38, %v2260
    %v2262 = vsel %vm2259, %v2261, %v2257
    %v2263 = vmul.f32 1.0, %v2262
    %v2264 = vrcp.pop %v2248
    %v2265 = vmul.f32 %v2248, %v2264
    %v2266 = vsub.f32 1.0, %v2265
    %v2267 = vmul.f32 %v2264, %v2266
    %v2268 = vadd.f32 %v2264, %v2267
    %vm2269 = vweird.f32 %v2248
    %vm2270 = vweird.f32 %v2264
    %vm2271 = vmor %vm2269, %vm2270
    %v2272 = vsel %vm2271, %v2264, %v2268
    %v2273 = vand.u32 2147483647, %v2248
    %vm2274 = vcmp.eq.f32.partialorder %v2273, 8.507059e+37
    %v2275 = vand.u32 %v2248, 2147483648
    %v2276 = vor.u32 1.1754944e-38, %v2275
    %v2277 = vsel %vm2274, %v2276, %v2272
    %v2278 = vmul.f32 1.0, %v2277
    %v2279 = vadd.f32 %v2019, %v2221
    %v2280 = vadd.f32 %v2021, %v2223
    %v2281 = vxor.u32 %v2279, 2147483648
    %v2282 = vxor.u32 %v2280, 2147483648
    %v2283 = vmul.f32 %v2281, 1.442695
    %v2284 = vpow.pop %v2283
    %v2285 = vmul.f32 %v2282, 1.442695
    %v2286 = vpow.pop %v2285
    %v2287 = vadd.f32 %v2284, 1.0
    %v2288 = vadd.f32 %v2286, 1.0
    %v2289 = vrcp.pop %v2287
    %v2290 = vmul.f32 %v2287, %v2289
    %v2291 = vsub.f32 1.0, %v2290
    %v2292 = vmul.f32 %v2289, %v2291
    %v2293 = vadd.f32 %v2289, %v2292
    %vm2294 = vweird.f32 %v2287
    %vm2295 = vweird.f32 %v2289
    %vm2296 = vmor %vm2294, %vm2295
    %v2297 = vsel %vm2296, %v2289, %v2293
    %v2298 = vand.u32 2147483647, %v2287
    %vm2299 = vcmp.eq.f32.partialorder %v2298, 8.507059e+37
    %v2300 = vand.u32 %v2287, 2147483648
    %v2301 = vor.u32 1.1754944e-38, %v2300
    %v2302 = vsel %vm2299, %v2301, %v2297
    %v2303 = vmul.f32 1.0, %v2302
    %v2304 = vrcp.pop %v2288
    %v2305 = vmul.f32 %v2288, %v2304
    %v2306 = vsub.f32 1.0, %v2305
    %v2307 = vmul.f32 %v2304, %v2306
    %v2308 = vadd.f32 %v2304, %v2307
    %vm2309 = vweird.f32 %v2288
    %vm2310 = vweird.f32 %v2304
    %vm2311 = vmor %vm2309, %vm2310
    %v2312 = vsel %vm2311, %v2304, %v2308
    %v2313 = vand.u32 2147483647, %v2288
    %vm2314 = vcmp.eq.f32.partialorder %v2313, 8.507059e+37
    %v2315 = vand.u32 %v2288, 2147483648
    %v2316 = vor.u32 1.1754944e-38, %v2315
    %v2317 = vsel %vm2314, %v2316, %v2312
    %v2318 = vmul.f32 1.0, %v2317
    %v2319 = vld [vmem:[#allocation14] sm:$0x1]
    %v2321 = vperm.slane %v2319, 0
    %v2323 = vadd.f32 %v2235, %v2321
    %v2324 = vadd.f32 %v2237, %v2321
    %v2325 = vmul.f32 %v2263, %v2323
    %v2326 = vmul.f32 %v2278, %v2324
    %v2327 = vadd.f32 %v2033, %v2325
    %v2328 = vadd.f32 %v2035, %v2326
    %v2329 = vtanh.pop %v2327
    %v2330 = vtanh.pop %v2328
    %v2331 = vsub.f32 1.0, %v2303
    %v2332 = vsub.f32 1.0, %v2318
    %v2333 = vmul.f32 %v2331, %v2329
    %v2334 = vmul.f32 %v2332, %v2330
    %v2335 = vmul.f32 %v2303, 0.0
    %v2336 = vmul.f32 %v2318, 0.0
    %v2337 = vadd.f32 %v2333, %v2335
    %v2338 = vadd.f32 %v2334, %v2336
    %v2339 = vpack.c.bf16 %v2338, %v2337
    %s2340 = smul.u32 6, 3
    %s2341 = smul.addr %s2340, 8
    %s2342 = scalar_lea.vmem [#allocation2], %s2341
    %v2343 = vld [vmem:[%s2342] sm:$0xff]
    %v2344 = vld [vmem:[%s2342 + $0x8] sm:$0xff]
    %v2345 = vld [vmem:[%s2342 + $0x10] sm:$0xff]
    %v2346 = vld [vmem:[%s2342 + $0x18] sm:$0xff]
    %v2347 = vld [vmem:[%s2342 + $0x20] sm:$0xff]
    %v2348 = vld [vmem:[%s2342 + $0x28] sm:$0xff]
    %2349 = vmatpush.bf16.msra.mxu0 %v673
    %2350 = vmatpush.bf16.msra.mxu0 %v670
    %2351 = vmatpush.bf16.msra.mxu0 %v667
    %2352 = vmatpush.bf16.msra.mxu0 %v664
    %2353 = vmatpush.bf16.msra.mxu0 %v661
    %2354 = vmatpush.bf16.msra.mxu0 %v658
    %2355 = vmatpush.bf16.msra.mxu0 %v655
    %2356 = vmatpush.bf16.msra.mxu0 %v652
    %2357 = vmatmul.bf16.gmra.mxu0 %v1645
    %v2358 = vpop.f32.mrf.mxu0
    %v2359 = vadd.f32 0.0, %v2358
    %v2360 = vpop.f32.mrf.mxu0
    %v2361 = vadd.f32 0.0, %v2360
    %2362 = vdwg.mxu0
    %2363 = vmatpush.bf16.msra.mxu0 %v674
    %2364 = vmatpush.bf16.msra.mxu0 %v671
    %2365 = vmatpush.bf16.msra.mxu0 %v668
    %2366 = vmatpush.bf16.msra.mxu0 %v665
    %2367 = vmatpush.bf16.msra.mxu0 %v662
    %2368 = vmatpush.bf16.msra.mxu0 %v659
    %2369 = vmatpush.bf16.msra.mxu0 %v656
    %2370 = vmatpush.bf16.msra.mxu0 %v653
    %2371 = vmatmul.bf16.gmra.mxu0 %v1645
    %v2372 = vpop.f32.mrf.mxu0
    %v2373 = vadd.f32 0.0, %v2372
    %v2374 = vpop.f32.mrf.mxu0
    %v2375 = vadd.f32 0.0, %v2374
    %2376 = vdwg.mxu0
    %2377 = vmatpush.bf16.msra.mxu0 %v675
    %2378 = vmatpush.bf16.msra.mxu0 %v672
    %2379 = vmatpush.bf16.msra.mxu0 %v669
    %2380 = vmatpush.bf16.msra.mxu0 %v666
    %2381 = vmatpush.bf16.msra.mxu0 %v663
    %2382 = vmatpush.bf16.msra.mxu0 %v660
    %2383 = vmatpush.bf16.msra.mxu0 %v657
    %2384 = vmatpush.bf16.msra.mxu0 %v654
    %2385 = vmatmul.bf16.gmra.mxu0 %v1645
    %v2386 = vpop.f32.mrf.mxu0
    %v2387 = vadd.f32 0.0, %v2386
    %v2388 = vpop.f32.mrf.mxu0
    %v2389 = vadd.f32 0.0, %v2388
    %2390 = vdwg.mxu0
    %v2391 = vadd.f32 %v2343, %v2359
    %v2392 = vadd.f32 %v2346, %v2361
    %v2393 = vxor.u32 %v2391, 2147483648
    %v2394 = vxor.u32 %v2392, 2147483648
    %v2395 = vmul.f32 %v2393, 1.442695
    %v2396 = vpow.pop %v2395
    %v2397 = vmul.f32 %v2394, 1.442695
    %v2398 = vpow.pop %v2397
    %v2399 = vadd.f32 %v2396, 1.0
    %v2400 = vadd.f32 %v2398, 1.0
    %v2401 = vrcp.pop %v2399
    %v2402 = vmul.f32 %v2399, %v2401
    %v2403 = vsub.f32 1.0, %v2402
    %v2404 = vmul.f32 %v2401, %v2403
    %v2405 = vadd.f32 %v2401, %v2404
    %vm2406 = vweird.f32 %v2399
    %vm2407 = vweird.f32 %v2401
    %vm2408 = vmor %vm2406, %vm2407
    %v2409 = vsel %vm2408, %v2401, %v2405
    %v2410 = vand.u32 2147483647, %v2399
    %vm2411 = vcmp.eq.f32.partialorder %v2410, 8.507059e+37
    %v2412 = vand.u32 %v2399, 2147483648
    %v2413 = vor.u32 1.1754944e-38, %v2412
    %v2414 = vsel %vm2411, %v2413, %v2409
    %v2415 = vmul.f32 1.0, %v2414
    %v2416 = vrcp.pop %v2400
    %v2417 = vmul.f32 %v2400, %v2416
    %v2418 = vsub.f32 1.0, %v2417
    %v2419 = vmul.f32 %v2416, %v2418
    %v2420 = vadd.f32 %v2416, %v2419
    %vm2421 = vweird.f32 %v2400
    %vm2422 = vweird.f32 %v2416
    %vm2423 = vmor %vm2421, %vm2422
    %v2424 = vsel %vm2423, %v2416, %v2420
    %v2425 = vand.u32 2147483647, %v2400
    %vm2426 = vcmp.eq.f32.partialorder %v2425, 8.507059e+37
    %v2427 = vand.u32 %v2400, 2147483648
    %v2428 = vor.u32 1.1754944e-38, %v2427
    %v2429 = vsel %vm2426, %v2428, %v2424
    %v2430 = vmul.f32 1.0, %v2429
    %v2431 = vadd.f32 %v2344, %v2373
    %v2432 = vadd.f32 %v2347, %v2375
    %v2433 = vxor.u32 %v2431, 2147483648
    %v2434 = vxor.u32 %v2432, 2147483648
    %v2435 = vmul.f32 %v2433, 1.442695
    %v2436 = vpow.pop %v2435
    %v2437 = vmul.f32 %v2434, 1.442695
    %v2438 = vpow.pop %v2437
    %v2439 = vadd.f32 %v2436, 1.0
    %v2440 = vadd.f32 %v2438, 1.0
    %v2441 = vrcp.pop %v2439
    %v2442 = vmul.f32 %v2439, %v2441
    %v2443 = vsub.f32 1.0, %v2442
    %v2444 = vmul.f32 %v2441, %v2443
    %v2445 = vadd.f32 %v2441, %v2444
    %vm2446 = vweird.f32 %v2439
    %vm2447 = vweird.f32 %v2441
    %vm2448 = vmor %vm2446, %vm2447
    %v2449 = vsel %vm2448, %v2441, %v2445
    %v2450 = vand.u32 2147483647, %v2439
    %vm2451 = vcmp.eq.f32.partialorder %v2450, 8.507059e+37
    %v2452 = vand.u32 %v2439, 2147483648
    %v2453 = vor.u32 1.1754944e-38, %v2452
    %v2454 = vsel %vm2451, %v2453, %v2449
    %v2455 = vmul.f32 1.0, %v2454
    %v2456 = vrcp.pop %v2440
    %v2457 = vmul.f32 %v2440, %v2456
    %v2458 = vsub.f32 1.0, %v2457
    %v2459 = vmul.f32 %v2456, %v2458
    %v2460 = vadd.f32 %v2456, %v2459
    %vm2461 = vweird.f32 %v2440
    %vm2462 = vweird.f32 %v2456
    %vm2463 = vmor %vm2461, %vm2462
    %v2464 = vsel %vm2463, %v2456, %v2460
    %v2465 = vand.u32 2147483647, %v2440
    %vm2466 = vcmp.eq.f32.partialorder %v2465, 8.507059e+37
    %v2467 = vand.u32 %v2440, 2147483648
    %v2468 = vor.u32 1.1754944e-38, %v2467
    %v2469 = vsel %vm2466, %v2468, %v2464
    %v2470 = vmul.f32 1.0, %v2469
    %v2471 = vadd.f32 %v2387, %v824
    %v2472 = vadd.f32 %v2389, %v824
    %v2473 = vmul.f32 %v2415, %v2471
    %v2474 = vmul.f32 %v2430, %v2472
    %v2475 = vadd.f32 %v2345, %v2473
    %v2476 = vadd.f32 %v2348, %v2474
    %v2477 = vtanh.pop %v2475
    %v2478 = vtanh.pop %v2476
    %v2479 = vsub.f32 1.0, %v2455
    %v2480 = vsub.f32 1.0, %v2470
    %v2481 = vmul.f32 %v2479, %v2477
    %v2482 = vmul.f32 %v2480, %v2478
    %v2483 = vmul.f32 %v2455, %v1643
    %v2484 = vmul.f32 %v2470, %v1644
    %v2485 = vadd.f32 %v2481, %v2483
    %v2486 = vadd.f32 %v2482, %v2484
    %v2487 = vpack.c.bf16 %v2486, %v2485
    %2488 = vmatpush.bf16.msra.mxu0 %v1129
    %2489 = vmatpush.bf16.msra.mxu0 %v1126
    %2490 = vmatpush.bf16.msra.mxu0 %v1123
    %2491 = vmatpush.bf16.msra.mxu0 %v1120
    %2492 = vmatpush.bf16.msra.mxu0 %v1117
    %2493 = vmatpush.bf16.msra.mxu0 %v1114
    %2494 = vmatpush.bf16.msra.mxu0 %v1111
    %2495 = vmatpush.bf16.msra.mxu0 %v1108
    %2496 = vmatmul.bf16.gmra.mxu0 %v1645
    %v2497 = vpop.f32.mrf.mxu0
    %v2498 = vadd.f32 %v1022, %v2497
    %v2499 = vpop.f32.mrf.mxu0
    %v2500 = vadd.f32 %v1022, %v2499
    %2501 = vdwg.mxu0
    %2502 = vmatpush.bf16.msra.mxu0 %v1130
    %2503 = vmatpush.bf16.msra.mxu0 %v1127
    %2504 = vmatpush.bf16.msra.mxu0 %v1124
    %2505 = vmatpush.bf16.msra.mxu0 %v1121
    %2506 = vmatpush.bf16.msra.mxu0 %v1118
    %2507 = vmatpush.bf16.msra.mxu0 %v1115
    %2508 = vmatpush.bf16.msra.mxu0 %v1112
    %2509 = vmatpush.bf16.msra.mxu0 %v1109
    %2510 = vmatmul.bf16.gmra.mxu0 %v1645
    %v2511 = vpop.f32.mrf.mxu0
    %v2512 = vadd.f32 %v1023, %v2511
    %v2513 = vpop.f32.mrf.mxu0
    %v2514 = vadd.f32 %v1023, %v2513
    %2515 = vdwg.mxu0
    %2516 = vmatpush.bf16.msra.mxu0 %v1131
    %2517 = vmatpush.bf16.msra.mxu0 %v1128
    %2518 = vmatpush.bf16.msra.mxu0 %v1125
    %2519 = vmatpush.bf16.msra.mxu0 %v1122
    %2520 = vmatpush.bf16.msra.mxu0 %v1119
    %2521 = vmatpush.bf16.msra.mxu0 %v1116
    %2522 = vmatpush.bf16.msra.mxu0 %v1113
    %2523 = vmatpush.bf16.msra.mxu0 %v1110
    %2524 = vmatmul.bf16.gmra.mxu0 %v1645
    %v2525 = vpop.f32.mrf.mxu0
    %v2526 = vadd.f32 %v1024, %v2525
    %v2527 = vpop.f32.mrf.mxu0
    %v2528 = vadd.f32 %v1024, %v2527
    %2529 = vdwg.mxu0
    %2530 = vmatpush.bf16.msra.mxu0 %v1331
    %2531 = vmatpush.bf16.msra.mxu0 %v1328
    %2532 = vmatpush.bf16.msra.mxu0 %v1325
    %2533 = vmatpush.bf16.msra.mxu0 %v1322
    %2534 = vmatpush.bf16.msra.mxu0 %v1319
    %2535 = vmatpush.bf16.msra.mxu0 %v1316
    %2536 = vmatpush.bf16.msra.mxu0 %v1313
    %2537 = vmatpush.bf16.msra.mxu0 %v1310
    %2538 = vmatmul.bf16.gmra.mxu0 %v1826
    %v2539 = vpop.f32.mrf.mxu0
    %v2540 = vadd.f32 0.0, %v2539
    %v2541 = vpop.f32.mrf.mxu0
    %v2542 = vadd.f32 0.0, %v2541
    %2543 = vdwg.mxu0
    %2544 = vmatpush.bf16.msra.mxu0 %v1332
    %2545 = vmatpush.bf16.msra.mxu0 %v1329
    %2546 = vmatpush.bf16.msra.mxu0 %v1326
    %2547 = vmatpush.bf16.msra.mxu0 %v1323
    %2548 = vmatpush.bf16.msra.mxu0 %v1320
    %2549 = vmatpush.bf16.msra.mxu0 %v1317
    %2550 = vmatpush.bf16.msra.mxu0 %v1314
    %2551 = vmatpush.bf16.msra.mxu0 %v1311
    %2552 = vmatmul.bf16.gmra.mxu0 %v1826
    %v2553 = vpop.f32.mrf.mxu0
    %v2554 = vadd.f32 0.0, %v2553
    %v2555 = vpop.f32.mrf.mxu0
    %v2556 = vadd.f32 0.0, %v2555
    %2557 = vdwg.mxu0
    %2558 = vmatpush.bf16.msra.mxu0 %v1333
    %2559 = vmatpush.bf16.msra.mxu0 %v1330
    %2560 = vmatpush.bf16.msra.mxu0 %v1327
    %2561 = vmatpush.bf16.msra.mxu0 %v1324
    %2562 = vmatpush.bf16.msra.mxu0 %v1321
    %2563 = vmatpush.bf16.msra.mxu0 %v1318
    %2564 = vmatpush.bf16.msra.mxu0 %v1315
    %2565 = vmatpush.bf16.msra.mxu0 %v1312
    %2566 = vmatmul.bf16.gmra.mxu0 %v1826
    %v2567 = vpop.f32.mrf.mxu0
    %v2568 = vadd.f32 0.0, %v2567
    %v2569 = vpop.f32.mrf.mxu0
    %v2570 = vadd.f32 0.0, %v2569
    %2571 = vdwg.mxu0
    %v2572 = vadd.f32 %v2498, %v2540
    %v2573 = vadd.f32 %v2500, %v2542
    %v2574 = vxor.u32 %v2572, 2147483648
    %v2575 = vxor.u32 %v2573, 2147483648
    %v2576 = vmul.f32 %v2574, 1.442695
    %v2577 = vpow.pop %v2576
    %v2578 = vmul.f32 %v2575, 1.442695
    %v2579 = vpow.pop %v2578
    %v2580 = vadd.f32 %v2577, 1.0
    %v2581 = vadd.f32 %v2579, 1.0
    %v2582 = vrcp.pop %v2580
    %v2583 = vmul.f32 %v2580, %v2582
    %v2584 = vsub.f32 1.0, %v2583
    %v2585 = vmul.f32 %v2582, %v2584
    %v2586 = vadd.f32 %v2582, %v2585
    %vm2587 = vweird.f32 %v2580
    %vm2588 = vweird.f32 %v2582
    %vm2589 = vmor %vm2587, %vm2588
    %v2590 = vsel %vm2589, %v2582, %v2586
    %v2591 = vand.u32 2147483647, %v2580
    %vm2592 = vcmp.eq.f32.partialorder %v2591, 8.507059e+37
    %v2593 = vand.u32 %v2580, 2147483648
    %v2594 = vor.u32 1.1754944e-38, %v2593
    %v2595 = vsel %vm2592, %v2594, %v2590
    %v2596 = vmul.f32 1.0, %v2595
    %v2597 = vrcp.pop %v2581
    %v2598 = vmul.f32 %v2581, %v2597
    %v2599 = vsub.f32 1.0, %v2598
    %v2600 = vmul.f32 %v2597, %v2599
    %v2601 = vadd.f32 %v2597, %v2600
    %vm2602 = vweird.f32 %v2581
    %vm2603 = vweird.f32 %v2597
    %vm2604 = vmor %vm2602, %vm2603
    %v2605 = vsel %vm2604, %v2597, %v2601
    %v2606 = vand.u32 2147483647, %v2581
    %vm2607 = vcmp.eq.f32.partialorder %v2606, 8.507059e+37
    %v2608 = vand.u32 %v2581, 2147483648
    %v2609 = vor.u32 1.1754944e-38, %v2608
    %v2610 = vsel %vm2607, %v2609, %v2605
    %v2611 = vmul.f32 1.0, %v2610
    %v2612 = vadd.f32 %v2512, %v2554
    %v2613 = vadd.f32 %v2514, %v2556
    %v2614 = vxor.u32 %v2612, 2147483648
    %v2615 = vxor.u32 %v2613, 2147483648
    %v2616 = vmul.f32 %v2614, 1.442695
    %v2617 = vpow.pop %v2616
    %v2618 = vmul.f32 %v2615, 1.442695
    %v2619 = vpow.pop %v2618
    %v2620 = vadd.f32 %v2617, 1.0
    %v2621 = vadd.f32 %v2619, 1.0
    %v2622 = vrcp.pop %v2620
    %v2623 = vmul.f32 %v2620, %v2622
    %v2624 = vsub.f32 1.0, %v2623
    %v2625 = vmul.f32 %v2622, %v2624
    %v2626 = vadd.f32 %v2622, %v2625
    %vm2627 = vweird.f32 %v2620
    %vm2628 = vweird.f32 %v2622
    %vm2629 = vmor %vm2627, %vm2628
    %v2630 = vsel %vm2629, %v2622, %v2626
    %v2631 = vand.u32 2147483647, %v2620
    %vm2632 = vcmp.eq.f32.partialorder %v2631, 8.507059e+37
    %v2633 = vand.u32 %v2620, 2147483648
    %v2634 = vor.u32 1.1754944e-38, %v2633
    %v2635 = vsel %vm2632, %v2634, %v2630
    %v2636 = vmul.f32 1.0, %v2635
    %v2637 = vrcp.pop %v2621
    %v2638 = vmul.f32 %v2621, %v2637
    %v2639 = vsub.f32 1.0, %v2638
    %v2640 = vmul.f32 %v2637, %v2639
    %v2641 = vadd.f32 %v2637, %v2640
    %vm2642 = vweird.f32 %v2621
    %vm2643 = vweird.f32 %v2637
    %vm2644 = vmor %vm2642, %vm2643
    %v2645 = vsel %vm2644, %v2637, %v2641
    %v2646 = vand.u32 2147483647, %v2621
    %vm2647 = vcmp.eq.f32.partialorder %v2646, 8.507059e+37
    %v2648 = vand.u32 %v2621, 2147483648
    %v2649 = vor.u32 1.1754944e-38, %v2648
    %v2650 = vsel %vm2647, %v2649, %v2645
    %v2651 = vmul.f32 1.0, %v2650
    %v2652 = vadd.f32 %v2568, %v1482
    %v2653 = vadd.f32 %v2570, %v1482
    %v2654 = vmul.f32 %v2596, %v2652
    %v2655 = vmul.f32 %v2611, %v2653
    %v2656 = vadd.f32 %v2526, %v2654
    %v2657 = vadd.f32 %v2528, %v2655
    %v2658 = vtanh.pop %v2656
    %v2659 = vtanh.pop %v2657
    %v2660 = vsub.f32 1.0, %v2636
    %v2661 = vsub.f32 1.0, %v2651
    %v2662 = vmul.f32 %v2660, %v2658
    %v2663 = vmul.f32 %v2661, %v2659
    %v2664 = vmul.f32 %v2636, %v1824
    %v2665 = vmul.f32 %v2651, %v1825
    %v2666 = vadd.f32 %v2662, %v2664
    %v2667 = vadd.f32 %v2663, %v2665
    %v2668 = vpack.c.bf16 %v2667, %v2666
    %2669 = vmatpush.bf16.msra.mxu0 %v1968
    %2670 = vmatpush.bf16.msra.mxu0 %v1965
    %2671 = vmatpush.bf16.msra.mxu0 %v1962
    %2672 = vmatpush.bf16.msra.mxu0 %v1959
    %2673 = vmatpush.bf16.msra.mxu0 %v1956
    %2674 = vmatpush.bf16.msra.mxu0 %v1953
    %2675 = vmatpush.bf16.msra.mxu0 %v1950
    %2676 = vmatpush.bf16.msra.mxu0 %v1947
    %2677 = vmatmul.bf16.gmra.mxu0 %v1826
    %v2678 = vpop.f32.mrf.mxu0
    %v2679 = vadd.f32 %v1861, %v2678
    %v2680 = vpop.f32.mrf.mxu0
    %v2681 = vadd.f32 %v1861, %v2680
    %2682 = vdwg.mxu0
    %2683 = vmatpush.bf16.msra.mxu0 %v1969
    %2684 = vmatpush.bf16.msra.mxu0 %v1966
    %2685 = vmatpush.bf16.msra.mxu0 %v1963
    %2686 = vmatpush.bf16.msra.mxu0 %v1960
    %2687 = vmatpush.bf16.msra.mxu0 %v1957
    %2688 = vmatpush.bf16.msra.mxu0 %v1954
    %2689 = vmatpush.bf16.msra.mxu0 %v1951
    %2690 = vmatpush.bf16.msra.mxu0 %v1948
    %2691 = vmatmul.bf16.gmra.mxu0 %v1826
    %v2692 = vpop.f32.mrf.mxu0
    %v2693 = vadd.f32 %v1862, %v2692
    %v2694 = vpop.f32.mrf.mxu0
    %v2695 = vadd.f32 %v1862, %v2694
    %2696 = vdwg.mxu0
    %2697 = vmatpush.bf16.msra.mxu0 %v1970
    %2698 = vmatpush.bf16.msra.mxu0 %v1967
    %2699 = vmatpush.bf16.msra.mxu0 %v1964
    %2700 = vmatpush.bf16.msra.mxu0 %v1961
    %2701 = vmatpush.bf16.msra.mxu0 %v1958
    %2702 = vmatpush.bf16.msra.mxu0 %v1955
    %2703 = vmatpush.bf16.msra.mxu0 %v1952
    %2704 = vmatpush.bf16.msra.mxu0 %v1949
    %2705 = vmatmul.bf16.gmra.mxu0 %v1826
    %v2706 = vpop.f32.mrf.mxu0
    %v2707 = vadd.f32 %v1863, %v2706
    %v2708 = vpop.f32.mrf.mxu0
    %v2709 = vadd.f32 %v1863, %v2708
    %2710 = vdwg.mxu0
    %2711 = vmatpush.bf16.msra.mxu0 %v2170
    %2712 = vmatpush.bf16.msra.mxu0 %v2167
    %2713 = vmatpush.bf16.msra.mxu0 %v2164
    %2714 = vmatpush.bf16.msra.mxu0 %v2161
    %2715 = vmatpush.bf16.msra.mxu0 %v2158
    %2716 = vmatpush.bf16.msra.mxu0 %v2155
    %2717 = vmatpush.bf16.msra.mxu0 %v2152
    %2718 = vmatpush.bf16.msra.mxu0 %v2149
    %2719 = vmatmul.bf16.gmra.mxu0 %v2339
    %v2720 = vpop.f32.mrf.mxu0
    %v2721 = vadd.f32 0.0, %v2720
    %v2722 = vpop.f32.mrf.mxu0
    %v2723 = vadd.f32 0.0, %v2722
    %2724 = vdwg.mxu0
    %2725 = vmatpush.bf16.msra.mxu0 %v2171
    %2726 = vmatpush.bf16.msra.mxu0 %v2168
    %2727 = vmatpush.bf16.msra.mxu0 %v2165
    %2728 = vmatpush.bf16.msra.mxu0 %v2162
    %2729 = vmatpush.bf16.msra.mxu0 %v2159
    %2730 = vmatpush.bf16.msra.mxu0 %v2156
    %2731 = vmatpush.bf16.msra.mxu0 %v2153
    %2732 = vmatpush.bf16.msra.mxu0 %v2150
    %2733 = vmatmul.bf16.gmra.mxu0 %v2339
    %v2734 = vpop.f32.mrf.mxu0
    %v2735 = vadd.f32 0.0, %v2734
    %v2736 = vpop.f32.mrf.mxu0
    %v2737 = vadd.f32 0.0, %v2736
    %2738 = vdwg.mxu0
    %2739 = vmatpush.bf16.msra.mxu0 %v2172
    %2740 = vmatpush.bf16.msra.mxu0 %v2169
    %2741 = vmatpush.bf16.msra.mxu0 %v2166
    %2742 = vmatpush.bf16.msra.mxu0 %v2163
    %2743 = vmatpush.bf16.msra.mxu0 %v2160
    %2744 = vmatpush.bf16.msra.mxu0 %v2157
    %2745 = vmatpush.bf16.msra.mxu0 %v2154
    %2746 = vmatpush.bf16.msra.mxu0 %v2151
    %2747 = vmatmul.bf16.gmra.mxu0 %v2339
    %v2748 = vpop.f32.mrf.mxu0
    %v2749 = vadd.f32 0.0, %v2748
    %v2750 = vpop.f32.mrf.mxu0
    %v2751 = vadd.f32 0.0, %v2750
    %2752 = vdwg.mxu0
    %v2753 = vadd.f32 %v2679, %v2721
    %v2754 = vadd.f32 %v2681, %v2723
    %v2755 = vxor.u32 %v2753, 2147483648
    %v2756 = vxor.u32 %v2754, 2147483648
    %v2757 = vmul.f32 %v2755, 1.442695
    %v2758 = vpow.pop %v2757
    %v2759 = vmul.f32 %v2756, 1.442695
    %v2760 = vpow.pop %v2759
    %v2761 = vadd.f32 %v2758, 1.0
    %v2762 = vadd.f32 %v2760, 1.0
    %v2763 = vrcp.pop %v2761
    %v2764 = vmul.f32 %v2761, %v2763
    %v2765 = vsub.f32 1.0, %v2764
    %v2766 = vmul.f32 %v2763, %v2765
    %v2767 = vadd.f32 %v2763, %v2766
    %vm2768 = vweird.f32 %v2761
    %vm2769 = vweird.f32 %v2763
    %vm2770 = vmor %vm2768, %vm2769
    %v2771 = vsel %vm2770, %v2763, %v2767
    %v2772 = vand.u32 2147483647, %v2761
    %vm2773 = vcmp.eq.f32.partialorder %v2772, 8.507059e+37
    %v2774 = vand.u32 %v2761, 2147483648
    %v2775 = vor.u32 1.1754944e-38, %v2774
    %v2776 = vsel %vm2773, %v2775, %v2771
    %v2777 = vmul.f32 1.0, %v2776
    %v2778 = vrcp.pop %v2762
    %v2779 = vmul.f32 %v2762, %v2778
    %v2780 = vsub.f32 1.0, %v2779
    %v2781 = vmul.f32 %v2778, %v2780
    %v2782 = vadd.f32 %v2778, %v2781
    %vm2783 = vweird.f32 %v2762
    %vm2784 = vweird.f32 %v2778
    %vm2785 = vmor %vm2783, %vm2784
    %v2786 = vsel %vm2785, %v2778, %v2782
    %v2787 = vand.u32 2147483647, %v2762
    %vm2788 = vcmp.eq.f32.partialorder %v2787, 8.507059e+37
    %v2789 = vand.u32 %v2762, 2147483648
    %v2790 = vor.u32 1.1754944e-38, %v2789
    %v2791 = vsel %vm2788, %v2790, %v2786
    %v2792 = vmul.f32 1.0, %v2791
    %v2793 = vadd.f32 %v2693, %v2735
    %v2794 = vadd.f32 %v2695, %v2737
    %v2795 = vxor.u32 %v2793, 2147483648
    %v2796 = vxor.u32 %v2794, 2147483648
    %v2797 = vmul.f32 %v2795, 1.442695
    %v2798 = vpow.pop %v2797
    %v2799 = vmul.f32 %v2796, 1.442695
    %v2800 = vpow.pop %v2799
    %v2801 = vadd.f32 %v2798, 1.0
    %v2802 = vadd.f32 %v2800, 1.0
    %v2803 = vrcp.pop %v2801
    %v2804 = vmul.f32 %v2801, %v2803
    %v2805 = vsub.f32 1.0, %v2804
    %v2806 = vmul.f32 %v2803, %v2805
    %v2807 = vadd.f32 %v2803, %v2806
    %vm2808 = vweird.f32 %v2801
    %vm2809 = vweird.f32 %v2803
    %vm2810 = vmor %vm2808, %vm2809
    %v2811 = vsel %vm2810, %v2803, %v2807
    %v2812 = vand.u32 2147483647, %v2801
    %vm2813 = vcmp.eq.f32.partialorder %v2812, 8.507059e+37
    %v2814 = vand.u32 %v2801, 2147483648
    %v2815 = vor.u32 1.1754944e-38, %v2814
    %v2816 = vsel %vm2813, %v2815, %v2811
    %v2817 = vmul.f32 1.0, %v2816
    %v2818 = vrcp.pop %v2802
    %v2819 = vmul.f32 %v2802, %v2818
    %v2820 = vsub.f32 1.0, %v2819
    %v2821 = vmul.f32 %v2818, %v2820
    %v2822 = vadd.f32 %v2818, %v2821
    %vm2823 = vweird.f32 %v2802
    %vm2824 = vweird.f32 %v2818
    %vm2825 = vmor %vm2823, %vm2824
    %v2826 = vsel %vm2825, %v2818, %v2822
    %v2827 = vand.u32 2147483647, %v2802
    %vm2828 = vcmp.eq.f32.partialorder %v2827, 8.507059e+37
    %v2829 = vand.u32 %v2802, 2147483648
    %v2830 = vor.u32 1.1754944e-38, %v2829
    %v2831 = vsel %vm2828, %v2830, %v2826
    %v2832 = vmul.f32 1.0, %v2831
    %v2833 = vadd.f32 %v2749, %v2321
    %v2834 = vadd.f32 %v2751, %v2321
    %v2835 = vmul.f32 %v2777, %v2833
    %v2836 = vmul.f32 %v2792, %v2834
    %v2837 = vadd.f32 %v2707, %v2835
    %v2838 = vadd.f32 %v2709, %v2836
    %v2839 = vtanh.pop %v2837
    %v2840 = vtanh.pop %v2838
    %v2841 = vsub.f32 1.0, %v2817
    %v2842 = vsub.f32 1.0, %v2832
    %v2843 = vmul.f32 %v2841, %v2839
    %v2844 = vmul.f32 %v2842, %v2840
    %v2845 = vmul.f32 %v2817, %v2337
    %v2846 = vmul.f32 %v2832, %v2338
    %v2847 = vadd.f32 %v2843, %v2845
    %v2848 = vadd.f32 %v2844, %v2846
    %v2849 = vpack.c.bf16 %v2848, %v2847
    %v2850 = vld [vmem:[#allocation15] sm:$0xff]
    %v2851 = vld [vmem:[#allocation15 + $0x8] sm:$0xf]
    %v2852 = vld [vmem:[#allocation15 + $0xc] sm:$0xff]
    %v2853 = vld [vmem:[#allocation15 + $0x14] sm:$0xf]
    %v2854 = vld [vmem:[#allocation15 + $0x18] sm:$0xff]
    %v2855 = vld [vmem:[#allocation15 + $0x20] sm:$0xf]
    %v2856 = vld [vmem:[#allocation15 + $0x24] sm:$0xff]
    %v2857 = vld [vmem:[#allocation15 + $0x2c] sm:$0xf]
    %v2858 = vld [vmem:[#allocation15 + $0x30] sm:$0xff]
    %v2859 = vld [vmem:[#allocation15 + $0x38] sm:$0xf]
    %v2860 = vld [vmem:[#allocation15 + $0x3c] sm:$0xff]
    %v2861 = vld [vmem:[#allocation15 + $0x44] sm:$0xf]
    %v2862 = vld [vmem:[#allocation15 + $0x48] sm:$0xff]
    %v2863 = vld [vmem:[#allocation15 + $0x50] sm:$0xf]
    %v2864 = vld [vmem:[#allocation15 + $0x54] sm:$0xff]
    %v2865 = vld [vmem:[#allocation15 + $0x5c] sm:$0xf]
    %v2866 = vld [vmem:[#allocation15 + $0x60] sm:$0xff]
    %v2867 = vld [vmem:[#allocation15 + $0x68] sm:$0xf]
    %v2868 = vld [vmem:[#allocation15 + $0x6c] sm:$0xff]
    %v2869 = vld [vmem:[#allocation15 + $0x74] sm:$0xf]
    %v2870 = vld [vmem:[#allocation15 + $0x78] sm:$0xff]
    %v2871 = vld [vmem:[#allocation15 + $0x80] sm:$0xf]
    %v2872 = vld [vmem:[#allocation15 + $0x84] sm:$0xff]
    %v2873 = vld [vmem:[#allocation15 + $0x8c] sm:$0xf]
    %v2874 = vld [vmem:[#allocation15 + $0x90] sm:$0xff]
    %v2875 = vld [vmem:[#allocation15 + $0x98] sm:$0xf]
    %v2876 = vld [vmem:[#allocation15 + $0x9c] sm:$0xff]
    %v2877 = vld [vmem:[#allocation15 + $0xa4] sm:$0xf]
    %v2878 = vld [vmem:[#allocation15 + $0xa8] sm:$0xff]
    %v2879 = vld [vmem:[#allocation15 + $0xb0] sm:$0xf]
    %v2880 = vld [vmem:[#allocation15 + $0xb4] sm:$0xff]
    %v2881 = vld [vmem:[#allocation15 + $0xbc] sm:$0xf]
    %v2882 = vld [vmem:[#allocation18] sm:$0x7]
    %v2884 = vperm.slane %v2882, 0
    %v2885 = vperm.slane %v2882, 1
    %v2886 = vperm.slane %v2882, 2
    %v2922 = vunpack.c.l.b16 %v2850
    %v2923 = vunpack.c.h.b16 %v2850
    %v2924 = vunpack.c.l.b16 %v2851
    %v2925 = vunpack.c.l.b16 %v2852
    %v2926 = vunpack.c.h.b16 %v2852
    %v2927 = vunpack.c.l.b16 %v2853
    %v2928 = vunpack.c.l.b16 %v2854
    %v2929 = vunpack.c.h.b16 %v2854
    %v2930 = vunpack.c.l.b16 %v2855
    %v2931 = vunpack.c.l.b16 %v2856
    %v2932 = vunpack.c.h.b16 %v2856
    %v2933 = vunpack.c.l.b16 %v2857
    %v2934 = vunpack.c.l.b16 %v2858
    %v2935 = vunpack.c.h.b16 %v2858
    %v2936 = vunpack.c.l.b16 %v2859
    %v2937 = vunpack.c.l.b16 %v2860
    %v2938 = vunpack.c.h.b16 %v2860
    %v2939 = vunpack.c.l.b16 %v2861
    %v2940 = vunpack.c.l.b16 %v2862
    %v2941 = vunpack.c.h.b16 %v2862
    %v2942 = vunpack.c.l.b16 %v2863
    %v2943 = vunpack.c.l.b16 %v2864
    %v2944 = vunpack.c.h.b16 %v2864
    %v2945 = vunpack.c.l.b16 %v2865
    %v2946 = vunpack.c.l.b16 %v2866
    %v2947 = vunpack.c.h.b16 %v2866
    %v2948 = vunpack.c.l.b16 %v2867
    %v2949 = vunpack.c.l.b16 %v2868
    %v2950 = vunpack.c.h.b16 %v2868
    %v2951 = vunpack.c.l.b16 %v2869
    %v2952 = vunpack.c.l.b16 %v2870
    %v2953 = vunpack.c.h.b16 %v2870
    %v2954 = vunpack.c.l.b16 %v2871
    %v2955 = vunpack.c.l.b16 %v2872
    %v2956 = vunpack.c.h.b16 %v2872
    %v2957 = vunpack.c.l.b16 %v2873
    %v2958 = vunpack.c.l.b16 %v2874
    %v2959 = vunpack.c.h.b16 %v2874
    %v2960 = vunpack.c.l.b16 %v2875
    %v2961 = vunpack.c.l.b16 %v2876
    %v2962 = vunpack.c.h.b16 %v2876
    %v2963 = vunpack.c.l.b16 %v2877
    %v2964 = vunpack.c.l.b16 %v2878
    %v2965 = vunpack.c.h.b16 %v2878
    %v2966 = vunpack.c.l.b16 %v2879
    %v2967 = vunpack.c.l.b16 %v2880
    %v2968 = vunpack.c.h.b16 %v2880
    %v2969 = vunpack.c.l.b16 %v2881
    %v2970 = vpack.c.b16 %v2925, %v2922
    %v2971 = vpack.c.b16 %v2926, %v2923
    %v2972 = vpack.c.b16 %v2927, %v2924
    %v2973 = vpack.c.b16 %v2931, %v2928
    %v2974 = vpack.c.b16 %v2932, %v2929
    %v2975 = vpack.c.b16 %v2933, %v2930
    %v2976 = vpack.c.b16 %v2937, %v2934
    %v2977 = vpack.c.b16 %v2938, %v2935
    %v2978 = vpack.c.b16 %v2939, %v2936
    %v2979 = vpack.c.b16 %v2943, %v2940
    %v2980 = vpack.c.b16 %v2944, %v2941
    %v2981 = vpack.c.b16 %v2945, %v2942
    %v2982 = vpack.c.b16 %v2949, %v2946
    %v2983 = vpack.c.b16 %v2950, %v2947
    %v2984 = vpack.c.b16 %v2951, %v2948
    %v2985 = vpack.c.b16 %v2955, %v2952
    %v2986 = vpack.c.b16 %v2956, %v2953
    %v2987 = vpack.c.b16 %v2957, %v2954
    %v2988 = vpack.c.b16 %v2961, %v2958
    %v2989 = vpack.c.b16 %v2962, %v2959
    %v2990 = vpack.c.b16 %v2963, %v2960
    %v2991 = vpack.c.b16 %v2967, %v2964
    %v2992 = vpack.c.b16 %v2968, %v2965
    %v2993 = vpack.c.b16 %v2969, %v2966
    %3018 = vmatpush.bf16.msra.mxu0 %v2991
    %3019 = vmatpush.bf16.msra.mxu0 %v2988
    %3020 = vmatpush.bf16.msra.mxu0 %v2985
    %3021 = vmatpush.bf16.msra.mxu0 %v2982
    %3022 = vmatpush.bf16.msra.mxu0 %v2979
    %3023 = vmatpush.bf16.msra.mxu0 %v2976
    %3024 = vmatpush.bf16.msra.mxu0 %v2973
    %3025 = vmatpush.bf16.msra.mxu0 %v2970
    %3026 = vmatmul.bf16.gmra.mxu0 %v2339
    %v3027 = vpop.f32.mrf.mxu0
    %v3028 = vadd.f32 %v2884, %v3027
    %v3029 = vpop.f32.mrf.mxu0
    %v3030 = vadd.f32 %v2884, %v3029
    %3031 = vdwg.mxu0
    %3032 = vmatpush.bf16.msra.mxu0 %v2992
    %3033 = vmatpush.bf16.msra.mxu0 %v2989
    %3034 = vmatpush.bf16.msra.mxu0 %v2986
    %3035 = vmatpush.bf16.msra.mxu0 %v2983
    %3036 = vmatpush.bf16.msra.mxu0 %v2980
    %3037 = vmatpush.bf16.msra.mxu0 %v2977
    %3038 = vmatpush.bf16.msra.mxu0 %v2974
    %3039 = vmatpush.bf16.msra.mxu0 %v2971
    %3040 = vmatmul.bf16.gmra.mxu0 %v2339
    %v3041 = vpop.f32.mrf.mxu0
    %v3042 = vadd.f32 %v2885, %v3041
    %v3043 = vpop.f32.mrf.mxu0
    %v3044 = vadd.f32 %v2885, %v3043
    %3045 = vdwg.mxu0
    %3046 = vmatpush.bf16.msra.mxu0 %v2993
    %3047 = vmatpush.bf16.msra.mxu0 %v2990
    %3048 = vmatpush.bf16.msra.mxu0 %v2987
    %3049 = vmatpush.bf16.msra.mxu0 %v2984
    %3050 = vmatpush.bf16.msra.mxu0 %v2981
    %3051 = vmatpush.bf16.msra.mxu0 %v2978
    %3052 = vmatpush.bf16.msra.mxu0 %v2975
    %3053 = vmatpush.bf16.msra.mxu0 %v2972
    %3054 = vmatmul.bf16.gmra.mxu0 %v2339
    %v3055 = vpop.f32.mrf.mxu0
    %v3056 = vadd.f32 %v2886, %v3055
    %v3057 = vpop.f32.mrf.mxu0
    %v3058 = vadd.f32 %v2886, %v3057
    %3059 = vdwg.mxu0
    %v3060 = vld [vmem:[#allocation17] sm:$0xff]
    %v3061 = vld [vmem:[#allocation17 + $0x8] sm:$0xf]
    %v3062 = vld [vmem:[#allocation17 + $0xc] sm:$0xff]
    %v3063 = vld [vmem:[#allocation17 + $0x14] sm:$0xf]
    %v3064 = vld [vmem:[#allocation17 + $0x18] sm:$0xff]
    %v3065 = vld [vmem:[#allocation17 + $0x20] sm:$0xf]
    %v3066 = vld [vmem:[#allocation17 + $0x24] sm:$0xff]
    %v3067 = vld [vmem:[#allocation17 + $0x2c] sm:$0xf]
    %v3068 = vld [vmem:[#allocation17 + $0x30] sm:$0xff]
    %v3069 = vld [vmem:[#allocation17 + $0x38] sm:$0xf]
    %v3070 = vld [vmem:[#allocation17 + $0x3c] sm:$0xff]
    %v3071 = vld [vmem:[#allocation17 + $0x44] sm:$0xf]
    %v3072 = vld [vmem:[#allocation17 + $0x48] sm:$0xff]
    %v3073 = vld [vmem:[#allocation17 + $0x50] sm:$0xf]
    %v3074 = vld [vmem:[#allocation17 + $0x54] sm:$0xff]
    %v3075 = vld [vmem:[#allocation17 + $0x5c] sm:$0xf]
    %v3076 = vld [vmem:[#allocation17 + $0x60] sm:$0xff]
    %v3077 = vld [vmem:[#allocation17 + $0x68] sm:$0xf]
    %v3078 = vld [vmem:[#allocation17 + $0x6c] sm:$0xff]
    %v3079 = vld [vmem:[#allocation17 + $0x74] sm:$0xf]
    %v3080 = vld [vmem:[#allocation17 + $0x78] sm:$0xff]
    %v3081 = vld [vmem:[#allocation17 + $0x80] sm:$0xf]
    %v3082 = vld [vmem:[#allocation17 + $0x84] sm:$0xff]
    %v3083 = vld [vmem:[#allocation17 + $0x8c] sm:$0xf]
    %v3084 = vld [vmem:[#allocation17 + $0x90] sm:$0xff]
    %v3085 = vld [vmem:[#allocation17 + $0x98] sm:$0xf]
    %v3086 = vld [vmem:[#allocation17 + $0x9c] sm:$0xff]
    %v3087 = vld [vmem:[#allocation17 + $0xa4] sm:$0xf]
    %v3088 = vld [vmem:[#allocation17 + $0xa8] sm:$0xff]
    %v3089 = vld [vmem:[#allocation17 + $0xb0] sm:$0xf]
    %v3090 = vld [vmem:[#allocation17 + $0xb4] sm:$0xff]
    %v3091 = vld [vmem:[#allocation17 + $0xbc] sm:$0xf]
    %v3124 = vunpack.c.l.b16 %v3060
    %v3125 = vunpack.c.h.b16 %v3060
    %v3126 = vunpack.c.l.b16 %v3061
    %v3127 = vunpack.c.l.b16 %v3062
    %v3128 = vunpack.c.h.b16 %v3062
    %v3129 = vunpack.c.l.b16 %v3063
    %v3130 = vunpack.c.l.b16 %v3064
    %v3131 = vunpack.c.h.b16 %v3064
    %v3132 = vunpack.c.l.b16 %v3065
    %v3133 = vunpack.c.l.b16 %v3066
    %v3134 = vunpack.c.h.b16 %v3066
    %v3135 = vunpack.c.l.b16 %v3067
    %v3136 = vunpack.c.l.b16 %v3068
    %v3137 = vunpack.c.h.b16 %v3068
    %v3138 = vunpack.c.l.b16 %v3069
    %v3139 = vunpack.c.l.b16 %v3070
    %v3140 = vunpack.c.h.b16 %v3070
    %v3141 = vunpack.c.l.b16 %v3071
    %v3142 = vunpack.c.l.b16 %v3072
    %v3143 = vunpack.c.h.b16 %v3072
    %v3144 = vunpack.c.l.b16 %v3073
    %v3145 = vunpack.c.l.b16 %v3074
    %v3146 = vunpack.c.h.b16 %v3074
    %v3147 = vunpack.c.l.b16 %v3075
    %v3148 = vunpack.c.l.b16 %v3076
    %v3149 = vunpack.c.h.b16 %v3076
    %v3150 = vunpack.c.l.b16 %v3077
    %v3151 = vunpack.c.l.b16 %v3078
    %v3152 = vunpack.c.h.b16 %v3078
    %v3153 = vunpack.c.l.b16 %v3079
    %v3154 = vunpack.c.l.b16 %v3080
    %v3155 = vunpack.c.h.b16 %v3080
    %v3156 = vunpack.c.l.b16 %v3081
    %v3157 = vunpack.c.l.b16 %v3082
    %v3158 = vunpack.c.h.b16 %v3082
    %v3159 = vunpack.c.l.b16 %v3083
    %v3160 = vunpack.c.l.b16 %v3084
    %v3161 = vunpack.c.h.b16 %v3084
    %v3162 = vunpack.c.l.b16 %v3085
    %v3163 = vunpack.c.l.b16 %v3086
    %v3164 = vunpack.c.h.b16 %v3086
    %v3165 = vunpack.c.l.b16 %v3087
    %v3166 = vunpack.c.l.b16 %v3088
    %v3167 = vunpack.c.h.b16 %v3088
    %v3168 = vunpack.c.l.b16 %v3089
    %v3169 = vunpack.c.l.b16 %v3090
    %v3170 = vunpack.c.h.b16 %v3090
    %v3171 = vunpack.c.l.b16 %v3091
    %v3172 = vpack.c.b16 %v3127, %v3124
    %v3173 = vpack.c.b16 %v3128, %v3125
    %v3174 = vpack.c.b16 %v3129, %v3126
    %v3175 = vpack.c.b16 %v3133, %v3130
    %v3176 = vpack.c.b16 %v3134, %v3131
    %v3177 = vpack.c.b16 %v3135, %v3132
    %v3178 = vpack.c.b16 %v3139, %v3136
    %v3179 = vpack.c.b16 %v3140, %v3137
    %v3180 = vpack.c.b16 %v3141, %v3138
    %v3181 = vpack.c.b16 %v3145, %v3142
    %v3182 = vpack.c.b16 %v3146, %v3143
    %v3183 = vpack.c.b16 %v3147, %v3144
    %v3184 = vpack.c.b16 %v3151, %v3148
    %v3185 = vpack.c.b16 %v3152, %v3149
    %v3186 = vpack.c.b16 %v3153, %v3150
    %v3187 = vpack.c.b16 %v3157, %v3154
    %v3188 = vpack.c.b16 %v3158, %v3155
    %v3189 = vpack.c.b16 %v3159, %v3156
    %v3190 = vpack.c.b16 %v3163, %v3160
    %v3191 = vpack.c.b16 %v3164, %v3161
    %v3192 = vpack.c.b16 %v3165, %v3162
    %v3193 = vpack.c.b16 %v3169, %v3166
    %v3194 = vpack.c.b16 %v3170, %v3167
    %v3195 = vpack.c.b16 %v3171, %v3168
    %3220 = vmatpush.bf16.msra.mxu0 %v3193
    %3221 = vmatpush.bf16.msra.mxu0 %v3190
    %3222 = vmatpush.bf16.msra.mxu0 %v3187
    %3223 = vmatpush.bf16.msra.mxu0 %v3184
    %3224 = vmatpush.bf16.msra.mxu0 %v3181
    %3225 = vmatpush.bf16.msra.mxu0 %v3178
    %3226 = vmatpush.bf16.msra.mxu0 %v3175
    %3227 = vmatpush.bf16.msra.mxu0 %v3172
    %3228 = vmatmul.bf16.gmra.mxu0 0
    %v3229 = vpop.f32.mrf.mxu0
    %v3230 = vadd.f32 0.0, %v3229
    %v3231 = vpop.f32.mrf.mxu0
    %v3232 = vadd.f32 0.0, %v3231
    %3233 = vdwg.mxu0
    %3234 = vmatpush.bf16.msra.mxu0 %v3194
    %3235 = vmatpush.bf16.msra.mxu0 %v3191
    %3236 = vmatpush.bf16.msra.mxu0 %v3188
    %3237 = vmatpush.bf16.msra.mxu0 %v3185
    %3238 = vmatpush.bf16.msra.mxu0 %v3182
    %3239 = vmatpush.bf16.msra.mxu0 %v3179
    %3240 = vmatpush.bf16.msra.mxu0 %v3176
    %3241 = vmatpush.bf16.msra.mxu0 %v3173
    %3242 = vmatmul.bf16.gmra.mxu0 0
    %v3243 = vpop.f32.mrf.mxu0
    %v3244 = vadd.f32 0.0, %v3243
    %v3245 = vpop.f32.mrf.mxu0
    %v3246 = vadd.f32 0.0, %v3245
    %3247 = vdwg.mxu0
    %3248 = vmatpush.bf16.msra.mxu0 %v3195
    %3249 = vmatpush.bf16.msra.mxu0 %v3192
    %3250 = vmatpush.bf16.msra.mxu0 %v3189
    %3251 = vmatpush.bf16.msra.mxu0 %v3186
    %3252 = vmatpush.bf16.msra.mxu0 %v3183
    %3253 = vmatpush.bf16.msra.mxu0 %v3180
    %3254 = vmatpush.bf16.msra.mxu0 %v3177
    %3255 = vmatpush.bf16.msra.mxu0 %v3174
    %3256 = vmatmul.bf16.gmra.mxu0 0
    %v3257 = vpop.f32.mrf.mxu0
    %v3258 = vadd.f32 0.0, %v3257
    %v3259 = vpop.f32.mrf.mxu0
    %v3260 = vadd.f32 0.0, %v3259
    %3261 = vdwg.mxu0
    %v3262 = vadd.f32 %v3028, %v3230
    %v3263 = vadd.f32 %v3030, %v3232
    %v3264 = vxor.u32 %v3262, 2147483648
    %v3265 = vxor.u32 %v3263, 2147483648
    %v3266 = vmul.f32 %v3264, 1.442695
    %v3267 = vpow.pop %v3266
    %v3268 = vmul.f32 %v3265, 1.442695
    %v3269 = vpow.pop %v3268
    %v3270 = vadd.f32 %v3267, 1.0
    %v3271 = vadd.f32 %v3269, 1.0
    %v3272 = vrcp.pop %v3270
    %v3273 = vmul.f32 %v3270, %v3272
    %v3274 = vsub.f32 1.0, %v3273
    %v3275 = vmul.f32 %v3272, %v3274
    %v3276 = vadd.f32 %v3272, %v3275
    %vm3277 = vweird.f32 %v3270
    %vm3278 = vweird.f32 %v3272
    %vm3279 = vmor %vm3277, %vm3278
    %v3280 = vsel %vm3279, %v3272, %v3276
    %v3281 = vand.u32 2147483647, %v3270
    %vm3282 = vcmp.eq.f32.partialorder %v3281, 8.507059e+37
    %v3283 = vand.u32 %v3270, 2147483648
    %v3284 = vor.u32 1.1754944e-38, %v3283
    %v3285 = vsel %vm3282, %v3284, %v3280
    %v3286 = vmul.f32 1.0, %v3285
    %v3287 = vrcp.pop %v3271
    %v3288 = vmul.f32 %v3271, %v3287
    %v3289 = vsub.f32 1.0, %v3288
    %v3290 = vmul.f32 %v3287, %v3289
    %v3291 = vadd.f32 %v3287, %v3290
    %vm3292 = vweird.f32 %v3271
    %vm3293 = vweird.f32 %v3287
    %vm3294 = vmor %vm3292, %vm3293
    %v3295 = vsel %vm3294, %v3287, %v3291
    %v3296 = vand.u32 2147483647, %v3271
    %vm3297 = vcmp.eq.f32.partialorder %v3296, 8.507059e+37
    %v3298 = vand.u32 %v3271, 2147483648
    %v3299 = vor.u32 1.1754944e-38, %v3298
    %v3300 = vsel %vm3297, %v3299, %v3295
    %v3301 = vmul.f32 1.0, %v3300
    %v3302 = vadd.f32 %v3042, %v3244
    %v3303 = vadd.f32 %v3044, %v3246
    %v3304 = vxor.u32 %v3302, 2147483648
    %v3305 = vxor.u32 %v3303, 2147483648
    %v3306 = vmul.f32 %v3304, 1.442695
    %v3307 = vpow.pop %v3306
    %v3308 = vmul.f32 %v3305, 1.442695
    %v3309 = vpow.pop %v3308
    %v3310 = vadd.f32 %v3307, 1.0
    %v3311 = vadd.f32 %v3309, 1.0
    %v3312 = vrcp.pop %v3310
    %v3313 = vmul.f32 %v3310, %v3312
    %v3314 = vsub.f32 1.0, %v3313
    %v3315 = vmul.f32 %v3312, %v3314
    %v3316 = vadd.f32 %v3312, %v3315
    %vm3317 = vweird.f32 %v3310
    %vm3318 = vweird.f32 %v3312
    %vm3319 = vmor %vm3317, %vm3318
    %v3320 = vsel %vm3319, %v3312, %v3316
    %v3321 = vand.u32 2147483647, %v3310
    %vm3322 = vcmp.eq.f32.partialorder %v3321, 8.507059e+37
    %v3323 = vand.u32 %v3310, 2147483648
    %v3324 = vor.u32 1.1754944e-38, %v3323
    %v3325 = vsel %vm3322, %v3324, %v3320
    %v3326 = vmul.f32 1.0, %v3325
    %v3327 = vrcp.pop %v3311
    %v3328 = vmul.f32 %v3311, %v3327
    %v3329 = vsub.f32 1.0, %v3328
    %v3330 = vmul.f32 %v3327, %v3329
    %v3331 = vadd.f32 %v3327, %v3330
    %vm3332 = vweird.f32 %v3311
    %vm3333 = vweird.f32 %v3327
    %vm3334 = vmor %vm3332, %vm3333
    %v3335 = vsel %vm3334, %v3327, %v3331
    %v3336 = vand.u32 2147483647, %v3311
    %vm3337 = vcmp.eq.f32.partialorder %v3336, 8.507059e+37
    %v3338 = vand.u32 %v3311, 2147483648
    %v3339 = vor.u32 1.1754944e-38, %v3338
    %v3340 = vsel %vm3337, %v3339, %v3335
    %v3341 = vmul.f32 1.0, %v3340
    %v3342 = vld [vmem:[#allocation20] sm:$0x1]
    %v3344 = vperm.slane %v3342, 0
    %v3346 = vadd.f32 %v3258, %v3344
    %v3347 = vadd.f32 %v3260, %v3344
    %v3348 = vmul.f32 %v3286, %v3346
    %v3349 = vmul.f32 %v3301, %v3347
    %v3350 = vadd.f32 %v3056, %v3348
    %v3351 = vadd.f32 %v3058, %v3349
    %v3352 = vtanh.pop %v3350
    %v3353 = vtanh.pop %v3351
    %v3354 = vsub.f32 1.0, %v3326
    %v3355 = vsub.f32 1.0, %v3341
    %v3356 = vmul.f32 %v3354, %v3352
    %v3357 = vmul.f32 %v3355, %v3353
    %v3358 = vmul.f32 %v3326, 0.0
    %v3359 = vmul.f32 %v3341, 0.0
    %v3360 = vadd.f32 %v3356, %v3358
    %v3361 = vadd.f32 %v3357, %v3359
    %s3362 = smul.u32 8, 3
    %s3363 = smul.addr %s3362, 8
    %s3364 = scalar_lea.vmem [#allocation2], %s3363
    %v3365 = vld [vmem:[%s3364] sm:$0xff]
    %v3366 = vld [vmem:[%s3364 + $0x8] sm:$0xff]
    %v3367 = vld [vmem:[%s3364 + $0x10] sm:$0xff]
    %v3368 = vld [vmem:[%s3364 + $0x18] sm:$0xff]
    %v3369 = vld [vmem:[%s3364 + $0x20] sm:$0xff]
    %v3370 = vld [vmem:[%s3364 + $0x28] sm:$0xff]
    %3371 = vmatpush.bf16.msra.mxu0 %v673
    %3372 = vmatpush.bf16.msra.mxu0 %v670
    %3373 = vmatpush.bf16.msra.mxu0 %v667
    %3374 = vmatpush.bf16.msra.mxu0 %v664
    %3375 = vmatpush.bf16.msra.mxu0 %v661
    %3376 = vmatpush.bf16.msra.mxu0 %v658
    %3377 = vmatpush.bf16.msra.mxu0 %v655
    %3378 = vmatpush.bf16.msra.mxu0 %v652
    %3379 = vmatmul.bf16.gmra.mxu0 %v2487
    %v3380 = vpop.f32.mrf.mxu0
    %v3381 = vadd.f32 0.0, %v3380
    %v3382 = vpop.f32.mrf.mxu0
    %v3383 = vadd.f32 0.0, %v3382
    %3384 = vdwg.mxu0
    %3385 = vmatpush.bf16.msra.mxu0 %v674
    %3386 = vmatpush.bf16.msra.mxu0 %v671
    %3387 = vmatpush.bf16.msra.mxu0 %v668
    %3388 = vmatpush.bf16.msra.mxu0 %v665
    %3389 = vmatpush.bf16.msra.mxu0 %v662
    %3390 = vmatpush.bf16.msra.mxu0 %v659
    %3391 = vmatpush.bf16.msra.mxu0 %v656
    %3392 = vmatpush.bf16.msra.mxu0 %v653
    %3393 = vmatmul.bf16.gmra.mxu0 %v2487
    %v3394 = vpop.f32.mrf.mxu0
    %v3395 = vadd.f32 0.0, %v3394
    %v3396 = vpop.f32.mrf.mxu0
    %v3397 = vadd.f32 0.0, %v3396
    %3398 = vdwg.mxu0
    %3399 = vmatpush.bf16.msra.mxu0 %v675
    %3400 = vmatpush.bf16.msra.mxu0 %v672
    %3401 = vmatpush.bf16.msra.mxu0 %v669
    %3402 = vmatpush.bf16.msra.mxu0 %v666
    %3403 = vmatpush.bf16.msra.mxu0 %v663
    %3404 = vmatpush.bf16.msra.mxu0 %v660
    %3405 = vmatpush.bf16.msra.mxu0 %v657
    %3406 = vmatpush.bf16.msra.mxu0 %v654
    %3407 = vmatmul.bf16.gmra.mxu0 %v2487
    %v3408 = vpop.f32.mrf.mxu0
    %v3409 = vadd.f32 0.0, %v3408
    %v3410 = vpop.f32.mrf.mxu0
    %v3411 = vadd.f32 0.0, %v3410
    %3412 = vdwg.mxu0
    %v3413 = vadd.f32 %v3365, %v3381
    %v3414 = vadd.f32 %v3368, %v3383
    %v3415 = vxor.u32 %v3413, 2147483648
    %v3416 = vxor.u32 %v3414, 2147483648
    %v3417 = vmul.f32 %v3415, 1.442695
    %v3418 = vpow.pop %v3417
    %v3419 = vmul.f32 %v3416, 1.442695
    %v3420 = vpow.pop %v3419
    %v3421 = vadd.f32 %v3418, 1.0
    %v3422 = vadd.f32 %v3420, 1.0
    %v3423 = vrcp.pop %v3421
    %v3424 = vmul.f32 %v3421, %v3423
    %v3425 = vsub.f32 1.0, %v3424
    %v3426 = vmul.f32 %v3423, %v3425
    %v3427 = vadd.f32 %v3423, %v3426
    %vm3428 = vweird.f32 %v3421
    %vm3429 = vweird.f32 %v3423
    %vm3430 = vmor %vm3428, %vm3429
    %v3431 = vsel %vm3430, %v3423, %v3427
    %v3432 = vand.u32 2147483647, %v3421
    %vm3433 = vcmp.eq.f32.partialorder %v3432, 8.507059e+37
    %v3434 = vand.u32 %v3421, 2147483648
    %v3435 = vor.u32 1.1754944e-38, %v3434
    %v3436 = vsel %vm3433, %v3435, %v3431
    %v3437 = vmul.f32 1.0, %v3436
    %v3438 = vrcp.pop %v3422
    %v3439 = vmul.f32 %v3422, %v3438
    %v3440 = vsub.f32 1.0, %v3439
    %v3441 = vmul.f32 %v3438, %v3440
    %v3442 = vadd.f32 %v3438, %v3441
    %vm3443 = vweird.f32 %v3422
    %vm3444 = vweird.f32 %v3438
    %vm3445 = vmor %vm3443, %vm3444
    %v3446 = vsel %vm3445, %v3438, %v3442
    %v3447 = vand.u32 2147483647, %v3422
    %vm3448 = vcmp.eq.f32.partialorder %v3447, 8.507059e+37
    %v3449 = vand.u32 %v3422, 2147483648
    %v3450 = vor.u32 1.1754944e-38, %v3449
    %v3451 = vsel %vm3448, %v3450, %v3446
    %v3452 = vmul.f32 1.0, %v3451
    %v3453 = vadd.f32 %v3366, %v3395
    %v3454 = vadd.f32 %v3369, %v3397
    %v3455 = vxor.u32 %v3453, 2147483648
    %v3456 = vxor.u32 %v3454, 2147483648
    %v3457 = vmul.f32 %v3455, 1.442695
    %v3458 = vpow.pop %v3457
    %v3459 = vmul.f32 %v3456, 1.442695
    %v3460 = vpow.pop %v3459
    %v3461 = vadd.f32 %v3458, 1.0
    %v3462 = vadd.f32 %v3460, 1.0
    %v3463 = vrcp.pop %v3461
    %v3464 = vmul.f32 %v3461, %v3463
    %v3465 = vsub.f32 1.0, %v3464
    %v3466 = vmul.f32 %v3463, %v3465
    %v3467 = vadd.f32 %v3463, %v3466
    %vm3468 = vweird.f32 %v3461
    %vm3469 = vweird.f32 %v3463
    %vm3470 = vmor %vm3468, %vm3469
    %v3471 = vsel %vm3470, %v3463, %v3467
    %v3472 = vand.u32 2147483647, %v3461
    %vm3473 = vcmp.eq.f32.partialorder %v3472, 8.507059e+37
    %v3474 = vand.u32 %v3461, 2147483648
    %v3475 = vor.u32 1.1754944e-38, %v3474
    %v3476 = vsel %vm3473, %v3475, %v3471
    %v3477 = vmul.f32 1.0, %v3476
    %v3478 = vrcp.pop %v3462
    %v3479 = vmul.f32 %v3462, %v3478
    %v3480 = vsub.f32 1.0, %v3479
    %v3481 = vmul.f32 %v3478, %v3480
    %v3482 = vadd.f32 %v3478, %v3481
    %vm3483 = vweird.f32 %v3462
    %vm3484 = vweird.f32 %v3478
    %vm3485 = vmor %vm3483, %vm3484
    %v3486 = vsel %vm3485, %v3478, %v3482
    %v3487 = vand.u32 2147483647, %v3462
    %vm3488 = vcmp.eq.f32.partialorder %v3487, 8.507059e+37
    %v3489 = vand.u32 %v3462, 2147483648
    %v3490 = vor.u32 1.1754944e-38, %v3489
    %v3491 = vsel %vm3488, %v3490, %v3486
    %v3492 = vmul.f32 1.0, %v3491
    %v3493 = vadd.f32 %v3409, %v824
    %v3494 = vadd.f32 %v3411, %v824
    %v3495 = vmul.f32 %v3437, %v3493
    %v3496 = vmul.f32 %v3452, %v3494
    %v3497 = vadd.f32 %v3367, %v3495
    %v3498 = vadd.f32 %v3370, %v3496
    %v3499 = vtanh.pop %v3497
    %v3500 = vtanh.pop %v3498
    %v3501 = vsub.f32 1.0, %v3477
    %v3502 = vsub.f32 1.0, %v3492
    %v3503 = vmul.f32 %v3501, %v3499
    %v3504 = vmul.f32 %v3502, %v3500
    %v3505 = vmul.f32 %v3477, %v2485
    %v3506 = vmul.f32 %v3492, %v2486
    %v3507 = vadd.f32 %v3503, %v3505
    %v3508 = vadd.f32 %v3504, %v3506
    %v3509 = vpack.c.bf16 %v3508, %v3507
    %3510 = vmatpush.bf16.msra.mxu0 %v1129
    %3511 = vmatpush.bf16.msra.mxu0 %v1126
    %3512 = vmatpush.bf16.msra.mxu0 %v1123
    %3513 = vmatpush.bf16.msra.mxu0 %v1120
    %3514 = vmatpush.bf16.msra.mxu0 %v1117
    %3515 = vmatpush.bf16.msra.mxu0 %v1114
    %3516 = vmatpush.bf16.msra.mxu0 %v1111
    %3517 = vmatpush.bf16.msra.mxu0 %v1108
    %3518 = vmatmul.bf16.gmra.mxu0 %v2487
    %v3519 = vpop.f32.mrf.mxu0
    %v3520 = vadd.f32 %v1022, %v3519
    %v3521 = vpop.f32.mrf.mxu0
    %v3522 = vadd.f32 %v1022, %v3521
    %3523 = vdwg.mxu0
    %3524 = vmatpush.bf16.msra.mxu0 %v1130
    %3525 = vmatpush.bf16.msra.mxu0 %v1127
    %3526 = vmatpush.bf16.msra.mxu0 %v1124
    %3527 = vmatpush.bf16.msra.mxu0 %v1121
    %3528 = vmatpush.bf16.msra.mxu0 %v1118
    %3529 = vmatpush.bf16.msra.mxu0 %v1115
    %3530 = vmatpush.bf16.msra.mxu0 %v1112
    %3531 = vmatpush.bf16.msra.mxu0 %v1109
    %3532 = vmatmul.bf16.gmra.mxu0 %v2487
    %v3533 = vpop.f32.mrf.mxu0
    %v3534 = vadd.f32 %v1023, %v3533
    %v3535 = vpop.f32.mrf.mxu0
    %v3536 = vadd.f32 %v1023, %v3535
    %3537 = vdwg.mxu0
    %3538 = vmatpush.bf16.msra.mxu0 %v1131
    %3539 = vmatpush.bf16.msra.mxu0 %v1128
    %3540 = vmatpush.bf16.msra.mxu0 %v1125
    %3541 = vmatpush.bf16.msra.mxu0 %v1122
    %3542 = vmatpush.bf16.msra.mxu0 %v1119
    %3543 = vmatpush.bf16.msra.mxu0 %v1116
    %3544 = vmatpush.bf16.msra.mxu0 %v1113
    %3545 = vmatpush.bf16.msra.mxu0 %v1110
    %3546 = vmatmul.bf16.gmra.mxu0 %v2487
    %v3547 = vpop.f32.mrf.mxu0
    %v3548 = vadd.f32 %v1024, %v3547
    %v3549 = vpop.f32.mrf.mxu0
    %v3550 = vadd.f32 %v1024, %v3549
    %3551 = vdwg.mxu0
    %3552 = vmatpush.bf16.msra.mxu0 %v1331
    %3553 = vmatpush.bf16.msra.mxu0 %v1328
    %3554 = vmatpush.bf16.msra.mxu0 %v1325
    %3555 = vmatpush.bf16.msra.mxu0 %v1322
    %3556 = vmatpush.bf16.msra.mxu0 %v1319
    %3557 = vmatpush.bf16.msra.mxu0 %v1316
    %3558 = vmatpush.bf16.msra.mxu0 %v1313
    %3559 = vmatpush.bf16.msra.mxu0 %v1310
    %3560 = vmatmul.bf16.gmra.mxu0 %v2668
    %v3561 = vpop.f32.mrf.mxu0
    %v3562 = vadd.f32 0.0, %v3561
    %v3563 = vpop.f32.mrf.mxu0
    %v3564 = vadd.f32 0.0, %v3563
    %3565 = vdwg.mxu0
    %3566 = vmatpush.bf16.msra.mxu0 %v1332
    %3567 = vmatpush.bf16.msra.mxu0 %v1329
    %3568 = vmatpush.bf16.msra.mxu0 %v1326
    %3569 = vmatpush.bf16.msra.mxu0 %v1323
    %3570 = vmatpush.bf16.msra.mxu0 %v1320
    %3571 = vmatpush.bf16.msra.mxu0 %v1317
    %3572 = vmatpush.bf16.msra.mxu0 %v1314
    %3573 = vmatpush.bf16.msra.mxu0 %v1311
    %3574 = vmatmul.bf16.gmra.mxu0 %v2668
    %v3575 = vpop.f32.mrf.mxu0
    %v3576 = vadd.f32 0.0, %v3575
    %v3577 = vpop.f32.mrf.mxu0
    %v3578 = vadd.f32 0.0, %v3577
    %3579 = vdwg.mxu0
    %3580 = vmatpush.bf16.msra.mxu0 %v1333
    %3581 = vmatpush.bf16.msra.mxu0 %v1330
    %3582 = vmatpush.bf16.msra.mxu0 %v1327
    %3583 = vmatpush.bf16.msra.mxu0 %v1324
    %3584 = vmatpush.bf16.msra.mxu0 %v1321
    %3585 = vmatpush.bf16.msra.mxu0 %v1318
    %3586 = vmatpush.bf16.msra.mxu0 %v1315
    %3587 = vmatpush.bf16.msra.mxu0 %v1312
    %3588 = vmatmul.bf16.gmra.mxu0 %v2668
    %v3589 = vpop.f32.mrf.mxu0
    %v3590 = vadd.f32 0.0, %v3589
    %v3591 = vpop.f32.mrf.mxu0
    %v3592 = vadd.f32 0.0, %v3591
    %3593 = vdwg.mxu0
    %v3594 = vadd.f32 %v3520, %v3562
    %v3595 = vadd.f32 %v3522, %v3564
    %v3596 = vxor.u32 %v3594, 2147483648
    %v3597 = vxor.u32 %v3595, 2147483648
    %v3598 = vmul.f32 %v3596, 1.442695
    %v3599 = vpow.pop %v3598
    %v3600 = vmul.f32 %v3597, 1.442695
    %v3601 = vpow.pop %v3600
    %v3602 = vadd.f32 %v3599, 1.0
    %v3603 = vadd.f32 %v3601, 1.0
    %v3604 = vrcp.pop %v3602
    %v3605 = vmul.f32 %v3602, %v3604
    %v3606 = vsub.f32 1.0, %v3605
    %v3607 = vmul.f32 %v3604, %v3606
    %v3608 = vadd.f32 %v3604, %v3607
    %vm3609 = vweird.f32 %v3602
    %vm3610 = vweird.f32 %v3604
    %vm3611 = vmor %vm3609, %vm3610
    %v3612 = vsel %vm3611, %v3604, %v3608
    %v3613 = vand.u32 2147483647, %v3602
    %vm3614 = vcmp.eq.f32.partialorder %v3613, 8.507059e+37
    %v3615 = vand.u32 %v3602, 2147483648
    %v3616 = vor.u32 1.1754944e-38, %v3615
    %v3617 = vsel %vm3614, %v3616, %v3612
    %v3618 = vmul.f32 1.0, %v3617
    %v3619 = vrcp.pop %v3603
    %v3620 = vmul.f32 %v3603, %v3619
    %v3621 = vsub.f32 1.0, %v3620
    %v3622 = vmul.f32 %v3619, %v3621
    %v3623 = vadd.f32 %v3619, %v3622
    %vm3624 = vweird.f32 %v3603
    %vm3625 = vweird.f32 %v3619
    %vm3626 = vmor %vm3624, %vm3625
    %v3627 = vsel %vm3626, %v3619, %v3623
    %v3628 = vand.u32 2147483647, %v3603
    %vm3629 = vcmp.eq.f32.partialorder %v3628, 8.507059e+37
    %v3630 = vand.u32 %v3603, 2147483648
    %v3631 = vor.u32 1.1754944e-38, %v3630
    %v3632 = vsel %vm3629, %v3631, %v3627
    %v3633 = vmul.f32 1.0, %v3632
    %v3634 = vadd.f32 %v3534, %v3576
    %v3635 = vadd.f32 %v3536, %v3578
    %v3636 = vxor.u32 %v3634, 2147483648
    %v3637 = vxor.u32 %v3635, 2147483648
    %v3638 = vmul.f32 %v3636, 1.442695
    %v3639 = vpow.pop %v3638
    %v3640 = vmul.f32 %v3637, 1.442695
    %v3641 = vpow.pop %v3640
    %v3642 = vadd.f32 %v3639, 1.0
    %v3643 = vadd.f32 %v3641, 1.0
    %v3644 = vrcp.pop %v3642
    %v3645 = vmul.f32 %v3642, %v3644
    %v3646 = vsub.f32 1.0, %v3645
    %v3647 = vmul.f32 %v3644, %v3646
    %v3648 = vadd.f32 %v3644, %v3647
    %vm3649 = vweird.f32 %v3642
    %vm3650 = vweird.f32 %v3644
    %vm3651 = vmor %vm3649, %vm3650
    %v3652 = vsel %vm3651, %v3644, %v3648
    %v3653 = vand.u32 2147483647, %v3642
    %vm3654 = vcmp.eq.f32.partialorder %v3653, 8.507059e+37
    %v3655 = vand.u32 %v3642, 2147483648
    %v3656 = vor.u32 1.1754944e-38, %v3655
    %v3657 = vsel %vm3654, %v3656, %v3652
    %v3658 = vmul.f32 1.0, %v3657
    %v3659 = vrcp.pop %v3643
    %v3660 = vmul.f32 %v3643, %v3659
    %v3661 = vsub.f32 1.0, %v3660
    %v3662 = vmul.f32 %v3659, %v3661
    %v3663 = vadd.f32 %v3659, %v3662
    %vm3664 = vweird.f32 %v3643
    %vm3665 = vweird.f32 %v3659
    %vm3666 = vmor %vm3664, %vm3665
    %v3667 = vsel %vm3666, %v3659, %v3663
    %v3668 = vand.u32 2147483647, %v3643
    %vm3669 = vcmp.eq.f32.partialorder %v3668, 8.507059e+37
    %v3670 = vand.u32 %v3643, 2147483648
    %v3671 = vor.u32 1.1754944e-38, %v3670
    %v3672 = vsel %vm3669, %v3671, %v3667
    %v3673 = vmul.f32 1.0, %v3672
    %v3674 = vadd.f32 %v3590, %v1482
    %v3675 = vadd.f32 %v3592, %v1482
    %v3676 = vmul.f32 %v3618, %v3674
    %v3677 = vmul.f32 %v3633, %v3675
    %v3678 = vadd.f32 %v3548, %v3676
    %v3679 = vadd.f32 %v3550, %v3677
    %v3680 = vtanh.pop %v3678
    %v3681 = vtanh.pop %v3679
    %v3682 = vsub.f32 1.0, %v3658
    %v3683 = vsub.f32 1.0, %v3673
    %v3684 = vmul.f32 %v3682, %v3680
    %v3685 = vmul.f32 %v3683, %v3681
    %v3686 = vmul.f32 %v3658, %v2666
    %v3687 = vmul.f32 %v3673, %v2667
    %v3688 = vadd.f32 %v3684, %v3686
    %v3689 = vadd.f32 %v3685, %v3687
    %v3690 = vpack.c.bf16 %v3689, %v3688
    %3691 = vmatpush.bf16.msra.mxu0 %v1968
    %3692 = vmatpush.bf16.msra.mxu0 %v1965
    %3693 = vmatpush.bf16.msra.mxu0 %v1962
    %3694 = vmatpush.bf16.msra.mxu0 %v1959
    %3695 = vmatpush.bf16.msra.mxu0 %v1956
    %3696 = vmatpush.bf16.msra.mxu0 %v1953
    %3697 = vmatpush.bf16.msra.mxu0 %v1950
    %3698 = vmatpush.bf16.msra.mxu0 %v1947
    %3699 = vmatmul.bf16.gmra.mxu0 %v2668
    %v3700 = vpop.f32.mrf.mxu0
    %v3701 = vadd.f32 %v1861, %v3700
    %v3702 = vpop.f32.mrf.mxu0
    %v3703 = vadd.f32 %v1861, %v3702
    %3704 = vdwg.mxu0
    %3705 = vmatpush.bf16.msra.mxu0 %v1969
    %3706 = vmatpush.bf16.msra.mxu0 %v1966
    %3707 = vmatpush.bf16.msra.mxu0 %v1963
    %3708 = vmatpush.bf16.msra.mxu0 %v1960
    %3709 = vmatpush.bf16.msra.mxu0 %v1957
    %3710 = vmatpush.bf16.msra.mxu0 %v1954
    %3711 = vmatpush.bf16.msra.mxu0 %v1951
    %3712 = vmatpush.bf16.msra.mxu0 %v1948
    %3713 = vmatmul.bf16.gmra.mxu0 %v2668
    %v3714 = vpop.f32.mrf.mxu0
    %v3715 = vadd.f32 %v1862, %v3714
    %v3716 = vpop.f32.mrf.mxu0
    %v3717 = vadd.f32 %v1862, %v3716
    %3718 = vdwg.mxu0
    %3719 = vmatpush.bf16.msra.mxu0 %v1970
    %3720 = vmatpush.bf16.msra.mxu0 %v1967
    %3721 = vmatpush.bf16.msra.mxu0 %v1964
    %3722 = vmatpush.bf16.msra.mxu0 %v1961
    %3723 = vmatpush.bf16.msra.mxu0 %v1958
    %3724 = vmatpush.bf16.msra.mxu0 %v1955
    %3725 = vmatpush.bf16.msra.mxu0 %v1952
    %3726 = vmatpush.bf16.msra.mxu0 %v1949
    %3727 = vmatmul.bf16.gmra.mxu0 %v2668
    %v3728 = vpop.f32.mrf.mxu0
    %v3729 = vadd.f32 %v1863, %v3728
    %v3730 = vpop.f32.mrf.mxu0
    %v3731 = vadd.f32 %v1863, %v3730
    %3732 = vdwg.mxu0
    %3733 = vmatpush.bf16.msra.mxu0 %v2170
    %3734 = vmatpush.bf16.msra.mxu0 %v2167
    %3735 = vmatpush.bf16.msra.mxu0 %v2164
    %3736 = vmatpush.bf16.msra.mxu0 %v2161
    %3737 = vmatpush.bf16.msra.mxu0 %v2158
    %3738 = vmatpush.bf16.msra.mxu0 %v2155
    %3739 = vmatpush.bf16.msra.mxu0 %v2152
    %3740 = vmatpush.bf16.msra.mxu0 %v2149
    %3741 = vmatmul.bf16.gmra.mxu0 %v2849
    %v3742 = vpop.f32.mrf.mxu0
    %v3743 = vadd.f32 0.0, %v3742
    %v3744 = vpop.f32.mrf.mxu0
    %v3745 = vadd.f32 0.0, %v3744
    %3746 = vdwg.mxu0
    %3747 = vmatpush.bf16.msra.mxu0 %v2171
    %3748 = vmatpush.bf16.msra.mxu0 %v2168
    %3749 = vmatpush.bf16.msra.mxu0 %v2165
    %3750 = vmatpush.bf16.msra.mxu0 %v2162
    %3751 = vmatpush.bf16.msra.mxu0 %v2159
    %3752 = vmatpush.bf16.msra.mxu0 %v2156
    %3753 = vmatpush.bf16.msra.mxu0 %v2153
    %3754 = vmatpush.bf16.msra.mxu0 %v2150
    %3755 = vmatmul.bf16.gmra.mxu0 %v2849
    %v3756 = vpop.f32.mrf.mxu0
    %v3757 = vadd.f32 0.0, %v3756
    %v3758 = vpop.f32.mrf.mxu0
    %v3759 = vadd.f32 0.0, %v3758
    %3760 = vdwg.mxu0
    %3761 = vmatpush.bf16.msra.mxu0 %v2172
    %3762 = vmatpush.bf16.msra.mxu0 %v2169
    %3763 = vmatpush.bf16.msra.mxu0 %v2166
    %3764 = vmatpush.bf16.msra.mxu0 %v2163
    %3765 = vmatpush.bf16.msra.mxu0 %v2160
    %3766 = vmatpush.bf16.msra.mxu0 %v2157
    %3767 = vmatpush.bf16.msra.mxu0 %v2154
    %3768 = vmatpush.bf16.msra.mxu0 %v2151
    %3769 = vmatmul.bf16.gmra.mxu0 %v2849
    %v3770 = vpop.f32.mrf.mxu0
    %v3771 = vadd.f32 0.0, %v3770
    %v3772 = vpop.f32.mrf.mxu0
    %v3773 = vadd.f32 0.0, %v3772
    %3774 = vdwg.mxu0
    %v3775 = vadd.f32 %v3701, %v3743
    %v3776 = vadd.f32 %v3703, %v3745
    %v3777 = vxor.u32 %v3775, 2147483648
    %v3778 = vxor.u32 %v3776, 2147483648
    %v3779 = vmul.f32 %v3777, 1.442695
    %v3780 = vpow.pop %v3779
    %v3781 = vmul.f32 %v3778, 1.442695
    %v3782 = vpow.pop %v3781
    %v3783 = vadd.f32 %v3780, 1.0
    %v3784 = vadd.f32 %v3782, 1.0
    %v3785 = vrcp.pop %v3783
    %v3786 = vmul.f32 %v3783, %v3785
    %v3787 = vsub.f32 1.0, %v3786
    %v3788 = vmul.f32 %v3785, %v3787
    %v3789 = vadd.f32 %v3785, %v3788
    %vm3790 = vweird.f32 %v3783
    %vm3791 = vweird.f32 %v3785
    %vm3792 = vmor %vm3790, %vm3791
    %v3793 = vsel %vm3792, %v3785, %v3789
    %v3794 = vand.u32 2147483647, %v3783
    %vm3795 = vcmp.eq.f32.partialorder %v3794, 8.507059e+37
    %v3796 = vand.u32 %v3783, 2147483648
    %v3797 = vor.u32 1.1754944e-38, %v3796
    %v3798 = vsel %vm3795, %v3797, %v3793
    %v3799 = vmul.f32 1.0, %v3798
    %v3800 = vrcp.pop %v3784
    %v3801 = vmul.f32 %v3784, %v3800
    %v3802 = vsub.f32 1.0, %v3801
    %v3803 = vmul.f32 %v3800, %v3802
    %v3804 = vadd.f32 %v3800, %v3803
    %vm3805 = vweird.f32 %v3784
    %vm3806 = vweird.f32 %v3800
    %vm3807 = vmor %vm3805, %vm3806
    %v3808 = vsel %vm3807, %v3800, %v3804
    %v3809 = vand.u32 2147483647, %v3784
    %vm3810 = vcmp.eq.f32.partialorder %v3809, 8.507059e+37
    %v3811 = vand.u32 %v3784, 2147483648
    %v3812 = vor.u32 1.1754944e-38, %v3811
    %v3813 = vsel %vm3810, %v3812, %v3808
    %v3814 = vmul.f32 1.0, %v3813
    %v3815 = vadd.f32 %v3715, %v3757
    %v3816 = vadd.f32 %v3717, %v3759
    %v3817 = vxor.u32 %v3815, 2147483648
    %v3818 = vxor.u32 %v3816, 2147483648
    %v3819 = vmul.f32 %v3817, 1.442695
    %v3820 = vpow.pop %v3819
    %v3821 = vmul.f32 %v3818, 1.442695
    %v3822 = vpow.pop %v3821
    %v3823 = vadd.f32 %v3820, 1.0
    %v3824 = vadd.f32 %v3822, 1.0
    %v3825 = vrcp.pop %v3823
    %v3826 = vmul.f32 %v3823, %v3825
    %v3827 = vsub.f32 1.0, %v3826
    %v3828 = vmul.f32 %v3825, %v3827
    %v3829 = vadd.f32 %v3825, %v3828
    %vm3830 = vweird.f32 %v3823
    %vm3831 = vweird.f32 %v3825
    %vm3832 = vmor %vm3830, %vm3831
    %v3833 = vsel %vm3832, %v3825, %v3829
    %v3834 = vand.u32 2147483647, %v3823
    %vm3835 = vcmp.eq.f32.partialorder %v3834, 8.507059e+37
    %v3836 = vand.u32 %v3823, 2147483648
    %v3837 = vor.u32 1.1754944e-38, %v3836
    %v3838 = vsel %vm3835, %v3837, %v3833
    %v3839 = vmul.f32 1.0, %v3838
    %v3840 = vrcp.pop %v3824
    %v3841 = vmul.f32 %v3824, %v3840
    %v3842 = vsub.f32 1.0, %v3841
    %v3843 = vmul.f32 %v3840, %v3842
    %v3844 = vadd.f32 %v3840, %v3843
    %vm3845 = vweird.f32 %v3824
    %vm3846 = vweird.f32 %v3840
    %vm3847 = vmor %vm3845, %vm3846
    %v3848 = vsel %vm3847, %v3840, %v3844
    %v3849 = vand.u32 2147483647, %v3824
    %vm3850 = vcmp.eq.f32.partialorder %v3849, 8.507059e+37
    %v3851 = vand.u32 %v3824, 2147483648
    %v3852 = vor.u32 1.1754944e-38, %v3851
    %v3853 = vsel %vm3850, %v3852, %v3848
    %v3854 = vmul.f32 1.0, %v3853
    %v3855 = vadd.f32 %v3771, %v2321
    %v3856 = vadd.f32 %v3773, %v2321
    %v3857 = vmul.f32 %v3799, %v3855
    %v3858 = vmul.f32 %v3814, %v3856
    %v3859 = vadd.f32 %v3729, %v3857
    %v3860 = vadd.f32 %v3731, %v3858
    %v3861 = vtanh.pop %v3859
    %v3862 = vtanh.pop %v3860
    %v3863 = vsub.f32 1.0, %v3839
    %v3864 = vsub.f32 1.0, %v3854
    %v3865 = vmul.f32 %v3863, %v3861
    %v3866 = vmul.f32 %v3864, %v3862
    %v3867 = vmul.f32 %v3839, %v2847
    %v3868 = vmul.f32 %v3854, %v2848
    %v3869 = vadd.f32 %v3865, %v3867
    %v3870 = vadd.f32 %v3866, %v3868
    %v3871 = vpack.c.bf16 %v3870, %v3869
    %3872 = vmatpush.bf16.msra.mxu0 %v2991
    %3873 = vmatpush.bf16.msra.mxu0 %v2988
    %3874 = vmatpush.bf16.msra.mxu0 %v2985
    %3875 = vmatpush.bf16.msra.mxu0 %v2982
    %3876 = vmatpush.bf16.msra.mxu0 %v2979
    %3877 = vmatpush.bf16.msra.mxu0 %v2976
    %3878 = vmatpush.bf16.msra.mxu0 %v2973
    %3879 = vmatpush.bf16.msra.mxu0 %v2970
    %3880 = vmatmul.bf16.gmra.mxu0 %v2849
    %v3881 = vpop.f32.mrf.mxu0
    %v3882 = vadd.f32 %v2884, %v3881
    %v3883 = vpop.f32.mrf.mxu0
    %v3884 = vadd.f32 %v2884, %v3883
    %3885 = vdwg.mxu0
    %3886 = vmatpush.bf16.msra.mxu0 %v2992
    %3887 = vmatpush.bf16.msra.mxu0 %v2989
    %3888 = vmatpush.bf16.msra.mxu0 %v2986
    %3889 = vmatpush.bf16.msra.mxu0 %v2983
    %3890 = vmatpush.bf16.msra.mxu0 %v2980
    %3891 = vmatpush.bf16.msra.mxu0 %v2977
    %3892 = vmatpush.bf16.msra.mxu0 %v2974
    %3893 = vmatpush.bf16.msra.mxu0 %v2971
    %3894 = vmatmul.bf16.gmra.mxu0 %v2849
    %v3895 = vpop.f32.mrf.mxu0
    %v3896 = vadd.f32 %v2885, %v3895
    %v3897 = vpop.f32.mrf.mxu0
    %v3898 = vadd.f32 %v2885, %v3897
    %3899 = vdwg.mxu0
    %3900 = vmatpush.bf16.msra.mxu0 %v2993
    %3901 = vmatpush.bf16.msra.mxu0 %v2990
    %3902 = vmatpush.bf16.msra.mxu0 %v2987
    %3903 = vmatpush.bf16.msra.mxu0 %v2984
    %3904 = vmatpush.bf16.msra.mxu0 %v2981
    %3905 = vmatpush.bf16.msra.mxu0 %v2978
    %3906 = vmatpush.bf16.msra.mxu0 %v2975
    %3907 = vmatpush.bf16.msra.mxu0 %v2972
    %3908 = vmatmul.bf16.gmra.mxu0 %v2849
    %v3909 = vpop.f32.mrf.mxu0
    %v3910 = vadd.f32 %v2886, %v3909
    %v3911 = vpop.f32.mrf.mxu0
    %v3912 = vadd.f32 %v2886, %v3911
    %3913 = vdwg.mxu0
    %v3914 = vpack.c.bf16 %v3361, %v3360
    %3915 = vmatpush.bf16.msra.mxu0 %v3193
    %3916 = vmatpush.bf16.msra.mxu0 %v3190
    %3917 = vmatpush.bf16.msra.mxu0 %v3187
    %3918 = vmatpush.bf16.msra.mxu0 %v3184
    %3919 = vmatpush.bf16.msra.mxu0 %v3181
    %3920 = vmatpush.bf16.msra.mxu0 %v3178
    %3921 = vmatpush.bf16.msra.mxu0 %v3175
    %3922 = vmatpush.bf16.msra.mxu0 %v3172
    %3923 = vmatmul.bf16.gmra.mxu0 %v3914
    %v3924 = vpop.f32.mrf.mxu0
    %v3925 = vadd.f32 0.0, %v3924
    %v3926 = vpop.f32.mrf.mxu0
    %v3927 = vadd.f32 0.0, %v3926
    %3928 = vdwg.mxu0
    %3929 = vmatpush.bf16.msra.mxu0 %v3194
    %3930 = vmatpush.bf16.msra.mxu0 %v3191
    %3931 = vmatpush.bf16.msra.mxu0 %v3188
    %3932 = vmatpush.bf16.msra.mxu0 %v3185
    %3933 = vmatpush.bf16.msra.mxu0 %v3182
    %3934 = vmatpush.bf16.msra.mxu0 %v3179
    %3935 = vmatpush.bf16.msra.mxu0 %v3176
    %3936 = vmatpush.bf16.msra.mxu0 %v3173
    %3937 = vmatmul.bf16.gmra.mxu0 %v3914
    %v3938 = vpop.f32.mrf.mxu0
    %v3939 = vadd.f32 0.0, %v3938
    %v3940 = vpop.f32.mrf.mxu0
    %v3941 = vadd.f32 0.0, %v3940
    %3942 = vdwg.mxu0
    %3943 = vmatpush.bf16.msra.mxu0 %v3195
    %3944 = vmatpush.bf16.msra.mxu0 %v3192
    %3945 = vmatpush.bf16.msra.mxu0 %v3189
    %3946 = vmatpush.bf16.msra.mxu0 %v3186
    %3947 = vmatpush.bf16.msra.mxu0 %v3183
    %3948 = vmatpush.bf16.msra.mxu0 %v3180
    %3949 = vmatpush.bf16.msra.mxu0 %v3177
    %3950 = vmatpush.bf16.msra.mxu0 %v3174
    %3951 = vmatmul.bf16.gmra.mxu0 %v3914
    %v3952 = vpop.f32.mrf.mxu0
    %v3953 = vadd.f32 0.0, %v3952
    %v3954 = vpop.f32.mrf.mxu0
    %v3955 = vadd.f32 0.0, %v3954
    %3956 = vdwg.mxu0
    %v3957 = vadd.f32 %v3882, %v3925
    %v3958 = vadd.f32 %v3884, %v3927
    %v3959 = vxor.u32 %v3957, 2147483648
    %v3960 = vxor.u32 %v3958, 2147483648
    %v3961 = vmul.f32 %v3959, 1.442695
    %v3962 = vpow.pop %v3961
    %v3963 = vmul.f32 %v3960, 1.442695
    %v3964 = vpow.pop %v3963
    %v3965 = vadd.f32 %v3962, 1.0
    %v3966 = vadd.f32 %v3964, 1.0
    %v3967 = vrcp.pop %v3965
    %v3968 = vmul.f32 %v3965, %v3967
    %v3969 = vsub.f32 1.0, %v3968
    %v3970 = vmul.f32 %v3967, %v3969
    %v3971 = vadd.f32 %v3967, %v3970
    %vm3972 = vweird.f32 %v3965
    %vm3973 = vweird.f32 %v3967
    %vm3974 = vmor %vm3972, %vm3973
    %v3975 = vsel %vm3974, %v3967, %v3971
    %v3976 = vand.u32 2147483647, %v3965
    %vm3977 = vcmp.eq.f32.partialorder %v3976, 8.507059e+37
    %v3978 = vand.u32 %v3965, 2147483648
    %v3979 = vor.u32 1.1754944e-38, %v3978
    %v3980 = vsel %vm3977, %v3979, %v3975
    %v3981 = vmul.f32 1.0, %v3980
    %v3982 = vrcp.pop %v3966
    %v3983 = vmul.f32 %v3966, %v3982
    %v3984 = vsub.f32 1.0, %v3983
    %v3985 = vmul.f32 %v3982, %v3984
    %v3986 = vadd.f32 %v3982, %v3985
    %vm3987 = vweird.f32 %v3966
    %vm3988 = vweird.f32 %v3982
    %vm3989 = vmor %vm3987, %vm3988
    %v3990 = vsel %vm3989, %v3982, %v3986
    %v3991 = vand.u32 2147483647, %v3966
    %vm3992 = vcmp.eq.f32.partialorder %v3991, 8.507059e+37
    %v3993 = vand.u32 %v3966, 2147483648
    %v3994 = vor.u32 1.1754944e-38, %v3993
    %v3995 = vsel %vm3992, %v3994, %v3990
    %v3996 = vmul.f32 1.0, %v3995
    %v3997 = vadd.f32 %v3896, %v3939
    %v3998 = vadd.f32 %v3898, %v3941
    %v3999 = vxor.u32 %v3997, 2147483648
    %v4000 = vxor.u32 %v3998, 2147483648
    %v4001 = vmul.f32 %v3999, 1.442695
    %v4002 = vpow.pop %v4001
    %v4003 = vmul.f32 %v4000, 1.442695
    %v4004 = vpow.pop %v4003
    %v4005 = vadd.f32 %v4002, 1.0
    %v4006 = vadd.f32 %v4004, 1.0
    %v4007 = vrcp.pop %v4005
    %v4008 = vmul.f32 %v4005, %v4007
    %v4009 = vsub.f32 1.0, %v4008
    %v4010 = vmul.f32 %v4007, %v4009
    %v4011 = vadd.f32 %v4007, %v4010
    %vm4012 = vweird.f32 %v4005
    %vm4013 = vweird.f32 %v4007
    %vm4014 = vmor %vm4012, %vm4013
    %v4015 = vsel %vm4014, %v4007, %v4011
    %v4016 = vand.u32 2147483647, %v4005
    %vm4017 = vcmp.eq.f32.partialorder %v4016, 8.507059e+37
    %v4018 = vand.u32 %v4005, 2147483648
    %v4019 = vor.u32 1.1754944e-38, %v4018
    %v4020 = vsel %vm4017, %v4019, %v4015
    %v4021 = vmul.f32 1.0, %v4020
    %v4022 = vrcp.pop %v4006
    %v4023 = vmul.f32 %v4006, %v4022
    %v4024 = vsub.f32 1.0, %v4023
    %v4025 = vmul.f32 %v4022, %v4024
    %v4026 = vadd.f32 %v4022, %v4025
    %vm4027 = vweird.f32 %v4006
    %vm4028 = vweird.f32 %v4022
    %vm4029 = vmor %vm4027, %vm4028
    %v4030 = vsel %vm4029, %v4022, %v4026
    %v4031 = vand.u32 2147483647, %v4006
    %vm4032 = vcmp.eq.f32.partialorder %v4031, 8.507059e+37
    %v4033 = vand.u32 %v4006, 2147483648
    %v4034 = vor.u32 1.1754944e-38, %v4033
    %v4035 = vsel %vm4032, %v4034, %v4030
    %v4036 = vmul.f32 1.0, %v4035
    %v4037 = vadd.f32 %v3953, %v3344
    %v4038 = vadd.f32 %v3955, %v3344
    %v4039 = vmul.f32 %v3981, %v4037
    %v4040 = vmul.f32 %v3996, %v4038
    %v4041 = vadd.f32 %v3910, %v4039
    %v4042 = vadd.f32 %v3912, %v4040
    %v4043 = vtanh.pop %v4041
    %v4044 = vtanh.pop %v4042
    %v4045 = vsub.f32 1.0, %v4021
    %v4046 = vsub.f32 1.0, %v4036
    %v4047 = vmul.f32 %v4045, %v4043
    %v4048 = vmul.f32 %v4046, %v4044
    %v4049 = vmul.f32 %v4021, %v3360
    %v4050 = vmul.f32 %v4036, %v3361
    %v4051 = vadd.f32 %v4047, %v4049
    %v4052 = vadd.f32 %v4048, %v4050
    %s4053 = smul.u32 10, 3
    %s4054 = smul.addr %s4053, 8
    %s4055 = scalar_lea.vmem [#allocation2], %s4054
    %v4056 = vld [vmem:[%s4055] sm:$0xff]
    %v4057 = vld [vmem:[%s4055 + $0x8] sm:$0xff]
    %v4058 = vld [vmem:[%s4055 + $0x10] sm:$0xff]
    %v4059 = vld [vmem:[%s4055 + $0x18] sm:$0xff]
    %v4060 = vld [vmem:[%s4055 + $0x20] sm:$0xff]
    %v4061 = vld [vmem:[%s4055 + $0x28] sm:$0xff]
    %4062 = vmatpush.bf16.msra.mxu0 %v673
    %4063 = vmatpush.bf16.msra.mxu0 %v670
    %4064 = vmatpush.bf16.msra.mxu0 %v667
    %4065 = vmatpush.bf16.msra.mxu0 %v664
    %4066 = vmatpush.bf16.msra.mxu0 %v661
    %4067 = vmatpush.bf16.msra.mxu0 %v658
    %4068 = vmatpush.bf16.msra.mxu0 %v655
    %4069 = vmatpush.bf16.msra.mxu0 %v652
    %4070 = vmatmul.bf16.gmra.mxu0 %v3509
    %v4071 = vpop.f32.mrf.mxu0
    %v4072 = vadd.f32 0.0, %v4071
    %v4073 = vpop.f32.mrf.mxu0
    %v4074 = vadd.f32 0.0, %v4073
    %4075 = vdwg.mxu0
    %4076 = vmatpush.bf16.msra.mxu0 %v674
    %4077 = vmatpush.bf16.msra.mxu0 %v671
    %4078 = vmatpush.bf16.msra.mxu0 %v668
    %4079 = vmatpush.bf16.msra.mxu0 %v665
    %4080 = vmatpush.bf16.msra.mxu0 %v662
    %4081 = vmatpush.bf16.msra.mxu0 %v659
    %4082 = vmatpush.bf16.msra.mxu0 %v656
    %4083 = vmatpush.bf16.msra.mxu0 %v653
    %4084 = vmatmul.bf16.gmra.mxu0 %v3509
    %v4085 = vpop.f32.mrf.mxu0
    %v4086 = vadd.f32 0.0, %v4085
    %v4087 = vpop.f32.mrf.mxu0
    %v4088 = vadd.f32 0.0, %v4087
    %4089 = vdwg.mxu0
    %4090 = vmatpush.bf16.msra.mxu0 %v675
    %4091 = vmatpush.bf16.msra.mxu0 %v672
    %4092 = vmatpush.bf16.msra.mxu0 %v669
    %4093 = vmatpush.bf16.msra.mxu0 %v666
    %4094 = vmatpush.bf16.msra.mxu0 %v663
    %4095 = vmatpush.bf16.msra.mxu0 %v660
    %4096 = vmatpush.bf16.msra.mxu0 %v657
    %4097 = vmatpush.bf16.msra.mxu0 %v654
    %4098 = vmatmul.bf16.gmra.mxu0 %v3509
    %v4099 = vpop.f32.mrf.mxu0
    %v4100 = vadd.f32 0.0, %v4099
    %v4101 = vpop.f32.mrf.mxu0
    %v4102 = vadd.f32 0.0, %v4101
    %4103 = vdwg.mxu0
    %v4104 = vadd.f32 %v4056, %v4072
    %v4105 = vadd.f32 %v4059, %v4074
    %v4106 = vxor.u32 %v4104, 2147483648
    %v4107 = vxor.u32 %v4105, 2147483648
    %v4108 = vmul.f32 %v4106, 1.442695
    %v4109 = vpow.pop %v4108
    %v4110 = vmul.f32 %v4107, 1.442695
    %v4111 = vpow.pop %v4110
    %v4112 = vadd.f32 %v4109, 1.0
    %v4113 = vadd.f32 %v4111, 1.0
    %v4114 = vrcp.pop %v4112
    %v4115 = vmul.f32 %v4112, %v4114
    %v4116 = vsub.f32 1.0, %v4115
    %v4117 = vmul.f32 %v4114, %v4116
    %v4118 = vadd.f32 %v4114, %v4117
    %vm4119 = vweird.f32 %v4112
    %vm4120 = vweird.f32 %v4114
    %vm4121 = vmor %vm4119, %vm4120
    %v4122 = vsel %vm4121, %v4114, %v4118
    %v4123 = vand.u32 2147483647, %v4112
    %vm4124 = vcmp.eq.f32.partialorder %v4123, 8.507059e+37
    %v4125 = vand.u32 %v4112, 2147483648
    %v4126 = vor.u32 1.1754944e-38, %v4125
    %v4127 = vsel %vm4124, %v4126, %v4122
    %v4128 = vmul.f32 1.0, %v4127
    %v4129 = vrcp.pop %v4113
    %v4130 = vmul.f32 %v4113, %v4129
    %v4131 = vsub.f32 1.0, %v4130
    %v4132 = vmul.f32 %v4129, %v4131
    %v4133 = vadd.f32 %v4129, %v4132
    %vm4134 = vweird.f32 %v4113
    %vm4135 = vweird.f32 %v4129
    %vm4136 = vmor %vm4134, %vm4135
    %v4137 = vsel %vm4136, %v4129, %v4133
    %v4138 = vand.u32 2147483647, %v4113
    %vm4139 = vcmp.eq.f32.partialorder %v4138, 8.507059e+37
    %v4140 = vand.u32 %v4113, 2147483648
    %v4141 = vor.u32 1.1754944e-38, %v4140
    %v4142 = vsel %vm4139, %v4141, %v4137
    %v4143 = vmul.f32 1.0, %v4142
    %v4144 = vadd.f32 %v4057, %v4086
    %v4145 = vadd.f32 %v4060, %v4088
    %v4146 = vxor.u32 %v4144, 2147483648
    %v4147 = vxor.u32 %v4145, 2147483648
    %v4148 = vmul.f32 %v4146, 1.442695
    %v4149 = vpow.pop %v4148
    %v4150 = vmul.f32 %v4147, 1.442695
    %v4151 = vpow.pop %v4150
    %v4152 = vadd.f32 %v4149, 1.0
    %v4153 = vadd.f32 %v4151, 1.0
    %v4154 = vrcp.pop %v4152
    %v4155 = vmul.f32 %v4152, %v4154
    %v4156 = vsub.f32 1.0, %v4155
    %v4157 = vmul.f32 %v4154, %v4156
    %v4158 = vadd.f32 %v4154, %v4157
    %vm4159 = vweird.f32 %v4152
    %vm4160 = vweird.f32 %v4154
    %vm4161 = vmor %vm4159, %vm4160
    %v4162 = vsel %vm4161, %v4154, %v4158
    %v4163 = vand.u32 2147483647, %v4152
    %vm4164 = vcmp.eq.f32.partialorder %v4163, 8.507059e+37
    %v4165 = vand.u32 %v4152, 2147483648
    %v4166 = vor.u32 1.1754944e-38, %v4165
    %v4167 = vsel %vm4164, %v4166, %v4162
    %v4168 = vmul.f32 1.0, %v4167
    %v4169 = vrcp.pop %v4153
    %v4170 = vmul.f32 %v4153, %v4169
    %v4171 = vsub.f32 1.0, %v4170
    %v4172 = vmul.f32 %v4169, %v4171
    %v4173 = vadd.f32 %v4169, %v4172
    %vm4174 = vweird.f32 %v4153
    %vm4175 = vweird.f32 %v4169
    %vm4176 = vmor %vm4174, %vm4175
    %v4177 = vsel %vm4176, %v4169, %v4173
    %v4178 = vand.u32 2147483647, %v4153
    %vm4179 = vcmp.eq.f32.partialorder %v4178, 8.507059e+37
    %v4180 = vand.u32 %v4153, 2147483648
    %v4181 = vor.u32 1.1754944e-38, %v4180
    %v4182 = vsel %vm4179, %v4181, %v4177
    %v4183 = vmul.f32 1.0, %v4182
    %v4184 = vadd.f32 %v4100, %v824
    %v4185 = vadd.f32 %v4102, %v824
    %v4186 = vmul.f32 %v4128, %v4184
    %v4187 = vmul.f32 %v4143, %v4185
    %v4188 = vadd.f32 %v4058, %v4186
    %v4189 = vadd.f32 %v4061, %v4187
    %v4190 = vtanh.pop %v4188
    %v4191 = vtanh.pop %v4189
    %v4192 = vsub.f32 1.0, %v4168
    %v4193 = vsub.f32 1.0, %v4183
    %v4194 = vmul.f32 %v4192, %v4190
    %v4195 = vmul.f32 %v4193, %v4191
    %v4196 = vmul.f32 %v4168, %v3507
    %v4197 = vmul.f32 %v4183, %v3508
    %v4198 = vadd.f32 %v4194, %v4196
    %v4199 = vadd.f32 %v4195, %v4197
    %v4200 = vpack.c.bf16 %v4199, %v4198
    %4201 = vmatpush.bf16.msra.mxu0 %v1129
    %4202 = vmatpush.bf16.msra.mxu0 %v1126
    %4203 = vmatpush.bf16.msra.mxu0 %v1123
    %4204 = vmatpush.bf16.msra.mxu0 %v1120
    %4205 = vmatpush.bf16.msra.mxu0 %v1117
    %4206 = vmatpush.bf16.msra.mxu0 %v1114
    %4207 = vmatpush.bf16.msra.mxu0 %v1111
    %4208 = vmatpush.bf16.msra.mxu0 %v1108
    %4209 = vmatmul.bf16.gmra.mxu0 %v3509
    %v4210 = vpop.f32.mrf.mxu0
    %v4211 = vadd.f32 %v1022, %v4210
    %v4212 = vpop.f32.mrf.mxu0
    %v4213 = vadd.f32 %v1022, %v4212
    %4214 = vdwg.mxu0
    %4215 = vmatpush.bf16.msra.mxu0 %v1130
    %4216 = vmatpush.bf16.msra.mxu0 %v1127
    %4217 = vmatpush.bf16.msra.mxu0 %v1124
    %4218 = vmatpush.bf16.msra.mxu0 %v1121
    %4219 = vmatpush.bf16.msra.mxu0 %v1118
    %4220 = vmatpush.bf16.msra.mxu0 %v1115
    %4221 = vmatpush.bf16.msra.mxu0 %v1112
    %4222 = vmatpush.bf16.msra.mxu0 %v1109
    %4223 = vmatmul.bf16.gmra.mxu0 %v3509
    %v4224 = vpop.f32.mrf.mxu0
    %v4225 = vadd.f32 %v1023, %v4224
    %v4226 = vpop.f32.mrf.mxu0
    %v4227 = vadd.f32 %v1023, %v4226
    %4228 = vdwg.mxu0
    %4229 = vmatpush.bf16.msra.mxu0 %v1131
    %4230 = vmatpush.bf16.msra.mxu0 %v1128
    %4231 = vmatpush.bf16.msra.mxu0 %v1125
    %4232 = vmatpush.bf16.msra.mxu0 %v1122
    %4233 = vmatpush.bf16.msra.mxu0 %v1119
    %4234 = vmatpush.bf16.msra.mxu0 %v1116
    %4235 = vmatpush.bf16.msra.mxu0 %v1113
    %4236 = vmatpush.bf16.msra.mxu0 %v1110
    %4237 = vmatmul.bf16.gmra.mxu0 %v3509
    %v4238 = vpop.f32.mrf.mxu0
    %v4239 = vadd.f32 %v1024, %v4238
    %v4240 = vpop.f32.mrf.mxu0
    %v4241 = vadd.f32 %v1024, %v4240
    %4242 = vdwg.mxu0
    %4243 = vmatpush.bf16.msra.mxu0 %v1331
    %4244 = vmatpush.bf16.msra.mxu0 %v1328
    %4245 = vmatpush.bf16.msra.mxu0 %v1325
    %4246 = vmatpush.bf16.msra.mxu0 %v1322
    %4247 = vmatpush.bf16.msra.mxu0 %v1319
    %4248 = vmatpush.bf16.msra.mxu0 %v1316
    %4249 = vmatpush.bf16.msra.mxu0 %v1313
    %4250 = vmatpush.bf16.msra.mxu0 %v1310
    %4251 = vmatmul.bf16.gmra.mxu0 %v3690
    %v4252 = vpop.f32.mrf.mxu0
    %v4253 = vadd.f32 0.0, %v4252
    %v4254 = vpop.f32.mrf.mxu0
    %v4255 = vadd.f32 0.0, %v4254
    %4256 = vdwg.mxu0
    %4257 = vmatpush.bf16.msra.mxu0 %v1332
    %4258 = vmatpush.bf16.msra.mxu0 %v1329
    %4259 = vmatpush.bf16.msra.mxu0 %v1326
    %4260 = vmatpush.bf16.msra.mxu0 %v1323
    %4261 = vmatpush.bf16.msra.mxu0 %v1320
    %4262 = vmatpush.bf16.msra.mxu0 %v1317
    %4263 = vmatpush.bf16.msra.mxu0 %v1314
    %4264 = vmatpush.bf16.msra.mxu0 %v1311
    %4265 = vmatmul.bf16.gmra.mxu0 %v3690
    %v4266 = vpop.f32.mrf.mxu0
    %v4267 = vadd.f32 0.0, %v4266
    %v4268 = vpop.f32.mrf.mxu0
    %v4269 = vadd.f32 0.0, %v4268
    %4270 = vdwg.mxu0
    %4271 = vmatpush.bf16.msra.mxu0 %v1333
    %4272 = vmatpush.bf16.msra.mxu0 %v1330
    %4273 = vmatpush.bf16.msra.mxu0 %v1327
    %4274 = vmatpush.bf16.msra.mxu0 %v1324
    %4275 = vmatpush.bf16.msra.mxu0 %v1321
    %4276 = vmatpush.bf16.msra.mxu0 %v1318
    %4277 = vmatpush.bf16.msra.mxu0 %v1315
    %4278 = vmatpush.bf16.msra.mxu0 %v1312
    %4279 = vmatmul.bf16.gmra.mxu0 %v3690
    %v4280 = vpop.f32.mrf.mxu0
    %v4281 = vadd.f32 0.0, %v4280
    %v4282 = vpop.f32.mrf.mxu0
    %v4283 = vadd.f32 0.0, %v4282
    %4284 = vdwg.mxu0
    %v4285 = vadd.f32 %v4211, %v4253
    %v4286 = vadd.f32 %v4213, %v4255
    %v4287 = vxor.u32 %v4285, 2147483648
    %v4288 = vxor.u32 %v4286, 2147483648
    %v4289 = vmul.f32 %v4287, 1.442695
    %v4290 = vpow.pop %v4289
    %v4291 = vmul.f32 %v4288, 1.442695
    %v4292 = vpow.pop %v4291
    %v4293 = vadd.f32 %v4290, 1.0
    %v4294 = vadd.f32 %v4292, 1.0
    %v4295 = vrcp.pop %v4293
    %v4296 = vmul.f32 %v4293, %v4295
    %v4297 = vsub.f32 1.0, %v4296
    %v4298 = vmul.f32 %v4295, %v4297
    %v4299 = vadd.f32 %v4295, %v4298
    %vm4300 = vweird.f32 %v4293
    %vm4301 = vweird.f32 %v4295
    %vm4302 = vmor %vm4300, %vm4301
    %v4303 = vsel %vm4302, %v4295, %v4299
    %v4304 = vand.u32 2147483647, %v4293
    %vm4305 = vcmp.eq.f32.partialorder %v4304, 8.507059e+37
    %v4306 = vand.u32 %v4293, 2147483648
    %v4307 = vor.u32 1.1754944e-38, %v4306
    %v4308 = vsel %vm4305, %v4307, %v4303
    %v4309 = vmul.f32 1.0, %v4308
    %v4310 = vrcp.pop %v4294
    %v4311 = vmul.f32 %v4294, %v4310
    %v4312 = vsub.f32 1.0, %v4311
    %v4313 = vmul.f32 %v4310, %v4312
    %v4314 = vadd.f32 %v4310, %v4313
    %vm4315 = vweird.f32 %v4294
    %vm4316 = vweird.f32 %v4310
    %vm4317 = vmor %vm4315, %vm4316
    %v4318 = vsel %vm4317, %v4310, %v4314
    %v4319 = vand.u32 2147483647, %v4294
    %vm4320 = vcmp.eq.f32.partialorder %v4319, 8.507059e+37
    %v4321 = vand.u32 %v4294, 2147483648
    %v4322 = vor.u32 1.1754944e-38, %v4321
    %v4323 = vsel %vm4320, %v4322, %v4318
    %v4324 = vmul.f32 1.0, %v4323
    %v4325 = vadd.f32 %v4225, %v4267
    %v4326 = vadd.f32 %v4227, %v4269
    %v4327 = vxor.u32 %v4325, 2147483648
    %v4328 = vxor.u32 %v4326, 2147483648
    %v4329 = vmul.f32 %v4327, 1.442695
    %v4330 = vpow.pop %v4329
    %v4331 = vmul.f32 %v4328, 1.442695
    %v4332 = vpow.pop %v4331
    %v4333 = vadd.f32 %v4330, 1.0
    %v4334 = vadd.f32 %v4332, 1.0
    %v4335 = vrcp.pop %v4333
    %v4336 = vmul.f32 %v4333, %v4335
    %v4337 = vsub.f32 1.0, %v4336
    %v4338 = vmul.f32 %v4335, %v4337
    %v4339 = vadd.f32 %v4335, %v4338
    %vm4340 = vweird.f32 %v4333
    %vm4341 = vweird.f32 %v4335
    %vm4342 = vmor %vm4340, %vm4341
    %v4343 = vsel %vm4342, %v4335, %v4339
    %v4344 = vand.u32 2147483647, %v4333
    %vm4345 = vcmp.eq.f32.partialorder %v4344, 8.507059e+37
    %v4346 = vand.u32 %v4333, 2147483648
    %v4347 = vor.u32 1.1754944e-38, %v4346
    %v4348 = vsel %vm4345, %v4347, %v4343
    %v4349 = vmul.f32 1.0, %v4348
    %v4350 = vrcp.pop %v4334
    %v4351 = vmul.f32 %v4334, %v4350
    %v4352 = vsub.f32 1.0, %v4351
    %v4353 = vmul.f32 %v4350, %v4352
    %v4354 = vadd.f32 %v4350, %v4353
    %vm4355 = vweird.f32 %v4334
    %vm4356 = vweird.f32 %v4350
    %vm4357 = vmor %vm4355, %vm4356
    %v4358 = vsel %vm4357, %v4350, %v4354
    %v4359 = vand.u32 2147483647, %v4334
    %vm4360 = vcmp.eq.f32.partialorder %v4359, 8.507059e+37
    %v4361 = vand.u32 %v4334, 2147483648
    %v4362 = vor.u32 1.1754944e-38, %v4361
    %v4363 = vsel %vm4360, %v4362, %v4358
    %v4364 = vmul.f32 1.0, %v4363
    %v4365 = vadd.f32 %v4281, %v1482
    %v4366 = vadd.f32 %v4283, %v1482
    %v4367 = vmul.f32 %v4309, %v4365
    %v4368 = vmul.f32 %v4324, %v4366
    %v4369 = vadd.f32 %v4239, %v4367
    %v4370 = vadd.f32 %v4241, %v4368
    %v4371 = vtanh.pop %v4369
    %v4372 = vtanh.pop %v4370
    %v4373 = vsub.f32 1.0, %v4349
    %v4374 = vsub.f32 1.0, %v4364
    %v4375 = vmul.f32 %v4373, %v4371
    %v4376 = vmul.f32 %v4374, %v4372
    %v4377 = vmul.f32 %v4349, %v3688
    %v4378 = vmul.f32 %v4364, %v3689
    %v4379 = vadd.f32 %v4375, %v4377
    %v4380 = vadd.f32 %v4376, %v4378
    %v4381 = vpack.c.bf16 %v4380, %v4379
    %4382 = vmatpush.bf16.msra.mxu0 %v1968
    %4383 = vmatpush.bf16.msra.mxu0 %v1965
    %4384 = vmatpush.bf16.msra.mxu0 %v1962
    %4385 = vmatpush.bf16.msra.mxu0 %v1959
    %4386 = vmatpush.bf16.msra.mxu0 %v1956
    %4387 = vmatpush.bf16.msra.mxu0 %v1953
    %4388 = vmatpush.bf16.msra.mxu0 %v1950
    %4389 = vmatpush.bf16.msra.mxu0 %v1947
    %4390 = vmatmul.bf16.gmra.mxu0 %v3690
    %v4391 = vpop.f32.mrf.mxu0
    %v4392 = vadd.f32 %v1861, %v4391
    %v4393 = vpop.f32.mrf.mxu0
    %v4394 = vadd.f32 %v1861, %v4393
    %4395 = vdwg.mxu0
    %4396 = vmatpush.bf16.msra.mxu0 %v1969
    %4397 = vmatpush.bf16.msra.mxu0 %v1966
    %4398 = vmatpush.bf16.msra.mxu0 %v1963
    %4399 = vmatpush.bf16.msra.mxu0 %v1960
    %4400 = vmatpush.bf16.msra.mxu0 %v1957
    %4401 = vmatpush.bf16.msra.mxu0 %v1954
    %4402 = vmatpush.bf16.msra.mxu0 %v1951
    %4403 = vmatpush.bf16.msra.mxu0 %v1948
    %4404 = vmatmul.bf16.gmra.mxu0 %v3690
    %v4405 = vpop.f32.mrf.mxu0
    %v4406 = vadd.f32 %v1862, %v4405
    %v4407 = vpop.f32.mrf.mxu0
    %v4408 = vadd.f32 %v1862, %v4407
    %4409 = vdwg.mxu0
    %4410 = vmatpush.bf16.msra.mxu0 %v1970
    %4411 = vmatpush.bf16.msra.mxu0 %v1967
    %4412 = vmatpush.bf16.msra.mxu0 %v1964
    %4413 = vmatpush.bf16.msra.mxu0 %v1961
    %4414 = vmatpush.bf16.msra.mxu0 %v1958
    %4415 = vmatpush.bf16.msra.mxu0 %v1955
    %4416 = vmatpush.bf16.msra.mxu0 %v1952
    %4417 = vmatpush.bf16.msra.mxu0 %v1949
    %4418 = vmatmul.bf16.gmra.mxu0 %v3690
    %v4419 = vpop.f32.mrf.mxu0
    %v4420 = vadd.f32 %v1863, %v4419
    %v4421 = vpop.f32.mrf.mxu0
    %v4422 = vadd.f32 %v1863, %v4421
    %4423 = vdwg.mxu0
    %4424 = vmatpush.bf16.msra.mxu0 %v2170
    %4425 = vmatpush.bf16.msra.mxu0 %v2167
    %4426 = vmatpush.bf16.msra.mxu0 %v2164
    %4427 = vmatpush.bf16.msra.mxu0 %v2161
    %4428 = vmatpush.bf16.msra.mxu0 %v2158
    %4429 = vmatpush.bf16.msra.mxu0 %v2155
    %4430 = vmatpush.bf16.msra.mxu0 %v2152
    %4431 = vmatpush.bf16.msra.mxu0 %v2149
    %4432 = vmatmul.bf16.gmra.mxu0 %v3871
    %v4433 = vpop.f32.mrf.mxu0
    %v4434 = vadd.f32 0.0, %v4433
    %v4435 = vpop.f32.mrf.mxu0
    %v4436 = vadd.f32 0.0, %v4435
    %4437 = vdwg.mxu0
    %4438 = vmatpush.bf16.msra.mxu0 %v2171
    %4439 = vmatpush.bf16.msra.mxu0 %v2168
    %4440 = vmatpush.bf16.msra.mxu0 %v2165
    %4441 = vmatpush.bf16.msra.mxu0 %v2162
    %4442 = vmatpush.bf16.msra.mxu0 %v2159
    %4443 = vmatpush.bf16.msra.mxu0 %v2156
    %4444 = vmatpush.bf16.msra.mxu0 %v2153
    %4445 = vmatpush.bf16.msra.mxu0 %v2150
    %4446 = vmatmul.bf16.gmra.mxu0 %v3871
    %v4447 = vpop.f32.mrf.mxu0
    %v4448 = vadd.f32 0.0, %v4447
    %v4449 = vpop.f32.mrf.mxu0
    %v4450 = vadd.f32 0.0, %v4449
    %4451 = vdwg.mxu0
    %4452 = vmatpush.bf16.msra.mxu0 %v2172
    %4453 = vmatpush.bf16.msra.mxu0 %v2169
    %4454 = vmatpush.bf16.msra.mxu0 %v2166
    %4455 = vmatpush.bf16.msra.mxu0 %v2163
    %4456 = vmatpush.bf16.msra.mxu0 %v2160
    %4457 = vmatpush.bf16.msra.mxu0 %v2157
    %4458 = vmatpush.bf16.msra.mxu0 %v2154
    %4459 = vmatpush.bf16.msra.mxu0 %v2151
    %4460 = vmatmul.bf16.gmra.mxu0 %v3871
    %v4461 = vpop.f32.mrf.mxu0
    %v4462 = vadd.f32 0.0, %v4461
    %v4463 = vpop.f32.mrf.mxu0
    %v4464 = vadd.f32 0.0, %v4463
    %4465 = vdwg.mxu0
    %v4466 = vadd.f32 %v4392, %v4434
    %v4467 = vadd.f32 %v4394, %v4436
    %v4468 = vxor.u32 %v4466, 2147483648
    %v4469 = vxor.u32 %v4467, 2147483648
    %v4470 = vmul.f32 %v4468, 1.442695
    %v4471 = vpow.pop %v4470
    %v4472 = vmul.f32 %v4469, 1.442695
    %v4473 = vpow.pop %v4472
    %v4474 = vadd.f32 %v4471, 1.0
    %v4475 = vadd.f32 %v4473, 1.0
    %v4476 = vrcp.pop %v4474
    %v4477 = vmul.f32 %v4474, %v4476
    %v4478 = vsub.f32 1.0, %v4477
    %v4479 = vmul.f32 %v4476, %v4478
    %v4480 = vadd.f32 %v4476, %v4479
    %vm4481 = vweird.f32 %v4474
    %vm4482 = vweird.f32 %v4476
    %vm4483 = vmor %vm4481, %vm4482
    %v4484 = vsel %vm4483, %v4476, %v4480
    %v4485 = vand.u32 2147483647, %v4474
    %vm4486 = vcmp.eq.f32.partialorder %v4485, 8.507059e+37
    %v4487 = vand.u32 %v4474, 2147483648
    %v4488 = vor.u32 1.1754944e-38, %v4487
    %v4489 = vsel %vm4486, %v4488, %v4484
    %v4490 = vmul.f32 1.0, %v4489
    %v4491 = vrcp.pop %v4475
    %v4492 = vmul.f32 %v4475, %v4491
    %v4493 = vsub.f32 1.0, %v4492
    %v4494 = vmul.f32 %v4491, %v4493
    %v4495 = vadd.f32 %v4491, %v4494
    %vm4496 = vweird.f32 %v4475
    %vm4497 = vweird.f32 %v4491
    %vm4498 = vmor %vm4496, %vm4497
    %v4499 = vsel %vm4498, %v4491, %v4495
    %v4500 = vand.u32 2147483647, %v4475
    %vm4501 = vcmp.eq.f32.partialorder %v4500, 8.507059e+37
    %v4502 = vand.u32 %v4475, 2147483648
    %v4503 = vor.u32 1.1754944e-38, %v4502
    %v4504 = vsel %vm4501, %v4503, %v4499
    %v4505 = vmul.f32 1.0, %v4504
    %v4506 = vadd.f32 %v4406, %v4448
    %v4507 = vadd.f32 %v4408, %v4450
    %v4508 = vxor.u32 %v4506, 2147483648
    %v4509 = vxor.u32 %v4507, 2147483648
    %v4510 = vmul.f32 %v4508, 1.442695
    %v4511 = vpow.pop %v4510
    %v4512 = vmul.f32 %v4509, 1.442695
    %v4513 = vpow.pop %v4512
    %v4514 = vadd.f32 %v4511, 1.0
    %v4515 = vadd.f32 %v4513, 1.0
    %v4516 = vrcp.pop %v4514
    %v4517 = vmul.f32 %v4514, %v4516
    %v4518 = vsub.f32 1.0, %v4517
    %v4519 = vmul.f32 %v4516, %v4518
    %v4520 = vadd.f32 %v4516, %v4519
    %vm4521 = vweird.f32 %v4514
    %vm4522 = vweird.f32 %v4516
    %vm4523 = vmor %vm4521, %vm4522
    %v4524 = vsel %vm4523, %v4516, %v4520
    %v4525 = vand.u32 2147483647, %v4514
    %vm4526 = vcmp.eq.f32.partialorder %v4525, 8.507059e+37
    %v4527 = vand.u32 %v4514, 2147483648
    %v4528 = vor.u32 1.1754944e-38, %v4527
    %v4529 = vsel %vm4526, %v4528, %v4524
    %v4530 = vmul.f32 1.0, %v4529
    %v4531 = vrcp.pop %v4515
    %v4532 = vmul.f32 %v4515, %v4531
    %v4533 = vsub.f32 1.0, %v4532
    %v4534 = vmul.f32 %v4531, %v4533
    %v4535 = vadd.f32 %v4531, %v4534
    %vm4536 = vweird.f32 %v4515
    %vm4537 = vweird.f32 %v4531
    %vm4538 = vmor %vm4536, %vm4537
    %v4539 = vsel %vm4538, %v4531, %v4535
    %v4540 = vand.u32 2147483647, %v4515
    %vm4541 = vcmp.eq.f32.partialorder %v4540, 8.507059e+37
    %v4542 = vand.u32 %v4515, 2147483648
    %v4543 = vor.u32 1.1754944e-38, %v4542
    %v4544 = vsel %vm4541, %v4543, %v4539
    %v4545 = vmul.f32 1.0, %v4544
    %v4546 = vadd.f32 %v4462, %v2321
    %v4547 = vadd.f32 %v4464, %v2321
    %v4548 = vmul.f32 %v4490, %v4546
    %v4549 = vmul.f32 %v4505, %v4547
    %v4550 = vadd.f32 %v4420, %v4548
    %v4551 = vadd.f32 %v4422, %v4549
    %v4552 = vtanh.pop %v4550
    %v4553 = vtanh.pop %v4551
    %v4554 = vsub.f32 1.0, %v4530
    %v4555 = vsub.f32 1.0, %v4545
    %v4556 = vmul.f32 %v4554, %v4552
    %v4557 = vmul.f32 %v4555, %v4553
    %v4558 = vmul.f32 %v4530, %v3869
    %v4559 = vmul.f32 %v4545, %v3870
    %v4560 = vadd.f32 %v4556, %v4558
    %v4561 = vadd.f32 %v4557, %v4559
    %v4562 = vpack.c.bf16 %v4561, %v4560
    %4563 = vmatpush.bf16.msra.mxu0 %v2991
    %4564 = vmatpush.bf16.msra.mxu0 %v2988
    %4565 = vmatpush.bf16.msra.mxu0 %v2985
    %4566 = vmatpush.bf16.msra.mxu0 %v2982
    %4567 = vmatpush.bf16.msra.mxu0 %v2979
    %4568 = vmatpush.bf16.msra.mxu0 %v2976
    %4569 = vmatpush.bf16.msra.mxu0 %v2973
    %4570 = vmatpush.bf16.msra.mxu0 %v2970
    %4571 = vmatmul.bf16.gmra.mxu0 %v3871
    %v4572 = vpop.f32.mrf.mxu0
    %v4573 = vadd.f32 %v2884, %v4572
    %v4574 = vpop.f32.mrf.mxu0
    %v4575 = vadd.f32 %v2884, %v4574
    %4576 = vdwg.mxu0
    %4577 = vmatpush.bf16.msra.mxu0 %v2992
    %4578 = vmatpush.bf16.msra.mxu0 %v2989
    %4579 = vmatpush.bf16.msra.mxu0 %v2986
    %4580 = vmatpush.bf16.msra.mxu0 %v2983
    %4581 = vmatpush.bf16.msra.mxu0 %v2980
    %4582 = vmatpush.bf16.msra.mxu0 %v2977
    %4583 = vmatpush.bf16.msra.mxu0 %v2974
    %4584 = vmatpush.bf16.msra.mxu0 %v2971
    %4585 = vmatmul.bf16.gmra.mxu0 %v3871
    %v4586 = vpop.f32.mrf.mxu0
    %v4587 = vadd.f32 %v2885, %v4586
    %v4588 = vpop.f32.mrf.mxu0
    %v4589 = vadd.f32 %v2885, %v4588
    %4590 = vdwg.mxu0
    %4591 = vmatpush.bf16.msra.mxu0 %v2993
    %4592 = vmatpush.bf16.msra.mxu0 %v2990
    %4593 = vmatpush.bf16.msra.mxu0 %v2987
    %4594 = vmatpush.bf16.msra.mxu0 %v2984
    %4595 = vmatpush.bf16.msra.mxu0 %v2981
    %4596 = vmatpush.bf16.msra.mxu0 %v2978
    %4597 = vmatpush.bf16.msra.mxu0 %v2975
    %4598 = vmatpush.bf16.msra.mxu0 %v2972
    %4599 = vmatmul.bf16.gmra.mxu0 %v3871
    %v4600 = vpop.f32.mrf.mxu0
    %v4601 = vadd.f32 %v2886, %v4600
    %v4602 = vpop.f32.mrf.mxu0
    %v4603 = vadd.f32 %v2886, %v4602
    %4604 = vdwg.mxu0
    %v4605 = vpack.c.bf16 %v4052, %v4051
    %4606 = vmatpush.bf16.msra.mxu0 %v3193
    %4607 = vmatpush.bf16.msra.mxu0 %v3190
    %4608 = vmatpush.bf16.msra.mxu0 %v3187
    %4609 = vmatpush.bf16.msra.mxu0 %v3184
    %4610 = vmatpush.bf16.msra.mxu0 %v3181
    %4611 = vmatpush.bf16.msra.mxu0 %v3178
    %4612 = vmatpush.bf16.msra.mxu0 %v3175
    %4613 = vmatpush.bf16.msra.mxu0 %v3172
    %4614 = vmatmul.bf16.gmra.mxu0 %v4605
    %v4615 = vpop.f32.mrf.mxu0
    %v4616 = vadd.f32 0.0, %v4615
    %v4617 = vpop.f32.mrf.mxu0
    %v4618 = vadd.f32 0.0, %v4617
    %4619 = vdwg.mxu0
    %4620 = vmatpush.bf16.msra.mxu0 %v3194
    %4621 = vmatpush.bf16.msra.mxu0 %v3191
    %4622 = vmatpush.bf16.msra.mxu0 %v3188
    %4623 = vmatpush.bf16.msra.mxu0 %v3185
    %4624 = vmatpush.bf16.msra.mxu0 %v3182
    %4625 = vmatpush.bf16.msra.mxu0 %v3179
    %4626 = vmatpush.bf16.msra.mxu0 %v3176
    %4627 = vmatpush.bf16.msra.mxu0 %v3173
    %4628 = vmatmul.bf16.gmra.mxu0 %v4605
    %v4629 = vpop.f32.mrf.mxu0
    %v4630 = vadd.f32 0.0, %v4629
    %v4631 = vpop.f32.mrf.mxu0
    %v4632 = vadd.f32 0.0, %v4631
    %4633 = vdwg.mxu0
    %4634 = vmatpush.bf16.msra.mxu0 %v3195
    %4635 = vmatpush.bf16.msra.mxu0 %v3192
    %4636 = vmatpush.bf16.msra.mxu0 %v3189
    %4637 = vmatpush.bf16.msra.mxu0 %v3186
    %4638 = vmatpush.bf16.msra.mxu0 %v3183
    %4639 = vmatpush.bf16.msra.mxu0 %v3180
    %4640 = vmatpush.bf16.msra.mxu0 %v3177
    %4641 = vmatpush.bf16.msra.mxu0 %v3174
    %4642 = vmatmul.bf16.gmra.mxu0 %v4605
    %v4643 = vpop.f32.mrf.mxu0
    %v4644 = vadd.f32 0.0, %v4643
    %v4645 = vpop.f32.mrf.mxu0
    %v4646 = vadd.f32 0.0, %v4645
    %4647 = vdwg.mxu0
    %v4648 = vadd.f32 %v4573, %v4616
    %v4649 = vadd.f32 %v4575, %v4618
    %v4650 = vxor.u32 %v4648, 2147483648
    %v4651 = vxor.u32 %v4649, 2147483648
    %v4652 = vmul.f32 %v4650, 1.442695
    %v4653 = vpow.pop %v4652
    %v4654 = vmul.f32 %v4651, 1.442695
    %v4655 = vpow.pop %v4654
    %v4656 = vadd.f32 %v4653, 1.0
    %v4657 = vadd.f32 %v4655, 1.0
    %v4658 = vrcp.pop %v4656
    %v4659 = vmul.f32 %v4656, %v4658
    %v4660 = vsub.f32 1.0, %v4659
    %v4661 = vmul.f32 %v4658, %v4660
    %v4662 = vadd.f32 %v4658, %v4661
    %vm4663 = vweird.f32 %v4656
    %vm4664 = vweird.f32 %v4658
    %vm4665 = vmor %vm4663, %vm4664
    %v4666 = vsel %vm4665, %v4658, %v4662
    %v4667 = vand.u32 2147483647, %v4656
    %vm4668 = vcmp.eq.f32.partialorder %v4667, 8.507059e+37
    %v4669 = vand.u32 %v4656, 2147483648
    %v4670 = vor.u32 1.1754944e-38, %v4669
    %v4671 = vsel %vm4668, %v4670, %v4666
    %v4672 = vmul.f32 1.0, %v4671
    %v4673 = vrcp.pop %v4657
    %v4674 = vmul.f32 %v4657, %v4673
    %v4675 = vsub.f32 1.0, %v4674
    %v4676 = vmul.f32 %v4673, %v4675
    %v4677 = vadd.f32 %v4673, %v4676
    %vm4678 = vweird.f32 %v4657
    %vm4679 = vweird.f32 %v4673
    %vm4680 = vmor %vm4678, %vm4679
    %v4681 = vsel %vm4680, %v4673, %v4677
    %v4682 = vand.u32 2147483647, %v4657
    %vm4683 = vcmp.eq.f32.partialorder %v4682, 8.507059e+37
    %v4684 = vand.u32 %v4657, 2147483648
    %v4685 = vor.u32 1.1754944e-38, %v4684
    %v4686 = vsel %vm4683, %v4685, %v4681
    %v4687 = vmul.f32 1.0, %v4686
    %v4688 = vadd.f32 %v4587, %v4630
    %v4689 = vadd.f32 %v4589, %v4632
    %v4690 = vxor.u32 %v4688, 2147483648
    %v4691 = vxor.u32 %v4689, 2147483648
    %v4692 = vmul.f32 %v4690, 1.442695
    %v4693 = vpow.pop %v4692
    %v4694 = vmul.f32 %v4691, 1.442695
    %v4695 = vpow.pop %v4694
    %v4696 = vadd.f32 %v4693, 1.0
    %v4697 = vadd.f32 %v4695, 1.0
    %v4698 = vrcp.pop %v4696
    %v4699 = vmul.f32 %v4696, %v4698
    %v4700 = vsub.f32 1.0, %v4699
    %v4701 = vmul.f32 %v4698, %v4700
    %v4702 = vadd.f32 %v4698, %v4701
    %vm4703 = vweird.f32 %v4696
    %vm4704 = vweird.f32 %v4698
    %vm4705 = vmor %vm4703, %vm4704
    %v4706 = vsel %vm4705, %v4698, %v4702
    %v4707 = vand.u32 2147483647, %v4696
    %vm4708 = vcmp.eq.f32.partialorder %v4707, 8.507059e+37
    %v4709 = vand.u32 %v4696, 2147483648
    %v4710 = vor.u32 1.1754944e-38, %v4709
    %v4711 = vsel %vm4708, %v4710, %v4706
    %v4712 = vmul.f32 1.0, %v4711
    %v4713 = vrcp.pop %v4697
    %v4714 = vmul.f32 %v4697, %v4713
    %v4715 = vsub.f32 1.0, %v4714
    %v4716 = vmul.f32 %v4713, %v4715
    %v4717 = vadd.f32 %v4713, %v4716
    %vm4718 = vweird.f32 %v4697
    %vm4719 = vweird.f32 %v4713
    %vm4720 = vmor %vm4718, %vm4719
    %v4721 = vsel %vm4720, %v4713, %v4717
    %v4722 = vand.u32 2147483647, %v4697
    %vm4723 = vcmp.eq.f32.partialorder %v4722, 8.507059e+37
    %v4724 = vand.u32 %v4697, 2147483648
    %v4725 = vor.u32 1.1754944e-38, %v4724
    %v4726 = vsel %vm4723, %v4725, %v4721
    %v4727 = vmul.f32 1.0, %v4726
    %v4728 = vadd.f32 %v4644, %v3344
    %v4729 = vadd.f32 %v4646, %v3344
    %v4730 = vmul.f32 %v4672, %v4728
    %v4731 = vmul.f32 %v4687, %v4729
    %v4732 = vadd.f32 %v4601, %v4730
    %v4733 = vadd.f32 %v4603, %v4731
    %v4734 = vtanh.pop %v4732
    %v4735 = vtanh.pop %v4733
    %v4736 = vsub.f32 1.0, %v4712
    %v4737 = vsub.f32 1.0, %v4727
    %v4738 = vmul.f32 %v4736, %v4734
    %v4739 = vmul.f32 %v4737, %v4735
    %v4740 = vmul.f32 %v4712, %v4051
    %v4741 = vmul.f32 %v4727, %v4052
    %v4742 = vadd.f32 %v4738, %v4740
    %v4743 = vadd.f32 %v4739, %v4741
    %s4744 = smul.u32 12, 3
    %s4745 = smul.addr %s4744, 8
    %s4746 = scalar_lea.vmem [#allocation2], %s4745
    %v4747 = vld [vmem:[%s4746] sm:$0xff]
    %v4748 = vld [vmem:[%s4746 + $0x8] sm:$0xff]
    %v4749 = vld [vmem:[%s4746 + $0x10] sm:$0xff]
    %v4750 = vld [vmem:[%s4746 + $0x18] sm:$0xff]
    %v4751 = vld [vmem:[%s4746 + $0x20] sm:$0xff]
    %v4752 = vld [vmem:[%s4746 + $0x28] sm:$0xff]
    %4753 = vmatpush.bf16.msra.mxu0 %v673
    %4754 = vmatpush.bf16.msra.mxu0 %v670
    %4755 = vmatpush.bf16.msra.mxu0 %v667
    %4756 = vmatpush.bf16.msra.mxu0 %v664
    %4757 = vmatpush.bf16.msra.mxu0 %v661
    %4758 = vmatpush.bf16.msra.mxu0 %v658
    %4759 = vmatpush.bf16.msra.mxu0 %v655
    %4760 = vmatpush.bf16.msra.mxu0 %v652
    %4761 = vmatmul.bf16.gmra.mxu0 %v4200
    %v4762 = vpop.f32.mrf.mxu0
    %v4763 = vadd.f32 0.0, %v4762
    %v4764 = vpop.f32.mrf.mxu0
    %v4765 = vadd.f32 0.0, %v4764
    %4766 = vdwg.mxu0
    %4767 = vmatpush.bf16.msra.mxu0 %v674
    %4768 = vmatpush.bf16.msra.mxu0 %v671
    %4769 = vmatpush.bf16.msra.mxu0 %v668
    %4770 = vmatpush.bf16.msra.mxu0 %v665
    %4771 = vmatpush.bf16.msra.mxu0 %v662
    %4772 = vmatpush.bf16.msra.mxu0 %v659
    %4773 = vmatpush.bf16.msra.mxu0 %v656
    %4774 = vmatpush.bf16.msra.mxu0 %v653
    %4775 = vmatmul.bf16.gmra.mxu0 %v4200
    %v4776 = vpop.f32.mrf.mxu0
    %v4777 = vadd.f32 0.0, %v4776
    %v4778 = vpop.f32.mrf.mxu0
    %v4779 = vadd.f32 0.0, %v4778
    %4780 = vdwg.mxu0
    %4781 = vmatpush.bf16.msra.mxu0 %v675
    %4782 = vmatpush.bf16.msra.mxu0 %v672
    %4783 = vmatpush.bf16.msra.mxu0 %v669
    %4784 = vmatpush.bf16.msra.mxu0 %v666
    %4785 = vmatpush.bf16.msra.mxu0 %v663
    %4786 = vmatpush.bf16.msra.mxu0 %v660
    %4787 = vmatpush.bf16.msra.mxu0 %v657
    %4788 = vmatpush.bf16.msra.mxu0 %v654
    %4789 = vmatmul.bf16.gmra.mxu0 %v4200
    %v4790 = vpop.f32.mrf.mxu0
    %v4791 = vadd.f32 0.0, %v4790
    %v4792 = vpop.f32.mrf.mxu0
    %v4793 = vadd.f32 0.0, %v4792
    %4794 = vdwg.mxu0
    %v4795 = vadd.f32 %v4747, %v4763
    %v4796 = vadd.f32 %v4750, %v4765
    %v4797 = vxor.u32 %v4795, 2147483648
    %v4798 = vxor.u32 %v4796, 2147483648
    %v4799 = vmul.f32 %v4797, 1.442695
    %v4800 = vpow.pop %v4799
    %v4801 = vmul.f32 %v4798, 1.442695
    %v4802 = vpow.pop %v4801
    %v4803 = vadd.f32 %v4800, 1.0
    %v4804 = vadd.f32 %v4802, 1.0
    %v4805 = vrcp.pop %v4803
    %v4806 = vmul.f32 %v4803, %v4805
    %v4807 = vsub.f32 1.0, %v4806
    %v4808 = vmul.f32 %v4805, %v4807
    %v4809 = vadd.f32 %v4805, %v4808
    %vm4810 = vweird.f32 %v4803
    %vm4811 = vweird.f32 %v4805
    %vm4812 = vmor %vm4810, %vm4811
    %v4813 = vsel %vm4812, %v4805, %v4809
    %v4814 = vand.u32 2147483647, %v4803
    %vm4815 = vcmp.eq.f32.partialorder %v4814, 8.507059e+37
    %v4816 = vand.u32 %v4803, 2147483648
    %v4817 = vor.u32 1.1754944e-38, %v4816
    %v4818 = vsel %vm4815, %v4817, %v4813
    %v4819 = vmul.f32 1.0, %v4818
    %v4820 = vrcp.pop %v4804
    %v4821 = vmul.f32 %v4804, %v4820
    %v4822 = vsub.f32 1.0, %v4821
    %v4823 = vmul.f32 %v4820, %v4822
    %v4824 = vadd.f32 %v4820, %v4823
    %vm4825 = vweird.f32 %v4804
    %vm4826 = vweird.f32 %v4820
    %vm4827 = vmor %vm4825, %vm4826
    %v4828 = vsel %vm4827, %v4820, %v4824
    %v4829 = vand.u32 2147483647, %v4804
    %vm4830 = vcmp.eq.f32.partialorder %v4829, 8.507059e+37
    %v4831 = vand.u32 %v4804, 2147483648
    %v4832 = vor.u32 1.1754944e-38, %v4831
    %v4833 = vsel %vm4830, %v4832, %v4828
    %v4834 = vmul.f32 1.0, %v4833
    %v4835 = vadd.f32 %v4748, %v4777
    %v4836 = vadd.f32 %v4751, %v4779
    %v4837 = vxor.u32 %v4835, 2147483648
    %v4838 = vxor.u32 %v4836, 2147483648
    %v4839 = vmul.f32 %v4837, 1.442695
    %v4840 = vpow.pop %v4839
    %v4841 = vmul.f32 %v4838, 1.442695
    %v4842 = vpow.pop %v4841
    %v4843 = vadd.f32 %v4840, 1.0
    %v4844 = vadd.f32 %v4842, 1.0
    %v4845 = vrcp.pop %v4843
    %v4846 = vmul.f32 %v4843, %v4845
    %v4847 = vsub.f32 1.0, %v4846
    %v4848 = vmul.f32 %v4845, %v4847
    %v4849 = vadd.f32 %v4845, %v4848
    %vm4850 = vweird.f32 %v4843
    %vm4851 = vweird.f32 %v4845
    %vm4852 = vmor %vm4850, %vm4851
    %v4853 = vsel %vm4852, %v4845, %v4849
    %v4854 = vand.u32 2147483647, %v4843
    %vm4855 = vcmp.eq.f32.partialorder %v4854, 8.507059e+37
    %v4856 = vand.u32 %v4843, 2147483648
    %v4857 = vor.u32 1.1754944e-38, %v4856
    %v4858 = vsel %vm4855, %v4857, %v4853
    %v4859 = vmul.f32 1.0, %v4858
    %v4860 = vrcp.pop %v4844
    %v4861 = vmul.f32 %v4844, %v4860
    %v4862 = vsub.f32 1.0, %v4861
    %v4863 = vmul.f32 %v4860, %v4862
    %v4864 = vadd.f32 %v4860, %v4863
    %vm4865 = vweird.f32 %v4844
    %vm4866 = vweird.f32 %v4860
    %vm4867 = vmor %vm4865, %vm4866
    %v4868 = vsel %vm4867, %v4860, %v4864
    %v4869 = vand.u32 2147483647, %v4844
    %vm4870 = vcmp.eq.f32.partialorder %v4869, 8.507059e+37
    %v4871 = vand.u32 %v4844, 2147483648
    %v4872 = vor.u32 1.1754944e-38, %v4871
    %v4873 = vsel %vm4870, %v4872, %v4868
    %v4874 = vmul.f32 1.0, %v4873
    %v4875 = vadd.f32 %v4791, %v824
    %v4876 = vadd.f32 %v4793, %v824
    %v4877 = vmul.f32 %v4819, %v4875
    %v4878 = vmul.f32 %v4834, %v4876
    %v4879 = vadd.f32 %v4749, %v4877
    %v4880 = vadd.f32 %v4752, %v4878
    %v4881 = vtanh.pop %v4879
    %v4882 = vtanh.pop %v4880
    %v4883 = vsub.f32 1.0, %v4859
    %v4884 = vsub.f32 1.0, %v4874
    %v4885 = vmul.f32 %v4883, %v4881
    %v4886 = vmul.f32 %v4884, %v4882
    %v4887 = vmul.f32 %v4859, %v4198
    %v4888 = vmul.f32 %v4874, %v4199
    %v4889 = vadd.f32 %v4885, %v4887
    %v4890 = vadd.f32 %v4886, %v4888
    %v4891 = vpack.c.bf16 %v4890, %v4889
    %4892 = vmatpush.bf16.msra.mxu0 %v1129
    %4893 = vmatpush.bf16.msra.mxu0 %v1126
    %4894 = vmatpush.bf16.msra.mxu0 %v1123
    %4895 = vmatpush.bf16.msra.mxu0 %v1120
    %4896 = vmatpush.bf16.msra.mxu0 %v1117
    %4897 = vmatpush.bf16.msra.mxu0 %v1114
    %4898 = vmatpush.bf16.msra.mxu0 %v1111
    %4899 = vmatpush.bf16.msra.mxu0 %v1108
    %4900 = vmatmul.bf16.gmra.mxu0 %v4200
    %v4901 = vpop.f32.mrf.mxu0
    %v4902 = vadd.f32 %v1022, %v4901
    %v4903 = vpop.f32.mrf.mxu0
    %v4904 = vadd.f32 %v1022, %v4903
    %4905 = vdwg.mxu0
    %4906 = vmatpush.bf16.msra.mxu0 %v1130
    %4907 = vmatpush.bf16.msra.mxu0 %v1127
    %4908 = vmatpush.bf16.msra.mxu0 %v1124
    %4909 = vmatpush.bf16.msra.mxu0 %v1121
    %4910 = vmatpush.bf16.msra.mxu0 %v1118
    %4911 = vmatpush.bf16.msra.mxu0 %v1115
    %4912 = vmatpush.bf16.msra.mxu0 %v1112
    %4913 = vmatpush.bf16.msra.mxu0 %v1109
    %4914 = vmatmul.bf16.gmra.mxu0 %v4200
    %v4915 = vpop.f32.mrf.mxu0
    %v4916 = vadd.f32 %v1023, %v4915
    %v4917 = vpop.f32.mrf.mxu0
    %v4918 = vadd.f32 %v1023, %v4917
    %4919 = vdwg.mxu0
    %4920 = vmatpush.bf16.msra.mxu0 %v1131
    %4921 = vmatpush.bf16.msra.mxu0 %v1128
    %4922 = vmatpush.bf16.msra.mxu0 %v1125
    %4923 = vmatpush.bf16.msra.mxu0 %v1122
    %4924 = vmatpush.bf16.msra.mxu0 %v1119
    %4925 = vmatpush.bf16.msra.mxu0 %v1116
    %4926 = vmatpush.bf16.msra.mxu0 %v1113
    %4927 = vmatpush.bf16.msra.mxu0 %v1110
    %4928 = vmatmul.bf16.gmra.mxu0 %v4200
    %v4929 = vpop.f32.mrf.mxu0
    %v4930 = vadd.f32 %v1024, %v4929
    %v4931 = vpop.f32.mrf.mxu0
    %v4932 = vadd.f32 %v1024, %v4931
    %4933 = vdwg.mxu0
    %4934 = vmatpush.bf16.msra.mxu0 %v1331
    %4935 = vmatpush.bf16.msra.mxu0 %v1328
    %4936 = vmatpush.bf16.msra.mxu0 %v1325
    %4937 = vmatpush.bf16.msra.mxu0 %v1322
    %4938 = vmatpush.bf16.msra.mxu0 %v1319
    %4939 = vmatpush.bf16.msra.mxu0 %v1316
    %4940 = vmatpush.bf16.msra.mxu0 %v1313
    %4941 = vmatpush.bf16.msra.mxu0 %v1310
    %4942 = vmatmul.bf16.gmra.mxu0 %v4381
    %v4943 = vpop.f32.mrf.mxu0
    %v4944 = vadd.f32 0.0, %v4943
    %v4945 = vpop.f32.mrf.mxu0
    %v4946 = vadd.f32 0.0, %v4945
    %4947 = vdwg.mxu0
    %4948 = vmatpush.bf16.msra.mxu0 %v1332
    %4949 = vmatpush.bf16.msra.mxu0 %v1329
    %4950 = vmatpush.bf16.msra.mxu0 %v1326
    %4951 = vmatpush.bf16.msra.mxu0 %v1323
    %4952 = vmatpush.bf16.msra.mxu0 %v1320
    %4953 = vmatpush.bf16.msra.mxu0 %v1317
    %4954 = vmatpush.bf16.msra.mxu0 %v1314
    %4955 = vmatpush.bf16.msra.mxu0 %v1311
    %4956 = vmatmul.bf16.gmra.mxu0 %v4381
    %v4957 = vpop.f32.mrf.mxu0
    %v4958 = vadd.f32 0.0, %v4957
    %v4959 = vpop.f32.mrf.mxu0
    %v4960 = vadd.f32 0.0, %v4959
    %4961 = vdwg.mxu0
    %4962 = vmatpush.bf16.msra.mxu0 %v1333
    %4963 = vmatpush.bf16.msra.mxu0 %v1330
    %4964 = vmatpush.bf16.msra.mxu0 %v1327
    %4965 = vmatpush.bf16.msra.mxu0 %v1324
    %4966 = vmatpush.bf16.msra.mxu0 %v1321
    %4967 = vmatpush.bf16.msra.mxu0 %v1318
    %4968 = vmatpush.bf16.msra.mxu0 %v1315
    %4969 = vmatpush.bf16.msra.mxu0 %v1312
    %4970 = vmatmul.bf16.gmra.mxu0 %v4381
    %v4971 = vpop.f32.mrf.mxu0
    %v4972 = vadd.f32 0.0, %v4971
    %v4973 = vpop.f32.mrf.mxu0
    %v4974 = vadd.f32 0.0, %v4973
    %4975 = vdwg.mxu0
    %v4976 = vadd.f32 %v4902, %v4944
    %v4977 = vadd.f32 %v4904, %v4946
    %v4978 = vxor.u32 %v4976, 2147483648
    %v4979 = vxor.u32 %v4977, 2147483648
    %v4980 = vmul.f32 %v4978, 1.442695
    %v4981 = vpow.pop %v4980
    %v4982 = vmul.f32 %v4979, 1.442695
    %v4983 = vpow.pop %v4982
    %v4984 = vadd.f32 %v4981, 1.0
    %v4985 = vadd.f32 %v4983, 1.0
    %v4986 = vrcp.pop %v4984
    %v4987 = vmul.f32 %v4984, %v4986
    %v4988 = vsub.f32 1.0, %v4987
    %v4989 = vmul.f32 %v4986, %v4988
    %v4990 = vadd.f32 %v4986, %v4989
    %vm4991 = vweird.f32 %v4984
    %vm4992 = vweird.f32 %v4986
    %vm4993 = vmor %vm4991, %vm4992
    %v4994 = vsel %vm4993, %v4986, %v4990
    %v4995 = vand.u32 2147483647, %v4984
    %vm4996 = vcmp.eq.f32.partialorder %v4995, 8.507059e+37
    %v4997 = vand.u32 %v4984, 2147483648
    %v4998 = vor.u32 1.1754944e-38, %v4997
    %v4999 = vsel %vm4996, %v4998, %v4994
    %v5000 = vmul.f32 1.0, %v4999
    %v5001 = vrcp.pop %v4985
    %v5002 = vmul.f32 %v4985, %v5001
    %v5003 = vsub.f32 1.0, %v5002
    %v5004 = vmul.f32 %v5001, %v5003
    %v5005 = vadd.f32 %v5001, %v5004
    %vm5006 = vweird.f32 %v4985
    %vm5007 = vweird.f32 %v5001
    %vm5008 = vmor %vm5006, %vm5007
    %v5009 = vsel %vm5008, %v5001, %v5005
    %v5010 = vand.u32 2147483647, %v4985
    %vm5011 = vcmp.eq.f32.partialorder %v5010, 8.507059e+37
    %v5012 = vand.u32 %v4985, 2147483648
    %v5013 = vor.u32 1.1754944e-38, %v5012
    %v5014 = vsel %vm5011, %v5013, %v5009
    %v5015 = vmul.f32 1.0, %v5014
    %v5016 = vadd.f32 %v4916, %v4958
    %v5017 = vadd.f32 %v4918, %v4960
    %v5018 = vxor.u32 %v5016, 2147483648
    %v5019 = vxor.u32 %v5017, 2147483648
    %v5020 = vmul.f32 %v5018, 1.442695
    %v5021 = vpow.pop %v5020
    %v5022 = vmul.f32 %v5019, 1.442695
    %v5023 = vpow.pop %v5022
    %v5024 = vadd.f32 %v5021, 1.0
    %v5025 = vadd.f32 %v5023, 1.0
    %v5026 = vrcp.pop %v5024
    %v5027 = vmul.f32 %v5024, %v5026
    %v5028 = vsub.f32 1.0, %v5027
    %v5029 = vmul.f32 %v5026, %v5028
    %v5030 = vadd.f32 %v5026, %v5029
    %vm5031 = vweird.f32 %v5024
    %vm5032 = vweird.f32 %v5026
    %vm5033 = vmor %vm5031, %vm5032
    %v5034 = vsel %vm5033, %v5026, %v5030
    %v5035 = vand.u32 2147483647, %v5024
    %vm5036 = vcmp.eq.f32.partialorder %v5035, 8.507059e+37
    %v5037 = vand.u32 %v5024, 2147483648
    %v5038 = vor.u32 1.1754944e-38, %v5037
    %v5039 = vsel %vm5036, %v5038, %v5034
    %v5040 = vmul.f32 1.0, %v5039
    %v5041 = vrcp.pop %v5025
    %v5042 = vmul.f32 %v5025, %v5041
    %v5043 = vsub.f32 1.0, %v5042
    %v5044 = vmul.f32 %v5041, %v5043
    %v5045 = vadd.f32 %v5041, %v5044
    %vm5046 = vweird.f32 %v5025
    %vm5047 = vweird.f32 %v5041
    %vm5048 = vmor %vm5046, %vm5047
    %v5049 = vsel %vm5048, %v5041, %v5045
    %v5050 = vand.u32 2147483647, %v5025
    %vm5051 = vcmp.eq.f32.partialorder %v5050, 8.507059e+37
    %v5052 = vand.u32 %v5025, 2147483648
    %v5053 = vor.u32 1.1754944e-38, %v5052
    %v5054 = vsel %vm5051, %v5053, %v5049
    %v5055 = vmul.f32 1.0, %v5054
    %v5056 = vadd.f32 %v4972, %v1482
    %v5057 = vadd.f32 %v4974, %v1482
    %v5058 = vmul.f32 %v5000, %v5056
    %v5059 = vmul.f32 %v5015, %v5057
    %v5060 = vadd.f32 %v4930, %v5058
    %v5061 = vadd.f32 %v4932, %v5059
    %v5062 = vtanh.pop %v5060
    %v5063 = vtanh.pop %v5061
    %v5064 = vsub.f32 1.0, %v5040
    %v5065 = vsub.f32 1.0, %v5055
    %v5066 = vmul.f32 %v5064, %v5062
    %v5067 = vmul.f32 %v5065, %v5063
    %v5068 = vmul.f32 %v5040, %v4379
    %v5069 = vmul.f32 %v5055, %v4380
    %v5070 = vadd.f32 %v5066, %v5068
    %v5071 = vadd.f32 %v5067, %v5069
    %v5072 = vpack.c.bf16 %v5071, %v5070
    %5073 = vmatpush.bf16.msra.mxu0 %v1968
    %5074 = vmatpush.bf16.msra.mxu0 %v1965
    %5075 = vmatpush.bf16.msra.mxu0 %v1962
    %5076 = vmatpush.bf16.msra.mxu0 %v1959
    %5077 = vmatpush.bf16.msra.mxu0 %v1956
    %5078 = vmatpush.bf16.msra.mxu0 %v1953
    %5079 = vmatpush.bf16.msra.mxu0 %v1950
    %5080 = vmatpush.bf16.msra.mxu0 %v1947
    %5081 = vmatmul.bf16.gmra.mxu0 %v4381
    %v5082 = vpop.f32.mrf.mxu0
    %v5083 = vadd.f32 %v1861, %v5082
    %v5084 = vpop.f32.mrf.mxu0
    %v5085 = vadd.f32 %v1861, %v5084
    %5086 = vdwg.mxu0
    %5087 = vmatpush.bf16.msra.mxu0 %v1969
    %5088 = vmatpush.bf16.msra.mxu0 %v1966
    %5089 = vmatpush.bf16.msra.mxu0 %v1963
    %5090 = vmatpush.bf16.msra.mxu0 %v1960
    %5091 = vmatpush.bf16.msra.mxu0 %v1957
    %5092 = vmatpush.bf16.msra.mxu0 %v1954
    %5093 = vmatpush.bf16.msra.mxu0 %v1951
    %5094 = vmatpush.bf16.msra.mxu0 %v1948
    %5095 = vmatmul.bf16.gmra.mxu0 %v4381
    %v5096 = vpop.f32.mrf.mxu0
    %v5097 = vadd.f32 %v1862, %v5096
    %v5098 = vpop.f32.mrf.mxu0
    %v5099 = vadd.f32 %v1862, %v5098
    %5100 = vdwg.mxu0
    %5101 = vmatpush.bf16.msra.mxu0 %v1970
    %5102 = vmatpush.bf16.msra.mxu0 %v1967
    %5103 = vmatpush.bf16.msra.mxu0 %v1964
    %5104 = vmatpush.bf16.msra.mxu0 %v1961
    %5105 = vmatpush.bf16.msra.mxu0 %v1958
    %5106 = vmatpush.bf16.msra.mxu0 %v1955
    %5107 = vmatpush.bf16.msra.mxu0 %v1952
    %5108 = vmatpush.bf16.msra.mxu0 %v1949
    %5109 = vmatmul.bf16.gmra.mxu0 %v4381
    %v5110 = vpop.f32.mrf.mxu0
    %v5111 = vadd.f32 %v1863, %v5110
    %v5112 = vpop.f32.mrf.mxu0
    %v5113 = vadd.f32 %v1863, %v5112
    %5114 = vdwg.mxu0
    %5115 = vmatpush.bf16.msra.mxu0 %v2170
    %5116 = vmatpush.bf16.msra.mxu0 %v2167
    %5117 = vmatpush.bf16.msra.mxu0 %v2164
    %5118 = vmatpush.bf16.msra.mxu0 %v2161
    %5119 = vmatpush.bf16.msra.mxu0 %v2158
    %5120 = vmatpush.bf16.msra.mxu0 %v2155
    %5121 = vmatpush.bf16.msra.mxu0 %v2152
    %5122 = vmatpush.bf16.msra.mxu0 %v2149
    %5123 = vmatmul.bf16.gmra.mxu0 %v4562
    %v5124 = vpop.f32.mrf.mxu0
    %v5125 = vadd.f32 0.0, %v5124
    %v5126 = vpop.f32.mrf.mxu0
    %v5127 = vadd.f32 0.0, %v5126
    %5128 = vdwg.mxu0
    %5129 = vmatpush.bf16.msra.mxu0 %v2171
    %5130 = vmatpush.bf16.msra.mxu0 %v2168
    %5131 = vmatpush.bf16.msra.mxu0 %v2165
    %5132 = vmatpush.bf16.msra.mxu0 %v2162
    %5133 = vmatpush.bf16.msra.mxu0 %v2159
    %5134 = vmatpush.bf16.msra.mxu0 %v2156
    %5135 = vmatpush.bf16.msra.mxu0 %v2153
    %5136 = vmatpush.bf16.msra.mxu0 %v2150
    %5137 = vmatmul.bf16.gmra.mxu0 %v4562
    %v5138 = vpop.f32.mrf.mxu0
    %v5139 = vadd.f32 0.0, %v5138
    %v5140 = vpop.f32.mrf.mxu0
    %v5141 = vadd.f32 0.0, %v5140
    %5142 = vdwg.mxu0
    %5143 = vmatpush.bf16.msra.mxu0 %v2172
    %5144 = vmatpush.bf16.msra.mxu0 %v2169
    %5145 = vmatpush.bf16.msra.mxu0 %v2166
    %5146 = vmatpush.bf16.msra.mxu0 %v2163
    %5147 = vmatpush.bf16.msra.mxu0 %v2160
    %5148 = vmatpush.bf16.msra.mxu0 %v2157
    %5149 = vmatpush.bf16.msra.mxu0 %v2154
    %5150 = vmatpush.bf16.msra.mxu0 %v2151
    %5151 = vmatmul.bf16.gmra.mxu0 %v4562
    %v5152 = vpop.f32.mrf.mxu0
    %v5153 = vadd.f32 0.0, %v5152
    %v5154 = vpop.f32.mrf.mxu0
    %v5155 = vadd.f32 0.0, %v5154
    %5156 = vdwg.mxu0
    %v5157 = vadd.f32 %v5083, %v5125
    %v5158 = vadd.f32 %v5085, %v5127
    %v5159 = vxor.u32 %v5157, 2147483648
    %v5160 = vxor.u32 %v5158, 2147483648
    %v5161 = vmul.f32 %v5159, 1.442695
    %v5162 = vpow.pop %v5161
    %v5163 = vmul.f32 %v5160, 1.442695
    %v5164 = vpow.pop %v5163
    %v5165 = vadd.f32 %v5162, 1.0
    %v5166 = vadd.f32 %v5164, 1.0
    %v5167 = vrcp.pop %v5165
    %v5168 = vmul.f32 %v5165, %v5167
    %v5169 = vsub.f32 1.0, %v5168
    %v5170 = vmul.f32 %v5167, %v5169
    %v5171 = vadd.f32 %v5167, %v5170
    %vm5172 = vweird.f32 %v5165
    %vm5173 = vweird.f32 %v5167
    %vm5174 = vmor %vm5172, %vm5173
    %v5175 = vsel %vm5174, %v5167, %v5171
    %v5176 = vand.u32 2147483647, %v5165
    %vm5177 = vcmp.eq.f32.partialorder %v5176, 8.507059e+37
    %v5178 = vand.u32 %v5165, 2147483648
    %v5179 = vor.u32 1.1754944e-38, %v5178
    %v5180 = vsel %vm5177, %v5179, %v5175
    %v5181 = vmul.f32 1.0, %v5180
    %v5182 = vrcp.pop %v5166
    %v5183 = vmul.f32 %v5166, %v5182
    %v5184 = vsub.f32 1.0, %v5183
    %v5185 = vmul.f32 %v5182, %v5184
    %v5186 = vadd.f32 %v5182, %v5185
    %vm5187 = vweird.f32 %v5166
    %vm5188 = vweird.f32 %v5182
    %vm5189 = vmor %vm5187, %vm5188
    %v5190 = vsel %vm5189, %v5182, %v5186
    %v5191 = vand.u32 2147483647, %v5166
    %vm5192 = vcmp.eq.f32.partialorder %v5191, 8.507059e+37
    %v5193 = vand.u32 %v5166, 2147483648
    %v5194 = vor.u32 1.1754944e-38, %v5193
    %v5195 = vsel %vm5192, %v5194, %v5190
    %v5196 = vmul.f32 1.0, %v5195
    %v5197 = vadd.f32 %v5097, %v5139
    %v5198 = vadd.f32 %v5099, %v5141
    %v5199 = vxor.u32 %v5197, 2147483648
    %v5200 = vxor.u32 %v5198, 2147483648
    %v5201 = vmul.f32 %v5199, 1.442695
    %v5202 = vpow.pop %v5201
    %v5203 = vmul.f32 %v5200, 1.442695
    %v5204 = vpow.pop %v5203
    %v5205 = vadd.f32 %v5202, 1.0
    %v5206 = vadd.f32 %v5204, 1.0
    %v5207 = vrcp.pop %v5205
    %v5208 = vmul.f32 %v5205, %v5207
    %v5209 = vsub.f32 1.0, %v5208
    %v5210 = vmul.f32 %v5207, %v5209
    %v5211 = vadd.f32 %v5207, %v5210
    %vm5212 = vweird.f32 %v5205
    %vm5213 = vweird.f32 %v5207
    %vm5214 = vmor %vm5212, %vm5213
    %v5215 = vsel %vm5214, %v5207, %v5211
    %v5216 = vand.u32 2147483647, %v5205
    %vm5217 = vcmp.eq.f32.partialorder %v5216, 8.507059e+37
    %v5218 = vand.u32 %v5205, 2147483648
    %v5219 = vor.u32 1.1754944e-38, %v5218
    %v5220 = vsel %vm5217, %v5219, %v5215
    %v5221 = vmul.f32 1.0, %v5220
    %v5222 = vrcp.pop %v5206
    %v5223 = vmul.f32 %v5206, %v5222
    %v5224 = vsub.f32 1.0, %v5223
    %v5225 = vmul.f32 %v5222, %v5224
    %v5226 = vadd.f32 %v5222, %v5225
    %vm5227 = vweird.f32 %v5206
    %vm5228 = vweird.f32 %v5222
    %vm5229 = vmor %vm5227, %vm5228
    %v5230 = vsel %vm5229, %v5222, %v5226
    %v5231 = vand.u32 2147483647, %v5206
    %vm5232 = vcmp.eq.f32.partialorder %v5231, 8.507059e+37
    %v5233 = vand.u32 %v5206, 2147483648
    %v5234 = vor.u32 1.1754944e-38, %v5233
    %v5235 = vsel %vm5232, %v5234, %v5230
    %v5236 = vmul.f32 1.0, %v5235
    %v5237 = vadd.f32 %v5153, %v2321
    %v5238 = vadd.f32 %v5155, %v2321
    %v5239 = vmul.f32 %v5181, %v5237
    %v5240 = vmul.f32 %v5196, %v5238
    %v5241 = vadd.f32 %v5111, %v5239
    %v5242 = vadd.f32 %v5113, %v5240
    %v5243 = vtanh.pop %v5241
    %v5244 = vtanh.pop %v5242
    %v5245 = vsub.f32 1.0, %v5221
    %v5246 = vsub.f32 1.0, %v5236
    %v5247 = vmul.f32 %v5245, %v5243
    %v5248 = vmul.f32 %v5246, %v5244
    %v5249 = vmul.f32 %v5221, %v4560
    %v5250 = vmul.f32 %v5236, %v4561
    %v5251 = vadd.f32 %v5247, %v5249
    %v5252 = vadd.f32 %v5248, %v5250
    %v5253 = vpack.c.bf16 %v5252, %v5251
    %5254 = vmatpush.bf16.msra.mxu0 %v2991
    %5255 = vmatpush.bf16.msra.mxu0 %v2988
    %5256 = vmatpush.bf16.msra.mxu0 %v2985
    %5257 = vmatpush.bf16.msra.mxu0 %v2982
    %5258 = vmatpush.bf16.msra.mxu0 %v2979
    %5259 = vmatpush.bf16.msra.mxu0 %v2976
    %5260 = vmatpush.bf16.msra.mxu0 %v2973
    %5261 = vmatpush.bf16.msra.mxu0 %v2970
    %5262 = vmatmul.bf16.gmra.mxu0 %v4562
    %v5263 = vpop.f32.mrf.mxu0
    %v5264 = vadd.f32 %v2884, %v5263
    %v5265 = vpop.f32.mrf.mxu0
    %v5266 = vadd.f32 %v2884, %v5265
    %5267 = vdwg.mxu0
    %5268 = vmatpush.bf16.msra.mxu0 %v2992
    %5269 = vmatpush.bf16.msra.mxu0 %v2989
    %5270 = vmatpush.bf16.msra.mxu0 %v2986
    %5271 = vmatpush.bf16.msra.mxu0 %v2983
    %5272 = vmatpush.bf16.msra.mxu0 %v2980
    %5273 = vmatpush.bf16.msra.mxu0 %v2977
    %5274 = vmatpush.bf16.msra.mxu0 %v2974
    %5275 = vmatpush.bf16.msra.mxu0 %v2971
    %5276 = vmatmul.bf16.gmra.mxu0 %v4562
    %v5277 = vpop.f32.mrf.mxu0
    %v5278 = vadd.f32 %v2885, %v5277
    %v5279 = vpop.f32.mrf.mxu0
    %v5280 = vadd.f32 %v2885, %v5279
    %5281 = vdwg.mxu0
    %5282 = vmatpush.bf16.msra.mxu0 %v2993
    %5283 = vmatpush.bf16.msra.mxu0 %v2990
    %5284 = vmatpush.bf16.msra.mxu0 %v2987
    %5285 = vmatpush.bf16.msra.mxu0 %v2984
    %5286 = vmatpush.bf16.msra.mxu0 %v2981
    %5287 = vmatpush.bf16.msra.mxu0 %v2978
    %5288 = vmatpush.bf16.msra.mxu0 %v2975
    %5289 = vmatpush.bf16.msra.mxu0 %v2972
    %5290 = vmatmul.bf16.gmra.mxu0 %v4562
    %v5291 = vpop.f32.mrf.mxu0
    %v5292 = vadd.f32 %v2886, %v5291
    %v5293 = vpop.f32.mrf.mxu0
    %v5294 = vadd.f32 %v2886, %v5293
    %5295 = vdwg.mxu0
    %v5296 = vpack.c.bf16 %v4743, %v4742
    %5297 = vmatpush.bf16.msra.mxu0 %v3193
    %5298 = vmatpush.bf16.msra.mxu0 %v3190
    %5299 = vmatpush.bf16.msra.mxu0 %v3187
    %5300 = vmatpush.bf16.msra.mxu0 %v3184
    %5301 = vmatpush.bf16.msra.mxu0 %v3181
    %5302 = vmatpush.bf16.msra.mxu0 %v3178
    %5303 = vmatpush.bf16.msra.mxu0 %v3175
    %5304 = vmatpush.bf16.msra.mxu0 %v3172
    %5305 = vmatmul.bf16.gmra.mxu0 %v5296
    %v5306 = vpop.f32.mrf.mxu0
    %v5307 = vadd.f32 0.0, %v5306
    %v5308 = vpop.f32.mrf.mxu0
    %v5309 = vadd.f32 0.0, %v5308
    %5310 = vdwg.mxu0
    %5311 = vmatpush.bf16.msra.mxu0 %v3194
    %5312 = vmatpush.bf16.msra.mxu0 %v3191
    %5313 = vmatpush.bf16.msra.mxu0 %v3188
    %5314 = vmatpush.bf16.msra.mxu0 %v3185
    %5315 = vmatpush.bf16.msra.mxu0 %v3182
    %5316 = vmatpush.bf16.msra.mxu0 %v3179
    %5317 = vmatpush.bf16.msra.mxu0 %v3176
    %5318 = vmatpush.bf16.msra.mxu0 %v3173
    %5319 = vmatmul.bf16.gmra.mxu0 %v5296
    %v5320 = vpop.f32.mrf.mxu0
    %v5321 = vadd.f32 0.0, %v5320
    %v5322 = vpop.f32.mrf.mxu0
    %v5323 = vadd.f32 0.0, %v5322
    %5324 = vdwg.mxu0
    %5325 = vmatpush.bf16.msra.mxu0 %v3195
    %5326 = vmatpush.bf16.msra.mxu0 %v3192
    %5327 = vmatpush.bf16.msra.mxu0 %v3189
    %5328 = vmatpush.bf16.msra.mxu0 %v3186
    %5329 = vmatpush.bf16.msra.mxu0 %v3183
    %5330 = vmatpush.bf16.msra.mxu0 %v3180
    %5331 = vmatpush.bf16.msra.mxu0 %v3177
    %5332 = vmatpush.bf16.msra.mxu0 %v3174
    %5333 = vmatmul.bf16.gmra.mxu0 %v5296
    %v5334 = vpop.f32.mrf.mxu0
    %v5335 = vadd.f32 0.0, %v5334
    %v5336 = vpop.f32.mrf.mxu0
    %v5337 = vadd.f32 0.0, %v5336
    %5338 = vdwg.mxu0
    %v5339 = vadd.f32 %v5264, %v5307
    %v5340 = vadd.f32 %v5266, %v5309
    %v5341 = vxor.u32 %v5339, 2147483648
    %v5342 = vxor.u32 %v5340, 2147483648
    %v5343 = vmul.f32 %v5341, 1.442695
    %v5344 = vpow.pop %v5343
    %v5345 = vmul.f32 %v5342, 1.442695
    %v5346 = vpow.pop %v5345
    %v5347 = vadd.f32 %v5344, 1.0
    %v5348 = vadd.f32 %v5346, 1.0
    %v5349 = vrcp.pop %v5347
    %v5350 = vmul.f32 %v5347, %v5349
    %v5351 = vsub.f32 1.0, %v5350
    %v5352 = vmul.f32 %v5349, %v5351
    %v5353 = vadd.f32 %v5349, %v5352
    %vm5354 = vweird.f32 %v5347
    %vm5355 = vweird.f32 %v5349
    %vm5356 = vmor %vm5354, %vm5355
    %v5357 = vsel %vm5356, %v5349, %v5353
    %v5358 = vand.u32 2147483647, %v5347
    %vm5359 = vcmp.eq.f32.partialorder %v5358, 8.507059e+37
    %v5360 = vand.u32 %v5347, 2147483648
    %v5361 = vor.u32 1.1754944e-38, %v5360
    %v5362 = vsel %vm5359, %v5361, %v5357
    %v5363 = vmul.f32 1.0, %v5362
    %v5364 = vrcp.pop %v5348
    %v5365 = vmul.f32 %v5348, %v5364
    %v5366 = vsub.f32 1.0, %v5365
    %v5367 = vmul.f32 %v5364, %v5366
    %v5368 = vadd.f32 %v5364, %v5367
    %vm5369 = vweird.f32 %v5348
    %vm5370 = vweird.f32 %v5364
    %vm5371 = vmor %vm5369, %vm5370
    %v5372 = vsel %vm5371, %v5364, %v5368
    %v5373 = vand.u32 2147483647, %v5348
    %vm5374 = vcmp.eq.f32.partialorder %v5373, 8.507059e+37
    %v5375 = vand.u32 %v5348, 2147483648
    %v5376 = vor.u32 1.1754944e-38, %v5375
    %v5377 = vsel %vm5374, %v5376, %v5372
    %v5378 = vmul.f32 1.0, %v5377
    %v5379 = vadd.f32 %v5278, %v5321
    %v5380 = vadd.f32 %v5280, %v5323
    %v5381 = vxor.u32 %v5379, 2147483648
    %v5382 = vxor.u32 %v5380, 2147483648
    %v5383 = vmul.f32 %v5381, 1.442695
    %v5384 = vpow.pop %v5383
    %v5385 = vmul.f32 %v5382, 1.442695
    %v5386 = vpow.pop %v5385
    %v5387 = vadd.f32 %v5384, 1.0
    %v5388 = vadd.f32 %v5386, 1.0
    %v5389 = vrcp.pop %v5387
    %v5390 = vmul.f32 %v5387, %v5389
    %v5391 = vsub.f32 1.0, %v5390
    %v5392 = vmul.f32 %v5389, %v5391
    %v5393 = vadd.f32 %v5389, %v5392
    %vm5394 = vweird.f32 %v5387
    %vm5395 = vweird.f32 %v5389
    %vm5396 = vmor %vm5394, %vm5395
    %v5397 = vsel %vm5396, %v5389, %v5393
    %v5398 = vand.u32 2147483647, %v5387
    %vm5399 = vcmp.eq.f32.partialorder %v5398, 8.507059e+37
    %v5400 = vand.u32 %v5387, 2147483648
    %v5401 = vor.u32 1.1754944e-38, %v5400
    %v5402 = vsel %vm5399, %v5401, %v5397
    %v5403 = vmul.f32 1.0, %v5402
    %v5404 = vrcp.pop %v5388
    %v5405 = vmul.f32 %v5388, %v5404
    %v5406 = vsub.f32 1.0, %v5405
    %v5407 = vmul.f32 %v5404, %v5406
    %v5408 = vadd.f32 %v5404, %v5407
    %vm5409 = vweird.f32 %v5388
    %vm5410 = vweird.f32 %v5404
    %vm5411 = vmor %vm5409, %vm5410
    %v5412 = vsel %vm5411, %v5404, %v5408
    %v5413 = vand.u32 2147483647, %v5388
    %vm5414 = vcmp.eq.f32.partialorder %v5413, 8.507059e+37
    %v5415 = vand.u32 %v5388, 2147483648
    %v5416 = vor.u32 1.1754944e-38, %v5415
    %v5417 = vsel %vm5414, %v5416, %v5412
    %v5418 = vmul.f32 1.0, %v5417
    %v5419 = vadd.f32 %v5335, %v3344
    %v5420 = vadd.f32 %v5337, %v3344
    %v5421 = vmul.f32 %v5363, %v5419
    %v5422 = vmul.f32 %v5378, %v5420
    %v5423 = vadd.f32 %v5292, %v5421
    %v5424 = vadd.f32 %v5294, %v5422
    %v5425 = vtanh.pop %v5423
    %v5426 = vtanh.pop %v5424
    %v5427 = vsub.f32 1.0, %v5403
    %v5428 = vsub.f32 1.0, %v5418
    %v5429 = vmul.f32 %v5427, %v5425
    %v5430 = vmul.f32 %v5428, %v5426
    %v5431 = vmul.f32 %v5403, %v4742
    %v5432 = vmul.f32 %v5418, %v4743
    %v5433 = vadd.f32 %v5429, %v5431
    %v5434 = vadd.f32 %v5430, %v5432
    %s5435 = smul.u32 14, 3
    %s5436 = smul.addr %s5435, 8
    %s5437 = scalar_lea.vmem [#allocation2], %s5436
    %v5438 = vld [vmem:[%s5437] sm:$0xff]
    %v5439 = vld [vmem:[%s5437 + $0x8] sm:$0xff]
    %v5440 = vld [vmem:[%s5437 + $0x10] sm:$0xff]
    %v5441 = vld [vmem:[%s5437 + $0x18] sm:$0xff]
    %v5442 = vld [vmem:[%s5437 + $0x20] sm:$0xff]
    %v5443 = vld [vmem:[%s5437 + $0x28] sm:$0xff]
    %5444 = vmatpush.bf16.msra.mxu0 %v673
    %5445 = vmatpush.bf16.msra.mxu0 %v670
    %5446 = vmatpush.bf16.msra.mxu0 %v667
    %5447 = vmatpush.bf16.msra.mxu0 %v664
    %5448 = vmatpush.bf16.msra.mxu0 %v661
    %5449 = vmatpush.bf16.msra.mxu0 %v658
    %5450 = vmatpush.bf16.msra.mxu0 %v655
    %5451 = vmatpush.bf16.msra.mxu0 %v652
    %5452 = vmatmul.bf16.gmra.mxu0 %v4891
    %v5453 = vpop.f32.mrf.mxu0
    %v5454 = vadd.f32 0.0, %v5453
    %v5455 = vpop.f32.mrf.mxu0
    %v5456 = vadd.f32 0.0, %v5455
    %5457 = vdwg.mxu0
    %5458 = vmatpush.bf16.msra.mxu0 %v674
    %5459 = vmatpush.bf16.msra.mxu0 %v671
    %5460 = vmatpush.bf16.msra.mxu0 %v668
    %5461 = vmatpush.bf16.msra.mxu0 %v665
    %5462 = vmatpush.bf16.msra.mxu0 %v662
    %5463 = vmatpush.bf16.msra.mxu0 %v659
    %5464 = vmatpush.bf16.msra.mxu0 %v656
    %5465 = vmatpush.bf16.msra.mxu0 %v653
    %5466 = vmatmul.bf16.gmra.mxu0 %v4891
    %v5467 = vpop.f32.mrf.mxu0
    %v5468 = vadd.f32 0.0, %v5467
    %v5469 = vpop.f32.mrf.mxu0
    %v5470 = vadd.f32 0.0, %v5469
    %5471 = vdwg.mxu0
    %5472 = vmatpush.bf16.msra.mxu0 %v675
    %5473 = vmatpush.bf16.msra.mxu0 %v672
    %5474 = vmatpush.bf16.msra.mxu0 %v669
    %5475 = vmatpush.bf16.msra.mxu0 %v666
    %5476 = vmatpush.bf16.msra.mxu0 %v663
    %5477 = vmatpush.bf16.msra.mxu0 %v660
    %5478 = vmatpush.bf16.msra.mxu0 %v657
    %5479 = vmatpush.bf16.msra.mxu0 %v654
    %5480 = vmatmul.bf16.gmra.mxu0 %v4891
    %v5481 = vpop.f32.mrf.mxu0
    %v5482 = vadd.f32 0.0, %v5481
    %v5483 = vpop.f32.mrf.mxu0
    %v5484 = vadd.f32 0.0, %v5483
    %5485 = vdwg.mxu0
    %v5486 = vadd.f32 %v5438, %v5454
    %v5487 = vadd.f32 %v5441, %v5456
    %v5488 = vxor.u32 %v5486, 2147483648
    %v5489 = vxor.u32 %v5487, 2147483648
    %v5490 = vmul.f32 %v5488, 1.442695
    %v5491 = vpow.pop %v5490
    %v5492 = vmul.f32 %v5489, 1.442695
    %v5493 = vpow.pop %v5492
    %v5494 = vadd.f32 %v5491, 1.0
    %v5495 = vadd.f32 %v5493, 1.0
    %v5496 = vrcp.pop %v5494
    %v5497 = vmul.f32 %v5494, %v5496
    %v5498 = vsub.f32 1.0, %v5497
    %v5499 = vmul.f32 %v5496, %v5498
    %v5500 = vadd.f32 %v5496, %v5499
    %vm5501 = vweird.f32 %v5494
    %vm5502 = vweird.f32 %v5496
    %vm5503 = vmor %vm5501, %vm5502
    %v5504 = vsel %vm5503, %v5496, %v5500
    %v5505 = vand.u32 2147483647, %v5494
    %vm5506 = vcmp.eq.f32.partialorder %v5505, 8.507059e+37
    %v5507 = vand.u32 %v5494, 2147483648
    %v5508 = vor.u32 1.1754944e-38, %v5507
    %v5509 = vsel %vm5506, %v5508, %v5504
    %v5510 = vmul.f32 1.0, %v5509
    %v5511 = vrcp.pop %v5495
    %v5512 = vmul.f32 %v5495, %v5511
    %v5513 = vsub.f32 1.0, %v5512
    %v5514 = vmul.f32 %v5511, %v5513
    %v5515 = vadd.f32 %v5511, %v5514
    %vm5516 = vweird.f32 %v5495
    %vm5517 = vweird.f32 %v5511
    %vm5518 = vmor %vm5516, %vm5517
    %v5519 = vsel %vm5518, %v5511, %v5515
    %v5520 = vand.u32 2147483647, %v5495
    %vm5521 = vcmp.eq.f32.partialorder %v5520, 8.507059e+37
    %v5522 = vand.u32 %v5495, 2147483648
    %v5523 = vor.u32 1.1754944e-38, %v5522
    %v5524 = vsel %vm5521, %v5523, %v5519
    %v5525 = vmul.f32 1.0, %v5524
    %v5526 = vadd.f32 %v5439, %v5468
    %v5527 = vadd.f32 %v5442, %v5470
    %v5528 = vxor.u32 %v5526, 2147483648
    %v5529 = vxor.u32 %v5527, 2147483648
    %v5530 = vmul.f32 %v5528, 1.442695
    %v5531 = vpow.pop %v5530
    %v5532 = vmul.f32 %v5529, 1.442695
    %v5533 = vpow.pop %v5532
    %v5534 = vadd.f32 %v5531, 1.0
    %v5535 = vadd.f32 %v5533, 1.0
    %v5536 = vrcp.pop %v5534
    %v5537 = vmul.f32 %v5534, %v5536
    %v5538 = vsub.f32 1.0, %v5537
    %v5539 = vmul.f32 %v5536, %v5538
    %v5540 = vadd.f32 %v5536, %v5539
    %vm5541 = vweird.f32 %v5534
    %vm5542 = vweird.f32 %v5536
    %vm5543 = vmor %vm5541, %vm5542
    %v5544 = vsel %vm5543, %v5536, %v5540
    %v5545 = vand.u32 2147483647, %v5534
    %vm5546 = vcmp.eq.f32.partialorder %v5545, 8.507059e+37
    %v5547 = vand.u32 %v5534, 2147483648
    %v5548 = vor.u32 1.1754944e-38, %v5547
    %v5549 = vsel %vm5546, %v5548, %v5544
    %v5550 = vmul.f32 1.0, %v5549
    %v5551 = vrcp.pop %v5535
    %v5552 = vmul.f32 %v5535, %v5551
    %v5553 = vsub.f32 1.0, %v5552
    %v5554 = vmul.f32 %v5551, %v5553
    %v5555 = vadd.f32 %v5551, %v5554
    %vm5556 = vweird.f32 %v5535
    %vm5557 = vweird.f32 %v5551
    %vm5558 = vmor %vm5556, %vm5557
    %v5559 = vsel %vm5558, %v5551, %v5555
    %v5560 = vand.u32 2147483647, %v5535
    %vm5561 = vcmp.eq.f32.partialorder %v5560, 8.507059e+37
    %v5562 = vand.u32 %v5535, 2147483648
    %v5563 = vor.u32 1.1754944e-38, %v5562
    %v5564 = vsel %vm5561, %v5563, %v5559
    %v5565 = vmul.f32 1.0, %v5564
    %v5566 = vadd.f32 %v5482, %v824
    %v5567 = vadd.f32 %v5484, %v824
    %v5568 = vmul.f32 %v5510, %v5566
    %v5569 = vmul.f32 %v5525, %v5567
    %v5570 = vadd.f32 %v5440, %v5568
    %v5571 = vadd.f32 %v5443, %v5569
    %v5572 = vtanh.pop %v5570
    %v5573 = vtanh.pop %v5571
    %v5574 = vsub.f32 1.0, %v5550
    %v5575 = vsub.f32 1.0, %v5565
    %v5576 = vmul.f32 %v5574, %v5572
    %v5577 = vmul.f32 %v5575, %v5573
    %v5578 = vmul.f32 %v5550, %v4889
    %v5579 = vmul.f32 %v5565, %v4890
    %v5580 = vadd.f32 %v5576, %v5578
    %v5581 = vadd.f32 %v5577, %v5579
    %v5582 = vpack.c.bf16 %v5581, %v5580
    %5583 = vmatpush.bf16.msra.mxu0 %v1129
    %5584 = vmatpush.bf16.msra.mxu0 %v1126
    %5585 = vmatpush.bf16.msra.mxu0 %v1123
    %5586 = vmatpush.bf16.msra.mxu0 %v1120
    %5587 = vmatpush.bf16.msra.mxu0 %v1117
    %5588 = vmatpush.bf16.msra.mxu0 %v1114
    %5589 = vmatpush.bf16.msra.mxu0 %v1111
    %5590 = vmatpush.bf16.msra.mxu0 %v1108
    %5591 = vmatmul.bf16.gmra.mxu0 %v4891
    %v5592 = vpop.f32.mrf.mxu0
    %v5593 = vadd.f32 %v1022, %v5592
    %v5594 = vpop.f32.mrf.mxu0
    %v5595 = vadd.f32 %v1022, %v5594
    %5596 = vdwg.mxu0
    %5597 = vmatpush.bf16.msra.mxu0 %v1130
    %5598 = vmatpush.bf16.msra.mxu0 %v1127
    %5599 = vmatpush.bf16.msra.mxu0 %v1124
    %5600 = vmatpush.bf16.msra.mxu0 %v1121
    %5601 = vmatpush.bf16.msra.mxu0 %v1118
    %5602 = vmatpush.bf16.msra.mxu0 %v1115
    %5603 = vmatpush.bf16.msra.mxu0 %v1112
    %5604 = vmatpush.bf16.msra.mxu0 %v1109
    %5605 = vmatmul.bf16.gmra.mxu0 %v4891
    %v5606 = vpop.f32.mrf.mxu0
    %v5607 = vadd.f32 %v1023, %v5606
    %v5608 = vpop.f32.mrf.mxu0
    %v5609 = vadd.f32 %v1023, %v5608
    %5610 = vdwg.mxu0
    %5611 = vmatpush.bf16.msra.mxu0 %v1131
    %5612 = vmatpush.bf16.msra.mxu0 %v1128
    %5613 = vmatpush.bf16.msra.mxu0 %v1125
    %5614 = vmatpush.bf16.msra.mxu0 %v1122
    %5615 = vmatpush.bf16.msra.mxu0 %v1119
    %5616 = vmatpush.bf16.msra.mxu0 %v1116
    %5617 = vmatpush.bf16.msra.mxu0 %v1113
    %5618 = vmatpush.bf16.msra.mxu0 %v1110
    %5619 = vmatmul.bf16.gmra.mxu0 %v4891
    %v5620 = vpop.f32.mrf.mxu0
    %v5621 = vadd.f32 %v1024, %v5620
    %v5622 = vpop.f32.mrf.mxu0
    %v5623 = vadd.f32 %v1024, %v5622
    %5624 = vdwg.mxu0
    %5625 = vmatpush.bf16.msra.mxu0 %v1331
    %5626 = vmatpush.bf16.msra.mxu0 %v1328
    %5627 = vmatpush.bf16.msra.mxu0 %v1325
    %5628 = vmatpush.bf16.msra.mxu0 %v1322
    %5629 = vmatpush.bf16.msra.mxu0 %v1319
    %5630 = vmatpush.bf16.msra.mxu0 %v1316
    %5631 = vmatpush.bf16.msra.mxu0 %v1313
    %5632 = vmatpush.bf16.msra.mxu0 %v1310
    %5633 = vmatmul.bf16.gmra.mxu0 %v5072
    %v5634 = vpop.f32.mrf.mxu0
    %v5635 = vadd.f32 0.0, %v5634
    %v5636 = vpop.f32.mrf.mxu0
    %v5637 = vadd.f32 0.0, %v5636
    %5638 = vdwg.mxu0
    %5639 = vmatpush.bf16.msra.mxu0 %v1332
    %5640 = vmatpush.bf16.msra.mxu0 %v1329
    %5641 = vmatpush.bf16.msra.mxu0 %v1326
    %5642 = vmatpush.bf16.msra.mxu0 %v1323
    %5643 = vmatpush.bf16.msra.mxu0 %v1320
    %5644 = vmatpush.bf16.msra.mxu0 %v1317
    %5645 = vmatpush.bf16.msra.mxu0 %v1314
    %5646 = vmatpush.bf16.msra.mxu0 %v1311
    %5647 = vmatmul.bf16.gmra.mxu0 %v5072
    %v5648 = vpop.f32.mrf.mxu0
    %v5649 = vadd.f32 0.0, %v5648
    %v5650 = vpop.f32.mrf.mxu0
    %v5651 = vadd.f32 0.0, %v5650
    %5652 = vdwg.mxu0
    %5653 = vmatpush.bf16.msra.mxu0 %v1333
    %5654 = vmatpush.bf16.msra.mxu0 %v1330
    %5655 = vmatpush.bf16.msra.mxu0 %v1327
    %5656 = vmatpush.bf16.msra.mxu0 %v1324
    %5657 = vmatpush.bf16.msra.mxu0 %v1321
    %5658 = vmatpush.bf16.msra.mxu0 %v1318
    %5659 = vmatpush.bf16.msra.mxu0 %v1315
    %5660 = vmatpush.bf16.msra.mxu0 %v1312
    %5661 = vmatmul.bf16.gmra.mxu0 %v5072
    %v5662 = vpop.f32.mrf.mxu0
    %v5663 = vadd.f32 0.0, %v5662
    %v5664 = vpop.f32.mrf.mxu0
    %v5665 = vadd.f32 0.0, %v5664
    %5666 = vdwg.mxu0
    %v5667 = vadd.f32 %v5593, %v5635
    %v5668 = vadd.f32 %v5595, %v5637
    %v5669 = vxor.u32 %v5667, 2147483648
    %v5670 = vxor.u32 %v5668, 2147483648
    %v5671 = vmul.f32 %v5669, 1.442695
    %v5672 = vpow.pop %v5671
    %v5673 = vmul.f32 %v5670, 1.442695
    %v5674 = vpow.pop %v5673
    %v5675 = vadd.f32 %v5672, 1.0
    %v5676 = vadd.f32 %v5674, 1.0
    %v5677 = vrcp.pop %v5675
    %v5678 = vmul.f32 %v5675, %v5677
    %v5679 = vsub.f32 1.0, %v5678
    %v5680 = vmul.f32 %v5677, %v5679
    %v5681 = vadd.f32 %v5677, %v5680
    %vm5682 = vweird.f32 %v5675
    %vm5683 = vweird.f32 %v5677
    %vm5684 = vmor %vm5682, %vm5683
    %v5685 = vsel %vm5684, %v5677, %v5681
    %v5686 = vand.u32 2147483647, %v5675
    %vm5687 = vcmp.eq.f32.partialorder %v5686, 8.507059e+37
    %v5688 = vand.u32 %v5675, 2147483648
    %v5689 = vor.u32 1.1754944e-38, %v5688
    %v5690 = vsel %vm5687, %v5689, %v5685
    %v5691 = vmul.f32 1.0, %v5690
    %v5692 = vrcp.pop %v5676
    %v5693 = vmul.f32 %v5676, %v5692
    %v5694 = vsub.f32 1.0, %v5693
    %v5695 = vmul.f32 %v5692, %v5694
    %v5696 = vadd.f32 %v5692, %v5695
    %vm5697 = vweird.f32 %v5676
    %vm5698 = vweird.f32 %v5692
    %vm5699 = vmor %vm5697, %vm5698
    %v5700 = vsel %vm5699, %v5692, %v5696
    %v5701 = vand.u32 2147483647, %v5676
    %vm5702 = vcmp.eq.f32.partialorder %v5701, 8.507059e+37
    %v5703 = vand.u32 %v5676, 2147483648
    %v5704 = vor.u32 1.1754944e-38, %v5703
    %v5705 = vsel %vm5702, %v5704, %v5700
    %v5706 = vmul.f32 1.0, %v5705
    %v5707 = vadd.f32 %v5607, %v5649
    %v5708 = vadd.f32 %v5609, %v5651
    %v5709 = vxor.u32 %v5707, 2147483648
    %v5710 = vxor.u32 %v5708, 2147483648
    %v5711 = vmul.f32 %v5709, 1.442695
    %v5712 = vpow.pop %v5711
    %v5713 = vmul.f32 %v5710, 1.442695
    %v5714 = vpow.pop %v5713
    %v5715 = vadd.f32 %v5712, 1.0
    %v5716 = vadd.f32 %v5714, 1.0
    %v5717 = vrcp.pop %v5715
    %v5718 = vmul.f32 %v5715, %v5717
    %v5719 = vsub.f32 1.0, %v5718
    %v5720 = vmul.f32 %v5717, %v5719
    %v5721 = vadd.f32 %v5717, %v5720
    %vm5722 = vweird.f32 %v5715
    %vm5723 = vweird.f32 %v5717
    %vm5724 = vmor %vm5722, %vm5723
    %v5725 = vsel %vm5724, %v5717, %v5721
    %v5726 = vand.u32 2147483647, %v5715
    %vm5727 = vcmp.eq.f32.partialorder %v5726, 8.507059e+37
    %v5728 = vand.u32 %v5715, 2147483648
    %v5729 = vor.u32 1.1754944e-38, %v5728
    %v5730 = vsel %vm5727, %v5729, %v5725
    %v5731 = vmul.f32 1.0, %v5730
    %v5732 = vrcp.pop %v5716
    %v5733 = vmul.f32 %v5716, %v5732
    %v5734 = vsub.f32 1.0, %v5733
    %v5735 = vmul.f32 %v5732, %v5734
    %v5736 = vadd.f32 %v5732, %v5735
    %vm5737 = vweird.f32 %v5716
    %vm5738 = vweird.f32 %v5732
    %vm5739 = vmor %vm5737, %vm5738
    %v5740 = vsel %vm5739, %v5732, %v5736
    %v5741 = vand.u32 2147483647, %v5716
    %vm5742 = vcmp.eq.f32.partialorder %v5741, 8.507059e+37
    %v5743 = vand.u32 %v5716, 2147483648
    %v5744 = vor.u32 1.1754944e-38, %v5743
    %v5745 = vsel %vm5742, %v5744, %v5740
    %v5746 = vmul.f32 1.0, %v5745
    %v5747 = vadd.f32 %v5663, %v1482
    %v5748 = vadd.f32 %v5665, %v1482
    %v5749 = vmul.f32 %v5691, %v5747
    %v5750 = vmul.f32 %v5706, %v5748
    %v5751 = vadd.f32 %v5621, %v5749
    %v5752 = vadd.f32 %v5623, %v5750
    %v5753 = vtanh.pop %v5751
    %v5754 = vtanh.pop %v5752
    %v5755 = vsub.f32 1.0, %v5731
    %v5756 = vsub.f32 1.0, %v5746
    %v5757 = vmul.f32 %v5755, %v5753
    %v5758 = vmul.f32 %v5756, %v5754
    %v5759 = vmul.f32 %v5731, %v5070
    %v5760 = vmul.f32 %v5746, %v5071
    %v5761 = vadd.f32 %v5757, %v5759
    %v5762 = vadd.f32 %v5758, %v5760
    %v5763 = vpack.c.bf16 %v5762, %v5761
    %5764 = vmatpush.bf16.msra.mxu0 %v1968
    %5765 = vmatpush.bf16.msra.mxu0 %v1965
    %5766 = vmatpush.bf16.msra.mxu0 %v1962
    %5767 = vmatpush.bf16.msra.mxu0 %v1959
    %5768 = vmatpush.bf16.msra.mxu0 %v1956
    %5769 = vmatpush.bf16.msra.mxu0 %v1953
    %5770 = vmatpush.bf16.msra.mxu0 %v1950
    %5771 = vmatpush.bf16.msra.mxu0 %v1947
    %5772 = vmatmul.bf16.gmra.mxu0 %v5072
    %v5773 = vpop.f32.mrf.mxu0
    %v5774 = vadd.f32 %v1861, %v5773
    %v5775 = vpop.f32.mrf.mxu0
    %v5776 = vadd.f32 %v1861, %v5775
    %5777 = vdwg.mxu0
    %5778 = vmatpush.bf16.msra.mxu0 %v1969
    %5779 = vmatpush.bf16.msra.mxu0 %v1966
    %5780 = vmatpush.bf16.msra.mxu0 %v1963
    %5781 = vmatpush.bf16.msra.mxu0 %v1960
    %5782 = vmatpush.bf16.msra.mxu0 %v1957
    %5783 = vmatpush.bf16.msra.mxu0 %v1954
    %5784 = vmatpush.bf16.msra.mxu0 %v1951
    %5785 = vmatpush.bf16.msra.mxu0 %v1948
    %5786 = vmatmul.bf16.gmra.mxu0 %v5072
    %v5787 = vpop.f32.mrf.mxu0
    %v5788 = vadd.f32 %v1862, %v5787
    %v5789 = vpop.f32.mrf.mxu0
    %v5790 = vadd.f32 %v1862, %v5789
    %5791 = vdwg.mxu0
    %5792 = vmatpush.bf16.msra.mxu0 %v1970
    %5793 = vmatpush.bf16.msra.mxu0 %v1967
    %5794 = vmatpush.bf16.msra.mxu0 %v1964
    %5795 = vmatpush.bf16.msra.mxu0 %v1961
    %5796 = vmatpush.bf16.msra.mxu0 %v1958
    %5797 = vmatpush.bf16.msra.mxu0 %v1955
    %5798 = vmatpush.bf16.msra.mxu0 %v1952
    %5799 = vmatpush.bf16.msra.mxu0 %v1949
    %5800 = vmatmul.bf16.gmra.mxu0 %v5072
    %v5801 = vpop.f32.mrf.mxu0
    %v5802 = vadd.f32 %v1863, %v5801
    %v5803 = vpop.f32.mrf.mxu0
    %v5804 = vadd.f32 %v1863, %v5803
    %5805 = vdwg.mxu0
    %5806 = vmatpush.bf16.msra.mxu0 %v2170
    %5807 = vmatpush.bf16.msra.mxu0 %v2167
    %5808 = vmatpush.bf16.msra.mxu0 %v2164
    %5809 = vmatpush.bf16.msra.mxu0 %v2161
    %5810 = vmatpush.bf16.msra.mxu0 %v2158
    %5811 = vmatpush.bf16.msra.mxu0 %v2155
    %5812 = vmatpush.bf16.msra.mxu0 %v2152
    %5813 = vmatpush.bf16.msra.mxu0 %v2149
    %5814 = vmatmul.bf16.gmra.mxu0 %v5253
    %v5815 = vpop.f32.mrf.mxu0
    %v5816 = vadd.f32 0.0, %v5815
    %v5817 = vpop.f32.mrf.mxu0
    %v5818 = vadd.f32 0.0, %v5817
    %5819 = vdwg.mxu0
    %5820 = vmatpush.bf16.msra.mxu0 %v2171
    %5821 = vmatpush.bf16.msra.mxu0 %v2168
    %5822 = vmatpush.bf16.msra.mxu0 %v2165
    %5823 = vmatpush.bf16.msra.mxu0 %v2162
    %5824 = vmatpush.bf16.msra.mxu0 %v2159
    %5825 = vmatpush.bf16.msra.mxu0 %v2156
    %5826 = vmatpush.bf16.msra.mxu0 %v2153
    %5827 = vmatpush.bf16.msra.mxu0 %v2150
    %5828 = vmatmul.bf16.gmra.mxu0 %v5253
    %v5829 = vpop.f32.mrf.mxu0
    %v5830 = vadd.f32 0.0, %v5829
    %v5831 = vpop.f32.mrf.mxu0
    %v5832 = vadd.f32 0.0, %v5831
    %5833 = vdwg.mxu0
    %5834 = vmatpush.bf16.msra.mxu0 %v2172
    %5835 = vmatpush.bf16.msra.mxu0 %v2169
    %5836 = vmatpush.bf16.msra.mxu0 %v2166
    %5837 = vmatpush.bf16.msra.mxu0 %v2163
    %5838 = vmatpush.bf16.msra.mxu0 %v2160
    %5839 = vmatpush.bf16.msra.mxu0 %v2157
    %5840 = vmatpush.bf16.msra.mxu0 %v2154
    %5841 = vmatpush.bf16.msra.mxu0 %v2151
    %5842 = vmatmul.bf16.gmra.mxu0 %v5253
    %v5843 = vpop.f32.mrf.mxu0
    %v5844 = vadd.f32 0.0, %v5843
    %v5845 = vpop.f32.mrf.mxu0
    %v5846 = vadd.f32 0.0, %v5845
    %5847 = vdwg.mxu0
    %v5848 = vadd.f32 %v5774, %v5816
    %v5849 = vadd.f32 %v5776, %v5818
    %v5850 = vxor.u32 %v5848, 2147483648
    %v5851 = vxor.u32 %v5849, 2147483648
    %v5852 = vmul.f32 %v5850, 1.442695
    %v5853 = vpow.pop %v5852
    %v5854 = vmul.f32 %v5851, 1.442695
    %v5855 = vpow.pop %v5854
    %v5856 = vadd.f32 %v5853, 1.0
    %v5857 = vadd.f32 %v5855, 1.0
    %v5858 = vrcp.pop %v5856
    %v5859 = vmul.f32 %v5856, %v5858
    %v5860 = vsub.f32 1.0, %v5859
    %v5861 = vmul.f32 %v5858, %v5860
    %v5862 = vadd.f32 %v5858, %v5861
    %vm5863 = vweird.f32 %v5856
    %vm5864 = vweird.f32 %v5858
    %vm5865 = vmor %vm5863, %vm5864
    %v5866 = vsel %vm5865, %v5858, %v5862
    %v5867 = vand.u32 2147483647, %v5856
    %vm5868 = vcmp.eq.f32.partialorder %v5867, 8.507059e+37
    %v5869 = vand.u32 %v5856, 2147483648
    %v5870 = vor.u32 1.1754944e-38, %v5869
    %v5871 = vsel %vm5868, %v5870, %v5866
    %v5872 = vmul.f32 1.0, %v5871
    %v5873 = vrcp.pop %v5857
    %v5874 = vmul.f32 %v5857, %v5873
    %v5875 = vsub.f32 1.0, %v5874
    %v5876 = vmul.f32 %v5873, %v5875
    %v5877 = vadd.f32 %v5873, %v5876
    %vm5878 = vweird.f32 %v5857
    %vm5879 = vweird.f32 %v5873
    %vm5880 = vmor %vm5878, %vm5879
    %v5881 = vsel %vm5880, %v5873, %v5877
    %v5882 = vand.u32 2147483647, %v5857
    %vm5883 = vcmp.eq.f32.partialorder %v5882, 8.507059e+37
    %v5884 = vand.u32 %v5857, 2147483648
    %v5885 = vor.u32 1.1754944e-38, %v5884
    %v5886 = vsel %vm5883, %v5885, %v5881
    %v5887 = vmul.f32 1.0, %v5886
    %v5888 = vadd.f32 %v5788, %v5830
    %v5889 = vadd.f32 %v5790, %v5832
    %v5890 = vxor.u32 %v5888, 2147483648
    %v5891 = vxor.u32 %v5889, 2147483648
    %v5892 = vmul.f32 %v5890, 1.442695
    %v5893 = vpow.pop %v5892
    %v5894 = vmul.f32 %v5891, 1.442695
    %v5895 = vpow.pop %v5894
    %v5896 = vadd.f32 %v5893, 1.0
    %v5897 = vadd.f32 %v5895, 1.0
    %v5898 = vrcp.pop %v5896
    %v5899 = vmul.f32 %v5896, %v5898
    %v5900 = vsub.f32 1.0, %v5899
    %v5901 = vmul.f32 %v5898, %v5900
    %v5902 = vadd.f32 %v5898, %v5901
    %vm5903 = vweird.f32 %v5896
    %vm5904 = vweird.f32 %v5898
    %vm5905 = vmor %vm5903, %vm5904
    %v5906 = vsel %vm5905, %v5898, %v5902
    %v5907 = vand.u32 2147483647, %v5896
    %vm5908 = vcmp.eq.f32.partialorder %v5907, 8.507059e+37
    %v5909 = vand.u32 %v5896, 2147483648
    %v5910 = vor.u32 1.1754944e-38, %v5909
    %v5911 = vsel %vm5908, %v5910, %v5906
    %v5912 = vmul.f32 1.0, %v5911
    %v5913 = vrcp.pop %v5897
    %v5914 = vmul.f32 %v5897, %v5913
    %v5915 = vsub.f32 1.0, %v5914
    %v5916 = vmul.f32 %v5913, %v5915
    %v5917 = vadd.f32 %v5913, %v5916
    %vm5918 = vweird.f32 %v5897
    %vm5919 = vweird.f32 %v5913
    %vm5920 = vmor %vm5918, %vm5919
    %v5921 = vsel %vm5920, %v5913, %v5917
    %v5922 = vand.u32 2147483647, %v5897
    %vm5923 = vcmp.eq.f32.partialorder %v5922, 8.507059e+37
    %v5924 = vand.u32 %v5897, 2147483648
    %v5925 = vor.u32 1.1754944e-38, %v5924
    %v5926 = vsel %vm5923, %v5925, %v5921
    %v5927 = vmul.f32 1.0, %v5926
    %v5928 = vadd.f32 %v5844, %v2321
    %v5929 = vadd.f32 %v5846, %v2321
    %v5930 = vmul.f32 %v5872, %v5928
    %v5931 = vmul.f32 %v5887, %v5929
    %v5932 = vadd.f32 %v5802, %v5930
    %v5933 = vadd.f32 %v5804, %v5931
    %v5934 = vtanh.pop %v5932
    %v5935 = vtanh.pop %v5933
    %v5936 = vsub.f32 1.0, %v5912
    %v5937 = vsub.f32 1.0, %v5927
    %v5938 = vmul.f32 %v5936, %v5934
    %v5939 = vmul.f32 %v5937, %v5935
    %v5940 = vmul.f32 %v5912, %v5251
    %v5941 = vmul.f32 %v5927, %v5252
    %v5942 = vadd.f32 %v5938, %v5940
    %v5943 = vadd.f32 %v5939, %v5941
    %v5944 = vpack.c.bf16 %v5943, %v5942
    %5945 = vmatpush.bf16.msra.mxu0 %v2991
    %5946 = vmatpush.bf16.msra.mxu0 %v2988
    %5947 = vmatpush.bf16.msra.mxu0 %v2985
    %5948 = vmatpush.bf16.msra.mxu0 %v2982
    %5949 = vmatpush.bf16.msra.mxu0 %v2979
    %5950 = vmatpush.bf16.msra.mxu0 %v2976
    %5951 = vmatpush.bf16.msra.mxu0 %v2973
    %5952 = vmatpush.bf16.msra.mxu0 %v2970
    %5953 = vmatmul.bf16.gmra.mxu0 %v5253
    %v5954 = vpop.f32.mrf.mxu0
    %v5955 = vadd.f32 %v2884, %v5954
    %v5956 = vpop.f32.mrf.mxu0
    %v5957 = vadd.f32 %v2884, %v5956
    %5958 = vdwg.mxu0
    %5959 = vmatpush.bf16.msra.mxu0 %v2992
    %5960 = vmatpush.bf16.msra.mxu0 %v2989
    %5961 = vmatpush.bf16.msra.mxu0 %v2986
    %5962 = vmatpush.bf16.msra.mxu0 %v2983
    %5963 = vmatpush.bf16.msra.mxu0 %v2980
    %5964 = vmatpush.bf16.msra.mxu0 %v2977
    %5965 = vmatpush.bf16.msra.mxu0 %v2974
    %5966 = vmatpush.bf16.msra.mxu0 %v2971
    %5967 = vmatmul.bf16.gmra.mxu0 %v5253
    %v5968 = vpop.f32.mrf.mxu0
    %v5969 = vadd.f32 %v2885, %v5968
    %v5970 = vpop.f32.mrf.mxu0
    %v5971 = vadd.f32 %v2885, %v5970
    %5972 = vdwg.mxu0
    %5973 = vmatpush.bf16.msra.mxu0 %v2993
    %5974 = vmatpush.bf16.msra.mxu0 %v2990
    %5975 = vmatpush.bf16.msra.mxu0 %v2987
    %5976 = vmatpush.bf16.msra.mxu0 %v2984
    %5977 = vmatpush.bf16.msra.mxu0 %v2981
    %5978 = vmatpush.bf16.msra.mxu0 %v2978
    %5979 = vmatpush.bf16.msra.mxu0 %v2975
    %5980 = vmatpush.bf16.msra.mxu0 %v2972
    %5981 = vmatmul.bf16.gmra.mxu0 %v5253
    %v5982 = vpop.f32.mrf.mxu0
    %v5983 = vadd.f32 %v2886, %v5982
    %v5984 = vpop.f32.mrf.mxu0
    %v5985 = vadd.f32 %v2886, %v5984
    %5986 = vdwg.mxu0
    %v5987 = vpack.c.bf16 %v5434, %v5433
    %5988 = vmatpush.bf16.msra.mxu0 %v3193
    %5989 = vmatpush.bf16.msra.mxu0 %v3190
    %5990 = vmatpush.bf16.msra.mxu0 %v3187
    %5991 = vmatpush.bf16.msra.mxu0 %v3184
    %5992 = vmatpush.bf16.msra.mxu0 %v3181
    %5993 = vmatpush.bf16.msra.mxu0 %v3178
    %5994 = vmatpush.bf16.msra.mxu0 %v3175
    %5995 = vmatpush.bf16.msra.mxu0 %v3172
    %5996 = vmatmul.bf16.gmra.mxu0 %v5987
    %v5997 = vpop.f32.mrf.mxu0
    %v5998 = vadd.f32 0.0, %v5997
    %v5999 = vpop.f32.mrf.mxu0
    %v6000 = vadd.f32 0.0, %v5999
    %6001 = vdwg.mxu0
    %6002 = vmatpush.bf16.msra.mxu0 %v3194
    %6003 = vmatpush.bf16.msra.mxu0 %v3191
    %6004 = vmatpush.bf16.msra.mxu0 %v3188
    %6005 = vmatpush.bf16.msra.mxu0 %v3185
    %6006 = vmatpush.bf16.msra.mxu0 %v3182
    %6007 = vmatpush.bf16.msra.mxu0 %v3179
    %6008 = vmatpush.bf16.msra.mxu0 %v3176
    %6009 = vmatpush.bf16.msra.mxu0 %v3173
    %6010 = vmatmul.bf16.gmra.mxu0 %v5987
    %v6011 = vpop.f32.mrf.mxu0
    %v6012 = vadd.f32 0.0, %v6011
    %v6013 = vpop.f32.mrf.mxu0
    %v6014 = vadd.f32 0.0, %v6013
    %6015 = vdwg.mxu0
    %6016 = vmatpush.bf16.msra.mxu0 %v3195
    %6017 = vmatpush.bf16.msra.mxu0 %v3192
    %6018 = vmatpush.bf16.msra.mxu0 %v3189
    %6019 = vmatpush.bf16.msra.mxu0 %v3186
    %6020 = vmatpush.bf16.msra.mxu0 %v3183
    %6021 = vmatpush.bf16.msra.mxu0 %v3180
    %6022 = vmatpush.bf16.msra.mxu0 %v3177
    %6023 = vmatpush.bf16.msra.mxu0 %v3174
    %6024 = vmatmul.bf16.gmra.mxu0 %v5987
    %v6025 = vpop.f32.mrf.mxu0
    %v6026 = vadd.f32 0.0, %v6025
    %v6027 = vpop.f32.mrf.mxu0
    %v6028 = vadd.f32 0.0, %v6027
    %6029 = vdwg.mxu0
    %v6030 = vadd.f32 %v5955, %v5998
    %v6031 = vadd.f32 %v5957, %v6000
    %v6032 = vxor.u32 %v6030, 2147483648
    %v6033 = vxor.u32 %v6031, 2147483648
    %v6034 = vmul.f32 %v6032, 1.442695
    %v6035 = vpow.pop %v6034
    %v6036 = vmul.f32 %v6033, 1.442695
    %v6037 = vpow.pop %v6036
    %v6038 = vadd.f32 %v6035, 1.0
    %v6039 = vadd.f32 %v6037, 1.0
    %v6040 = vrcp.pop %v6038
    %v6041 = vmul.f32 %v6038, %v6040
    %v6042 = vsub.f32 1.0, %v6041
    %v6043 = vmul.f32 %v6040, %v6042
    %v6044 = vadd.f32 %v6040, %v6043
    %vm6045 = vweird.f32 %v6038
    %vm6046 = vweird.f32 %v6040
    %vm6047 = vmor %vm6045, %vm6046
    %v6048 = vsel %vm6047, %v6040, %v6044
    %v6049 = vand.u32 2147483647, %v6038
    %vm6050 = vcmp.eq.f32.partialorder %v6049, 8.507059e+37
    %v6051 = vand.u32 %v6038, 2147483648
    %v6052 = vor.u32 1.1754944e-38, %v6051
    %v6053 = vsel %vm6050, %v6052, %v6048
    %v6054 = vmul.f32 1.0, %v6053
    %v6055 = vrcp.pop %v6039
    %v6056 = vmul.f32 %v6039, %v6055
    %v6057 = vsub.f32 1.0, %v6056
    %v6058 = vmul.f32 %v6055, %v6057
    %v6059 = vadd.f32 %v6055, %v6058
    %vm6060 = vweird.f32 %v6039
    %vm6061 = vweird.f32 %v6055
    %vm6062 = vmor %vm6060, %vm6061
    %v6063 = vsel %vm6062, %v6055, %v6059
    %v6064 = vand.u32 2147483647, %v6039
    %vm6065 = vcmp.eq.f32.partialorder %v6064, 8.507059e+37
    %v6066 = vand.u32 %v6039, 2147483648
    %v6067 = vor.u32 1.1754944e-38, %v6066
    %v6068 = vsel %vm6065, %v6067, %v6063
    %v6069 = vmul.f32 1.0, %v6068
    %v6070 = vadd.f32 %v5969, %v6012
    %v6071 = vadd.f32 %v5971, %v6014
    %v6072 = vxor.u32 %v6070, 2147483648
    %v6073 = vxor.u32 %v6071, 2147483648
    %v6074 = vmul.f32 %v6072, 1.442695
    %v6075 = vpow.pop %v6074
    %v6076 = vmul.f32 %v6073, 1.442695
    %v6077 = vpow.pop %v6076
    %v6078 = vadd.f32 %v6075, 1.0
    %v6079 = vadd.f32 %v6077, 1.0
    %v6080 = vrcp.pop %v6078
    %v6081 = vmul.f32 %v6078, %v6080
    %v6082 = vsub.f32 1.0, %v6081
    %v6083 = vmul.f32 %v6080, %v6082
    %v6084 = vadd.f32 %v6080, %v6083
    %vm6085 = vweird.f32 %v6078
    %vm6086 = vweird.f32 %v6080
    %vm6087 = vmor %vm6085, %vm6086
    %v6088 = vsel %vm6087, %v6080, %v6084
    %v6089 = vand.u32 2147483647, %v6078
    %vm6090 = vcmp.eq.f32.partialorder %v6089, 8.507059e+37
    %v6091 = vand.u32 %v6078, 2147483648
    %v6092 = vor.u32 1.1754944e-38, %v6091
    %v6093 = vsel %vm6090, %v6092, %v6088
    %v6094 = vmul.f32 1.0, %v6093
    %v6095 = vrcp.pop %v6079
    %v6096 = vmul.f32 %v6079, %v6095
    %v6097 = vsub.f32 1.0, %v6096
    %v6098 = vmul.f32 %v6095, %v6097
    %v6099 = vadd.f32 %v6095, %v6098
    %vm6100 = vweird.f32 %v6079
    %vm6101 = vweird.f32 %v6095
    %vm6102 = vmor %vm6100, %vm6101
    %v6103 = vsel %vm6102, %v6095, %v6099
    %v6104 = vand.u32 2147483647, %v6079
    %vm6105 = vcmp.eq.f32.partialorder %v6104, 8.507059e+37
    %v6106 = vand.u32 %v6079, 2147483648
    %v6107 = vor.u32 1.1754944e-38, %v6106
    %v6108 = vsel %vm6105, %v6107, %v6103
    %v6109 = vmul.f32 1.0, %v6108
    %v6110 = vadd.f32 %v6026, %v3344
    %v6111 = vadd.f32 %v6028, %v3344
    %v6112 = vmul.f32 %v6054, %v6110
    %v6113 = vmul.f32 %v6069, %v6111
    %v6114 = vadd.f32 %v5983, %v6112
    %v6115 = vadd.f32 %v5985, %v6113
    %v6116 = vtanh.pop %v6114
    %v6117 = vtanh.pop %v6115
    %v6118 = vsub.f32 1.0, %v6094
    %v6119 = vsub.f32 1.0, %v6109
    %v6120 = vmul.f32 %v6118, %v6116
    %v6121 = vmul.f32 %v6119, %v6117
    %v6122 = vmul.f32 %v6094, %v5433
    %v6123 = vmul.f32 %v6109, %v5434
    %v6124 = vadd.f32 %v6120, %v6122
    %v6125 = vadd.f32 %v6121, %v6123
    %6126 = vmatpush.bf16.msra.mxu0 %v1129
    %6127 = vmatpush.bf16.msra.mxu0 %v1126
    %6128 = vmatpush.bf16.msra.mxu0 %v1123
    %6129 = vmatpush.bf16.msra.mxu0 %v1120
    %6130 = vmatpush.bf16.msra.mxu0 %v1117
    %6131 = vmatpush.bf16.msra.mxu0 %v1114
    %6132 = vmatpush.bf16.msra.mxu0 %v1111
    %6133 = vmatpush.bf16.msra.mxu0 %v1108
    %6134 = vmatmul.bf16.gmra.mxu0 %v5582
    %v6135 = vpop.f32.mrf.mxu0
    %v6136 = vadd.f32 %v1022, %v6135
    %v6137 = vpop.f32.mrf.mxu0
    %v6138 = vadd.f32 %v1022, %v6137
    %6139 = vdwg.mxu0
    %6140 = vmatpush.bf16.msra.mxu0 %v1130
    %6141 = vmatpush.bf16.msra.mxu0 %v1127
    %6142 = vmatpush.bf16.msra.mxu0 %v1124
    %6143 = vmatpush.bf16.msra.mxu0 %v1121
    %6144 = vmatpush.bf16.msra.mxu0 %v1118
    %6145 = vmatpush.bf16.msra.mxu0 %v1115
    %6146 = vmatpush.bf16.msra.mxu0 %v1112
    %6147 = vmatpush.bf16.msra.mxu0 %v1109
    %6148 = vmatmul.bf16.gmra.mxu0 %v5582
    %v6149 = vpop.f32.mrf.mxu0
    %v6150 = vadd.f32 %v1023, %v6149
    %v6151 = vpop.f32.mrf.mxu0
    %v6152 = vadd.f32 %v1023, %v6151
    %6153 = vdwg.mxu0
    %6154 = vmatpush.bf16.msra.mxu0 %v1131
    %6155 = vmatpush.bf16.msra.mxu0 %v1128
    %6156 = vmatpush.bf16.msra.mxu0 %v1125
    %6157 = vmatpush.bf16.msra.mxu0 %v1122
    %6158 = vmatpush.bf16.msra.mxu0 %v1119
    %6159 = vmatpush.bf16.msra.mxu0 %v1116
    %6160 = vmatpush.bf16.msra.mxu0 %v1113
    %6161 = vmatpush.bf16.msra.mxu0 %v1110
    %6162 = vmatmul.bf16.gmra.mxu0 %v5582
    %v6163 = vpop.f32.mrf.mxu0
    %v6164 = vadd.f32 %v1024, %v6163
    %v6165 = vpop.f32.mrf.mxu0
    %v6166 = vadd.f32 %v1024, %v6165
    %6167 = vdwg.mxu0
    %6168 = vmatpush.bf16.msra.mxu0 %v1331
    %6169 = vmatpush.bf16.msra.mxu0 %v1328
    %6170 = vmatpush.bf16.msra.mxu0 %v1325
    %6171 = vmatpush.bf16.msra.mxu0 %v1322
    %6172 = vmatpush.bf16.msra.mxu0 %v1319
    %6173 = vmatpush.bf16.msra.mxu0 %v1316
    %6174 = vmatpush.bf16.msra.mxu0 %v1313
    %6175 = vmatpush.bf16.msra.mxu0 %v1310
    %6176 = vmatmul.bf16.gmra.mxu0 %v5763
    %v6177 = vpop.f32.mrf.mxu0
    %v6178 = vadd.f32 0.0, %v6177
    %v6179 = vpop.f32.mrf.mxu0
    %v6180 = vadd.f32 0.0, %v6179
    %6181 = vdwg.mxu0
    %6182 = vmatpush.bf16.msra.mxu0 %v1332
    %6183 = vmatpush.bf16.msra.mxu0 %v1329
    %6184 = vmatpush.bf16.msra.mxu0 %v1326
    %6185 = vmatpush.bf16.msra.mxu0 %v1323
    %6186 = vmatpush.bf16.msra.mxu0 %v1320
    %6187 = vmatpush.bf16.msra.mxu0 %v1317
    %6188 = vmatpush.bf16.msra.mxu0 %v1314
    %6189 = vmatpush.bf16.msra.mxu0 %v1311
    %6190 = vmatmul.bf16.gmra.mxu0 %v5763
    %v6191 = vpop.f32.mrf.mxu0
    %v6192 = vadd.f32 0.0, %v6191
    %v6193 = vpop.f32.mrf.mxu0
    %v6194 = vadd.f32 0.0, %v6193
    %6195 = vdwg.mxu0
    %6196 = vmatpush.bf16.msra.mxu0 %v1333
    %6197 = vmatpush.bf16.msra.mxu0 %v1330
    %6198 = vmatpush.bf16.msra.mxu0 %v1327
    %6199 = vmatpush.bf16.msra.mxu0 %v1324
    %6200 = vmatpush.bf16.msra.mxu0 %v1321
    %6201 = vmatpush.bf16.msra.mxu0 %v1318
    %6202 = vmatpush.bf16.msra.mxu0 %v1315
    %6203 = vmatpush.bf16.msra.mxu0 %v1312
    %6204 = vmatmul.bf16.gmra.mxu0 %v5763
    %v6205 = vpop.f32.mrf.mxu0
    %v6206 = vadd.f32 0.0, %v6205
    %v6207 = vpop.f32.mrf.mxu0
    %v6208 = vadd.f32 0.0, %v6207
    %6209 = vdwg.mxu0
    %v6210 = vadd.f32 %v6136, %v6178
    %v6211 = vadd.f32 %v6138, %v6180
    %v6212 = vxor.u32 %v6210, 2147483648
    %v6213 = vxor.u32 %v6211, 2147483648
    %v6214 = vmul.f32 %v6212, 1.442695
    %v6215 = vpow.pop %v6214
    %v6216 = vmul.f32 %v6213, 1.442695
    %v6217 = vpow.pop %v6216
    %v6218 = vadd.f32 %v6215, 1.0
    %v6219 = vadd.f32 %v6217, 1.0
    %v6220 = vrcp.pop %v6218
    %v6221 = vmul.f32 %v6218, %v6220
    %v6222 = vsub.f32 1.0, %v6221
    %v6223 = vmul.f32 %v6220, %v6222
    %v6224 = vadd.f32 %v6220, %v6223
    %vm6225 = vweird.f32 %v6218
    %vm6226 = vweird.f32 %v6220
    %vm6227 = vmor %vm6225, %vm6226
    %v6228 = vsel %vm6227, %v6220, %v6224
    %v6229 = vand.u32 2147483647, %v6218
    %vm6230 = vcmp.eq.f32.partialorder %v6229, 8.507059e+37
    %v6231 = vand.u32 %v6218, 2147483648
    %v6232 = vor.u32 1.1754944e-38, %v6231
    %v6233 = vsel %vm6230, %v6232, %v6228
    %v6234 = vmul.f32 1.0, %v6233
    %v6235 = vrcp.pop %v6219
    %v6236 = vmul.f32 %v6219, %v6235
    %v6237 = vsub.f32 1.0, %v6236
    %v6238 = vmul.f32 %v6235, %v6237
    %v6239 = vadd.f32 %v6235, %v6238
    %vm6240 = vweird.f32 %v6219
    %vm6241 = vweird.f32 %v6235
    %vm6242 = vmor %vm6240, %vm6241
    %v6243 = vsel %vm6242, %v6235, %v6239
    %v6244 = vand.u32 2147483647, %v6219
    %vm6245 = vcmp.eq.f32.partialorder %v6244, 8.507059e+37
    %v6246 = vand.u32 %v6219, 2147483648
    %v6247 = vor.u32 1.1754944e-38, %v6246
    %v6248 = vsel %vm6245, %v6247, %v6243
    %v6249 = vmul.f32 1.0, %v6248
    %v6250 = vadd.f32 %v6150, %v6192
    %v6251 = vadd.f32 %v6152, %v6194
    %v6252 = vxor.u32 %v6250, 2147483648
    %v6253 = vxor.u32 %v6251, 2147483648
    %v6254 = vmul.f32 %v6252, 1.442695
    %v6255 = vpow.pop %v6254
    %v6256 = vmul.f32 %v6253, 1.442695
    %v6257 = vpow.pop %v6256
    %v6258 = vadd.f32 %v6255, 1.0
    %v6259 = vadd.f32 %v6257, 1.0
    %v6260 = vrcp.pop %v6258
    %v6261 = vmul.f32 %v6258, %v6260
    %v6262 = vsub.f32 1.0, %v6261
    %v6263 = vmul.f32 %v6260, %v6262
    %v6264 = vadd.f32 %v6260, %v6263
    %vm6265 = vweird.f32 %v6258
    %vm6266 = vweird.f32 %v6260
    %vm6267 = vmor %vm6265, %vm6266
    %v6268 = vsel %vm6267, %v6260, %v6264
    %v6269 = vand.u32 2147483647, %v6258
    %vm6270 = vcmp.eq.f32.partialorder %v6269, 8.507059e+37
    %v6271 = vand.u32 %v6258, 2147483648
    %v6272 = vor.u32 1.1754944e-38, %v6271
    %v6273 = vsel %vm6270, %v6272, %v6268
    %v6274 = vmul.f32 1.0, %v6273
    %v6275 = vrcp.pop %v6259
    %v6276 = vmul.f32 %v6259, %v6275
    %v6277 = vsub.f32 1.0, %v6276
    %v6278 = vmul.f32 %v6275, %v6277
    %v6279 = vadd.f32 %v6275, %v6278
    %vm6280 = vweird.f32 %v6259
    %vm6281 = vweird.f32 %v6275
    %vm6282 = vmor %vm6280, %vm6281
    %v6283 = vsel %vm6282, %v6275, %v6279
    %v6284 = vand.u32 2147483647, %v6259
    %vm6285 = vcmp.eq.f32.partialorder %v6284, 8.507059e+37
    %v6286 = vand.u32 %v6259, 2147483648
    %v6287 = vor.u32 1.1754944e-38, %v6286
    %v6288 = vsel %vm6285, %v6287, %v6283
    %v6289 = vmul.f32 1.0, %v6288
    %v6290 = vadd.f32 %v6206, %v1482
    %v6291 = vadd.f32 %v6208, %v1482
    %v6292 = vmul.f32 %v6234, %v6290
    %v6293 = vmul.f32 %v6249, %v6291
    %v6294 = vadd.f32 %v6164, %v6292
    %v6295 = vadd.f32 %v6166, %v6293
    %v6296 = vtanh.pop %v6294
    %v6297 = vtanh.pop %v6295
    %v6298 = vsub.f32 1.0, %v6274
    %v6299 = vsub.f32 1.0, %v6289
    %v6300 = vmul.f32 %v6298, %v6296
    %v6301 = vmul.f32 %v6299, %v6297
    %v6302 = vmul.f32 %v6274, %v5761
    %v6303 = vmul.f32 %v6289, %v5762
    %v6304 = vadd.f32 %v6300, %v6302
    %v6305 = vadd.f32 %v6301, %v6303
    %v6306 = vpack.c.bf16 %v6305, %v6304
    %6307 = vmatpush.bf16.msra.mxu0 %v1968
    %6308 = vmatpush.bf16.msra.mxu0 %v1965
    %6309 = vmatpush.bf16.msra.mxu0 %v1962
    %6310 = vmatpush.bf16.msra.mxu0 %v1959
    %6311 = vmatpush.bf16.msra.mxu0 %v1956
    %6312 = vmatpush.bf16.msra.mxu0 %v1953
    %6313 = vmatpush.bf16.msra.mxu0 %v1950
    %6314 = vmatpush.bf16.msra.mxu0 %v1947
    %6315 = vmatmul.bf16.gmra.mxu0 %v5763
    %v6316 = vpop.f32.mrf.mxu0
    %v6317 = vadd.f32 %v1861, %v6316
    %v6318 = vpop.f32.mrf.mxu0
    %v6319 = vadd.f32 %v1861, %v6318
    %6320 = vdwg.mxu0
    %6321 = vmatpush.bf16.msra.mxu0 %v1969
    %6322 = vmatpush.bf16.msra.mxu0 %v1966
    %6323 = vmatpush.bf16.msra.mxu0 %v1963
    %6324 = vmatpush.bf16.msra.mxu0 %v1960
    %6325 = vmatpush.bf16.msra.mxu0 %v1957
    %6326 = vmatpush.bf16.msra.mxu0 %v1954
    %6327 = vmatpush.bf16.msra.mxu0 %v1951
    %6328 = vmatpush.bf16.msra.mxu0 %v1948
    %6329 = vmatmul.bf16.gmra.mxu0 %v5763
    %v6330 = vpop.f32.mrf.mxu0
    %v6331 = vadd.f32 %v1862, %v6330
    %v6332 = vpop.f32.mrf.mxu0
    %v6333 = vadd.f32 %v1862, %v6332
    %6334 = vdwg.mxu0
    %6335 = vmatpush.bf16.msra.mxu0 %v1970
    %6336 = vmatpush.bf16.msra.mxu0 %v1967
    %6337 = vmatpush.bf16.msra.mxu0 %v1964
    %6338 = vmatpush.bf16.msra.mxu0 %v1961
    %6339 = vmatpush.bf16.msra.mxu0 %v1958
    %6340 = vmatpush.bf16.msra.mxu0 %v1955
    %6341 = vmatpush.bf16.msra.mxu0 %v1952
    %6342 = vmatpush.bf16.msra.mxu0 %v1949
    %6343 = vmatmul.bf16.gmra.mxu0 %v5763
    %v6344 = vpop.f32.mrf.mxu0
    %v6345 = vadd.f32 %v1863, %v6344
    %v6346 = vpop.f32.mrf.mxu0
    %v6347 = vadd.f32 %v1863, %v6346
    %6348 = vdwg.mxu0
    %6349 = vmatpush.bf16.msra.mxu0 %v2170
    %6350 = vmatpush.bf16.msra.mxu0 %v2167
    %6351 = vmatpush.bf16.msra.mxu0 %v2164
    %6352 = vmatpush.bf16.msra.mxu0 %v2161
    %6353 = vmatpush.bf16.msra.mxu0 %v2158
    %6354 = vmatpush.bf16.msra.mxu0 %v2155
    %6355 = vmatpush.bf16.msra.mxu0 %v2152
    %6356 = vmatpush.bf16.msra.mxu0 %v2149
    %6357 = vmatmul.bf16.gmra.mxu0 %v5944
    %v6358 = vpop.f32.mrf.mxu0
    %v6359 = vadd.f32 0.0, %v6358
    %v6360 = vpop.f32.mrf.mxu0
    %v6361 = vadd.f32 0.0, %v6360
    %6362 = vdwg.mxu0
    %6363 = vmatpush.bf16.msra.mxu0 %v2171
    %6364 = vmatpush.bf16.msra.mxu0 %v2168
    %6365 = vmatpush.bf16.msra.mxu0 %v2165
    %6366 = vmatpush.bf16.msra.mxu0 %v2162
    %6367 = vmatpush.bf16.msra.mxu0 %v2159
    %6368 = vmatpush.bf16.msra.mxu0 %v2156
    %6369 = vmatpush.bf16.msra.mxu0 %v2153
    %6370 = vmatpush.bf16.msra.mxu0 %v2150
    %6371 = vmatmul.bf16.gmra.mxu0 %v5944
    %v6372 = vpop.f32.mrf.mxu0
    %v6373 = vadd.f32 0.0, %v6372
    %v6374 = vpop.f32.mrf.mxu0
    %v6375 = vadd.f32 0.0, %v6374
    %6376 = vdwg.mxu0
    %6377 = vmatpush.bf16.msra.mxu0 %v2172
    %6378 = vmatpush.bf16.msra.mxu0 %v2169
    %6379 = vmatpush.bf16.msra.mxu0 %v2166
    %6380 = vmatpush.bf16.msra.mxu0 %v2163
    %6381 = vmatpush.bf16.msra.mxu0 %v2160
    %6382 = vmatpush.bf16.msra.mxu0 %v2157
    %6383 = vmatpush.bf16.msra.mxu0 %v2154
    %6384 = vmatpush.bf16.msra.mxu0 %v2151
    %6385 = vmatmul.bf16.gmra.mxu0 %v5944
    %v6386 = vpop.f32.mrf.mxu0
    %v6387 = vadd.f32 0.0, %v6386
    %v6388 = vpop.f32.mrf.mxu0
    %v6389 = vadd.f32 0.0, %v6388
    %6390 = vdwg.mxu0
    %v6391 = vadd.f32 %v6317, %v6359
    %v6392 = vadd.f32 %v6319, %v6361
    %v6393 = vxor.u32 %v6391, 2147483648
    %v6394 = vxor.u32 %v6392, 2147483648
    %v6395 = vmul.f32 %v6393, 1.442695
    %v6396 = vpow.pop %v6395
    %v6397 = vmul.f32 %v6394, 1.442695
    %v6398 = vpow.pop %v6397
    %v6399 = vadd.f32 %v6396, 1.0
    %v6400 = vadd.f32 %v6398, 1.0
    %v6401 = vrcp.pop %v6399
    %v6402 = vmul.f32 %v6399, %v6401
    %v6403 = vsub.f32 1.0, %v6402
    %v6404 = vmul.f32 %v6401, %v6403
    %v6405 = vadd.f32 %v6401, %v6404
    %vm6406 = vweird.f32 %v6399
    %vm6407 = vweird.f32 %v6401
    %vm6408 = vmor %vm6406, %vm6407
    %v6409 = vsel %vm6408, %v6401, %v6405
    %v6410 = vand.u32 2147483647, %v6399
    %vm6411 = vcmp.eq.f32.partialorder %v6410, 8.507059e+37
    %v6412 = vand.u32 %v6399, 2147483648
    %v6413 = vor.u32 1.1754944e-38, %v6412
    %v6414 = vsel %vm6411, %v6413, %v6409
    %v6415 = vmul.f32 1.0, %v6414
    %v6416 = vrcp.pop %v6400
    %v6417 = vmul.f32 %v6400, %v6416
    %v6418 = vsub.f32 1.0, %v6417
    %v6419 = vmul.f32 %v6416, %v6418
    %v6420 = vadd.f32 %v6416, %v6419
    %vm6421 = vweird.f32 %v6400
    %vm6422 = vweird.f32 %v6416
    %vm6423 = vmor %vm6421, %vm6422
    %v6424 = vsel %vm6423, %v6416, %v6420
    %v6425 = vand.u32 2147483647, %v6400
    %vm6426 = vcmp.eq.f32.partialorder %v6425, 8.507059e+37
    %v6427 = vand.u32 %v6400, 2147483648
    %v6428 = vor.u32 1.1754944e-38, %v6427
    %v6429 = vsel %vm6426, %v6428, %v6424
    %v6430 = vmul.f32 1.0, %v6429
    %v6431 = vadd.f32 %v6331, %v6373
    %v6432 = vadd.f32 %v6333, %v6375
    %v6433 = vxor.u32 %v6431, 2147483648
    %v6434 = vxor.u32 %v6432, 2147483648
    %v6435 = vmul.f32 %v6433, 1.442695
    %v6436 = vpow.pop %v6435
    %v6437 = vmul.f32 %v6434, 1.442695
    %v6438 = vpow.pop %v6437
    %v6439 = vadd.f32 %v6436, 1.0
    %v6440 = vadd.f32 %v6438, 1.0
    %v6441 = vrcp.pop %v6439
    %v6442 = vmul.f32 %v6439, %v6441
    %v6443 = vsub.f32 1.0, %v6442
    %v6444 = vmul.f32 %v6441, %v6443
    %v6445 = vadd.f32 %v6441, %v6444
    %vm6446 = vweird.f32 %v6439
    %vm6447 = vweird.f32 %v6441
    %vm6448 = vmor %vm6446, %vm6447
    %v6449 = vsel %vm6448, %v6441, %v6445
    %v6450 = vand.u32 2147483647, %v6439
    %vm6451 = vcmp.eq.f32.partialorder %v6450, 8.507059e+37
    %v6452 = vand.u32 %v6439, 2147483648
    %v6453 = vor.u32 1.1754944e-38, %v6452
    %v6454 = vsel %vm6451, %v6453, %v6449
    %v6455 = vmul.f32 1.0, %v6454
    %v6456 = vrcp.pop %v6440
    %v6457 = vmul.f32 %v6440, %v6456
    %v6458 = vsub.f32 1.0, %v6457
    %v6459 = vmul.f32 %v6456, %v6458
    %v6460 = vadd.f32 %v6456, %v6459
    %vm6461 = vweird.f32 %v6440
    %vm6462 = vweird.f32 %v6456
    %vm6463 = vmor %vm6461, %vm6462
    %v6464 = vsel %vm6463, %v6456, %v6460
    %v6465 = vand.u32 2147483647, %v6440
    %vm6466 = vcmp.eq.f32.partialorder %v6465, 8.507059e+37
    %v6467 = vand.u32 %v6440, 2147483648
    %v6468 = vor.u32 1.1754944e-38, %v6467
    %v6469 = vsel %vm6466, %v6468, %v6464
    %v6470 = vmul.f32 1.0, %v6469
    %v6471 = vadd.f32 %v6387, %v2321
    %v6472 = vadd.f32 %v6389, %v2321
    %v6473 = vmul.f32 %v6415, %v6471
    %v6474 = vmul.f32 %v6430, %v6472
    %v6475 = vadd.f32 %v6345, %v6473
    %v6476 = vadd.f32 %v6347, %v6474
    %v6477 = vtanh.pop %v6475
    %v6478 = vtanh.pop %v6476
    %v6479 = vsub.f32 1.0, %v6455
    %v6480 = vsub.f32 1.0, %v6470
    %v6481 = vmul.f32 %v6479, %v6477
    %v6482 = vmul.f32 %v6480, %v6478
    %v6483 = vmul.f32 %v6455, %v5942
    %v6484 = vmul.f32 %v6470, %v5943
    %v6485 = vadd.f32 %v6481, %v6483
    %v6486 = vadd.f32 %v6482, %v6484
    %v6487 = vpack.c.bf16 %v6486, %v6485
    %6488 = vmatpush.bf16.msra.mxu0 %v2991
    %6489 = vmatpush.bf16.msra.mxu0 %v2988
    %6490 = vmatpush.bf16.msra.mxu0 %v2985
    %6491 = vmatpush.bf16.msra.mxu0 %v2982
    %6492 = vmatpush.bf16.msra.mxu0 %v2979
    %6493 = vmatpush.bf16.msra.mxu0 %v2976
    %6494 = vmatpush.bf16.msra.mxu0 %v2973
    %6495 = vmatpush.bf16.msra.mxu0 %v2970
    %6496 = vmatmul.bf16.gmra.mxu0 %v5944
    %v6497 = vpop.f32.mrf.mxu0
    %v6498 = vadd.f32 %v2884, %v6497
    %v6499 = vpop.f32.mrf.mxu0
    %v6500 = vadd.f32 %v2884, %v6499
    %6501 = vdwg.mxu0
    %6502 = vmatpush.bf16.msra.mxu0 %v2992
    %6503 = vmatpush.bf16.msra.mxu0 %v2989
    %6504 = vmatpush.bf16.msra.mxu0 %v2986
    %6505 = vmatpush.bf16.msra.mxu0 %v2983
    %6506 = vmatpush.bf16.msra.mxu0 %v2980
    %6507 = vmatpush.bf16.msra.mxu0 %v2977
    %6508 = vmatpush.bf16.msra.mxu0 %v2974
    %6509 = vmatpush.bf16.msra.mxu0 %v2971
    %6510 = vmatmul.bf16.gmra.mxu0 %v5944
    %v6511 = vpop.f32.mrf.mxu0
    %v6512 = vadd.f32 %v2885, %v6511
    %v6513 = vpop.f32.mrf.mxu0
    %v6514 = vadd.f32 %v2885, %v6513
    %6515 = vdwg.mxu0
    %6516 = vmatpush.bf16.msra.mxu0 %v2993
    %6517 = vmatpush.bf16.msra.mxu0 %v2990
    %6518 = vmatpush.bf16.msra.mxu0 %v2987
    %6519 = vmatpush.bf16.msra.mxu0 %v2984
    %6520 = vmatpush.bf16.msra.mxu0 %v2981
    %6521 = vmatpush.bf16.msra.mxu0 %v2978
    %6522 = vmatpush.bf16.msra.mxu0 %v2975
    %6523 = vmatpush.bf16.msra.mxu0 %v2972
    %6524 = vmatmul.bf16.gmra.mxu0 %v5944
    %v6525 = vpop.f32.mrf.mxu0
    %v6526 = vadd.f32 %v2886, %v6525
    %v6527 = vpop.f32.mrf.mxu0
    %v6528 = vadd.f32 %v2886, %v6527
    %6529 = vdwg.mxu0
    %v6530 = vpack.c.bf16 %v6125, %v6124
    %6531 = vmatpush.bf16.msra.mxu0 %v3193
    %6532 = vmatpush.bf16.msra.mxu0 %v3190
    %6533 = vmatpush.bf16.msra.mxu0 %v3187
    %6534 = vmatpush.bf16.msra.mxu0 %v3184
    %6535 = vmatpush.bf16.msra.mxu0 %v3181
    %6536 = vmatpush.bf16.msra.mxu0 %v3178
    %6537 = vmatpush.bf16.msra.mxu0 %v3175
    %6538 = vmatpush.bf16.msra.mxu0 %v3172
    %6539 = vmatmul.bf16.gmra.mxu0 %v6530
    %v6540 = vpop.f32.mrf.mxu0
    %v6541 = vadd.f32 0.0, %v6540
    %v6542 = vpop.f32.mrf.mxu0
    %v6543 = vadd.f32 0.0, %v6542
    %6544 = vdwg.mxu0
    %6545 = vmatpush.bf16.msra.mxu0 %v3194
    %6546 = vmatpush.bf16.msra.mxu0 %v3191
    %6547 = vmatpush.bf16.msra.mxu0 %v3188
    %6548 = vmatpush.bf16.msra.mxu0 %v3185
    %6549 = vmatpush.bf16.msra.mxu0 %v3182
    %6550 = vmatpush.bf16.msra.mxu0 %v3179
    %6551 = vmatpush.bf16.msra.mxu0 %v3176
    %6552 = vmatpush.bf16.msra.mxu0 %v3173
    %6553 = vmatmul.bf16.gmra.mxu0 %v6530
    %v6554 = vpop.f32.mrf.mxu0
    %v6555 = vadd.f32 0.0, %v6554
    %v6556 = vpop.f32.mrf.mxu0
    %v6557 = vadd.f32 0.0, %v6556
    %6558 = vdwg.mxu0
    %6559 = vmatpush.bf16.msra.mxu0 %v3195
    %6560 = vmatpush.bf16.msra.mxu0 %v3192
    %6561 = vmatpush.bf16.msra.mxu0 %v3189
    %6562 = vmatpush.bf16.msra.mxu0 %v3186
    %6563 = vmatpush.bf16.msra.mxu0 %v3183
    %6564 = vmatpush.bf16.msra.mxu0 %v3180
    %6565 = vmatpush.bf16.msra.mxu0 %v3177
    %6566 = vmatpush.bf16.msra.mxu0 %v3174
    %6567 = vmatmul.bf16.gmra.mxu0 %v6530
    %v6568 = vpop.f32.mrf.mxu0
    %v6569 = vadd.f32 0.0, %v6568
    %v6570 = vpop.f32.mrf.mxu0
    %v6571 = vadd.f32 0.0, %v6570
    %6572 = vdwg.mxu0
    %v6573 = vadd.f32 %v6498, %v6541
    %v6574 = vadd.f32 %v6500, %v6543
    %v6575 = vxor.u32 %v6573, 2147483648
    %v6576 = vxor.u32 %v6574, 2147483648
    %v6577 = vmul.f32 %v6575, 1.442695
    %v6578 = vpow.pop %v6577
    %v6579 = vmul.f32 %v6576, 1.442695
    %v6580 = vpow.pop %v6579
    %v6581 = vadd.f32 %v6578, 1.0
    %v6582 = vadd.f32 %v6580, 1.0
    %v6583 = vrcp.pop %v6581
    %v6584 = vmul.f32 %v6581, %v6583
    %v6585 = vsub.f32 1.0, %v6584
    %v6586 = vmul.f32 %v6583, %v6585
    %v6587 = vadd.f32 %v6583, %v6586
    %vm6588 = vweird.f32 %v6581
    %vm6589 = vweird.f32 %v6583
    %vm6590 = vmor %vm6588, %vm6589
    %v6591 = vsel %vm6590, %v6583, %v6587
    %v6592 = vand.u32 2147483647, %v6581
    %vm6593 = vcmp.eq.f32.partialorder %v6592, 8.507059e+37
    %v6594 = vand.u32 %v6581, 2147483648
    %v6595 = vor.u32 1.1754944e-38, %v6594
    %v6596 = vsel %vm6593, %v6595, %v6591
    %v6597 = vmul.f32 1.0, %v6596
    %v6598 = vrcp.pop %v6582
    %v6599 = vmul.f32 %v6582, %v6598
    %v6600 = vsub.f32 1.0, %v6599
    %v6601 = vmul.f32 %v6598, %v6600
    %v6602 = vadd.f32 %v6598, %v6601
    %vm6603 = vweird.f32 %v6582
    %vm6604 = vweird.f32 %v6598
    %vm6605 = vmor %vm6603, %vm6604
    %v6606 = vsel %vm6605, %v6598, %v6602
    %v6607 = vand.u32 2147483647, %v6582
    %vm6608 = vcmp.eq.f32.partialorder %v6607, 8.507059e+37
    %v6609 = vand.u32 %v6582, 2147483648
    %v6610 = vor.u32 1.1754944e-38, %v6609
    %v6611 = vsel %vm6608, %v6610, %v6606
    %v6612 = vmul.f32 1.0, %v6611
    %v6613 = vadd.f32 %v6512, %v6555
    %v6614 = vadd.f32 %v6514, %v6557
    %v6615 = vxor.u32 %v6613, 2147483648
    %v6616 = vxor.u32 %v6614, 2147483648
    %v6617 = vmul.f32 %v6615, 1.442695
    %v6618 = vpow.pop %v6617
    %v6619 = vmul.f32 %v6616, 1.442695
    %v6620 = vpow.pop %v6619
    %v6621 = vadd.f32 %v6618, 1.0
    %v6622 = vadd.f32 %v6620, 1.0
    %v6623 = vrcp.pop %v6621
    %v6624 = vmul.f32 %v6621, %v6623
    %v6625 = vsub.f32 1.0, %v6624
    %v6626 = vmul.f32 %v6623, %v6625
    %v6627 = vadd.f32 %v6623, %v6626
    %vm6628 = vweird.f32 %v6621
    %vm6629 = vweird.f32 %v6623
    %vm6630 = vmor %vm6628, %vm6629
    %v6631 = vsel %vm6630, %v6623, %v6627
    %v6632 = vand.u32 2147483647, %v6621
    %vm6633 = vcmp.eq.f32.partialorder %v6632, 8.507059e+37
    %v6634 = vand.u32 %v6621, 2147483648
    %v6635 = vor.u32 1.1754944e-38, %v6634
    %v6636 = vsel %vm6633, %v6635, %v6631
    %v6637 = vmul.f32 1.0, %v6636
    %v6638 = vrcp.pop %v6622
    %v6639 = vmul.f32 %v6622, %v6638
    %v6640 = vsub.f32 1.0, %v6639
    %v6641 = vmul.f32 %v6638, %v6640
    %v6642 = vadd.f32 %v6638, %v6641
    %vm6643 = vweird.f32 %v6622
    %vm6644 = vweird.f32 %v6638
    %vm6645 = vmor %vm6643, %vm6644
    %v6646 = vsel %vm6645, %v6638, %v6642
    %v6647 = vand.u32 2147483647, %v6622
    %vm6648 = vcmp.eq.f32.partialorder %v6647, 8.507059e+37
    %v6649 = vand.u32 %v6622, 2147483648
    %v6650 = vor.u32 1.1754944e-38, %v6649
    %v6651 = vsel %vm6648, %v6650, %v6646
    %v6652 = vmul.f32 1.0, %v6651
    %v6653 = vadd.f32 %v6569, %v3344
    %v6654 = vadd.f32 %v6571, %v3344
    %v6655 = vmul.f32 %v6597, %v6653
    %v6656 = vmul.f32 %v6612, %v6654
    %v6657 = vadd.f32 %v6526, %v6655
    %v6658 = vadd.f32 %v6528, %v6656
    %v6659 = vtanh.pop %v6657
    %v6660 = vtanh.pop %v6658
    %v6661 = vsub.f32 1.0, %v6637
    %v6662 = vsub.f32 1.0, %v6652
    %v6663 = vmul.f32 %v6661, %v6659
    %v6664 = vmul.f32 %v6662, %v6660
    %v6665 = vmul.f32 %v6637, %v6124
    %v6666 = vmul.f32 %v6652, %v6125
    %v6667 = vadd.f32 %v6663, %v6665
    %v6668 = vadd.f32 %v6664, %v6666
    %6669 = vmatpush.bf16.msra.mxu0 %v1968
    %6670 = vmatpush.bf16.msra.mxu0 %v1965
    %6671 = vmatpush.bf16.msra.mxu0 %v1962
    %6672 = vmatpush.bf16.msra.mxu0 %v1959
    %6673 = vmatpush.bf16.msra.mxu0 %v1956
    %6674 = vmatpush.bf16.msra.mxu0 %v1953
    %6675 = vmatpush.bf16.msra.mxu0 %v1950
    %6676 = vmatpush.bf16.msra.mxu0 %v1947
    %6677 = vmatmul.bf16.gmra.mxu0 %v6306
    %v6678 = vpop.f32.mrf.mxu0
    %v6679 = vadd.f32 %v1861, %v6678
    %v6680 = vpop.f32.mrf.mxu0
    %v6681 = vadd.f32 %v1861, %v6680
    %6682 = vdwg.mxu0
    %6683 = vmatpush.bf16.msra.mxu0 %v1969
    %6684 = vmatpush.bf16.msra.mxu0 %v1966
    %6685 = vmatpush.bf16.msra.mxu0 %v1963
    %6686 = vmatpush.bf16.msra.mxu0 %v1960
    %6687 = vmatpush.bf16.msra.mxu0 %v1957
    %6688 = vmatpush.bf16.msra.mxu0 %v1954
    %6689 = vmatpush.bf16.msra.mxu0 %v1951
    %6690 = vmatpush.bf16.msra.mxu0 %v1948
    %6691 = vmatmul.bf16.gmra.mxu0 %v6306
    %v6692 = vpop.f32.mrf.mxu0
    %v6693 = vadd.f32 %v1862, %v6692
    %v6694 = vpop.f32.mrf.mxu0
    %v6695 = vadd.f32 %v1862, %v6694
    %6696 = vdwg.mxu0
    %6697 = vmatpush.bf16.msra.mxu0 %v1970
    %6698 = vmatpush.bf16.msra.mxu0 %v1967
    %6699 = vmatpush.bf16.msra.mxu0 %v1964
    %6700 = vmatpush.bf16.msra.mxu0 %v1961
    %6701 = vmatpush.bf16.msra.mxu0 %v1958
    %6702 = vmatpush.bf16.msra.mxu0 %v1955
    %6703 = vmatpush.bf16.msra.mxu0 %v1952
    %6704 = vmatpush.bf16.msra.mxu0 %v1949
    %6705 = vmatmul.bf16.gmra.mxu0 %v6306
    %v6706 = vpop.f32.mrf.mxu0
    %v6707 = vadd.f32 %v1863, %v6706
    %v6708 = vpop.f32.mrf.mxu0
    %v6709 = vadd.f32 %v1863, %v6708
    %6710 = vdwg.mxu0
    %6711 = vmatpush.bf16.msra.mxu0 %v2170
    %6712 = vmatpush.bf16.msra.mxu0 %v2167
    %6713 = vmatpush.bf16.msra.mxu0 %v2164
    %6714 = vmatpush.bf16.msra.mxu0 %v2161
    %6715 = vmatpush.bf16.msra.mxu0 %v2158
    %6716 = vmatpush.bf16.msra.mxu0 %v2155
    %6717 = vmatpush.bf16.msra.mxu0 %v2152
    %6718 = vmatpush.bf16.msra.mxu0 %v2149
    %6719 = vmatmul.bf16.gmra.mxu0 %v6487
    %v6720 = vpop.f32.mrf.mxu0
    %v6721 = vadd.f32 0.0, %v6720
    %v6722 = vpop.f32.mrf.mxu0
    %v6723 = vadd.f32 0.0, %v6722
    %6724 = vdwg.mxu0
    %6725 = vmatpush.bf16.msra.mxu0 %v2171
    %6726 = vmatpush.bf16.msra.mxu0 %v2168
    %6727 = vmatpush.bf16.msra.mxu0 %v2165
    %6728 = vmatpush.bf16.msra.mxu0 %v2162
    %6729 = vmatpush.bf16.msra.mxu0 %v2159
    %6730 = vmatpush.bf16.msra.mxu0 %v2156
    %6731 = vmatpush.bf16.msra.mxu0 %v2153
    %6732 = vmatpush.bf16.msra.mxu0 %v2150
    %6733 = vmatmul.bf16.gmra.mxu0 %v6487
    %v6734 = vpop.f32.mrf.mxu0
    %v6735 = vadd.f32 0.0, %v6734
    %v6736 = vpop.f32.mrf.mxu0
    %v6737 = vadd.f32 0.0, %v6736
    %6738 = vdwg.mxu0
    %6739 = vmatpush.bf16.msra.mxu0 %v2172
    %6740 = vmatpush.bf16.msra.mxu0 %v2169
    %6741 = vmatpush.bf16.msra.mxu0 %v2166
    %6742 = vmatpush.bf16.msra.mxu0 %v2163
    %6743 = vmatpush.bf16.msra.mxu0 %v2160
    %6744 = vmatpush.bf16.msra.mxu0 %v2157
    %6745 = vmatpush.bf16.msra.mxu0 %v2154
    %6746 = vmatpush.bf16.msra.mxu0 %v2151
    %6747 = vmatmul.bf16.gmra.mxu0 %v6487
    %v6748 = vpop.f32.mrf.mxu0
    %v6749 = vadd.f32 0.0, %v6748
    %v6750 = vpop.f32.mrf.mxu0
    %v6751 = vadd.f32 0.0, %v6750
    %6752 = vdwg.mxu0
    %v6753 = vadd.f32 %v6679, %v6721
    %v6754 = vadd.f32 %v6681, %v6723
    %v6755 = vxor.u32 %v6753, 2147483648
    %v6756 = vxor.u32 %v6754, 2147483648
    %v6757 = vmul.f32 %v6755, 1.442695
    %v6758 = vpow.pop %v6757
    %v6759 = vmul.f32 %v6756, 1.442695
    %v6760 = vpow.pop %v6759
    %v6761 = vadd.f32 %v6758, 1.0
    %v6762 = vadd.f32 %v6760, 1.0
    %v6763 = vrcp.pop %v6761
    %v6764 = vmul.f32 %v6761, %v6763
    %v6765 = vsub.f32 1.0, %v6764
    %v6766 = vmul.f32 %v6763, %v6765
    %v6767 = vadd.f32 %v6763, %v6766
    %vm6768 = vweird.f32 %v6761
    %vm6769 = vweird.f32 %v6763
    %vm6770 = vmor %vm6768, %vm6769
    %v6771 = vsel %vm6770, %v6763, %v6767
    %v6772 = vand.u32 2147483647, %v6761
    %vm6773 = vcmp.eq.f32.partialorder %v6772, 8.507059e+37
    %v6774 = vand.u32 %v6761, 2147483648
    %v6775 = vor.u32 1.1754944e-38, %v6774
    %v6776 = vsel %vm6773, %v6775, %v6771
    %v6777 = vmul.f32 1.0, %v6776
    %v6778 = vrcp.pop %v6762
    %v6779 = vmul.f32 %v6762, %v6778
    %v6780 = vsub.f32 1.0, %v6779
    %v6781 = vmul.f32 %v6778, %v6780
    %v6782 = vadd.f32 %v6778, %v6781
    %vm6783 = vweird.f32 %v6762
    %vm6784 = vweird.f32 %v6778
    %vm6785 = vmor %vm6783, %vm6784
    %v6786 = vsel %vm6785, %v6778, %v6782
    %v6787 = vand.u32 2147483647, %v6762
    %vm6788 = vcmp.eq.f32.partialorder %v6787, 8.507059e+37
    %v6789 = vand.u32 %v6762, 2147483648
    %v6790 = vor.u32 1.1754944e-38, %v6789
    %v6791 = vsel %vm6788, %v6790, %v6786
    %v6792 = vmul.f32 1.0, %v6791
    %v6793 = vadd.f32 %v6693, %v6735
    %v6794 = vadd.f32 %v6695, %v6737
    %v6795 = vxor.u32 %v6793, 2147483648
    %v6796 = vxor.u32 %v6794, 2147483648
    %v6797 = vmul.f32 %v6795, 1.442695
    %v6798 = vpow.pop %v6797
    %v6799 = vmul.f32 %v6796, 1.442695
    %v6800 = vpow.pop %v6799
    %v6801 = vadd.f32 %v6798, 1.0
    %v6802 = vadd.f32 %v6800, 1.0
    %v6803 = vrcp.pop %v6801
    %v6804 = vmul.f32 %v6801, %v6803
    %v6805 = vsub.f32 1.0, %v6804
    %v6806 = vmul.f32 %v6803, %v6805
    %v6807 = vadd.f32 %v6803, %v6806
    %vm6808 = vweird.f32 %v6801
    %vm6809 = vweird.f32 %v6803
    %vm6810 = vmor %vm6808, %vm6809
    %v6811 = vsel %vm6810, %v6803, %v6807
    %v6812 = vand.u32 2147483647, %v6801
    %vm6813 = vcmp.eq.f32.partialorder %v6812, 8.507059e+37
    %v6814 = vand.u32 %v6801, 2147483648
    %v6815 = vor.u32 1.1754944e-38, %v6814
    %v6816 = vsel %vm6813, %v6815, %v6811
    %v6817 = vmul.f32 1.0, %v6816
    %v6818 = vrcp.pop %v6802
    %v6819 = vmul.f32 %v6802, %v6818
    %v6820 = vsub.f32 1.0, %v6819
    %v6821 = vmul.f32 %v6818, %v6820
    %v6822 = vadd.f32 %v6818, %v6821
    %vm6823 = vweird.f32 %v6802
    %vm6824 = vweird.f32 %v6818
    %vm6825 = vmor %vm6823, %vm6824
    %v6826 = vsel %vm6825, %v6818, %v6822
    %v6827 = vand.u32 2147483647, %v6802
    %vm6828 = vcmp.eq.f32.partialorder %v6827, 8.507059e+37
    %v6829 = vand.u32 %v6802, 2147483648
    %v6830 = vor.u32 1.1754944e-38, %v6829
    %v6831 = vsel %vm6828, %v6830, %v6826
    %v6832 = vmul.f32 1.0, %v6831
    %v6833 = vadd.f32 %v6749, %v2321
    %v6834 = vadd.f32 %v6751, %v2321
    %v6835 = vmul.f32 %v6777, %v6833
    %v6836 = vmul.f32 %v6792, %v6834
    %v6837 = vadd.f32 %v6707, %v6835
    %v6838 = vadd.f32 %v6709, %v6836
    %v6839 = vtanh.pop %v6837
    %v6840 = vtanh.pop %v6838
    %v6841 = vsub.f32 1.0, %v6817
    %v6842 = vsub.f32 1.0, %v6832
    %v6843 = vmul.f32 %v6841, %v6839
    %v6844 = vmul.f32 %v6842, %v6840
    %v6845 = vmul.f32 %v6817, %v6485
    %v6846 = vmul.f32 %v6832, %v6486
    %v6847 = vadd.f32 %v6843, %v6845
    %v6848 = vadd.f32 %v6844, %v6846
    %v6849 = vpack.c.bf16 %v6848, %v6847
    %6850 = vmatpush.bf16.msra.mxu0 %v2991
    %6851 = vmatpush.bf16.msra.mxu0 %v2988
    %6852 = vmatpush.bf16.msra.mxu0 %v2985
    %6853 = vmatpush.bf16.msra.mxu0 %v2982
    %6854 = vmatpush.bf16.msra.mxu0 %v2979
    %6855 = vmatpush.bf16.msra.mxu0 %v2976
    %6856 = vmatpush.bf16.msra.mxu0 %v2973
    %6857 = vmatpush.bf16.msra.mxu0 %v2970
    %6858 = vmatmul.bf16.gmra.mxu0 %v6487
    %v6859 = vpop.f32.mrf.mxu0
    %v6860 = vadd.f32 %v2884, %v6859
    %v6861 = vpop.f32.mrf.mxu0
    %v6862 = vadd.f32 %v2884, %v6861
    %6863 = vdwg.mxu0
    %6864 = vmatpush.bf16.msra.mxu0 %v2992
    %6865 = vmatpush.bf16.msra.mxu0 %v2989
    %6866 = vmatpush.bf16.msra.mxu0 %v2986
    %6867 = vmatpush.bf16.msra.mxu0 %v2983
    %6868 = vmatpush.bf16.msra.mxu0 %v2980
    %6869 = vmatpush.bf16.msra.mxu0 %v2977
    %6870 = vmatpush.bf16.msra.mxu0 %v2974
    %6871 = vmatpush.bf16.msra.mxu0 %v2971
    %6872 = vmatmul.bf16.gmra.mxu0 %v6487
    %v6873 = vpop.f32.mrf.mxu0
    %v6874 = vadd.f32 %v2885, %v6873
    %v6875 = vpop.f32.mrf.mxu0
    %v6876 = vadd.f32 %v2885, %v6875
    %6877 = vdwg.mxu0
    %6878 = vmatpush.bf16.msra.mxu0 %v2993
    %6879 = vmatpush.bf16.msra.mxu0 %v2990
    %6880 = vmatpush.bf16.msra.mxu0 %v2987
    %6881 = vmatpush.bf16.msra.mxu0 %v2984
    %6882 = vmatpush.bf16.msra.mxu0 %v2981
    %6883 = vmatpush.bf16.msra.mxu0 %v2978
    %6884 = vmatpush.bf16.msra.mxu0 %v2975
    %6885 = vmatpush.bf16.msra.mxu0 %v2972
    %6886 = vmatmul.bf16.gmra.mxu0 %v6487
    %v6887 = vpop.f32.mrf.mxu0
    %v6888 = vadd.f32 %v2886, %v6887
    %v6889 = vpop.f32.mrf.mxu0
    %v6890 = vadd.f32 %v2886, %v6889
    %6891 = vdwg.mxu0
    %v6892 = vpack.c.bf16 %v6668, %v6667
    %6893 = vmatpush.bf16.msra.mxu0 %v3193
    %6894 = vmatpush.bf16.msra.mxu0 %v3190
    %6895 = vmatpush.bf16.msra.mxu0 %v3187
    %6896 = vmatpush.bf16.msra.mxu0 %v3184
    %6897 = vmatpush.bf16.msra.mxu0 %v3181
    %6898 = vmatpush.bf16.msra.mxu0 %v3178
    %6899 = vmatpush.bf16.msra.mxu0 %v3175
    %6900 = vmatpush.bf16.msra.mxu0 %v3172
    %6901 = vmatmul.bf16.gmra.mxu0 %v6892
    %v6902 = vpop.f32.mrf.mxu0
    %v6903 = vadd.f32 0.0, %v6902
    %v6904 = vpop.f32.mrf.mxu0
    %v6905 = vadd.f32 0.0, %v6904
    %6906 = vdwg.mxu0
    %6907 = vmatpush.bf16.msra.mxu0 %v3194
    %6908 = vmatpush.bf16.msra.mxu0 %v3191
    %6909 = vmatpush.bf16.msra.mxu0 %v3188
    %6910 = vmatpush.bf16.msra.mxu0 %v3185
    %6911 = vmatpush.bf16.msra.mxu0 %v3182
    %6912 = vmatpush.bf16.msra.mxu0 %v3179
    %6913 = vmatpush.bf16.msra.mxu0 %v3176
    %6914 = vmatpush.bf16.msra.mxu0 %v3173
    %6915 = vmatmul.bf16.gmra.mxu0 %v6892
    %v6916 = vpop.f32.mrf.mxu0
    %v6917 = vadd.f32 0.0, %v6916
    %v6918 = vpop.f32.mrf.mxu0
    %v6919 = vadd.f32 0.0, %v6918
    %6920 = vdwg.mxu0
    %6921 = vmatpush.bf16.msra.mxu0 %v3195
    %6922 = vmatpush.bf16.msra.mxu0 %v3192
    %6923 = vmatpush.bf16.msra.mxu0 %v3189
    %6924 = vmatpush.bf16.msra.mxu0 %v3186
    %6925 = vmatpush.bf16.msra.mxu0 %v3183
    %6926 = vmatpush.bf16.msra.mxu0 %v3180
    %6927 = vmatpush.bf16.msra.mxu0 %v3177
    %6928 = vmatpush.bf16.msra.mxu0 %v3174
    %6929 = vmatmul.bf16.gmra.mxu0 %v6892
    %v6930 = vpop.f32.mrf.mxu0
    %v6931 = vadd.f32 0.0, %v6930
    %v6932 = vpop.f32.mrf.mxu0
    %v6933 = vadd.f32 0.0, %v6932
    %6934 = vdwg.mxu0
    %v6935 = vadd.f32 %v6860, %v6903
    %v6936 = vadd.f32 %v6862, %v6905
    %v6937 = vxor.u32 %v6935, 2147483648
    %v6938 = vxor.u32 %v6936, 2147483648
    %v6939 = vmul.f32 %v6937, 1.442695
    %v6940 = vpow.pop %v6939
    %v6941 = vmul.f32 %v6938, 1.442695
    %v6942 = vpow.pop %v6941
    %v6943 = vadd.f32 %v6940, 1.0
    %v6944 = vadd.f32 %v6942, 1.0
    %v6945 = vrcp.pop %v6943
    %v6946 = vmul.f32 %v6943, %v6945
    %v6947 = vsub.f32 1.0, %v6946
    %v6948 = vmul.f32 %v6945, %v6947
    %v6949 = vadd.f32 %v6945, %v6948
    %vm6950 = vweird.f32 %v6943
    %vm6951 = vweird.f32 %v6945
    %vm6952 = vmor %vm6950, %vm6951
    %v6953 = vsel %vm6952, %v6945, %v6949
    %v6954 = vand.u32 2147483647, %v6943
    %vm6955 = vcmp.eq.f32.partialorder %v6954, 8.507059e+37
    %v6956 = vand.u32 %v6943, 2147483648
    %v6957 = vor.u32 1.1754944e-38, %v6956
    %v6958 = vsel %vm6955, %v6957, %v6953
    %v6959 = vmul.f32 1.0, %v6958
    %v6960 = vrcp.pop %v6944
    %v6961 = vmul.f32 %v6944, %v6960
    %v6962 = vsub.f32 1.0, %v6961
    %v6963 = vmul.f32 %v6960, %v6962
    %v6964 = vadd.f32 %v6960, %v6963
    %vm6965 = vweird.f32 %v6944
    %vm6966 = vweird.f32 %v6960
    %vm6967 = vmor %vm6965, %vm6966
    %v6968 = vsel %vm6967, %v6960, %v6964
    %v6969 = vand.u32 2147483647, %v6944
    %vm6970 = vcmp.eq.f32.partialorder %v6969, 8.507059e+37
    %v6971 = vand.u32 %v6944, 2147483648
    %v6972 = vor.u32 1.1754944e-38, %v6971
    %v6973 = vsel %vm6970, %v6972, %v6968
    %v6974 = vmul.f32 1.0, %v6973
    %v6975 = vadd.f32 %v6874, %v6917
    %v6976 = vadd.f32 %v6876, %v6919
    %v6977 = vxor.u32 %v6975, 2147483648
    %v6978 = vxor.u32 %v6976, 2147483648
    %v6979 = vmul.f32 %v6977, 1.442695
    %v6980 = vpow.pop %v6979
    %v6981 = vmul.f32 %v6978, 1.442695
    %v6982 = vpow.pop %v6981
    %v6983 = vadd.f32 %v6980, 1.0
    %v6984 = vadd.f32 %v6982, 1.0
    %v6985 = vrcp.pop %v6983
    %v6986 = vmul.f32 %v6983, %v6985
    %v6987 = vsub.f32 1.0, %v6986
    %v6988 = vmul.f32 %v6985, %v6987
    %v6989 = vadd.f32 %v6985, %v6988
    %vm6990 = vweird.f32 %v6983
    %vm6991 = vweird.f32 %v6985
    %vm6992 = vmor %vm6990, %vm6991
    %v6993 = vsel %vm6992, %v6985, %v6989
    %v6994 = vand.u32 2147483647, %v6983
    %vm6995 = vcmp.eq.f32.partialorder %v6994, 8.507059e+37
    %v6996 = vand.u32 %v6983, 2147483648
    %v6997 = vor.u32 1.1754944e-38, %v6996
    %v6998 = vsel %vm6995, %v6997, %v6993
    %v6999 = vmul.f32 1.0, %v6998
    %v7000 = vrcp.pop %v6984
    %v7001 = vmul.f32 %v6984, %v7000
    %v7002 = vsub.f32 1.0, %v7001
    %v7003 = vmul.f32 %v7000, %v7002
    %v7004 = vadd.f32 %v7000, %v7003
    %vm7005 = vweird.f32 %v6984
    %vm7006 = vweird.f32 %v7000
    %vm7007 = vmor %vm7005, %vm7006
    %v7008 = vsel %vm7007, %v7000, %v7004
    %v7009 = vand.u32 2147483647, %v6984
    %vm7010 = vcmp.eq.f32.partialorder %v7009, 8.507059e+37
    %v7011 = vand.u32 %v6984, 2147483648
    %v7012 = vor.u32 1.1754944e-38, %v7011
    %v7013 = vsel %vm7010, %v7012, %v7008
    %v7014 = vmul.f32 1.0, %v7013
    %v7015 = vadd.f32 %v6931, %v3344
    %v7016 = vadd.f32 %v6933, %v3344
    %v7017 = vmul.f32 %v6959, %v7015
    %v7018 = vmul.f32 %v6974, %v7016
    %v7019 = vadd.f32 %v6888, %v7017
    %v7020 = vadd.f32 %v6890, %v7018
    %v7021 = vtanh.pop %v7019
    %v7022 = vtanh.pop %v7020
    %v7023 = vsub.f32 1.0, %v6999
    %v7024 = vsub.f32 1.0, %v7014
    %v7025 = vmul.f32 %v7023, %v7021
    %v7026 = vmul.f32 %v7024, %v7022
    %v7027 = vmul.f32 %v6999, %v6667
    %v7028 = vmul.f32 %v7014, %v6668
    %v7029 = vadd.f32 %v7025, %v7027
    %v7030 = vadd.f32 %v7026, %v7028
    %7031 = vmatpush.bf16.msra.mxu0 %v2991
    %7032 = vmatpush.bf16.msra.mxu0 %v2988
    %7033 = vmatpush.bf16.msra.mxu0 %v2985
    %7034 = vmatpush.bf16.msra.mxu0 %v2982
    %7035 = vmatpush.bf16.msra.mxu0 %v2979
    %7036 = vmatpush.bf16.msra.mxu0 %v2976
    %7037 = vmatpush.bf16.msra.mxu0 %v2973
    %7038 = vmatpush.bf16.msra.mxu0 %v2970
    %7039 = vmatmul.bf16.gmra.mxu0 %v6849
    %v7040 = vpop.f32.mrf.mxu0
    %v7041 = vadd.f32 %v2884, %v7040
    %v7042 = vpop.f32.mrf.mxu0
    %v7043 = vadd.f32 %v2884, %v7042
    %7044 = vdwg.mxu0
    %7045 = vmatpush.bf16.msra.mxu0 %v2992
    %7046 = vmatpush.bf16.msra.mxu0 %v2989
    %7047 = vmatpush.bf16.msra.mxu0 %v2986
    %7048 = vmatpush.bf16.msra.mxu0 %v2983
    %7049 = vmatpush.bf16.msra.mxu0 %v2980
    %7050 = vmatpush.bf16.msra.mxu0 %v2977
    %7051 = vmatpush.bf16.msra.mxu0 %v2974
    %7052 = vmatpush.bf16.msra.mxu0 %v2971
    %7053 = vmatmul.bf16.gmra.mxu0 %v6849
    %v7054 = vpop.f32.mrf.mxu0
    %v7055 = vadd.f32 %v2885, %v7054
    %v7056 = vpop.f32.mrf.mxu0
    %v7057 = vadd.f32 %v2885, %v7056
    %7058 = vdwg.mxu0
    %7059 = vmatpush.bf16.msra.mxu0 %v2993
    %7060 = vmatpush.bf16.msra.mxu0 %v2990
    %7061 = vmatpush.bf16.msra.mxu0 %v2987
    %7062 = vmatpush.bf16.msra.mxu0 %v2984
    %7063 = vmatpush.bf16.msra.mxu0 %v2981
    %7064 = vmatpush.bf16.msra.mxu0 %v2978
    %7065 = vmatpush.bf16.msra.mxu0 %v2975
    %7066 = vmatpush.bf16.msra.mxu0 %v2972
    %7067 = vmatmul.bf16.gmra.mxu0 %v6849
    %v7068 = vpop.f32.mrf.mxu0
    %v7069 = vadd.f32 %v2886, %v7068
    %v7070 = vpop.f32.mrf.mxu0
    %v7071 = vadd.f32 %v2886, %v7070
    %7072 = vdwg.mxu0
    %v7073 = vpack.c.bf16 %v7030, %v7029
    %7074 = vmatpush.bf16.msra.mxu0 %v3193
    %7075 = vmatpush.bf16.msra.mxu0 %v3190
    %7076 = vmatpush.bf16.msra.mxu0 %v3187
    %7077 = vmatpush.bf16.msra.mxu0 %v3184
    %7078 = vmatpush.bf16.msra.mxu0 %v3181
    %7079 = vmatpush.bf16.msra.mxu0 %v3178
    %7080 = vmatpush.bf16.msra.mxu0 %v3175
    %7081 = vmatpush.bf16.msra.mxu0 %v3172
    %7082 = vmatmul.bf16.gmra.mxu0 %v7073
    %v7083 = vpop.f32.mrf.mxu0
    %v7084 = vadd.f32 0.0, %v7083
    %v7085 = vpop.f32.mrf.mxu0
    %v7086 = vadd.f32 0.0, %v7085
    %7087 = vdwg.mxu0
    %7088 = vmatpush.bf16.msra.mxu0 %v3194
    %7089 = vmatpush.bf16.msra.mxu0 %v3191
    %7090 = vmatpush.bf16.msra.mxu0 %v3188
    %7091 = vmatpush.bf16.msra.mxu0 %v3185
    %7092 = vmatpush.bf16.msra.mxu0 %v3182
    %7093 = vmatpush.bf16.msra.mxu0 %v3179
    %7094 = vmatpush.bf16.msra.mxu0 %v3176
    %7095 = vmatpush.bf16.msra.mxu0 %v3173
    %7096 = vmatmul.bf16.gmra.mxu0 %v7073
    %v7097 = vpop.f32.mrf.mxu0
    %v7098 = vadd.f32 0.0, %v7097
    %v7099 = vpop.f32.mrf.mxu0
    %v7100 = vadd.f32 0.0, %v7099
    %7101 = vdwg.mxu0
    %7102 = vmatpush.bf16.msra.mxu0 %v3195
    %7103 = vmatpush.bf16.msra.mxu0 %v3192
    %7104 = vmatpush.bf16.msra.mxu0 %v3189
    %7105 = vmatpush.bf16.msra.mxu0 %v3186
    %7106 = vmatpush.bf16.msra.mxu0 %v3183
    %7107 = vmatpush.bf16.msra.mxu0 %v3180
    %7108 = vmatpush.bf16.msra.mxu0 %v3177
    %7109 = vmatpush.bf16.msra.mxu0 %v3174
    %7110 = vmatmul.bf16.gmra.mxu0 %v7073
    %v7111 = vpop.f32.mrf.mxu0
    %v7112 = vadd.f32 0.0, %v7111
    %v7113 = vpop.f32.mrf.mxu0
    %v7114 = vadd.f32 0.0, %v7113
    %7115 = vdwg.mxu0
    %v7116 = vadd.f32 %v7041, %v7084
    %v7117 = vadd.f32 %v7043, %v7086
    %v7118 = vxor.u32 %v7116, 2147483648
    %v7119 = vxor.u32 %v7117, 2147483648
    %v7120 = vmul.f32 %v7118, 1.442695
    %v7121 = vpow.pop %v7120
    %v7122 = vmul.f32 %v7119, 1.442695
    %v7123 = vpow.pop %v7122
    %v7124 = vadd.f32 %v7121, 1.0
    %v7125 = vadd.f32 %v7123, 1.0
    %v7126 = vrcp.pop %v7124
    %v7127 = vmul.f32 %v7124, %v7126
    %v7128 = vsub.f32 1.0, %v7127
    %v7129 = vmul.f32 %v7126, %v7128
    %v7130 = vadd.f32 %v7126, %v7129
    %vm7131 = vweird.f32 %v7124
    %vm7132 = vweird.f32 %v7126
    %vm7133 = vmor %vm7131, %vm7132
    %v7134 = vsel %vm7133, %v7126, %v7130
    %v7135 = vand.u32 2147483647, %v7124
    %vm7136 = vcmp.eq.f32.partialorder %v7135, 8.507059e+37
    %v7137 = vand.u32 %v7124, 2147483648
    %v7138 = vor.u32 1.1754944e-38, %v7137
    %v7139 = vsel %vm7136, %v7138, %v7134
    %v7140 = vmul.f32 1.0, %v7139
    %v7141 = vrcp.pop %v7125
    %v7142 = vmul.f32 %v7125, %v7141
    %v7143 = vsub.f32 1.0, %v7142
    %v7144 = vmul.f32 %v7141, %v7143
    %v7145 = vadd.f32 %v7141, %v7144
    %vm7146 = vweird.f32 %v7125
    %vm7147 = vweird.f32 %v7141
    %vm7148 = vmor %vm7146, %vm7147
    %v7149 = vsel %vm7148, %v7141, %v7145
    %v7150 = vand.u32 2147483647, %v7125
    %vm7151 = vcmp.eq.f32.partialorder %v7150, 8.507059e+37
    %v7152 = vand.u32 %v7125, 2147483648
    %v7153 = vor.u32 1.1754944e-38, %v7152
    %v7154 = vsel %vm7151, %v7153, %v7149
    %v7155 = vmul.f32 1.0, %v7154
    %v7156 = vadd.f32 %v7055, %v7098
    %v7157 = vadd.f32 %v7057, %v7100
    %v7158 = vxor.u32 %v7156, 2147483648
    %v7159 = vxor.u32 %v7157, 2147483648
    %v7160 = vmul.f32 %v7158, 1.442695
    %v7161 = vpow.pop %v7160
    %v7162 = vmul.f32 %v7159, 1.442695
    %v7163 = vpow.pop %v7162
    %v7164 = vadd.f32 %v7161, 1.0
    %v7165 = vadd.f32 %v7163, 1.0
    %v7166 = vrcp.pop %v7164
    %v7167 = vmul.f32 %v7164, %v7166
    %v7168 = vsub.f32 1.0, %v7167
    %v7169 = vmul.f32 %v7166, %v7168
    %v7170 = vadd.f32 %v7166, %v7169
    %vm7171 = vweird.f32 %v7164
    %vm7172 = vweird.f32 %v7166
    %vm7173 = vmor %vm7171, %vm7172
    %v7174 = vsel %vm7173, %v7166, %v7170
    %v7175 = vand.u32 2147483647, %v7164
    %vm7176 = vcmp.eq.f32.partialorder %v7175, 8.507059e+37
    %v7177 = vand.u32 %v7164, 2147483648
    %v7178 = vor.u32 1.1754944e-38, %v7177
    %v7179 = vsel %vm7176, %v7178, %v7174
    %v7180 = vmul.f32 1.0, %v7179
    %v7181 = vrcp.pop %v7165
    %v7182 = vmul.f32 %v7165, %v7181
    %v7183 = vsub.f32 1.0, %v7182
    %v7184 = vmul.f32 %v7181, %v7183
    %v7185 = vadd.f32 %v7181, %v7184
    %vm7186 = vweird.f32 %v7165
    %vm7187 = vweird.f32 %v7181
    %vm7188 = vmor %vm7186, %vm7187
    %v7189 = vsel %vm7188, %v7181, %v7185
    %v7190 = vand.u32 2147483647, %v7165
    %vm7191 = vcmp.eq.f32.partialorder %v7190, 8.507059e+37
    %v7192 = vand.u32 %v7165, 2147483648
    %v7193 = vor.u32 1.1754944e-38, %v7192
    %v7194 = vsel %vm7191, %v7193, %v7189
    %v7195 = vmul.f32 1.0, %v7194
    %v7196 = vadd.f32 %v7112, %v3344
    %v7197 = vadd.f32 %v7114, %v3344
    %v7198 = vmul.f32 %v7140, %v7196
    %v7199 = vmul.f32 %v7155, %v7197
    %v7200 = vadd.f32 %v7069, %v7198
    %v7201 = vadd.f32 %v7071, %v7199
    %v7202 = vtanh.pop %v7200
    %v7203 = vtanh.pop %v7201
    %v7204 = vsub.f32 1.0, %v7180
    %v7205 = vsub.f32 1.0, %v7195
    %v7206 = vmul.f32 %v7204, %v7202
    %v7207 = vmul.f32 %v7205, %v7203
    %v7208 = vmul.f32 %v7180, %v7029
    %v7209 = vmul.f32 %v7195, %v7030
    %v7210 = vadd.f32 %v7206, %v7208
    %v7211 = vadd.f32 %v7207, %v7209
    %v7212 = vpack.c.bf16 %v7211, %v7210
    %v7213 = vld [vmem:[%s17] sm:$0xf]
    %v7214 = vld [vmem:[%s17 + $0x4] sm:$0xf]
    %v7215 = vld [vmem:[%s17 + $0x8] sm:$0xf]
    %v7216 = vld [vmem:[%s17 + $0xc] sm:$0xf]
    %v7217 = vld [vmem:[%s17 + $0x10] sm:$0xf]
    %v7218 = vld [vmem:[%s17 + $0x14] sm:$0xf]
    %v7219 = vld [vmem:[%s17 + $0x18] sm:$0xf]
    %v7220 = vld [vmem:[%s17 + $0x1c] sm:$0xf]
    %v7221 = vld [vmem:[%s17 + $0x20] sm:$0xf]
    %v7222 = vld [vmem:[%s17 + $0x24] sm:$0xf]
    %v7223 = vld [vmem:[%s17 + $0x28] sm:$0xf]
    %v7224 = vld [vmem:[%s17 + $0x2c] sm:$0xf]
    %v7225 = vld [vmem:[%s17 + $0x30] sm:$0xf]
    %v7226 = vld [vmem:[%s17 + $0x34] sm:$0xf]
    %v7227 = vld [vmem:[%s17 + $0x38] sm:$0xf]
    %v7228 = vld [vmem:[%s17 + $0x3c] sm:$0xf]
    %v7229 = vld [vmem:[%s18] sm:$0x1]
    %v7231 = vperm.slane %v7229, 0
    %v7249 = vunpack.c.l.b16 %v7213
    %v7250 = vunpack.c.l.b16 %v7214
    %v7251 = vunpack.c.l.b16 %v7215
    %v7252 = vunpack.c.l.b16 %v7216
    %v7253 = vunpack.c.l.b16 %v7217
    %v7254 = vunpack.c.l.b16 %v7218
    %v7255 = vunpack.c.l.b16 %v7219
    %v7256 = vunpack.c.l.b16 %v7220
    %v7257 = vunpack.c.l.b16 %v7221
    %v7258 = vunpack.c.l.b16 %v7222
    %v7259 = vunpack.c.l.b16 %v7223
    %v7260 = vunpack.c.l.b16 %v7224
    %v7261 = vunpack.c.l.b16 %v7225
    %v7262 = vunpack.c.l.b16 %v7226
    %v7263 = vunpack.c.l.b16 %v7227
    %v7264 = vunpack.c.l.b16 %v7228
    %v7265 = vpack.c.b16 %v7250, %v7249
    %v7266 = vpack.c.b16 %v7252, %v7251
    %v7267 = vpack.c.b16 %v7254, %v7253
    %v7268 = vpack.c.b16 %v7256, %v7255
    %v7269 = vpack.c.b16 %v7258, %v7257
    %v7270 = vpack.c.b16 %v7260, %v7259
    %v7271 = vpack.c.b16 %v7262, %v7261
    %v7272 = vpack.c.b16 %v7264, %v7263
    %7281 = vmatpush.bf16.msra.mxu0 %v7272
    %7282 = vmatpush.bf16.msra.mxu0 %v7271
    %7283 = vmatpush.bf16.msra.mxu0 %v7270
    %7284 = vmatpush.bf16.msra.mxu0 %v7269
    %7285 = vmatpush.bf16.msra.mxu0 %v7268
    %7286 = vmatpush.bf16.msra.mxu0 %v7267
    %7287 = vmatpush.bf16.msra.mxu0 %v7266
    %7288 = vmatpush.bf16.msra.mxu0 %v7265
    %7289 = vmatmul.bf16.gmra.mxu0 %v7212
    %v7290 = vpop.f32.mrf.mxu0
    %v7291 = vadd.f32 %v7231, %v7290
    %v7292 = vpop.f32.mrf.mxu0
    %v7293 = vadd.f32 %v7231, %v7292
    %7294 = vdwg.mxu0
    %7295 = vst [vmem:[#allocation21] sm:$0xff] %v7291
    %7296 = vst [vmem:[#allocation21 + $0x8] sm:$0xff] %v7293
    // Predicated region
    $region122: #{tpu_custom_call.1} parent=1 // pred_check
      _
    $region123: #{tpu_custom_call.1} parent=1 // pred_check_branch
      %7298 = sbr.rel (0) target = $region125
    $region124: #{tpu_custom_call.1} parent=1 // pred_region
      %7300 = vsyncadd [#allocation5], 0
      %s7301 = sshll.u32 [#allocation21], 4
      %s7302 = int_to_ptr.vmem [resolvable:$true] %s7301
      %s7303 = sshll.u32 %s19, 4
      %s7304 = int_to_ptr.hbm [resolvable:$true] %s7303
      %7309 = dma.vmem_to_hbm [thread:$0]  %s7302, 256, %s7304, [#allocation5], 128, 128, 8
    $region125: #{tpu_custom_call.1} parent=1 // pred_fallthru
      _
    // Predicated region
    $region126: #{tpu_custom_call.1} parent=1 // pred_check
      _
    $region127: #{tpu_custom_call.1} parent=1 // pred_check_branch
      %7311 = sbr.rel (0) target = $region129
    $region128: #{tpu_custom_call.1} parent=1 // pred_region
      %7313 = dma.done [#allocation5], 256
    $region129: #{tpu_custom_call.1} parent=1 // pred_fallthru
      _
    %7314 = vsyncpa [#allocation4], 1
    %7315 = vsyncpa [#allocation7], 1
    %7316 = vsyncpa [#allocation10], 1
    %7317 = vsyncpa [#allocation13], 1
    %7318 = vsyncpa [#allocation16], 1
    %7319 = vsyncpa [#allocation19], 1
    %7320 = vsyncpa [#allocation5], 1

</llo_original>
